<compile_context>
chip_gen: v6e
topology: v6e:2x2x1
jax: 0.10.0
libtpu: 0.0.40
codegen_flags: <defaults>
</compile_context>

<pallas_src>
import math

import jax
import jax.numpy as jnp
from jax.experimental import pallas as pl
from jax.experimental.pallas import tpu as pltpu

EPS = 1e-5          # torch InstanceNorm default eps
NEG_SLOPE = 0.01    # torch LeakyReLU default negative_slope

# ----------------------------- hyper-params ---------------------------------
DIM = 2
PFIELD = 32
PFIELD_OUT = 32
IN_CH = 3
OUT_CH = 3
CV = 6                         # out_channels_v
CK = 5                         # out_channels_k (== out_channels_q)
MT = 2                         # number of "heads"
TS = 4                         # self.ts (token spatial size)
PATCH = PFIELD // TS           # conv kernel == stride == 8
GRID = PFIELD // PATCH         # 4 tokens per side
NPOS = GRID ** DIM             # 16 tokens per sample
KDIM = IN_CH * PATCH * PATCH   # 192 flattened patch length
F_CH = MT * CV                 # 12 feature channels (res == '+')
NUPS = int(math.log2(PFIELD_OUT // TS))   # 3 upsample stages
assert NUPS == 3

# lane packing: LB samples * 16 token positions = 128 lanes per grid step.
# (LB=16 -> 256 lanes is an option on v6e/v7x when the batch allows.)
LB = 8
LANES = LB * NPOS              # 128

# padded row layout of the fused [k|v|q] patch-conv output: each head's
# k/v/q block starts on an 8-row boundary; pad rows have zero weight/bias.
QKV_ROWS = 48
K_OFF, V_OFF, Q_OFF = 0, 16, 32

# row counts of the three upsample stages (rows = out_channel * 4^stage)
RU1 = F_CH * 4      # 48
RU2 = F_CH * 16     # 192
RU3 = OUT_CH * 64   # 192
CHUNK = 64          # row chunk for stages 2/3 (== one stage-3 channel group)


# ----------------------------- fused kernel ----------------------------------
def _fused_kernel(xp_ref, wqkv_ref, bqkv_ref, mask_ref, seg_ref,
                  w1_ref, b1_ref, red1_ref, exp1_ref,
                  w2_ref, b2_ref, red2_ref, exp2_ref,
                  w3_ref, b3_ref, red3_ref, exp3_ref,
                  o_ref):
    f32 = jnp.float32
    bf16 = jnp.bfloat16
    seg = seg_ref[...]                      # (LANES, LANES) block-diag 1/16

    # ---- conv_k / conv_v / conv_q as one bf16 patch matmul (MXU) -----------
    kvq = (jnp.dot(wqkv_ref[...], xp_ref[0], preferred_element_type=f32)
           + bqkv_ref[...])                 # (48, LANES) f32; pad rows exactly 0

    # per-(sample, head) joint InstanceNorm over (C_valid, 16 token lanes)
    row = jax.lax.broadcasted_iota(jnp.int32, (8, LANES), 0)
    mask_kq = (row < CK).astype(f32)
    mask_v = (row < CV).astype(f32)

    def inorm_seg(t8, rowmask, nvalid):
        inv_n = 1.0 / nvalid
        # per-sample lane averaging via the seg matmul; pad rows contribute 0
        t_seg = jnp.dot(t8, seg, preferred_element_type=f32)      # (8, LANES)
        mu = jnp.sum(t_seg, axis=0, keepdims=True) * inv_n        # (1, LANES)
        zc = (t8 - mu) * rowmask                                  # zero pad rows
        s_seg = jnp.dot(zc * zc, seg, preferred_element_type=f32)
        var = jnp.sum(s_seg, axis=0, keepdims=True) * inv_n
        return zc * jax.lax.rsqrt(var + EPS)                      # (8, LANES)

    def head(m):                             # m is a Python int (unrolled)
        k = inorm_seg(kvq[K_OFF + 8 * m:K_OFF + 8 * m + 8], mask_kq, CK)
        v = inorm_seg(kvq[V_OFF + 8 * m:V_OFF + 8 * m + 8], mask_v, CV)
        q = inorm_seg(kvq[Q_OFF + 8 * m:Q_OFF + 8 * m + 8], mask_kq, CK)
        # K^T Q over the zero-padded 8-row contraction -> (LANES, LANES)
        cmat = jax.lax.dot_general(k, q, (((0,), (0,)), ((), ())),
                                   preferred_element_type=f32)
        cmat = cmat + mask_ref[...]          # block-diag per-sample mask
        # softmax over dim=-2 (key positions == axis 0); exact division
        cmat = cmat - jnp.max(cmat, axis=0, keepdims=True)
        e = jnp.exp(cmat)
        cmat = e * (1.0 / jnp.sum(e, axis=0, keepdims=True))
        # V @ cmat (off-block entries are exactly 0) + residual '+'
        return jnp.dot(v, cmat, preferred_element_type=f32) + v   # (8, LANES)

    yres = jnp.concatenate([head(0), head(1)], axis=0)            # (16, LANES)

    # inorm_f: per feature channel (row), per sample (its 16 lanes)
    mu_f = jnp.dot(yres, seg, preferred_element_type=f32)
    zc_f = yres - mu_f
    var_f = jnp.dot(zc_f * zc_f, seg, preferred_element_type=f32)
    ycat = zc_f * jax.lax.rsqrt(var_f + EPS)                      # (16, LANES)

    def leaky(z):
        return jnp.where(z >= 0, z, NEG_SLOPE * z)

    def thin_stats(z, red_ref):
        # per-channel, per-sample mean and inv-std via thin reduce + seg matmuls
        m1 = jnp.dot(jnp.dot(red_ref[...], z, preferred_element_type=f32),
                     seg, preferred_element_type=f32)
        m2 = jnp.dot(jnp.dot(red_ref[...], z * z, preferred_element_type=f32),
                     seg, preferred_element_type=f32)
        var = jnp.maximum(m2 - m1 * m1, 0.0)
        return m1, jax.lax.rsqrt(var + EPS)

    # ---- upsample stage 1: ConvT(2,2) + InstanceNorm + LeakyReLU -----------
    z1 = (jnp.dot(w1_ref[...], ycat.astype(bf16), preferred_element_type=f32)
          + b1_ref[...])                                          # (48, LANES)
    m1_1, inv_1 = thin_stats(z1, red1_ref)                        # (12, LANES)
    a1 = leaky((z1 - jnp.dot(exp1_ref[...], m1_1, preferred_element_type=f32))
               * jnp.dot(exp1_ref[...], inv_1, preferred_element_type=f32))

    # ---- stage 2 (+ fused stage-3 matmul), processed in 64-row chunks ------
    z2 = (jnp.dot(w2_ref[...], a1.astype(bf16), preferred_element_type=f32)
          + b2_ref[...])                                          # (192, LANES)
    m1_2, inv_2 = thin_stats(z2, red2_ref)                        # (12, LANES)

    z3 = None
    for c in range(RU2 // CHUNK):
        r0 = CHUNK * c
        e2 = exp2_ref[r0:r0 + CHUNK, :]                           # (64, 12)
        zc2 = z2[r0:r0 + CHUNK] - jnp.dot(e2, m1_2, preferred_element_type=f32)
        a2c = leaky(zc2 * jnp.dot(e2, inv_2, preferred_element_type=f32))
        part = jnp.dot(w3_ref[c], a2c.astype(bf16), preferred_element_type=f32)
        z3 = part if z3 is None else z3 + part
    z3 = z3 + b3_ref[...]                                         # (192, LANES)

    # ---- stage 3 norm + act, chunked writes to the output -------------------
    m1_3, inv_3 = thin_stats(z3, red3_ref)                        # (3, LANES)
    for c in range(RU3 // CHUNK):
        r0 = CHUNK * c
        e3 = exp3_ref[r0:r0 + CHUNK, :]                           # (64, 3)
        zc3 = z3[r0:r0 + CHUNK] - jnp.dot(e3, m1_3, preferred_element_type=f32)
        o_ref[0, r0:r0 + CHUNK, :] = leaky(
            zc3 * jnp.dot(e3, inv_3, preferred_element_type=f32))


# ----------------------------- forward wrapper --------------------------------
@jax.jit
def patch_block_forward(x, params):
    B = x.shape[0]
    assert x.shape[1:] == (IN_CH, PFIELD, PFIELD)
    nb = (B + LB - 1) // LB
    bp = nb * LB
    if bp != B:                      # pad batch to a multiple of LB (static)
        x = jnp.pad(x, ((0, bp - B), (0, 0), (0, 0), (0, 0)))

    # channel-major flattened patches, LB samples packed along the lane axis:
    # xp[nb, c*64 + di*8 + dj, s*16 + gi*4 + gj] = x[nb*LB+s, c, gi*8+di, gj*8+dj]
    xp = x.reshape(nb, LB, IN_CH, GRID, PATCH, GRID, PATCH)
    xp = xp.transpose(0, 2, 4, 6, 1, 3, 5).reshape(nb, KDIM, LANES)
    xp = xp.astype(jnp.bfloat16)

    def wspec(shape):
        return pl.BlockSpec(shape, lambda b: (0,) * len(shape))

    out = pl.pallas_call(
        _fused_kernel,
        out_shape=jax.ShapeDtypeStruct((nb, RU3, LANES), jnp.float32),
        grid=(nb,),
        in_specs=[
            pl.BlockSpec((1, KDIM, LANES), lambda b: (b, 0, 0)),
            wspec((QKV_ROWS, KDIM)), wspec((QKV_ROWS, 1)),
            wspec((LANES, LANES)), wspec((LANES, LANES)),
            wspec((RU1, 16)), wspec((RU1, 1)), wspec((F_CH, RU1)), wspec((RU1, F_CH)),
            wspec((RU2, RU1)), wspec((RU2, 1)), wspec((F_CH, RU2)), wspec((RU2, F_CH)),
            wspec((3, RU3, CHUNK)), wspec((RU3, 1)), wspec((OUT_CH, RU3)), wspec((RU3, OUT_CH)),
        ],
        out_specs=pl.BlockSpec((1, RU3, LANES), lambda b: (b, 0, 0)),
        compiler_params=pltpu.CompilerParams(
            dimension_semantics=("parallel",)),   # shards the batch-block axis
    )(xp, params["w_qkv"], params["b_qkv"], params["attn_mask"], params["seg_avg"],
      params["w1"], params["b1"], params["red1"], params["exp1"],
      params["w2"], params["b2"], params["red2"], params["exp2"],
      params["w3"], params["b3"], params["red3"], params["exp3"])

    # unscramble: rows are c*64 + d3*16 + d2*4 + d1 (d = di*2+dj),
    # lanes are s*16 + i0*4 + j0;
    # output pixel (8*i0+4*di1+2*di2+di3, 8*j0+4*dj1+2*dj2+dj3)
    y = out.reshape(nb, OUT_CH, 2, 2, 2, 2, 2, 2, LB, GRID, GRID)
    #              (nb, c, di3, dj3, di2, dj2, di1, dj1, s, i0, j0)
    y = y.transpose(0, 8, 1, 9, 6, 4, 2, 10, 7, 5, 3)
    y = y.reshape(bp, OUT_CH, PFIELD_OUT, PFIELD_OUT)
    return y[:B]


# ----------------------------- parameter packing ------------------------------
def _pack_qkv(wk, bk, wv, bv, wq, bq):
    """Fused, 8-row-aligned, channel-major [k|v|q] patch-conv weight (f32)."""
    W = jnp.zeros((QKV_ROWS, KDIM), jnp.float32)
    b = jnp.zeros((QKV_ROWS, 1), jnp.float32)

    def put(W, b, w_src, b_src, base, nch):
        wf = w_src.reshape(w_src.shape[0], -1)          # (nch*MT, 192)
        for m in range(MT):
            r = base + 8 * m
            W = W.at[r:r + nch].set(wf[m * nch:(m + 1) * nch])
            b = b.at[r:r + nch, 0].set(b_src[m * nch:(m + 1) * nch])
        return W, b

    W, b = put(W, b, wk, bk, K_OFF, CK)
    W, b = put(W, b, wv, bv, V_OFF, CV)
    W, b = put(W, b, wq, bq, Q_OFF, CK)
    return W, b


def _make_up_stage(wt, bias, tail):
    """Block-diagonal ConvTranspose2d(k=2,s=2) weight + bias + thin norm mats.

    wt: (Cin, Cout, 2, 2).  Input rows of the stage are (cin, tail); output rows
    are (cout, d, tail) with d = di*2 + dj.  InstanceNorm groups are contiguous
    row blocks of size G = 4*tail; `red` averages each group (1/G), `exp`
    broadcasts the per-channel statistic back to its rows.
    """
    cin, cout = wt.shape[0], wt.shape[1]
    w4 = wt.reshape(cin, cout, 4)                       # d = di*2 + dj
    eye = jnp.eye(tail, dtype=jnp.float32)
    wb = jnp.einsum('iod,tu->odtiu', w4, eye).reshape(cout * 4 * tail, cin * tail)
    brows = jnp.repeat(bias, 4 * tail).reshape(cout * 4 * tail, 1)
    g = 4 * tail
    gids = jnp.arange(cout * g) // g
    ch = jnp.arange(cout)
    red = (gids[None, :] == ch[:, None]).astype(jnp.float32) / g    # (cout, R)
    exp = (gids[:, None] == ch[None, :]).astype(jnp.float32)        # (R, cout)
    return wb, brows, red, exp


def init_params(key):
    ks = jax.random.split(key, 12)
    sc = 1.0 / math.sqrt(KDIM)
    wk = sc * jax.random.normal(ks[0], (CK * MT, IN_CH, PATCH, PATCH), jnp.float32)
    bk = sc * jax.random.normal(ks[1], (CK * MT,), jnp.float32)
    wv = sc * jax.random.normal(ks[2], (CV * MT, IN_CH, PATCH, PATCH), jnp.float32)
    bv = sc * jax.random.normal(ks[3], (CV * MT,), jnp.float32)
    wq = sc * jax.random.normal(ks[4], (CK * MT, IN_CH, PATCH, PATCH), jnp.float32)
    bq = sc * jax.random.normal(ks[5], (CK * MT,), jnp.float32)
    w_qkv, b_qkv = _pack_qkv(wk, bk, wv, bv, wq, bq)

    stages = []
    cin = F_CH
    for n in range(NUPS):
        cout = F_CH if n < NUPS - 1 else OUT_CH
        scu = 1.0 / math.sqrt(cin * 4)
        wt = scu * jax.random.normal(ks[6 + 2 * n], (cin, cout, 2, 2), jnp.float32)
        bt = scu * jax.random.normal(ks[7 + 2 * n], (cout,), jnp.float32)
        stages.append(_make_up_stage(wt, bt, 4 ** n))
        cin = cout

    wb1, b1, red1, exp1 = stages[0]
    wb2, b2, red2, exp2 = stages[1]
    wb3, b3, red3, exp3 = stages[2]

    # merged stage-1 weight over the 16-row (2 heads x 8 padded) buffer
    w1 = jnp.zeros((RU1, 16), jnp.float32)
    w1 = w1.at[:, 0:CV].set(wb1[:, 0:CV])
    w1 = w1.at[:, 8:8 + CV].set(wb1[:, CV:2 * CV])

    # stage-3 weight pre-split into the three 64-column K chunks
    w3c = jnp.stack([wb3[:, CHUNK * c:CHUNK * (c + 1)] for c in range(3)], axis=0)

    # lane-segment helpers (per-sample 16-lane blocks)
    blk = jnp.arange(LANES) // NPOS
    same = (blk[:, None] == blk[None, :]).astype(jnp.float32)
    seg_avg = same / NPOS                       # block-diag 1/16 lane averaging
    attn_mask = (1.0 - same) * (-1e30)          # 0 in-block, -1e30 off-block

    bf16 = jnp.bfloat16
    return {
        "w_qkv": w_qkv.astype(bf16), "b_qkv": b_qkv,
        "attn_mask": attn_mask, "seg_avg": seg_avg,
        "w1": w1.astype(bf16), "b1": b1, "red1": red1, "exp1": exp1,
        "w2": wb2.astype(bf16), "b2": b2, "red2": red2, "exp2": exp2,
        "w3": w3c.astype(bf16), "b3": b3, "red3": red3, "exp3": exp3,
    }


# ----------------------------- main -------------------------------------------
if __name__ == "__main__":
    key = jax.random.PRNGKey(0)
    kx, kp = jax.random.split(key)
    # B=16 -> 2 grid steps of 8 lane-packed samples (keeps both v7x cores busy)
    x = jax.random.normal(kx, (16, IN_CH, PFIELD, PFIELD), jnp.float32)
    params = init_params(kp)

    y = patch_block_forward(x, params)
    y = jax.block_until_ready(y)
    assert y.shape == (16, OUT_CH, PFIELD_OUT, PFIELD_OUT), y.shape
    assert bool(jnp.all(jnp.isfinite(y)))
    print("KERNEL_OK")
</pallas_src>

<mosaic_0001>
module attributes {stable_mosaic.version = 11 : i64} {
  func.func @_fused_kernel(%arg0: i32, %arg1: memref<1x192x128xbf16, #tpu.memory_space<vmem>>, %arg2: memref<48x192xbf16, #tpu.memory_space<vmem>>, %arg3: memref<48x1xf32, #tpu.memory_space<vmem>>, %arg4: memref<128x128xf32, #tpu.memory_space<vmem>>, %arg5: memref<128x128xf32, #tpu.memory_space<vmem>>, %arg6: memref<48x16xbf16, #tpu.memory_space<vmem>>, %arg7: memref<48x1xf32, #tpu.memory_space<vmem>>, %arg8: memref<12x48xf32, #tpu.memory_space<vmem>>, %arg9: memref<48x12xf32, #tpu.memory_space<vmem>>, %arg10: memref<192x48xbf16, #tpu.memory_space<vmem>>, %arg11: memref<192x1xf32, #tpu.memory_space<vmem>>, %arg12: memref<12x192xf32, #tpu.memory_space<vmem>>, %arg13: memref<192x12xf32, #tpu.memory_space<vmem>>, %arg14: memref<3x192x64xbf16, #tpu.memory_space<vmem>>, %arg15: memref<192x1xf32, #tpu.memory_space<vmem>>, %arg16: memref<3x192xf32, #tpu.memory_space<vmem>>, %arg17: memref<192x3xf32, #tpu.memory_space<vmem>>, %arg18: memref<1x192x128xf32, #tpu.memory_space<vmem>>) attributes {dimension_semantics = [#tpu.dimension_semantics<parallel>], iteration_bounds = array<i64: 2>, scalar_prefetch = 0 : i64, scratch_operands = 0 : i64, tpu.core_type = #tpu.core_type<tc>, window_params = [{transform_indices = @transform_0, window_bounds = array<i64: 1, 192, 128>}, {pipeline_mode = #tpu.pipeline_mode<synchronous>, transform_indices = @transform_1, window_bounds = array<i64: 48, 192>}, {pipeline_mode = #tpu.pipeline_mode<synchronous>, transform_indices = @transform_2, window_bounds = array<i64: 48, 1>}, {pipeline_mode = #tpu.pipeline_mode<synchronous>, transform_indices = @transform_3, window_bounds = array<i64: 128, 128>}, {pipeline_mode = #tpu.pipeline_mode<synchronous>, transform_indices = @transform_4, window_bounds = array<i64: 128, 128>}, {pipeline_mode = #tpu.pipeline_mode<synchronous>, transform_indices = @transform_5, window_bounds = array<i64: 48, 16>}, {pipeline_mode = #tpu.pipeline_mode<synchronous>, transform_indices = @transform_6, window_bounds = array<i64: 48, 1>}, {pipeline_mode = #tpu.pipeline_mode<synchronous>, transform_indices = @transform_7, window_bounds = array<i64: 12, 48>}, {pipeline_mode = #tpu.pipeline_mode<synchronous>, transform_indices = @transform_8, window_bounds = array<i64: 48, 12>}, {pipeline_mode = #tpu.pipeline_mode<synchronous>, transform_indices = @transform_9, window_bounds = array<i64: 192, 48>}, {pipeline_mode = #tpu.pipeline_mode<synchronous>, transform_indices = @transform_10, window_bounds = array<i64: 192, 1>}, {pipeline_mode = #tpu.pipeline_mode<synchronous>, transform_indices = @transform_11, window_bounds = array<i64: 12, 192>}, {pipeline_mode = #tpu.pipeline_mode<synchronous>, transform_indices = @transform_12, window_bounds = array<i64: 192, 12>}, {pipeline_mode = #tpu.pipeline_mode<synchronous>, transform_indices = @transform_13, window_bounds = array<i64: 3, 192, 64>}, {pipeline_mode = #tpu.pipeline_mode<synchronous>, transform_indices = @transform_14, window_bounds = array<i64: 192, 1>}, {pipeline_mode = #tpu.pipeline_mode<synchronous>, transform_indices = @transform_15, window_bounds = array<i64: 3, 192>}, {pipeline_mode = #tpu.pipeline_mode<synchronous>, transform_indices = @transform_16, window_bounds = array<i64: 192, 3>}, {transform_indices = @transform_17, window_bounds = array<i64: 1, 192, 128>}]} {
    %c0 = arith.constant 0 : index
    %c0_0 = arith.constant 0 : index
    %0 = vector.load %arg5[%c0, %c0_0] : memref<128x128xf32, #tpu.memory_space<vmem>>, vector<128x128xf32>
    %c0_1 = arith.constant 0 : index
    %c0_2 = arith.constant 0 : index
    %1 = vector.load %arg2[%c0_1, %c0_2] : memref<48x192xbf16, #tpu.memory_space<vmem>>, vector<48x192xbf16>
    %c0_3 = arith.constant 0 : index
    %c0_4 = arith.constant 0 : index
    %c0_5 = arith.constant 0 : index
    %2 = vector.load %arg1[%c0_3, %c0_4, %c0_5] : memref<1x192x128xbf16, #tpu.memory_space<vmem>>, vector<1x192x128xbf16>
    %3 = vector.shape_cast %2 : vector<1x192x128xbf16> to vector<192x128xbf16>
    %cst = arith.constant dense<0.000000e+00> : vector<48x128xf32>
    %4 = tpu.matmul %1, %3, %cst {dimension_numbers = #tpu.dot_dimension_numbers<[1], [0], [0], [1], [0, 0, 1, 1], [], []>} : vector<48x192xbf16>, vector<192x128xbf16>, vector<48x128xf32> -> vector<48x128xf32>
    %c0_6 = arith.constant 0 : index
    %c0_7 = arith.constant 0 : index
    %5 = vector.load %arg3[%c0_6, %c0_7] : memref<48x1xf32, #tpu.memory_space<vmem>>, vector<48x1xf32>
    %6 = vector.broadcast %5 : vector<48x1xf32> to vector<48x128xf32>
    %7 = arith.addf %4, %6 : vector<48x128xf32>
    %8 = tpu.iota {dimensions = array<i32: 0>} : vector<8x128xi32>
    %c5_i32 = arith.constant 5 : i32
    %9 = vector.broadcast %c5_i32 : i32 to vector<8x128xi32>
    %10 = arith.cmpi slt, %8, %9 : vector<8x128xi32>
    %11 = arith.extui %10 : vector<8x128xi1> to vector<8x128xi32>
    %12 = arith.sitofp %11 : vector<8x128xi32> to vector<8x128xf32>
    %c6_i32 = arith.constant 6 : i32
    %13 = vector.broadcast %c6_i32 : i32 to vector<8x128xi32>
    %14 = arith.cmpi slt, %8, %13 : vector<8x128xi32>
    %15 = arith.extui %14 : vector<8x128xi1> to vector<8x128xi32>
    %16 = arith.sitofp %15 : vector<8x128xi32> to vector<8x128xf32>
    %17 = vector.extract_strided_slice %7 {offsets = [0, 0], sizes = [8, 128], strides = [1, 1]} : vector<48x128xf32> to vector<8x128xf32>
    %cst_8 = arith.constant dense<0.000000e+00> : vector<8x128xf32>
    %18 = tpu.matmul %17, %0, %cst_8 {dimension_numbers = #tpu.dot_dimension_numbers<[1], [0], [0], [1], [0, 0, 1, 1], [], []>} : vector<8x128xf32>, vector<128x128xf32>, vector<8x128xf32> -> vector<8x128xf32>
    %cst_9 = arith.constant dense<0.000000e+00> : vector<128xf32>
    %19 = vector.multi_reduction <add>, %18, %cst_9 [0] : vector<8x128xf32> to vector<128xf32>
    %20 = vector.shape_cast %19 : vector<128xf32> to vector<1x128xf32>
    %cst_10 = arith.constant 2.000000e-01 : f32
    %21 = vector.broadcast %cst_10 : f32 to vector<1x128xf32>
    %22 = arith.mulf %20, %21 : vector<1x128xf32>
    %23 = vector.broadcast %22 : vector<1x128xf32> to vector<8x128xf32>
    %24 = arith.subf %17, %23 : vector<8x128xf32>
    %25 = arith.mulf %24, %12 : vector<8x128xf32>
    %26 = arith.mulf %25, %25 : vector<8x128xf32>
    %cst_11 = arith.constant dense<0.000000e+00> : vector<8x128xf32>
    %27 = tpu.matmul %26, %0, %cst_11 {dimension_numbers = #tpu.dot_dimension_numbers<[1], [0], [0], [1], [0, 0, 1, 1], [], []>} : vector<8x128xf32>, vector<128x128xf32>, vector<8x128xf32> -> vector<8x128xf32>
    %cst_12 = arith.constant dense<0.000000e+00> : vector<128xf32>
    %28 = vector.multi_reduction <add>, %27, %cst_12 [0] : vector<8x128xf32> to vector<128xf32>
    %29 = vector.shape_cast %28 : vector<128xf32> to vector<1x128xf32>
    %cst_13 = arith.constant 2.000000e-01 : f32
    %30 = vector.broadcast %cst_13 : f32 to vector<1x128xf32>
    %31 = arith.mulf %29, %30 : vector<1x128xf32>
    %cst_14 = arith.constant 9.99999974E-6 : f32
    %32 = vector.broadcast %cst_14 : f32 to vector<1x128xf32>
    %33 = arith.addf %31, %32 : vector<1x128xf32>
    %34 = math.rsqrt %33 : vector<1x128xf32>
    %35 = vector.broadcast %34 : vector<1x128xf32> to vector<8x128xf32>
    %36 = arith.mulf %25, %35 : vector<8x128xf32>
    %37 = vector.extract_strided_slice %7 {offsets = [16, 0], sizes = [8, 128], strides = [1, 1]} : vector<48x128xf32> to vector<8x128xf32>
    %cst_15 = arith.constant dense<0.000000e+00> : vector<8x128xf32>
    %38 = tpu.matmul %37, %0, %cst_15 {dimension_numbers = #tpu.dot_dimension_numbers<[1], [0], [0], [1], [0, 0, 1, 1], [], []>} : vector<8x128xf32>, vector<128x128xf32>, vector<8x128xf32> -> vector<8x128xf32>
    %cst_16 = arith.constant dense<0.000000e+00> : vector<128xf32>
    %39 = vector.multi_reduction <add>, %38, %cst_16 [0] : vector<8x128xf32> to vector<128xf32>
    %40 = vector.shape_cast %39 : vector<128xf32> to vector<1x128xf32>
    %cst_17 = arith.constant 0.166666672 : f32
    %41 = vector.broadcast %cst_17 : f32 to vector<1x128xf32>
    %42 = arith.mulf %40, %41 : vector<1x128xf32>
    %43 = vector.broadcast %42 : vector<1x128xf32> to vector<8x128xf32>
    %44 = arith.subf %37, %43 : vector<8x128xf32>
    %45 = arith.mulf %44, %16 : vector<8x128xf32>
    %46 = arith.mulf %45, %45 : vector<8x128xf32>
    %cst_18 = arith.constant dense<0.000000e+00> : vector<8x128xf32>
    %47 = tpu.matmul %46, %0, %cst_18 {dimension_numbers = #tpu.dot_dimension_numbers<[1], [0], [0], [1], [0, 0, 1, 1], [], []>} : vector<8x128xf32>, vector<128x128xf32>, vector<8x128xf32> -> vector<8x128xf32>
    %cst_19 = arith.constant dense<0.000000e+00> : vector<128xf32>
    %48 = vector.multi_reduction <add>, %47, %cst_19 [0] : vector<8x128xf32> to vector<128xf32>
    %49 = vector.shape_cast %48 : vector<128xf32> to vector<1x128xf32>
    %cst_20 = arith.constant 0.166666672 : f32
    %50 = vector.broadcast %cst_20 : f32 to vector<1x128xf32>
    %51 = arith.mulf %49, %50 : vector<1x128xf32>
    %cst_21 = arith.constant 9.99999974E-6 : f32
    %52 = vector.broadcast %cst_21 : f32 to vector<1x128xf32>
    %53 = arith.addf %51, %52 : vector<1x128xf32>
    %54 = math.rsqrt %53 : vector<1x128xf32>
    %55 = vector.broadcast %54 : vector<1x128xf32> to vector<8x128xf32>
    %56 = arith.mulf %45, %55 : vector<8x128xf32>
    %57 = vector.extract_strided_slice %7 {offsets = [32, 0], sizes = [8, 128], strides = [1, 1]} : vector<48x128xf32> to vector<8x128xf32>
    %cst_22 = arith.constant dense<0.000000e+00> : vector<8x128xf32>
    %58 = tpu.matmul %57, %0, %cst_22 {dimension_numbers = #tpu.dot_dimension_numbers<[1], [0], [0], [1], [0, 0, 1, 1], [], []>} : vector<8x128xf32>, vector<128x128xf32>, vector<8x128xf32> -> vector<8x128xf32>
    %cst_23 = arith.constant dense<0.000000e+00> : vector<128xf32>
    %59 = vector.multi_reduction <add>, %58, %cst_23 [0] : vector<8x128xf32> to vector<128xf32>
    %60 = vector.shape_cast %59 : vector<128xf32> to vector<1x128xf32>
    %cst_24 = arith.constant 2.000000e-01 : f32
    %61 = vector.broadcast %cst_24 : f32 to vector<1x128xf32>
    %62 = arith.mulf %60, %61 : vector<1x128xf32>
    %63 = vector.broadcast %62 : vector<1x128xf32> to vector<8x128xf32>
    %64 = arith.subf %57, %63 : vector<8x128xf32>
    %65 = arith.mulf %64, %12 : vector<8x128xf32>
    %66 = arith.mulf %65, %65 : vector<8x128xf32>
    %cst_25 = arith.constant dense<0.000000e+00> : vector<8x128xf32>
    %67 = tpu.matmul %66, %0, %cst_25 {dimension_numbers = #tpu.dot_dimension_numbers<[1], [0], [0], [1], [0, 0, 1, 1], [], []>} : vector<8x128xf32>, vector<128x128xf32>, vector<8x128xf32> -> vector<8x128xf32>
    %cst_26 = arith.constant dense<0.000000e+00> : vector<128xf32>
    %68 = vector.multi_reduction <add>, %67, %cst_26 [0] : vector<8x128xf32> to vector<128xf32>
    %69 = vector.shape_cast %68 : vector<128xf32> to vector<1x128xf32>
    %cst_27 = arith.constant 2.000000e-01 : f32
    %70 = vector.broadcast %cst_27 : f32 to vector<1x128xf32>
    %71 = arith.mulf %69, %70 : vector<1x128xf32>
    %cst_28 = arith.constant 9.99999974E-6 : f32
    %72 = vector.broadcast %cst_28 : f32 to vector<1x128xf32>
    %73 = arith.addf %71, %72 : vector<1x128xf32>
    %74 = math.rsqrt %73 : vector<1x128xf32>
    %75 = vector.broadcast %74 : vector<1x128xf32> to vector<8x128xf32>
    %76 = arith.mulf %65, %75 : vector<8x128xf32>
    %cst_29 = arith.constant dense<0.000000e+00> : vector<128x128xf32>
    %77 = tpu.matmul %36, %76, %cst_29 {dimension_numbers = #tpu.dot_dimension_numbers<[0], [0], [1], [1], [0, 1, 1, 1], [], []>} : vector<8x128xf32>, vector<8x128xf32>, vector<128x128xf32> -> vector<128x128xf32>
    %c0_30 = arith.constant 0 : index
    %c0_31 = arith.constant 0 : index
    %78 = vector.load %arg4[%c0_30, %c0_31] : memref<128x128xf32, #tpu.memory_space<vmem>>, vector<128x128xf32>
    %79 = arith.addf %77, %78 : vector<128x128xf32>
    %cst_32 = arith.constant dense<0xFF800000> : vector<128xf32>
    %80 = vector.multi_reduction <maximumf>, %79, %cst_32 [0] : vector<128x128xf32> to vector<128xf32>
    %81 = vector.shape_cast %80 : vector<128xf32> to vector<1x128xf32>
    %82 = vector.broadcast %81 : vector<1x128xf32> to vector<128x128xf32>
    %83 = arith.subf %79, %82 : vector<128x128xf32>
    %84 = math.exp %83 : vector<128x128xf32>
    %cst_33 = arith.constant dense<0.000000e+00> : vector<128xf32>
    %85 = vector.multi_reduction <add>, %84, %cst_33 [0] : vector<128x128xf32> to vector<128xf32>
    %86 = vector.shape_cast %85 : vector<128xf32> to vector<1x128xf32>
    %cst_34 = arith.constant 1.000000e+00 : f32
    %87 = vector.broadcast %cst_34 : f32 to vector<1x128xf32>
    %88 = arith.divf %87, %86 : vector<1x128xf32>
    %89 = vector.broadcast %88 : vector<1x128xf32> to vector<128x128xf32>
    %90 = arith.mulf %84, %89 : vector<128x128xf32>
    %cst_35 = arith.constant dense<0.000000e+00> : vector<8x128xf32>
    %91 = tpu.matmul %56, %90, %cst_35 {dimension_numbers = #tpu.dot_dimension_numbers<[1], [0], [0], [1], [0, 0, 1, 1], [], []>} : vector<8x128xf32>, vector<128x128xf32>, vector<8x128xf32> -> vector<8x128xf32>
    %92 = arith.addf %91, %56 : vector<8x128xf32>
    %93 = vector.extract_strided_slice %7 {offsets = [8, 0], sizes = [8, 128], strides = [1, 1]} : vector<48x128xf32> to vector<8x128xf32>
    %cst_36 = arith.constant dense<0.000000e+00> : vector<8x128xf32>
    %94 = tpu.matmul %93, %0, %cst_36 {dimension_numbers = #tpu.dot_dimension_numbers<[1], [0], [0], [1], [0, 0, 1, 1], [], []>} : vector<8x128xf32>, vector<128x128xf32>, vector<8x128xf32> -> vector<8x128xf32>
    %cst_37 = arith.constant dense<0.000000e+00> : vector<128xf32>
    %95 = vector.multi_reduction <add>, %94, %cst_37 [0] : vector<8x128xf32> to vector<128xf32>
    %96 = vector.shape_cast %95 : vector<128xf32> to vector<1x128xf32>
    %cst_38 = arith.constant 2.000000e-01 : f32
    %97 = vector.broadcast %cst_38 : f32 to vector<1x128xf32>
    %98 = arith.mulf %96, %97 : vector<1x128xf32>
    %99 = vector.broadcast %98 : vector<1x128xf32> to vector<8x128xf32>
    %100 = arith.subf %93, %99 : vector<8x128xf32>
    %101 = arith.mulf %100, %12 : vector<8x128xf32>
    %102 = arith.mulf %101, %101 : vector<8x128xf32>
    %cst_39 = arith.constant dense<0.000000e+00> : vector<8x128xf32>
    %103 = tpu.matmul %102, %0, %cst_39 {dimension_numbers = #tpu.dot_dimension_numbers<[1], [0], [0], [1], [0, 0, 1, 1], [], []>} : vector<8x128xf32>, vector<128x128xf32>, vector<8x128xf32> -> vector<8x128xf32>
    %cst_40 = arith.constant dense<0.000000e+00> : vector<128xf32>
    %104 = vector.multi_reduction <add>, %103, %cst_40 [0] : vector<8x128xf32> to vector<128xf32>
    %105 = vector.shape_cast %104 : vector<128xf32> to vector<1x128xf32>
    %cst_41 = arith.constant 2.000000e-01 : f32
    %106 = vector.broadcast %cst_41 : f32 to vector<1x128xf32>
    %107 = arith.mulf %105, %106 : vector<1x128xf32>
    %cst_42 = arith.constant 9.99999974E-6 : f32
    %108 = vector.broadcast %cst_42 : f32 to vector<1x128xf32>
    %109 = arith.addf %107, %108 : vector<1x128xf32>
    %110 = math.rsqrt %109 : vector<1x128xf32>
    %111 = vector.broadcast %110 : vector<1x128xf32> to vector<8x128xf32>
    %112 = arith.mulf %101, %111 : vector<8x128xf32>
    %113 = vector.extract_strided_slice %7 {offsets = [24, 0], sizes = [8, 128], strides = [1, 1]} : vector<48x128xf32> to vector<8x128xf32>
    %cst_43 = arith.constant dense<0.000000e+00> : vector<8x128xf32>
    %114 = tpu.matmul %113, %0, %cst_43 {dimension_numbers = #tpu.dot_dimension_numbers<[1], [0], [0], [1], [0, 0, 1, 1], [], []>} : vector<8x128xf32>, vector<128x128xf32>, vector<8x128xf32> -> vector<8x128xf32>
    %cst_44 = arith.constant dense<0.000000e+00> : vector<128xf32>
    %115 = vector.multi_reduction <add>, %114, %cst_44 [0] : vector<8x128xf32> to vector<128xf32>
    %116 = vector.shape_cast %115 : vector<128xf32> to vector<1x128xf32>
    %cst_45 = arith.constant 0.166666672 : f32
    %117 = vector.broadcast %cst_45 : f32 to vector<1x128xf32>
    %118 = arith.mulf %116, %117 : vector<1x128xf32>
    %119 = vector.broadcast %118 : vector<1x128xf32> to vector<8x128xf32>
    %120 = arith.subf %113, %119 : vector<8x128xf32>
    %121 = arith.mulf %120, %16 : vector<8x128xf32>
    %122 = arith.mulf %121, %121 : vector<8x128xf32>
    %cst_46 = arith.constant dense<0.000000e+00> : vector<8x128xf32>
    %123 = tpu.matmul %122, %0, %cst_46 {dimension_numbers = #tpu.dot_dimension_numbers<[1], [0], [0], [1], [0, 0, 1, 1], [], []>} : vector<8x128xf32>, vector<128x128xf32>, vector<8x128xf32> -> vector<8x128xf32>
    %cst_47 = arith.constant dense<0.000000e+00> : vector<128xf32>
    %124 = vector.multi_reduction <add>, %123, %cst_47 [0] : vector<8x128xf32> to vector<128xf32>
    %125 = vector.shape_cast %124 : vector<128xf32> to vector<1x128xf32>
    %cst_48 = arith.constant 0.166666672 : f32
    %126 = vector.broadcast %cst_48 : f32 to vector<1x128xf32>
    %127 = arith.mulf %125, %126 : vector<1x128xf32>
    %cst_49 = arith.constant 9.99999974E-6 : f32
    %128 = vector.broadcast %cst_49 : f32 to vector<1x128xf32>
    %129 = arith.addf %127, %128 : vector<1x128xf32>
    %130 = math.rsqrt %129 : vector<1x128xf32>
    %131 = vector.broadcast %130 : vector<1x128xf32> to vector<8x128xf32>
    %132 = arith.mulf %121, %131 : vector<8x128xf32>
    %133 = vector.extract_strided_slice %7 {offsets = [40, 0], sizes = [8, 128], strides = [1, 1]} : vector<48x128xf32> to vector<8x128xf32>
    %cst_50 = arith.constant dense<0.000000e+00> : vector<8x128xf32>
    %134 = tpu.matmul %133, %0, %cst_50 {dimension_numbers = #tpu.dot_dimension_numbers<[1], [0], [0], [1], [0, 0, 1, 1], [], []>} : vector<8x128xf32>, vector<128x128xf32>, vector<8x128xf32> -> vector<8x128xf32>
    %cst_51 = arith.constant dense<0.000000e+00> : vector<128xf32>
    %135 = vector.multi_reduction <add>, %134, %cst_51 [0] : vector<8x128xf32> to vector<128xf32>
    %136 = vector.shape_cast %135 : vector<128xf32> to vector<1x128xf32>
    %cst_52 = arith.constant 2.000000e-01 : f32
    %137 = vector.broadcast %cst_52 : f32 to vector<1x128xf32>
    %138 = arith.mulf %136, %137 : vector<1x128xf32>
    %139 = vector.broadcast %138 : vector<1x128xf32> to vector<8x128xf32>
    %140 = arith.subf %133, %139 : vector<8x128xf32>
    %141 = arith.mulf %140, %12 : vector<8x128xf32>
    %142 = arith.mulf %141, %141 : vector<8x128xf32>
    %cst_53 = arith.constant dense<0.000000e+00> : vector<8x128xf32>
    %143 = tpu.matmul %142, %0, %cst_53 {dimension_numbers = #tpu.dot_dimension_numbers<[1], [0], [0], [1], [0, 0, 1, 1], [], []>} : vector<8x128xf32>, vector<128x128xf32>, vector<8x128xf32> -> vector<8x128xf32>
    %cst_54 = arith.constant dense<0.000000e+00> : vector<128xf32>
    %144 = vector.multi_reduction <add>, %143, %cst_54 [0] : vector<8x128xf32> to vector<128xf32>
    %145 = vector.shape_cast %144 : vector<128xf32> to vector<1x128xf32>
    %cst_55 = arith.constant 2.000000e-01 : f32
    %146 = vector.broadcast %cst_55 : f32 to vector<1x128xf32>
    %147 = arith.mulf %145, %146 : vector<1x128xf32>
    %cst_56 = arith.constant 9.99999974E-6 : f32
    %148 = vector.broadcast %cst_56 : f32 to vector<1x128xf32>
    %149 = arith.addf %147, %148 : vector<1x128xf32>
    %150 = math.rsqrt %149 : vector<1x128xf32>
    %151 = vector.broadcast %150 : vector<1x128xf32> to vector<8x128xf32>
    %152 = arith.mulf %141, %151 : vector<8x128xf32>
    %cst_57 = arith.constant dense<0.000000e+00> : vector<128x128xf32>
    %153 = tpu.matmul %112, %152, %cst_57 {dimension_numbers = #tpu.dot_dimension_numbers<[0], [0], [1], [1], [0, 1, 1, 1], [], []>} : vector<8x128xf32>, vector<8x128xf32>, vector<128x128xf32> -> vector<128x128xf32>
    %c0_58 = arith.constant 0 : index
    %c0_59 = arith.constant 0 : index
    %154 = vector.load %arg4[%c0_58, %c0_59] : memref<128x128xf32, #tpu.memory_space<vmem>>, vector<128x128xf32>
    %155 = arith.addf %153, %154 : vector<128x128xf32>
    %cst_60 = arith.constant dense<0xFF800000> : vector<128xf32>
    %156 = vector.multi_reduction <maximumf>, %155, %cst_60 [0] : vector<128x128xf32> to vector<128xf32>
    %157 = vector.shape_cast %156 : vector<128xf32> to vector<1x128xf32>
    %158 = vector.broadcast %157 : vector<1x128xf32> to vector<128x128xf32>
    %159 = arith.subf %155, %158 : vector<128x128xf32>
    %160 = math.exp %159 : vector<128x128xf32>
    %cst_61 = arith.constant dense<0.000000e+00> : vector<128xf32>
    %161 = vector.multi_reduction <add>, %160, %cst_61 [0] : vector<128x128xf32> to vector<128xf32>
    %162 = vector.shape_cast %161 : vector<128xf32> to vector<1x128xf32>
    %cst_62 = arith.constant 1.000000e+00 : f32
    %163 = vector.broadcast %cst_62 : f32 to vector<1x128xf32>
    %164 = arith.divf %163, %162 : vector<1x128xf32>
    %165 = vector.broadcast %164 : vector<1x128xf32> to vector<128x128xf32>
    %166 = arith.mulf %160, %165 : vector<128x128xf32>
    %cst_63 = arith.constant dense<0.000000e+00> : vector<8x128xf32>
    %167 = tpu.matmul %132, %166, %cst_63 {dimension_numbers = #tpu.dot_dimension_numbers<[1], [0], [0], [1], [0, 0, 1, 1], [], []>} : vector<8x128xf32>, vector<128x128xf32>, vector<8x128xf32> -> vector<8x128xf32>
    %168 = arith.addf %167, %132 : vector<8x128xf32>
    %169 = tpu.concatenate %92, %168 in 0 : vector<8x128xf32>, vector<8x128xf32> -> vector<16x128xf32>
    %cst_64 = arith.constant dense<0.000000e+00> : vector<16x128xf32>
    %170 = tpu.matmul %169, %0, %cst_64 {dimension_numbers = #tpu.dot_dimension_numbers<[1], [0], [0], [1], [0, 0, 1, 1], [], []>} : vector<16x128xf32>, vector<128x128xf32>, vector<16x128xf32> -> vector<16x128xf32>
    %171 = arith.subf %169, %170 : vector<16x128xf32>
    %172 = arith.mulf %171, %171 : vector<16x128xf32>
    %cst_65 = arith.constant dense<0.000000e+00> : vector<16x128xf32>
    %173 = tpu.matmul %172, %0, %cst_65 {dimension_numbers = #tpu.dot_dimension_numbers<[1], [0], [0], [1], [0, 0, 1, 1], [], []>} : vector<16x128xf32>, vector<128x128xf32>, vector<16x128xf32> -> vector<16x128xf32>
    %cst_66 = arith.constant 9.99999974E-6 : f32
    %174 = vector.broadcast %cst_66 : f32 to vector<16x128xf32>
    %175 = arith.addf %173, %174 : vector<16x128xf32>
    %176 = math.rsqrt %175 : vector<16x128xf32>
    %177 = arith.mulf %171, %176 : vector<16x128xf32>
    %c0_67 = arith.constant 0 : index
    %c0_68 = arith.constant 0 : index
    %178 = vector.load %arg6[%c0_67, %c0_68] : memref<48x16xbf16, #tpu.memory_space<vmem>>, vector<48x16xbf16>
    %179 = arith.truncf %177 : vector<16x128xf32> to vector<16x128xbf16>
    %cst_69 = arith.constant dense<0.000000e+00> : vector<48x128xf32>
    %180 = tpu.matmul %178, %179, %cst_69 {dimension_numbers = #tpu.dot_dimension_numbers<[1], [0], [0], [1], [0, 0, 1, 1], [], []>} : vector<48x16xbf16>, vector<16x128xbf16>, vector<48x128xf32> -> vector<48x128xf32>
    %c0_70 = arith.constant 0 : index
    %c0_71 = arith.constant 0 : index
    %181 = vector.load %arg7[%c0_70, %c0_71] : memref<48x1xf32, #tpu.memory_space<vmem>>, vector<48x1xf32>
    %182 = vector.broadcast %181 : vector<48x1xf32> to vector<48x128xf32>
    %183 = arith.addf %180, %182 : vector<48x128xf32>
    %c0_72 = arith.constant 0 : index
    %c0_73 = arith.constant 0 : index
    %184 = vector.load %arg8[%c0_72, %c0_73] : memref<12x48xf32, #tpu.memory_space<vmem>>, vector<12x48xf32>
    %cst_74 = arith.constant dense<0.000000e+00> : vector<12x128xf32>
    %185 = tpu.matmul %184, %183, %cst_74 {dimension_numbers = #tpu.dot_dimension_numbers<[1], [0], [0], [1], [0, 0, 1, 1], [], []>} : vector<12x48xf32>, vector<48x128xf32>, vector<12x128xf32> -> vector<12x128xf32>
    %cst_75 = arith.constant dense<0.000000e+00> : vector<12x128xf32>
    %186 = tpu.matmul %185, %0, %cst_75 {dimension_numbers = #tpu.dot_dimension_numbers<[1], [0], [0], [1], [0, 0, 1, 1], [], []>} : vector<12x128xf32>, vector<128x128xf32>, vector<12x128xf32> -> vector<12x128xf32>
    %c0_76 = arith.constant 0 : index
    %c0_77 = arith.constant 0 : index
    %187 = vector.load %arg8[%c0_76, %c0_77] : memref<12x48xf32, #tpu.memory_space<vmem>>, vector<12x48xf32>
    %188 = arith.mulf %183, %183 : vector<48x128xf32>
    %cst_78 = arith.constant dense<0.000000e+00> : vector<12x128xf32>
    %189 = tpu.matmul %187, %188, %cst_78 {dimension_numbers = #tpu.dot_dimension_numbers<[1], [0], [0], [1], [0, 0, 1, 1], [], []>} : vector<12x48xf32>, vector<48x128xf32>, vector<12x128xf32> -> vector<12x128xf32>
    %cst_79 = arith.constant dense<0.000000e+00> : vector<12x128xf32>
    %190 = tpu.matmul %189, %0, %cst_79 {dimension_numbers = #tpu.dot_dimension_numbers<[1], [0], [0], [1], [0, 0, 1, 1], [], []>} : vector<12x128xf32>, vector<128x128xf32>, vector<12x128xf32> -> vector<12x128xf32>
    %191 = arith.mulf %186, %186 : vector<12x128xf32>
    %192 = arith.subf %190, %191 : vector<12x128xf32>
    %cst_80 = arith.constant 0.000000e+00 : f32
    %193 = vector.broadcast %cst_80 : f32 to vector<12x128xf32>
    %194 = arith.maximumf %192, %193 : vector<12x128xf32>
    %cst_81 = arith.constant 9.99999974E-6 : f32
    %195 = vector.broadcast %cst_81 : f32 to vector<12x128xf32>
    %196 = arith.addf %194, %195 : vector<12x128xf32>
    %197 = math.rsqrt %196 : vector<12x128xf32>
    %c0_82 = arith.constant 0 : index
    %c0_83 = arith.constant 0 : index
    %198 = vector.load %arg9[%c0_82, %c0_83] : memref<48x12xf32, #tpu.memory_space<vmem>>, vector<48x12xf32>
    %cst_84 = arith.constant dense<0.000000e+00> : vector<48x128xf32>
    %199 = tpu.matmul %198, %186, %cst_84 {dimension_numbers = #tpu.dot_dimension_numbers<[1], [0], [0], [1], [0, 0, 1, 1], [], []>} : vector<48x12xf32>, vector<12x128xf32>, vector<48x128xf32> -> vector<48x128xf32>
    %200 = arith.subf %183, %199 : vector<48x128xf32>
    %c0_85 = arith.constant 0 : index
    %c0_86 = arith.constant 0 : index
    %201 = vector.load %arg9[%c0_85, %c0_86] : memref<48x12xf32, #tpu.memory_space<vmem>>, vector<48x12xf32>
    %cst_87 = arith.constant dense<0.000000e+00> : vector<48x128xf32>
    %202 = tpu.matmul %201, %197, %cst_87 {dimension_numbers = #tpu.dot_dimension_numbers<[1], [0], [0], [1], [0, 0, 1, 1], [], []>} : vector<48x12xf32>, vector<12x128xf32>, vector<48x128xf32> -> vector<48x128xf32>
    %203 = arith.mulf %200, %202 : vector<48x128xf32>
    %cst_88 = arith.constant 0.000000e+00 : f32
    %204 = vector.broadcast %cst_88 : f32 to vector<48x128xf32>
    %205 = arith.cmpf oge, %203, %204 : vector<48x128xf32>
    %cst_89 = arith.constant 0.00999999977 : f32
    %206 = vector.broadcast %cst_89 : f32 to vector<48x128xf32>
    %207 = arith.mulf %206, %203 : vector<48x128xf32>
    %208 = arith.select %205, %203, %207 : vector<48x128xi1>, vector<48x128xf32>
    %c0_90 = arith.constant 0 : index
    %c0_91 = arith.constant 0 : index
    %209 = vector.load %arg10[%c0_90, %c0_91] : memref<192x48xbf16, #tpu.memory_space<vmem>>, vector<192x48xbf16>
    %210 = arith.truncf %208 : vector<48x128xf32> to vector<48x128xbf16>
    %cst_92 = arith.constant dense<0.000000e+00> : vector<192x128xf32>
    %211 = tpu.matmul %209, %210, %cst_92 {dimension_numbers = #tpu.dot_dimension_numbers<[1], [0], [0], [1], [0, 0, 1, 1], [], []>} : vector<192x48xbf16>, vector<48x128xbf16>, vector<192x128xf32> -> vector<192x128xf32>
    %c0_93 = arith.constant 0 : index
    %c0_94 = arith.constant 0 : index
    %212 = vector.load %arg11[%c0_93, %c0_94] : memref<192x1xf32, #tpu.memory_space<vmem>>, vector<192x1xf32>
    %213 = vector.broadcast %212 : vector<192x1xf32> to vector<192x128xf32>
    %214 = arith.addf %211, %213 : vector<192x128xf32>
    %c0_95 = arith.constant 0 : index
    %c0_96 = arith.constant 0 : index
    %215 = vector.load %arg12[%c0_95, %c0_96] : memref<12x192xf32, #tpu.memory_space<vmem>>, vector<12x192xf32>
    %cst_97 = arith.constant dense<0.000000e+00> : vector<12x128xf32>
    %216 = tpu.matmul %215, %214, %cst_97 {dimension_numbers = #tpu.dot_dimension_numbers<[1], [0], [0], [1], [0, 0, 1, 1], [], []>} : vector<12x192xf32>, vector<192x128xf32>, vector<12x128xf32> -> vector<12x128xf32>
    %cst_98 = arith.constant dense<0.000000e+00> : vector<12x128xf32>
    %217 = tpu.matmul %216, %0, %cst_98 {dimension_numbers = #tpu.dot_dimension_numbers<[1], [0], [0], [1], [0, 0, 1, 1], [], []>} : vector<12x128xf32>, vector<128x128xf32>, vector<12x128xf32> -> vector<12x128xf32>
    %c0_99 = arith.constant 0 : index
    %c0_100 = arith.constant 0 : index
    %218 = vector.load %arg12[%c0_99, %c0_100] : memref<12x192xf32, #tpu.memory_space<vmem>>, vector<12x192xf32>
    %219 = arith.mulf %214, %214 : vector<192x128xf32>
    %cst_101 = arith.constant dense<0.000000e+00> : vector<12x128xf32>
    %220 = tpu.matmul %218, %219, %cst_101 {dimension_numbers = #tpu.dot_dimension_numbers<[1], [0], [0], [1], [0, 0, 1, 1], [], []>} : vector<12x192xf32>, vector<192x128xf32>, vector<12x128xf32> -> vector<12x128xf32>
    %cst_102 = arith.constant dense<0.000000e+00> : vector<12x128xf32>
    %221 = tpu.matmul %220, %0, %cst_102 {dimension_numbers = #tpu.dot_dimension_numbers<[1], [0], [0], [1], [0, 0, 1, 1], [], []>} : vector<12x128xf32>, vector<128x128xf32>, vector<12x128xf32> -> vector<12x128xf32>
    %222 = arith.mulf %217, %217 : vector<12x128xf32>
    %223 = arith.subf %221, %222 : vector<12x128xf32>
    %cst_103 = arith.constant 0.000000e+00 : f32
    %224 = vector.broadcast %cst_103 : f32 to vector<12x128xf32>
    %225 = arith.maximumf %223, %224 : vector<12x128xf32>
    %cst_104 = arith.constant 9.99999974E-6 : f32
    %226 = vector.broadcast %cst_104 : f32 to vector<12x128xf32>
    %227 = arith.addf %225, %226 : vector<12x128xf32>
    %228 = math.rsqrt %227 : vector<12x128xf32>
    %c0_105 = arith.constant 0 : index
    %c0_106 = arith.constant 0 : index
    %229 = vector.load %arg13[%c0_105, %c0_106] : memref<192x12xf32, #tpu.memory_space<vmem>>, vector<64x12xf32>
    %230 = vector.extract_strided_slice %214 {offsets = [0, 0], sizes = [64, 128], strides = [1, 1]} : vector<192x128xf32> to vector<64x128xf32>
    %cst_107 = arith.constant dense<0.000000e+00> : vector<64x128xf32>
    %231 = tpu.matmul %229, %217, %cst_107 {dimension_numbers = #tpu.dot_dimension_numbers<[1], [0], [0], [1], [0, 0, 1, 1], [], []>} : vector<64x12xf32>, vector<12x128xf32>, vector<64x128xf32> -> vector<64x128xf32>
    %232 = arith.subf %230, %231 : vector<64x128xf32>
    %cst_108 = arith.constant dense<0.000000e+00> : vector<64x128xf32>
    %233 = tpu.matmul %229, %228, %cst_108 {dimension_numbers = #tpu.dot_dimension_numbers<[1], [0], [0], [1], [0, 0, 1, 1], [], []>} : vector<64x12xf32>, vector<12x128xf32>, vector<64x128xf32> -> vector<64x128xf32>
    %234 = arith.mulf %232, %233 : vector<64x128xf32>
    %cst_109 = arith.constant 0.000000e+00 : f32
    %235 = vector.broadcast %cst_109 : f32 to vector<64x128xf32>
    %236 = arith.cmpf oge, %234, %235 : vector<64x128xf32>
    %cst_110 = arith.constant 0.00999999977 : f32
    %237 = vector.broadcast %cst_110 : f32 to vector<64x128xf32>
    %238 = arith.mulf %237, %234 : vector<64x128xf32>
    %239 = arith.select %236, %234, %238 : vector<64x128xi1>, vector<64x128xf32>
    %c0_111 = arith.constant 0 : index
    %c0_112 = arith.constant 0 : index
    %c0_113 = arith.constant 0 : index
    %240 = vector.load %arg14[%c0_111, %c0_112, %c0_113] : memref<3x192x64xbf16, #tpu.memory_space<vmem>>, vector<1x192x64xbf16>
    %241 = vector.shape_cast %240 : vector<1x192x64xbf16> to vector<192x64xbf16>
    %242 = arith.truncf %239 : vector<64x128xf32> to vector<64x128xbf16>
    %cst_114 = arith.constant dense<0.000000e+00> : vector<192x128xf32>
    %243 = tpu.matmul %241, %242, %cst_114 {dimension_numbers = #tpu.dot_dimension_numbers<[1], [0], [0], [1], [0, 0, 1, 1], [], []>} : vector<192x64xbf16>, vector<64x128xbf16>, vector<192x128xf32> -> vector<192x128xf32>
    %c64 = arith.constant 64 : index
    %c0_115 = arith.constant 0 : index
    %244 = vector.load %arg13[%c64, %c0_115] : memref<192x12xf32, #tpu.memory_space<vmem>>, vector<64x12xf32>
    %245 = vector.extract_strided_slice %214 {offsets = [64, 0], sizes = [64, 128], strides = [1, 1]} : vector<192x128xf32> to vector<64x128xf32>
    %cst_116 = arith.constant dense<0.000000e+00> : vector<64x128xf32>
    %246 = tpu.matmul %244, %217, %cst_116 {dimension_numbers = #tpu.dot_dimension_numbers<[1], [0], [0], [1], [0, 0, 1, 1], [], []>} : vector<64x12xf32>, vector<12x128xf32>, vector<64x128xf32> -> vector<64x128xf32>
    %247 = arith.subf %245, %246 : vector<64x128xf32>
    %cst_117 = arith.constant dense<0.000000e+00> : vector<64x128xf32>
    %248 = tpu.matmul %244, %228, %cst_117 {dimension_numbers = #tpu.dot_dimension_numbers<[1], [0], [0], [1], [0, 0, 1, 1], [], []>} : vector<64x12xf32>, vector<12x128xf32>, vector<64x128xf32> -> vector<64x128xf32>
    %249 = arith.mulf %247, %248 : vector<64x128xf32>
    %cst_118 = arith.constant 0.000000e+00 : f32
    %250 = vector.broadcast %cst_118 : f32 to vector<64x128xf32>
    %251 = arith.cmpf oge, %249, %250 : vector<64x128xf32>
    %cst_119 = arith.constant 0.00999999977 : f32
    %252 = vector.broadcast %cst_119 : f32 to vector<64x128xf32>
    %253 = arith.mulf %252, %249 : vector<64x128xf32>
    %254 = arith.select %251, %249, %253 : vector<64x128xi1>, vector<64x128xf32>
    %c1 = arith.constant 1 : index
    %c0_120 = arith.constant 0 : index
    %c0_121 = arith.constant 0 : index
    %255 = vector.load %arg14[%c1, %c0_120, %c0_121] : memref<3x192x64xbf16, #tpu.memory_space<vmem>>, vector<1x192x64xbf16>
    %256 = vector.shape_cast %255 : vector<1x192x64xbf16> to vector<192x64xbf16>
    %257 = arith.truncf %254 : vector<64x128xf32> to vector<64x128xbf16>
    %cst_122 = arith.constant dense<0.000000e+00> : vector<192x128xf32>
    %258 = tpu.matmul %256, %257, %cst_122 {dimension_numbers = #tpu.dot_dimension_numbers<[1], [0], [0], [1], [0, 0, 1, 1], [], []>} : vector<192x64xbf16>, vector<64x128xbf16>, vector<192x128xf32> -> vector<192x128xf32>
    %259 = arith.addf %243, %258 : vector<192x128xf32>
    %c128 = arith.constant 128 : index
    %c0_123 = arith.constant 0 : index
    %260 = vector.load %arg13[%c128, %c0_123] : memref<192x12xf32, #tpu.memory_space<vmem>>, vector<64x12xf32>
    %261 = vector.extract_strided_slice %214 {offsets = [128, 0], sizes = [64, 128], strides = [1, 1]} : vector<192x128xf32> to vector<64x128xf32>
    %cst_124 = arith.constant dense<0.000000e+00> : vector<64x128xf32>
    %262 = tpu.matmul %260, %217, %cst_124 {dimension_numbers = #tpu.dot_dimension_numbers<[1], [0], [0], [1], [0, 0, 1, 1], [], []>} : vector<64x12xf32>, vector<12x128xf32>, vector<64x128xf32> -> vector<64x128xf32>
    %263 = arith.subf %261, %262 : vector<64x128xf32>
    %cst_125 = arith.constant dense<0.000000e+00> : vector<64x128xf32>
    %264 = tpu.matmul %260, %228, %cst_125 {dimension_numbers = #tpu.dot_dimension_numbers<[1], [0], [0], [1], [0, 0, 1, 1], [], []>} : vector<64x12xf32>, vector<12x128xf32>, vector<64x128xf32> -> vector<64x128xf32>
    %265 = arith.mulf %263, %264 : vector<64x128xf32>
    %cst_126 = arith.constant 0.000000e+00 : f32
    %266 = vector.broadcast %cst_126 : f32 to vector<64x128xf32>
    %267 = arith.cmpf oge, %265, %266 : vector<64x128xf32>
    %cst_127 = arith.constant 0.00999999977 : f32
    %268 = vector.broadcast %cst_127 : f32 to vector<64x128xf32>
    %269 = arith.mulf %268, %265 : vector<64x128xf32>
    %270 = arith.select %267, %265, %269 : vector<64x128xi1>, vector<64x128xf32>
    %c2 = arith.constant 2 : index
    %c0_128 = arith.constant 0 : index
    %c0_129 = arith.constant 0 : index
    %271 = vector.load %arg14[%c2, %c0_128, %c0_129] : memref<3x192x64xbf16, #tpu.memory_space<vmem>>, vector<1x192x64xbf16>
    %272 = vector.shape_cast %271 : vector<1x192x64xbf16> to vector<192x64xbf16>
    %273 = arith.truncf %270 : vector<64x128xf32> to vector<64x128xbf16>
    %cst_130 = arith.constant dense<0.000000e+00> : vector<192x128xf32>
    %274 = tpu.matmul %272, %273, %cst_130 {dimension_numbers = #tpu.dot_dimension_numbers<[1], [0], [0], [1], [0, 0, 1, 1], [], []>} : vector<192x64xbf16>, vector<64x128xbf16>, vector<192x128xf32> -> vector<192x128xf32>
    %275 = arith.addf %259, %274 : vector<192x128xf32>
    %c0_131 = arith.constant 0 : index
    %c0_132 = arith.constant 0 : index
    %276 = vector.load %arg15[%c0_131, %c0_132] : memref<192x1xf32, #tpu.memory_space<vmem>>, vector<192x1xf32>
    %277 = vector.broadcast %276 : vector<192x1xf32> to vector<192x128xf32>
    %278 = arith.addf %275, %277 : vector<192x128xf32>
    %c0_133 = arith.constant 0 : index
    %c0_134 = arith.constant 0 : index
    %279 = vector.load %arg16[%c0_133, %c0_134] : memref<3x192xf32, #tpu.memory_space<vmem>>, vector<3x192xf32>
    %cst_135 = arith.constant dense<0.000000e+00> : vector<3x128xf32>
    %280 = tpu.matmul %279, %278, %cst_135 {dimension_numbers = #tpu.dot_dimension_numbers<[1], [0], [0], [1], [0, 0, 1, 1], [], []>} : vector<3x192xf32>, vector<192x128xf32>, vector<3x128xf32> -> vector<3x128xf32>
    %cst_136 = arith.constant dense<0.000000e+00> : vector<3x128xf32>
    %281 = tpu.matmul %280, %0, %cst_136 {dimension_numbers = #tpu.dot_dimension_numbers<[1], [0], [0], [1], [0, 0, 1, 1], [], []>} : vector<3x128xf32>, vector<128x128xf32>, vector<3x128xf32> -> vector<3x128xf32>
    %c0_137 = arith.constant 0 : index
    %c0_138 = arith.constant 0 : index
    %282 = vector.load %arg16[%c0_137, %c0_138] : memref<3x192xf32, #tpu.memory_space<vmem>>, vector<3x192xf32>
    %283 = arith.mulf %278, %278 : vector<192x128xf32>
    %cst_139 = arith.constant dense<0.000000e+00> : vector<3x128xf32>
    %284 = tpu.matmul %282, %283, %cst_139 {dimension_numbers = #tpu.dot_dimension_numbers<[1], [0], [0], [1], [0, 0, 1, 1], [], []>} : vector<3x192xf32>, vector<192x128xf32>, vector<3x128xf32> -> vector<3x128xf32>
    %cst_140 = arith.constant dense<0.000000e+00> : vector<3x128xf32>
    %285 = tpu.matmul %284, %0, %cst_140 {dimension_numbers = #tpu.dot_dimension_numbers<[1], [0], [0], [1], [0, 0, 1, 1], [], []>} : vector<3x128xf32>, vector<128x128xf32>, vector<3x128xf32> -> vector<3x128xf32>
    %286 = arith.mulf %281, %281 : vector<3x128xf32>
    %287 = arith.subf %285, %286 : vector<3x128xf32>
    %cst_141 = arith.constant 0.000000e+00 : f32
    %288 = vector.broadcast %cst_141 : f32 to vector<3x128xf32>
    %289 = arith.maximumf %287, %288 : vector<3x128xf32>
    %cst_142 = arith.constant 9.99999974E-6 : f32
    %290 = vector.broadcast %cst_142 : f32 to vector<3x128xf32>
    %291 = arith.addf %289, %290 : vector<3x128xf32>
    %292 = math.rsqrt %291 : vector<3x128xf32>
    %c0_143 = arith.constant 0 : index
    %c0_144 = arith.constant 0 : index
    %293 = vector.load %arg17[%c0_143, %c0_144] : memref<192x3xf32, #tpu.memory_space<vmem>>, vector<64x3xf32>
    %294 = vector.extract_strided_slice %278 {offsets = [0, 0], sizes = [64, 128], strides = [1, 1]} : vector<192x128xf32> to vector<64x128xf32>
    %cst_145 = arith.constant dense<0.000000e+00> : vector<64x128xf32>
    %295 = tpu.matmul %293, %281, %cst_145 {dimension_numbers = #tpu.dot_dimension_numbers<[1], [0], [0], [1], [0, 0, 1, 1], [], []>} : vector<64x3xf32>, vector<3x128xf32>, vector<64x128xf32> -> vector<64x128xf32>
    %296 = arith.subf %294, %295 : vector<64x128xf32>
    %cst_146 = arith.constant dense<0.000000e+00> : vector<64x128xf32>
    %297 = tpu.matmul %293, %292, %cst_146 {dimension_numbers = #tpu.dot_dimension_numbers<[1], [0], [0], [1], [0, 0, 1, 1], [], []>} : vector<64x3xf32>, vector<3x128xf32>, vector<64x128xf32> -> vector<64x128xf32>
    %298 = arith.mulf %296, %297 : vector<64x128xf32>
    %cst_147 = arith.constant 0.000000e+00 : f32
    %299 = vector.broadcast %cst_147 : f32 to vector<64x128xf32>
    %300 = arith.cmpf oge, %298, %299 : vector<64x128xf32>
    %cst_148 = arith.constant 0.00999999977 : f32
    %301 = vector.broadcast %cst_148 : f32 to vector<64x128xf32>
    %302 = arith.mulf %301, %298 : vector<64x128xf32>
    %303 = arith.select %300, %298, %302 : vector<64x128xi1>, vector<64x128xf32>
    %c0_149 = arith.constant 0 : index
    %c0_150 = arith.constant 0 : index
    %c0_151 = arith.constant 0 : index
    %304 = vector.load %arg18[%c0_149, %c0_150, %c0_151] : memref<1x192x128xf32, #tpu.memory_space<vmem>>, vector<1x64x128xf32>
    %305 = vector.shape_cast %304 : vector<1x64x128xf32> to vector<64x128xf32>
    %306 = vector.shape_cast %303 : vector<64x128xf32> to vector<1x64x128xf32>
    tpu.vector_store %arg18[%c0_149, %c0_150, %c0_151], %306 {strides = array<i32>} : memref<1x192x128xf32, #tpu.memory_space<vmem>>, vector<1x64x128xf32>,
    %c64_152 = arith.constant 64 : index
    %c0_153 = arith.constant 0 : index
    %307 = vector.load %arg17[%c64_152, %c0_153] : memref<192x3xf32, #tpu.memory_space<vmem>>, vector<64x3xf32>
    %308 = vector.extract_strided_slice %278 {offsets = [64, 0], sizes = [64, 128], strides = [1, 1]} : vector<192x128xf32> to vector<64x128xf32>
    %cst_154 = arith.constant dense<0.000000e+00> : vector<64x128xf32>
    %309 = tpu.matmul %307, %281, %cst_154 {dimension_numbers = #tpu.dot_dimension_numbers<[1], [0], [0], [1], [0, 0, 1, 1], [], []>} : vector<64x3xf32>, vector<3x128xf32>, vector<64x128xf32> -> vector<64x128xf32>
    %310 = arith.subf %308, %309 : vector<64x128xf32>
    %cst_155 = arith.constant dense<0.000000e+00> : vector<64x128xf32>
    %311 = tpu.matmul %307, %292, %cst_155 {dimension_numbers = #tpu.dot_dimension_numbers<[1], [0], [0], [1], [0, 0, 1, 1], [], []>} : vector<64x3xf32>, vector<3x128xf32>, vector<64x128xf32> -> vector<64x128xf32>
    %312 = arith.mulf %310, %311 : vector<64x128xf32>
    %cst_156 = arith.constant 0.000000e+00 : f32
    %313 = vector.broadcast %cst_156 : f32 to vector<64x128xf32>
    %314 = arith.cmpf oge, %312, %313 : vector<64x128xf32>
    %cst_157 = arith.constant 0.00999999977 : f32
    %315 = vector.broadcast %cst_157 : f32 to vector<64x128xf32>
    %316 = arith.mulf %315, %312 : vector<64x128xf32>
    %317 = arith.select %314, %312, %316 : vector<64x128xi1>, vector<64x128xf32>
    %c0_158 = arith.constant 0 : index
    %c64_159 = arith.constant 64 : index
    %c0_160 = arith.constant 0 : index
    %318 = vector.load %arg18[%c0_158, %c64_159, %c0_160] : memref<1x192x128xf32, #tpu.memory_space<vmem>>, vector<1x64x128xf32>
    %319 = vector.shape_cast %318 : vector<1x64x128xf32> to vector<64x128xf32>
    %320 = vector.shape_cast %317 : vector<64x128xf32> to vector<1x64x128xf32>
    tpu.vector_store %arg18[%c0_158, %c64_159, %c0_160], %320 {strides = array<i32>} : memref<1x192x128xf32, #tpu.memory_space<vmem>>, vector<1x64x128xf32>,
    %c128_161 = arith.constant 128 : index
    %c0_162 = arith.constant 0 : index
    %321 = vector.load %arg17[%c128_161, %c0_162] : memref<192x3xf32, #tpu.memory_space<vmem>>, vector<64x3xf32>
    %322 = vector.extract_strided_slice %278 {offsets = [128, 0], sizes = [64, 128], strides = [1, 1]} : vector<192x128xf32> to vector<64x128xf32>
    %cst_163 = arith.constant dense<0.000000e+00> : vector<64x128xf32>
    %323 = tpu.matmul %321, %281, %cst_163 {dimension_numbers = #tpu.dot_dimension_numbers<[1], [0], [0], [1], [0, 0, 1, 1], [], []>} : vector<64x3xf32>, vector<3x128xf32>, vector<64x128xf32> -> vector<64x128xf32>
    %324 = arith.subf %322, %323 : vector<64x128xf32>
    %cst_164 = arith.constant dense<0.000000e+00> : vector<64x128xf32>
    %325 = tpu.matmul %321, %292, %cst_164 {dimension_numbers = #tpu.dot_dimension_numbers<[1], [0], [0], [1], [0, 0, 1, 1], [], []>} : vector<64x3xf32>, vector<3x128xf32>, vector<64x128xf32> -> vector<64x128xf32>
    %326 = arith.mulf %324, %325 : vector<64x128xf32>
    %cst_165 = arith.constant 0.000000e+00 : f32
    %327 = vector.broadcast %cst_165 : f32 to vector<64x128xf32>
    %328 = arith.cmpf oge, %326, %327 : vector<64x128xf32>
    %cst_166 = arith.constant 0.00999999977 : f32
    %329 = vector.broadcast %cst_166 : f32 to vector<64x128xf32>
    %330 = arith.mulf %329, %326 : vector<64x128xf32>
    %331 = arith.select %328, %326, %330 : vector<64x128xi1>, vector<64x128xf32>
    %c0_167 = arith.constant 0 : index
    %c128_168 = arith.constant 128 : index
    %c0_169 = arith.constant 0 : index
    %332 = vector.load %arg18[%c0_167, %c128_168, %c0_169] : memref<1x192x128xf32, #tpu.memory_space<vmem>>, vector<1x64x128xf32>
    %333 = vector.shape_cast %332 : vector<1x64x128xf32> to vector<64x128xf32>
    %334 = vector.shape_cast %331 : vector<64x128xf32> to vector<1x64x128xf32>
    tpu.vector_store %arg18[%c0_167, %c128_168, %c0_169], %334 {strides = array<i32>} : memref<1x192x128xf32, #tpu.memory_space<vmem>>, vector<1x64x128xf32>,
    return
  }
  func.func @transform_0(%arg0: i32) -> (i32, i32, i32) {
    %c0_i32 = arith.constant 0 : i32
    %c0_i32_0 = arith.constant 0 : i32
    %c0_i32_1 = arith.constant 0 : i32
    return %arg0, %c0_i32, %c0_i32_0 : i32, i32, i32
  }
  func.func @transform_1(%arg0: i32) -> (i32, i32) {
    %c0_i32 = arith.constant 0 : i32
    %c0_i32_0 = arith.constant 0 : i32
    %c0_i32_1 = arith.constant 0 : i32
    return %c0_i32, %c0_i32_0 : i32, i32
  }
  func.func @transform_2(%arg0: i32) -> (i32, i32) {
    %c0_i32 = arith.constant 0 : i32
    %c0_i32_0 = arith.constant 0 : i32
    %c0_i32_1 = arith.constant 0 : i32
    return %c0_i32, %c0_i32_0 : i32, i32
  }
  func.func @transform_3(%arg0: i32) -> (i32, i32) {
    %c0_i32 = arith.constant 0 : i32
    %c0_i32_0 = arith.constant 0 : i32
    %c0_i32_1 = arith.constant 0 : i32
    return %c0_i32, %c0_i32_0 : i32, i32
  }
  func.func @transform_4(%arg0: i32) -> (i32, i32) {
    %c0_i32 = arith.constant 0 : i32
    %c0_i32_0 = arith.constant 0 : i32
    %c0_i32_1 = arith.constant 0 : i32
    return %c0_i32, %c0_i32_0 : i32, i32
  }
  func.func @transform_5(%arg0: i32) -> (i32, i32) {
    %c0_i32 = arith.constant 0 : i32
    %c0_i32_0 = arith.constant 0 : i32
    %c0_i32_1 = arith.constant 0 : i32
    return %c0_i32, %c0_i32_0 : i32, i32
  }
  func.func @transform_6(%arg0: i32) -> (i32, i32) {
    %c0_i32 = arith.constant 0 : i32
    %c0_i32_0 = arith.constant 0 : i32
    %c0_i32_1 = arith.constant 0 : i32
    return %c0_i32, %c0_i32_0 : i32, i32
  }
  func.func @transform_7(%arg0: i32) -> (i32, i32) {
    %c0_i32 = arith.constant 0 : i32
    %c0_i32_0 = arith.constant 0 : i32
    %c0_i32_1 = arith.constant 0 : i32
    return %c0_i32, %c0_i32_0 : i32, i32
  }
  func.func @transform_8(%arg0: i32) -> (i32, i32) {
    %c0_i32 = arith.constant 0 : i32
    %c0_i32_0 = arith.constant 0 : i32
    %c0_i32_1 = arith.constant 0 : i32
    return %c0_i32, %c0_i32_0 : i32, i32
  }
  func.func @transform_9(%arg0: i32) -> (i32, i32) {
    %c0_i32 = arith.constant 0 : i32
    %c0_i32_0 = arith.constant 0 : i32
    %c0_i32_1 = arith.constant 0 : i32
    return %c0_i32, %c0_i32_0 : i32, i32
  }
  func.func @transform_10(%arg0: i32) -> (i32, i32) {
    %c0_i32 = arith.constant 0 : i32
    %c0_i32_0 = arith.constant 0 : i32
    %c0_i32_1 = arith.constant 0 : i32
    return %c0_i32, %c0_i32_0 : i32, i32
  }
  func.func @transform_11(%arg0: i32) -> (i32, i32) {
    %c0_i32 = arith.constant 0 : i32
    %c0_i32_0 = arith.constant 0 : i32
    %c0_i32_1 = arith.constant 0 : i32
    return %c0_i32, %c0_i32_0 : i32, i32
  }
  func.func @transform_12(%arg0: i32) -> (i32, i32) {
    %c0_i32 = arith.constant 0 : i32
    %c0_i32_0 = arith.constant 0 : i32
    %c0_i32_1 = arith.constant 0 : i32
    return %c0_i32, %c0_i32_0 : i32, i32
  }
  func.func @transform_13(%arg0: i32) -> (i32, i32, i32) {
    %c0_i32 = arith.constant 0 : i32
    %c0_i32_0 = arith.constant 0 : i32
    %c0_i32_1 = arith.constant 0 : i32
    %c0_i32_2 = arith.constant 0 : i32
    return %c0_i32, %c0_i32_0, %c0_i32_1 : i32, i32, i32
  }
  func.func @transform_14(%arg0: i32) -> (i32, i32) {
    %c0_i32 = arith.constant 0 : i32
    %c0_i32_0 = arith.constant 0 : i32
    %c0_i32_1 = arith.constant 0 : i32
    return %c0_i32, %c0_i32_0 : i32, i32
  }
  func.func @transform_15(%arg0: i32) -> (i32, i32) {
    %c0_i32 = arith.constant 0 : i32
    %c0_i32_0 = arith.constant 0 : i32
    %c0_i32_1 = arith.constant 0 : i32
    return %c0_i32, %c0_i32_0 : i32, i32
  }
  func.func @transform_16(%arg0: i32) -> (i32, i32) {
    %c0_i32 = arith.constant 0 : i32
    %c0_i32_0 = arith.constant 0 : i32
    %c0_i32_1 = arith.constant 0 : i32
    return %c0_i32, %c0_i32_0 : i32, i32
  }
  func.func @transform_17(%arg0: i32) -> (i32, i32, i32) {
    %c0_i32 = arith.constant 0 : i32
    %c0_i32_0 = arith.constant 0 : i32
    %c0_i32_1 = arith.constant 0 : i32
    return %arg0, %c0_i32, %c0_i32_0 : i32, i32, i32
  }
}

</mosaic_0001>

<llo_original>
// kernel: patch_block_forward.1
$region0: #{patch_block_forward.1}
  #allocation0 [shape = 'u32[]', space=smem, size = 0x4, offset = 0x4, fixed_abs, tag = 'smem constant byte address 0x4 - core index']
  #allocation1 [shape = 'u32[144,128]{1,0:T(1,128)}', space=vmem, size = 0x12000, scoped, tag = 'internal scratch']
  %s0 = inlined_call_operand.vmem [shape: bf16[2,192,128], index: 0, kind: input, shape index: {}]
  %s1 = inlined_call_operand.vmem [shape: bf16[48,192], index: 1, kind: input, shape index: {}]
  %s2 = inlined_call_operand.vmem [shape: f32[48,1], index: 2, kind: input, shape index: {}]
  %s3 = inlined_call_operand.vmem [shape: f32[128,128], index: 3, kind: input, shape index: {}]
  %s4 = inlined_call_operand.vmem [shape: f32[128,128], index: 4, kind: input, shape index: {}]
  %s5 = inlined_call_operand.vmem [shape: bf16[48,16], index: 5, kind: input, shape index: {}]
  %s6 = inlined_call_operand.vmem [shape: f32[48,1], index: 6, kind: input, shape index: {}]
  %s7 = inlined_call_operand.vmem [shape: f32[12,48], index: 7, kind: input, shape index: {}]
  %s8 = inlined_call_operand.vmem [shape: f32[48,12], index: 8, kind: input, shape index: {}]
  %s9 = inlined_call_operand.vmem [shape: bf16[192,48], index: 9, kind: input, shape index: {}]
  %s10 = inlined_call_operand.vmem [shape: f32[192,1], index: 10, kind: input, shape index: {}]
  %s11 = inlined_call_operand.vmem [shape: f32[12,192], index: 11, kind: input, shape index: {}]
  %s12 = inlined_call_operand.vmem [shape: f32[192,12], index: 12, kind: input, shape index: {}]
  %s13 = inlined_call_operand.vmem [shape: bf16[3,192,64], index: 13, kind: input, shape index: {}]
  %s14 = inlined_call_operand.vmem [shape: f32[192,1], index: 14, kind: input, shape index: {}]
  %s15 = inlined_call_operand.vmem [shape: f32[3,192], index: 15, kind: input, shape index: {}]
  %s16 = inlined_call_operand.vmem [shape: f32[192,3], index: 16, kind: input, shape index: {}]
  %s17 = inlined_call_operand.vmem [shape: f32[2,192,128], index: 17, kind: output, shape index: {}]
  %s18 = sld [smem:[#allocation0]]
  $region101: #{patch_block_forward.1} parent=0
    _
  %s20 = ssub.s32 1, %s18
  %s21 = scalar_select 0, %s20, %s18
  loop: start=0, step=1, limit=4
  $region2: #{patch_block_forward.1} parent=0 // loop_pre_header
    _
  $region3: #{patch_block_forward.1} parent=0 // loop_header
    %s23 = sphi 0, %s27
    %p24 = scmp.ge.s32.totalorder %s23, 4
    %s33 = sphi 0, %s35
    %s36 = sphi 0, %s33
    %s37 = sphi 0, %s36
    %s53 = sphi 0, %s37
    %s57 = sphi 0, %s57
    %s59 = sphi 0, %s57
    %s60 = sphi 0, %s59
    %s74 = sphi 0, %s60
    %s78 = sphi 0, %s78
    %s80 = sphi 0, %s78
    %s81 = sphi 0, %s80
    %s95 = sphi 0, %s81
    %s99 = sphi 0, %s99
    %s101 = sphi 0, %s99
    %s102 = sphi 0, %s101
    %s116 = sphi 0, %s102
    %s120 = sphi 0, %s120
    %s122 = sphi 0, %s120
    %s123 = sphi 0, %s122
    %s137 = sphi 0, %s123
    %s141 = sphi 0, %s141
    %s143 = sphi 0, %s141
    %s144 = sphi 0, %s143
    %s158 = sphi 0, %s144
    %s162 = sphi 0, %s162
    %s164 = sphi 0, %s162
    %s165 = sphi 0, %s164
    %s179 = sphi 0, %s165
    %s183 = sphi 0, %s183
    %s185 = sphi 0, %s183
    %s186 = sphi 0, %s185
    %s200 = sphi 0, %s186
    %s204 = sphi 0, %s204
    %s206 = sphi 0, %s204
    %s207 = sphi 0, %s206
    %s221 = sphi 0, %s207
    %s225 = sphi 0, %s225
    %s227 = sphi 0, %s225
    %s228 = sphi 0, %s227
    %s242 = sphi 0, %s228
    %s246 = sphi 0, %s246
    %s248 = sphi 0, %s246
    %s249 = sphi 0, %s248
    %s263 = sphi 0, %s249
    %s267 = sphi 0, %s267
    %s269 = sphi 0, %s267
    %s270 = sphi 0, %s269
    %s284 = sphi 0, %s270
    %s288 = sphi 0, %s288
    %s290 = sphi 0, %s288
    %s291 = sphi 0, %s290
    %s305 = sphi 0, %s291
    %s309 = sphi 0, %s309
    %s311 = sphi 0, %s309
    %s312 = sphi 0, %s311
    %s326 = sphi 0, %s312
    %s330 = sphi 0, %s330
    %s332 = sphi 0, %s330
    %s333 = sphi 0, %s332
    %s347 = sphi 0, %s333
    %s351 = sphi 0, %s351
    %s353 = sphi 0, %s351
    %s354 = sphi 0, %s353
    %s368 = sphi 0, %s354
    %s372 = sphi 0, %s372
    %s374 = sphi 0, %s372
    %s375 = sphi 0, %s374
    %s389 = sphi 0, %s375
    %s395 = sphi 0, %s397
    %s398 = sphi 0, %s395
    %s399 = sphi 0, %s398
    %s415 = sphi 0, %s399
  $region4: #{patch_block_forward.1} parent=0 // loop_header_branch
    %26 = sbr.rel (%p24) target = $region8
  $region5: #{patch_block_forward.1} parent=0 // loop_body
    %s28 = ssub.s32 %s23, 1
    %s29 = ssub.s32 %s23, 2
    %s30 = sadd.s32 %s23, 1
    %s31 = ssub.s32 %s23, %s30
    %p32 = scmp.eq.s32.totalorder %s31, 0
    %s34 = sadd.s32 %s33, 1
    %s35 = scalar_select %p32, %s33, %s34
    %p38 = pneg %p32
    %p39 = scmp.eq.s32.totalorder %s23, 1
    %p40 = por %p38, %p39
    %p41 = scmp.ne.s32.totalorder %s33, %s36
    %p42 = scmp.eq.s32.totalorder %s23, 0
    %p43 = por %p41, %p42
    %p44 = scmp.ne.s32.totalorder %s33, %s36
    %p45 = scmp.eq.s32.totalorder %s28, 1
    %p46 = por %p44, %p45
    %p47 = scmp.ne.s32.totalorder %s36, %s37
    %p48 = scmp.eq.s32.totalorder %s28, 0
    %p49 = por %p47, %p48
    %p50 = scmp.ne.s32.totalorder %s36, %s37
    %p51 = scmp.eq.s32.totalorder %s29, 1
    %p52 = por %p50, %p51
    %p54 = scmp.ne.s32.totalorder %s37, %s53
    %p55 = scmp.eq.s32.totalorder %s29, 0
    %p56 = por %p54, %p55
    %s58 = sadd.s32 %s57, 1
    %p61 = scmp.eq.s32.totalorder %s23, 1
    %p62 = scmp.ne.s32.totalorder %s57, %s59
    %p63 = scmp.eq.s32.totalorder %s23, 0
    %p64 = por %p62, %p63
    %p65 = scmp.ne.s32.totalorder %s57, %s59
    %p66 = scmp.eq.s32.totalorder %s28, 1
    %p67 = por %p65, %p66
    %p68 = scmp.ne.s32.totalorder %s59, %s60
    %p69 = scmp.eq.s32.totalorder %s28, 0
    %p70 = por %p68, %p69
    %p71 = scmp.ne.s32.totalorder %s59, %s60
    %p72 = scmp.eq.s32.totalorder %s29, 1
    %p73 = por %p71, %p72
    %p75 = scmp.ne.s32.totalorder %s60, %s74
    %p76 = scmp.eq.s32.totalorder %s29, 0
    %p77 = por %p75, %p76
    %s79 = sadd.s32 %s78, 1
    %p82 = scmp.eq.s32.totalorder %s23, 1
    %p83 = scmp.ne.s32.totalorder %s78, %s80
    %p84 = scmp.eq.s32.totalorder %s23, 0
    %p85 = por %p83, %p84
    %p86 = scmp.ne.s32.totalorder %s78, %s80
    %p87 = scmp.eq.s32.totalorder %s28, 1
    %p88 = por %p86, %p87
    %p89 = scmp.ne.s32.totalorder %s80, %s81
    %p90 = scmp.eq.s32.totalorder %s28, 0
    %p91 = por %p89, %p90
    %p92 = scmp.ne.s32.totalorder %s80, %s81
    %p93 = scmp.eq.s32.totalorder %s29, 1
    %p94 = por %p92, %p93
    %p96 = scmp.ne.s32.totalorder %s81, %s95
    %p97 = scmp.eq.s32.totalorder %s29, 0
    %p98 = por %p96, %p97
    %s100 = sadd.s32 %s99, 1
    %p103 = scmp.eq.s32.totalorder %s23, 1
    %p104 = scmp.ne.s32.totalorder %s99, %s101
    %p105 = scmp.eq.s32.totalorder %s23, 0
    %p106 = por %p104, %p105
    %p107 = scmp.ne.s32.totalorder %s99, %s101
    %p108 = scmp.eq.s32.totalorder %s28, 1
    %p109 = por %p107, %p108
    %p110 = scmp.ne.s32.totalorder %s101, %s102
    %p111 = scmp.eq.s32.totalorder %s28, 0
    %p112 = por %p110, %p111
    %p113 = scmp.ne.s32.totalorder %s101, %s102
    %p114 = scmp.eq.s32.totalorder %s29, 1
    %p115 = por %p113, %p114
    %p117 = scmp.ne.s32.totalorder %s102, %s116
    %p118 = scmp.eq.s32.totalorder %s29, 0
    %p119 = por %p117, %p118
    %s121 = sadd.s32 %s120, 1
    %p124 = scmp.eq.s32.totalorder %s23, 1
    %p125 = scmp.ne.s32.totalorder %s120, %s122
    %p126 = scmp.eq.s32.totalorder %s23, 0
    %p127 = por %p125, %p126
    %p128 = scmp.ne.s32.totalorder %s120, %s122
    %p129 = scmp.eq.s32.totalorder %s28, 1
    %p130 = por %p128, %p129
    %p131 = scmp.ne.s32.totalorder %s122, %s123
    %p132 = scmp.eq.s32.totalorder %s28, 0
    %p133 = por %p131, %p132
    %p134 = scmp.ne.s32.totalorder %s122, %s123
    %p135 = scmp.eq.s32.totalorder %s29, 1
    %p136 = por %p134, %p135
    %p138 = scmp.ne.s32.totalorder %s123, %s137
    %p139 = scmp.eq.s32.totalorder %s29, 0
    %p140 = por %p138, %p139
    %s142 = sadd.s32 %s141, 1
    %p145 = scmp.eq.s32.totalorder %s23, 1
    %p146 = scmp.ne.s32.totalorder %s141, %s143
    %p147 = scmp.eq.s32.totalorder %s23, 0
    %p148 = por %p146, %p147
    %p149 = scmp.ne.s32.totalorder %s141, %s143
    %p150 = scmp.eq.s32.totalorder %s28, 1
    %p151 = por %p149, %p150
    %p152 = scmp.ne.s32.totalorder %s143, %s144
    %p153 = scmp.eq.s32.totalorder %s28, 0
    %p154 = por %p152, %p153
    %p155 = scmp.ne.s32.totalorder %s143, %s144
    %p156 = scmp.eq.s32.totalorder %s29, 1
    %p157 = por %p155, %p156
    %p159 = scmp.ne.s32.totalorder %s144, %s158
    %p160 = scmp.eq.s32.totalorder %s29, 0
    %p161 = por %p159, %p160
    %s163 = sadd.s32 %s162, 1
    %p166 = scmp.eq.s32.totalorder %s23, 1
    %p167 = scmp.ne.s32.totalorder %s162, %s164
    %p168 = scmp.eq.s32.totalorder %s23, 0
    %p169 = por %p167, %p168
    %p170 = scmp.ne.s32.totalorder %s162, %s164
    %p171 = scmp.eq.s32.totalorder %s28, 1
    %p172 = por %p170, %p171
    %p173 = scmp.ne.s32.totalorder %s164, %s165
    %p174 = scmp.eq.s32.totalorder %s28, 0
    %p175 = por %p173, %p174
    %p176 = scmp.ne.s32.totalorder %s164, %s165
    %p177 = scmp.eq.s32.totalorder %s29, 1
    %p178 = por %p176, %p177
    %p180 = scmp.ne.s32.totalorder %s165, %s179
    %p181 = scmp.eq.s32.totalorder %s29, 0
    %p182 = por %p180, %p181
    %s184 = sadd.s32 %s183, 1
    %p187 = scmp.eq.s32.totalorder %s23, 1
    %p188 = scmp.ne.s32.totalorder %s183, %s185
    %p189 = scmp.eq.s32.totalorder %s23, 0
    %p190 = por %p188, %p189
    %p191 = scmp.ne.s32.totalorder %s183, %s185
    %p192 = scmp.eq.s32.totalorder %s28, 1
    %p193 = por %p191, %p192
    %p194 = scmp.ne.s32.totalorder %s185, %s186
    %p195 = scmp.eq.s32.totalorder %s28, 0
    %p196 = por %p194, %p195
    %p197 = scmp.ne.s32.totalorder %s185, %s186
    %p198 = scmp.eq.s32.totalorder %s29, 1
    %p199 = por %p197, %p198
    %p201 = scmp.ne.s32.totalorder %s186, %s200
    %p202 = scmp.eq.s32.totalorder %s29, 0
    %p203 = por %p201, %p202
    %s205 = sadd.s32 %s204, 1
    %p208 = scmp.eq.s32.totalorder %s23, 1
    %p209 = scmp.ne.s32.totalorder %s204, %s206
    %p210 = scmp.eq.s32.totalorder %s23, 0
    %p211 = por %p209, %p210
    %p212 = scmp.ne.s32.totalorder %s204, %s206
    %p213 = scmp.eq.s32.totalorder %s28, 1
    %p214 = por %p212, %p213
    %p215 = scmp.ne.s32.totalorder %s206, %s207
    %p216 = scmp.eq.s32.totalorder %s28, 0
    %p217 = por %p215, %p216
    %p218 = scmp.ne.s32.totalorder %s206, %s207
    %p219 = scmp.eq.s32.totalorder %s29, 1
    %p220 = por %p218, %p219
    %p222 = scmp.ne.s32.totalorder %s207, %s221
    %p223 = scmp.eq.s32.totalorder %s29, 0
    %p224 = por %p222, %p223
    %s226 = sadd.s32 %s225, 1
    %p229 = scmp.eq.s32.totalorder %s23, 1
    %p230 = scmp.ne.s32.totalorder %s225, %s227
    %p231 = scmp.eq.s32.totalorder %s23, 0
    %p232 = por %p230, %p231
    %p233 = scmp.ne.s32.totalorder %s225, %s227
    %p234 = scmp.eq.s32.totalorder %s28, 1
    %p235 = por %p233, %p234
    %p236 = scmp.ne.s32.totalorder %s227, %s228
    %p237 = scmp.eq.s32.totalorder %s28, 0
    %p238 = por %p236, %p237
    %p239 = scmp.ne.s32.totalorder %s227, %s228
    %p240 = scmp.eq.s32.totalorder %s29, 1
    %p241 = por %p239, %p240
    %p243 = scmp.ne.s32.totalorder %s228, %s242
    %p244 = scmp.eq.s32.totalorder %s29, 0
    %p245 = por %p243, %p244
    %s247 = sadd.s32 %s246, 1
    %p250 = scmp.eq.s32.totalorder %s23, 1
    %p251 = scmp.ne.s32.totalorder %s246, %s248
    %p252 = scmp.eq.s32.totalorder %s23, 0
    %p253 = por %p251, %p252
    %p254 = scmp.ne.s32.totalorder %s246, %s248
    %p255 = scmp.eq.s32.totalorder %s28, 1
    %p256 = por %p254, %p255
    %p257 = scmp.ne.s32.totalorder %s248, %s249
    %p258 = scmp.eq.s32.totalorder %s28, 0
    %p259 = por %p257, %p258
    %p260 = scmp.ne.s32.totalorder %s248, %s249
    %p261 = scmp.eq.s32.totalorder %s29, 1
    %p262 = por %p260, %p261
    %p264 = scmp.ne.s32.totalorder %s249, %s263
    %p265 = scmp.eq.s32.totalorder %s29, 0
    %p266 = por %p264, %p265
    %s268 = sadd.s32 %s267, 1
    %p271 = scmp.eq.s32.totalorder %s23, 1
    %p272 = scmp.ne.s32.totalorder %s267, %s269
    %p273 = scmp.eq.s32.totalorder %s23, 0
    %p274 = por %p272, %p273
    %p275 = scmp.ne.s32.totalorder %s267, %s269
    %p276 = scmp.eq.s32.totalorder %s28, 1
    %p277 = por %p275, %p276
    %p278 = scmp.ne.s32.totalorder %s269, %s270
    %p279 = scmp.eq.s32.totalorder %s28, 0
    %p280 = por %p278, %p279
    %p281 = scmp.ne.s32.totalorder %s269, %s270
    %p282 = scmp.eq.s32.totalorder %s29, 1
    %p283 = por %p281, %p282
    %p285 = scmp.ne.s32.totalorder %s270, %s284
    %p286 = scmp.eq.s32.totalorder %s29, 0
    %p287 = por %p285, %p286
    %s289 = sadd.s32 %s288, 1
    %p292 = scmp.eq.s32.totalorder %s23, 1
    %p293 = scmp.ne.s32.totalorder %s288, %s290
    %p294 = scmp.eq.s32.totalorder %s23, 0
    %p295 = por %p293, %p294
    %p296 = scmp.ne.s32.totalorder %s288, %s290
    %p297 = scmp.eq.s32.totalorder %s28, 1
    %p298 = por %p296, %p297
    %p299 = scmp.ne.s32.totalorder %s290, %s291
    %p300 = scmp.eq.s32.totalorder %s28, 0
    %p301 = por %p299, %p300
    %p302 = scmp.ne.s32.totalorder %s290, %s291
    %p303 = scmp.eq.s32.totalorder %s29, 1
    %p304 = por %p302, %p303
    %p306 = scmp.ne.s32.totalorder %s291, %s305
    %p307 = scmp.eq.s32.totalorder %s29, 0
    %p308 = por %p306, %p307
    %s310 = sadd.s32 %s309, 1
    %p313 = scmp.eq.s32.totalorder %s23, 1
    %p314 = scmp.ne.s32.totalorder %s309, %s311
    %p315 = scmp.eq.s32.totalorder %s23, 0
    %p316 = por %p314, %p315
    %p317 = scmp.ne.s32.totalorder %s309, %s311
    %p318 = scmp.eq.s32.totalorder %s28, 1
    %p319 = por %p317, %p318
    %p320 = scmp.ne.s32.totalorder %s311, %s312
    %p321 = scmp.eq.s32.totalorder %s28, 0
    %p322 = por %p320, %p321
    %p323 = scmp.ne.s32.totalorder %s311, %s312
    %p324 = scmp.eq.s32.totalorder %s29, 1
    %p325 = por %p323, %p324
    %p327 = scmp.ne.s32.totalorder %s312, %s326
    %p328 = scmp.eq.s32.totalorder %s29, 0
    %p329 = por %p327, %p328
    %s331 = sadd.s32 %s330, 1
    %p334 = scmp.eq.s32.totalorder %s23, 1
    %p335 = scmp.ne.s32.totalorder %s330, %s332
    %p336 = scmp.eq.s32.totalorder %s23, 0
    %p337 = por %p335, %p336
    %p338 = scmp.ne.s32.totalorder %s330, %s332
    %p339 = scmp.eq.s32.totalorder %s28, 1
    %p340 = por %p338, %p339
    %p341 = scmp.ne.s32.totalorder %s332, %s333
    %p342 = scmp.eq.s32.totalorder %s28, 0
    %p343 = por %p341, %p342
    %p344 = scmp.ne.s32.totalorder %s332, %s333
    %p345 = scmp.eq.s32.totalorder %s29, 1
    %p346 = por %p344, %p345
    %p348 = scmp.ne.s32.totalorder %s333, %s347
    %p349 = scmp.eq.s32.totalorder %s29, 0
    %p350 = por %p348, %p349
    %s352 = sadd.s32 %s351, 1
    %p355 = scmp.eq.s32.totalorder %s23, 1
    %p356 = scmp.ne.s32.totalorder %s351, %s353
    %p357 = scmp.eq.s32.totalorder %s23, 0
    %p358 = por %p356, %p357
    %p359 = scmp.ne.s32.totalorder %s351, %s353
    %p360 = scmp.eq.s32.totalorder %s28, 1
    %p361 = por %p359, %p360
    %p362 = scmp.ne.s32.totalorder %s353, %s354
    %p363 = scmp.eq.s32.totalorder %s28, 0
    %p364 = por %p362, %p363
    %p365 = scmp.ne.s32.totalorder %s353, %s354
    %p366 = scmp.eq.s32.totalorder %s29, 1
    %p367 = por %p365, %p366
    %p369 = scmp.ne.s32.totalorder %s354, %s368
    %p370 = scmp.eq.s32.totalorder %s29, 0
    %p371 = por %p369, %p370
    %s373 = sadd.s32 %s372, 1
    %p376 = scmp.eq.s32.totalorder %s23, 1
    %p377 = scmp.ne.s32.totalorder %s372, %s374
    %p378 = scmp.eq.s32.totalorder %s23, 0
    %p379 = por %p377, %p378
    %p380 = scmp.ne.s32.totalorder %s372, %s374
    %p381 = scmp.eq.s32.totalorder %s28, 1
    %p382 = por %p380, %p381
    %p383 = scmp.ne.s32.totalorder %s374, %s375
    %p384 = scmp.eq.s32.totalorder %s28, 0
    %p385 = por %p383, %p384
    %p386 = scmp.ne.s32.totalorder %s374, %s375
    %p387 = scmp.eq.s32.totalorder %s29, 1
    %p388 = por %p386, %p387
    %p390 = scmp.ne.s32.totalorder %s375, %s389
    %p391 = scmp.eq.s32.totalorder %s29, 0
    %p392 = por %p390, %p391
    %s393 = ssub.s32 %s23, %s30
    %p394 = scmp.eq.s32.totalorder %s393, 0
    %s396 = sadd.s32 %s395, 1
    %s397 = scalar_select %p394, %s395, %s396
    %p400 = pneg %p394
    %p401 = scmp.eq.s32.totalorder %s23, 1
    %p402 = por %p400, %p401
    %p403 = scmp.ne.s32.totalorder %s395, %s398
    %p404 = scmp.eq.s32.totalorder %s23, 0
    %p405 = por %p403, %p404
    %p406 = scmp.ne.s32.totalorder %s395, %s398
    %p407 = scmp.eq.s32.totalorder %s28, 1
    %p408 = por %p406, %p407
    %p409 = scmp.ne.s32.totalorder %s398, %s399
    %p410 = scmp.eq.s32.totalorder %s28, 0
    %p411 = por %p409, %p410
    %p412 = scmp.ne.s32.totalorder %s398, %s399
    %p413 = scmp.eq.s32.totalorder %s29, 1
    %p414 = por %p412, %p413
    %p416 = scmp.ne.s32.totalorder %s399, %s415
    %p417 = scmp.eq.s32.totalorder %s29, 0
    %p418 = por %p416, %p417
    %p419 = scmp.le.s32.totalorder 1, %s23
    %p420 = scmp.lt.s32.totalorder %s23, 3
    %p421 = pnand %p419, %p420
    %p422 = pneg %p421
    // Predicated region
    $region9: #{patch_block_forward.1} parent=5 // pred_check
      _
    $region10: #{patch_block_forward.1} parent=5 // pred_check_branch
      %424 = sbr.rel (%p421) target = $region12
    $region11: #{patch_block_forward.1} parent=5 // pred_region
      %s425 = ssub.s32 %s23, 1
      // Predicated region
      $region13: #{patch_block_forward.1} parent=11 // pred_check
        %p426 = pneg %p70
      $region14: #{patch_block_forward.1} parent=11 // pred_check_branch
        %428 = sbr.rel (%p426) target = $region16
      $region15: #{patch_block_forward.1} parent=11 // pred_region
        _
      $region16: #{patch_block_forward.1} parent=11 // pred_fallthru
        _
      // Predicated region
      $region17: #{patch_block_forward.1} parent=11 // pred_check
        %p429 = pneg %p91
      $region18: #{patch_block_forward.1} parent=11 // pred_check_branch
        %431 = sbr.rel (%p429) target = $region20
      $region19: #{patch_block_forward.1} parent=11 // pred_region
        _
      $region20: #{patch_block_forward.1} parent=11 // pred_fallthru
        _
      // Predicated region
      $region21: #{patch_block_forward.1} parent=11 // pred_check
        %p432 = pneg %p112
      $region22: #{patch_block_forward.1} parent=11 // pred_check_branch
        %434 = sbr.rel (%p432) target = $region24
      $region23: #{patch_block_forward.1} parent=11 // pred_region
        _
      $region24: #{patch_block_forward.1} parent=11 // pred_fallthru
        _
      // Predicated region
      $region25: #{patch_block_forward.1} parent=11 // pred_check
        %p435 = pneg %p133
      $region26: #{patch_block_forward.1} parent=11 // pred_check_branch
        %437 = sbr.rel (%p435) target = $region28
      $region27: #{patch_block_forward.1} parent=11 // pred_region
        _
      $region28: #{patch_block_forward.1} parent=11 // pred_fallthru
        _
      // Predicated region
      $region29: #{patch_block_forward.1} parent=11 // pred_check
        %p438 = pneg %p154
      $region30: #{patch_block_forward.1} parent=11 // pred_check_branch
        %440 = sbr.rel (%p438) target = $region32
      $region31: #{patch_block_forward.1} parent=11 // pred_region
        _
      $region32: #{patch_block_forward.1} parent=11 // pred_fallthru
        _
      // Predicated region
      $region33: #{patch_block_forward.1} parent=11 // pred_check
        %p441 = pneg %p175
      $region34: #{patch_block_forward.1} parent=11 // pred_check_branch
        %443 = sbr.rel (%p441) target = $region36
      $region35: #{patch_block_forward.1} parent=11 // pred_region
        _
      $region36: #{patch_block_forward.1} parent=11 // pred_fallthru
        _
      // Predicated region
      $region37: #{patch_block_forward.1} parent=11 // pred_check
        %p444 = pneg %p196
      $region38: #{patch_block_forward.1} parent=11 // pred_check_branch
        %446 = sbr.rel (%p444) target = $region40
      $region39: #{patch_block_forward.1} parent=11 // pred_region
        _
      $region40: #{patch_block_forward.1} parent=11 // pred_fallthru
        _
      // Predicated region
      $region41: #{patch_block_forward.1} parent=11 // pred_check
        %p447 = pneg %p217
      $region42: #{patch_block_forward.1} parent=11 // pred_check_branch
        %449 = sbr.rel (%p447) target = $region44
      $region43: #{patch_block_forward.1} parent=11 // pred_region
        _
      $region44: #{patch_block_forward.1} parent=11 // pred_fallthru
        _
      // Predicated region
      $region45: #{patch_block_forward.1} parent=11 // pred_check
        %p450 = pneg %p238
      $region46: #{patch_block_forward.1} parent=11 // pred_check_branch
        %452 = sbr.rel (%p450) target = $region48
      $region47: #{patch_block_forward.1} parent=11 // pred_region
        _
      $region48: #{patch_block_forward.1} parent=11 // pred_fallthru
        _
      // Predicated region
      $region49: #{patch_block_forward.1} parent=11 // pred_check
        %p453 = pneg %p259
      $region50: #{patch_block_forward.1} parent=11 // pred_check_branch
        %455 = sbr.rel (%p453) target = $region52
      $region51: #{patch_block_forward.1} parent=11 // pred_region
        _
      $region52: #{patch_block_forward.1} parent=11 // pred_fallthru
        _
      // Predicated region
      $region53: #{patch_block_forward.1} parent=11 // pred_check
        %p456 = pneg %p280
      $region54: #{patch_block_forward.1} parent=11 // pred_check_branch
        %458 = sbr.rel (%p456) target = $region56
      $region55: #{patch_block_forward.1} parent=11 // pred_region
        _
      $region56: #{patch_block_forward.1} parent=11 // pred_fallthru
        _
      // Predicated region
      $region57: #{patch_block_forward.1} parent=11 // pred_check
        %p459 = pneg %p301
      $region58: #{patch_block_forward.1} parent=11 // pred_check_branch
        %461 = sbr.rel (%p459) target = $region60
      $region59: #{patch_block_forward.1} parent=11 // pred_region
        _
      $region60: #{patch_block_forward.1} parent=11 // pred_fallthru
        _
      // Predicated region
      $region61: #{patch_block_forward.1} parent=11 // pred_check
        %p462 = pneg %p322
      $region62: #{patch_block_forward.1} parent=11 // pred_check_branch
        %464 = sbr.rel (%p462) target = $region64
      $region63: #{patch_block_forward.1} parent=11 // pred_region
        _
      $region64: #{patch_block_forward.1} parent=11 // pred_fallthru
        _
      // Predicated region
      $region65: #{patch_block_forward.1} parent=11 // pred_check
        %p465 = pneg %p343
      $region66: #{patch_block_forward.1} parent=11 // pred_check_branch
        %467 = sbr.rel (%p465) target = $region68
      $region67: #{patch_block_forward.1} parent=11 // pred_region
        _
      $region68: #{patch_block_forward.1} parent=11 // pred_fallthru
        _
      // Predicated region
      $region69: #{patch_block_forward.1} parent=11 // pred_check
        %p468 = pneg %p364
      $region70: #{patch_block_forward.1} parent=11 // pred_check_branch
        %470 = sbr.rel (%p468) target = $region72
      $region71: #{patch_block_forward.1} parent=11 // pred_region
        _
      $region72: #{patch_block_forward.1} parent=11 // pred_fallthru
        _
      // Predicated region
      $region73: #{patch_block_forward.1} parent=11 // pred_check
        %p471 = pneg %p385
      $region74: #{patch_block_forward.1} parent=11 // pred_check_branch
        %473 = sbr.rel (%p471) target = $region76
      $region75: #{patch_block_forward.1} parent=11 // pred_region
        _
      $region76: #{patch_block_forward.1} parent=11 // pred_fallthru
        _
    $region12: #{patch_block_forward.1} parent=5 // pred_fallthru
      _
    %p474 = scmp.lt.s32.totalorder %s23, 2
    // Predicated region
    $region77: #{patch_block_forward.1} parent=5 // pred_check
      %p475 = pneg %p474
    $region78: #{patch_block_forward.1} parent=5 // pred_check_branch
      %477 = sbr.rel (%p475) target = $region80
    $region79: #{patch_block_forward.1} parent=5 // pred_region
      // Predicated region
      $region81: #{patch_block_forward.1} parent=79 // pred_check
        %p478 = pneg %p43
      $region82: #{patch_block_forward.1} parent=79 // pred_check_branch
        %480 = sbr.rel (%p478) target = $region84
      $region83: #{patch_block_forward.1} parent=79 // pred_region
        %p481 = scmp.lt.s32.totalorder %s23, 1
        %s482 = scalar_select %p481, %s23, 1
        %s483 = smul.addr %s482, 24
        %s484 = smul.addr %s483, 4
        %s485 = scalar_lea.vmem %s0, %s484
      $region84: #{patch_block_forward.1} parent=79 // pred_fallthru
        _
    $region80: #{patch_block_forward.1} parent=5 // pred_fallthru
      _
    %p486 = scmp.le.s32.totalorder 1, %s23
    %p487 = scmp.lt.s32.totalorder %s23, 3
    %p488 = pnand %p486, %p487
    %p489 = pneg %p488
    // Predicated region
    $region85: #{patch_block_forward.1} parent=5 // pred_check
      _
    $region86: #{patch_block_forward.1} parent=5 // pred_check_branch
      %491 = sbr.rel (%p488) target = $region88
    $region87: #{patch_block_forward.1} parent=5 // pred_region
      %s492 = ssub.s32 %s23, 1
      %p493 = scmp.lt.s32.totalorder %s28, 1
      %s494 = scalar_select %p493, %s28, 1
      %s495 = smul.addr %s494, 24
      %s496 = smul.addr %s495, 4
      %s497 = scalar_lea.vmem %s0, %s496
      %p498 = pneg %p49
      %p499 = pneg %p46
      %p500 = pneg %p70
      %p501 = pneg %p67
      %p502 = pneg %p91
      %p503 = pneg %p88
      %p504 = pneg %p112
      %p505 = pneg %p109
      %p506 = pneg %p133
      %p507 = pneg %p130
      %p508 = pneg %p154
      %p509 = pneg %p151
      %p510 = pneg %p175
      %p511 = pneg %p172
      %p512 = pneg %p196
      %p513 = pneg %p193
      %p514 = pneg %p217
      %p515 = pneg %p214
      %p516 = pneg %p238
      %p517 = pneg %p235
      %p518 = pneg %p259
      %p519 = pneg %p256
      %p520 = pneg %p280
      %p521 = pneg %p277
      %p522 = pneg %p301
      %p523 = pneg %p298
      %p524 = pneg %p322
      %p525 = pneg %p319
      %p526 = pneg %p343
      %p527 = pneg %p340
      %p528 = pneg %p364
      %p529 = pneg %p361
      %p530 = pneg %p385
      %p531 = pneg %p382
      %p532 = pneg %p411
      %p533 = pneg %p408
      %p534 = scmp.lt.s32.totalorder %s28, 1
      %s535 = scalar_select %p534, %s28, 1
      %s536 = smul.addr %s535, 24
      %s537 = smul.addr %s536, 8
      %s538 = scalar_lea.vmem %s17, %s537
      %p539 = scmp.lt.s32.totalorder %s28, 1
      %s540 = scalar_select %p539, %s28, 1
      %s541 = smul.addr %s540, 24
      %s542 = smul.addr %s541, 4
      %s543 = scalar_lea.vmem %s0, %s542
      %p544 = scmp.lt.s32.totalorder %s28, 1
      %s545 = scalar_select %p544, %s28, 1
      %s546 = smul.addr %s545, 24
      %s547 = smul.addr %s546, 8
      %s548 = scalar_lea.vmem %s17, %s547
      %v550 = vld [vmem:[%s4] sm:$0xff]
      %v551 = vld [vmem:[%s4 + $0x8] sm:$0xff]
      %v552 = vld [vmem:[%s4 + $0x10] sm:$0xff]
      %v553 = vld [vmem:[%s4 + $0x18] sm:$0xff]
      %v554 = vld [vmem:[%s4 + $0x20] sm:$0xff]
      %v555 = vld [vmem:[%s4 + $0x28] sm:$0xff]
      %v556 = vld [vmem:[%s4 + $0x30] sm:$0xff]
      %v557 = vld [vmem:[%s4 + $0x38] sm:$0xff]
      %v558 = vld [vmem:[%s4 + $0x40] sm:$0xff]
      %v559 = vld [vmem:[%s4 + $0x48] sm:$0xff]
      %v560 = vld [vmem:[%s4 + $0x50] sm:$0xff]
      %v561 = vld [vmem:[%s4 + $0x58] sm:$0xff]
      %v562 = vld [vmem:[%s4 + $0x60] sm:$0xff]
      %v563 = vld [vmem:[%s4 + $0x68] sm:$0xff]
      %v564 = vld [vmem:[%s4 + $0x70] sm:$0xff]
      %v565 = vld [vmem:[%s4 + $0x78] sm:$0xff]
      %v566 = vld [vmem:[%s1] sm:$0xff]
      %v567 = vld [vmem:[%s1 + $0x8] sm:$0xff]
      %v568 = vld [vmem:[%s1 + $0x10] sm:$0xff]
      %v569 = vld [vmem:[%s1 + $0x18] sm:$0xff]
      %v570 = vld [vmem:[%s1 + $0x20] sm:$0xff]
      %v571 = vld [vmem:[%s1 + $0x28] sm:$0xff]
      %v572 = vld [vmem:[%s543] sm:$0xf]
      %v573 = vld [vmem:[%s543 + $0x4] sm:$0xf]
      %v574 = vld [vmem:[%s543 + $0x8] sm:$0xf]
      %v575 = vld [vmem:[%s543 + $0xc] sm:$0xf]
      %v576 = vld [vmem:[%s543 + $0x10] sm:$0xf]
      %v577 = vld [vmem:[%s543 + $0x14] sm:$0xf]
      %v578 = vld [vmem:[%s543 + $0x18] sm:$0xf]
      %v579 = vld [vmem:[%s543 + $0x1c] sm:$0xf]
      %v580 = vld [vmem:[%s543 + $0x20] sm:$0xf]
      %v581 = vld [vmem:[%s543 + $0x24] sm:$0xf]
      %v582 = vld [vmem:[%s543 + $0x28] sm:$0xf]
      %v583 = vld [vmem:[%s543 + $0x2c] sm:$0xf]
      %v584 = vld [vmem:[%s543 + $0x30] sm:$0xf]
      %v585 = vld [vmem:[%s543 + $0x34] sm:$0xf]
      %v586 = vld [vmem:[%s543 + $0x38] sm:$0xf]
      %v587 = vld [vmem:[%s543 + $0x3c] sm:$0xf]
      %v588 = vld [vmem:[%s543 + $0x40] sm:$0xf]
      %v589 = vld [vmem:[%s543 + $0x44] sm:$0xf]
      %v590 = vld [vmem:[%s543 + $0x48] sm:$0xf]
      %v591 = vld [vmem:[%s543 + $0x4c] sm:$0xf]
      %v592 = vld [vmem:[%s543 + $0x50] sm:$0xf]
      %v593 = vld [vmem:[%s543 + $0x54] sm:$0xf]
      %v594 = vld [vmem:[%s543 + $0x58] sm:$0xf]
      %v595 = vld [vmem:[%s543 + $0x5c] sm:$0xf]
      %v596 = vld [vmem:[%s2] sm:$0xff]
      %v597 = vld [vmem:[%s2 + $0x8] sm:$0xff]
      %v598 = vld [vmem:[%s2 + $0x10] sm:$0xff]
      %v599 = vld [vmem:[%s2 + $0x18] sm:$0xff]
      %v600 = vld [vmem:[%s2 + $0x20] sm:$0xff]
      %v601 = vld [vmem:[%s2 + $0x28] sm:$0xff]
      %603 = vset.pattern.permute.xlu0 0
      %604 = vperm.xlu0 %603, %v596
      %v605 = vpop.permute.xlu0 %604
      %608 = vset.pattern.permute.xlu0 0
      %609 = vperm.xlu0 %608, %v597
      %v610 = vpop.permute.xlu0 %609
      %613 = vset.pattern.permute.xlu0 0
      %614 = vperm.xlu0 %613, %v598
      %v615 = vpop.permute.xlu0 %614
      %618 = vset.pattern.permute.xlu0 0
      %619 = vperm.xlu0 %618, %v599
      %v620 = vpop.permute.xlu0 %619
      %623 = vset.pattern.permute.xlu0 0
      %624 = vperm.xlu0 %623, %v600
      %v625 = vpop.permute.xlu0 %624
      %628 = vset.pattern.permute.xlu0 0
      %629 = vperm.xlu0 %628, %v601
      %v630 = vpop.permute.xlu0 %629
      %v638 = vunpack.c.l.b16 %v566
      %v639 = vunpack.c.h.b16 %v566
      %v640 = vunpack.c.l.b16 %v567
      %v641 = vunpack.c.h.b16 %v567
      %v642 = vunpack.c.l.b16 %v568
      %v643 = vunpack.c.h.b16 %v568
      %v644 = vunpack.c.l.b16 %v569
      %v645 = vunpack.c.h.b16 %v569
      %v646 = vunpack.c.l.b16 %v570
      %v647 = vunpack.c.h.b16 %v570
      %v648 = vunpack.c.l.b16 %v571
      %v649 = vunpack.c.h.b16 %v571
      %v650 = vpack.c.b16 %v640, %v638
      %v651 = vpack.c.b16 %v641, %v639
      %v652 = vpack.c.b16 %v644, %v642
      %v653 = vpack.c.b16 %v645, %v643
      %v654 = vpack.c.b16 %v648, %v646
      %v655 = vpack.c.b16 %v649, %v647
      %v683 = vunpack.c.l.b16 %v572
      %v684 = vunpack.c.l.b16 %v573
      %v685 = vunpack.c.l.b16 %v574
      %v686 = vunpack.c.l.b16 %v575
      %v687 = vunpack.c.l.b16 %v576
      %v688 = vunpack.c.l.b16 %v577
      %v689 = vunpack.c.l.b16 %v578
      %v690 = vunpack.c.l.b16 %v579
      %v691 = vunpack.c.l.b16 %v580
      %v692 = vunpack.c.l.b16 %v581
      %v693 = vunpack.c.l.b16 %v582
      %v694 = vunpack.c.l.b16 %v583
      %v695 = vunpack.c.l.b16 %v584
      %v696 = vunpack.c.l.b16 %v585
      %v697 = vunpack.c.l.b16 %v586
      %v698 = vunpack.c.l.b16 %v587
      %v699 = vunpack.c.l.b16 %v588
      %v700 = vunpack.c.l.b16 %v589
      %v701 = vunpack.c.l.b16 %v590
      %v702 = vunpack.c.l.b16 %v591
      %v703 = vunpack.c.l.b16 %v592
      %v704 = vunpack.c.l.b16 %v593
      %v705 = vunpack.c.l.b16 %v594
      %v706 = vunpack.c.l.b16 %v595
      %v707 = vpack.c.b16 %v684, %v683
      %v708 = vpack.c.b16 %v686, %v685
      %v709 = vpack.c.b16 %v688, %v687
      %v710 = vpack.c.b16 %v690, %v689
      %v711 = vpack.c.b16 %v692, %v691
      %v712 = vpack.c.b16 %v694, %v693
      %v713 = vpack.c.b16 %v696, %v695
      %v714 = vpack.c.b16 %v698, %v697
      %v715 = vpack.c.b16 %v700, %v699
      %v716 = vpack.c.b16 %v702, %v701
      %v717 = vpack.c.b16 %v704, %v703
      %v718 = vpack.c.b16 %v706, %v705
      %vm731 = vcmask 523264
      %v733 = vsel %vm731, %v651, 0
      %v736 = vsel %vm731, %v653, 0
      %v739 = vsel %vm731, %v655, 0
      %741 = vmatprep.subr.bf16.mxu0 0
      %742 = vmatpush1.bf16.msra.mxu0 %v714
      %743 = vmatprep.subr.bf16.mxu0 0
      %744 = vmatpush1.bf16.msra.mxu0 %v713
      %745 = vmatprep.subr.bf16.mxu0 0
      %746 = vmatpush1.bf16.msra.mxu0 %v712
      %747 = vmatprep.subr.bf16.mxu0 0
      %748 = vmatpush1.bf16.msra.mxu0 %v711
      %749 = vmatprep.subr.bf16.mxu0 0
      %750 = vmatpush1.bf16.msra.mxu0 %v710
      %751 = vmatprep.subr.bf16.mxu0 0
      %752 = vmatpush1.bf16.msra.mxu0 %v709
      %753 = vmatprep.subr.bf16.mxu0 0
      %754 = vmatpush1.bf16.msra.mxu0 %v708
      %755 = vmatprep.subr.bf16.mxu0 0
      %756 = vmatpush1.bf16.msra.mxu0 %v707
      %757 = vmatprep.subr.bf16.mxu0 0
      %758 = vmatpush2.bf16.msra.mxu0 0
      %759 = vmatprep.subr.bf16.mxu0 0
      %760 = vmatpush2.bf16.msra.mxu0 0
      %761 = vmatprep.subr.bf16.mxu0 0
      %762 = vmatpush2.bf16.msra.mxu0 0
      %763 = vmatprep.subr.bf16.mxu0 0
      %764 = vmatpush2.bf16.msra.mxu0 0
      %765 = vmatprep.subr.bf16.mxu0 0
      %766 = vmatpush2.bf16.msra.mxu0 %v718
      %767 = vmatprep.subr.bf16.mxu0 0
      %768 = vmatpush2.bf16.msra.mxu0 %v717
      %769 = vmatprep.subr.bf16.mxu0 0
      %770 = vmatpush2.bf16.msra.mxu0 %v716
      %771 = vmatprep.subr.bf16.mxu0 0
      %772 = vmatpush2.bf16.msra.mxu0 %v715
      %773 = vmatprep.mubr.bf16.mxu0 %v733
      %774 = vmatmul.mubr.bf16.gmra.mxu0 %v650
      %v775 = vpop.f32.mrf.mxu0
      %v776 = vadd.f32 %v605, %v775
      %v777 = vpop.f32.mrf.mxu0
      %v778 = vpop.f32.mrf.mxu0
      %v779 = vadd.f32 %v610, %v778
      %v780 = vpop.f32.mrf.mxu0
      %781 = vmatprep.mubr.bf16.mxu0 %v736
      %782 = vmatmul.mubr.bf16.gmra.mxu0 %v652
      %v783 = vpop.f32.mrf.mxu0
      %v784 = vadd.f32 %v615, %v783
      %v785 = vpop.f32.mrf.mxu0
      %v786 = vpop.f32.mrf.mxu0
      %v787 = vadd.f32 %v620, %v786
      %v788 = vpop.f32.mrf.mxu0
      %789 = vmatprep.mubr.bf16.mxu0 %v739
      %790 = vmatmul.mubr.bf16.gmra.mxu0 %v654
      %v791 = vpop.f32.mrf.mxu0
      %v792 = vadd.f32 %v625, %v791
      %v793 = vpop.f32.mrf.mxu0
      %v794 = vpop.f32.mrf.mxu0
      %v795 = vadd.f32 %v630, %v794
      %v796 = vpop.f32.mrf.mxu0
      %797 = vdwg.mxu0
      %v798 = vlaneseq
      %v799 = vshrl.u32 %v798, 7
      %vm800 = vcmp.lt.s32.totalorder %v799, 5
      %v801 = vsel %vm800, 1, 0
      %v802 = vcvt.s32.f32 %v801
      %vm803 = vcmp.lt.s32.totalorder %v799, 6
      %v804 = vsel %vm803, 1, 0
      %v805 = vcvt.s32.f32 %v804
      %806 = vmatprep.subr.mxu0 0.0
      %807 = vmatpush1.msra.mxu0 %v565
      %808 = vmatprep.subr.mxu0 0.0
      %809 = vmatpush1.msra.mxu0 %v564
      %810 = vmatprep.subr.mxu0 0.0
      %811 = vmatpush1.msra.mxu0 %v563
      %812 = vmatprep.subr.mxu0 0.0
      %813 = vmatpush1.msra.mxu0 %v562
      %814 = vmatprep.subr.mxu0 0.0
      %815 = vmatpush1.msra.mxu0 %v561
      %816 = vmatprep.subr.mxu0 0.0
      %817 = vmatpush1.msra.mxu0 %v560
      %818 = vmatprep.subr.mxu0 0.0
      %819 = vmatpush1.msra.mxu0 %v559
      %820 = vmatprep.subr.mxu0 0.0
      %821 = vmatpush1.msra.mxu0 %v558
      %822 = vmatprep.subr.mxu0 0.0
      %823 = vmatpush1.msra.mxu0 %v557
      %824 = vmatprep.subr.mxu0 0.0
      %825 = vmatpush1.msra.mxu0 %v556
      %826 = vmatprep.subr.mxu0 0.0
      %827 = vmatpush1.msra.mxu0 %v555
      %828 = vmatprep.subr.mxu0 0.0
      %829 = vmatpush1.msra.mxu0 %v554
      %830 = vmatprep.subr.mxu0 0.0
      %831 = vmatpush1.msra.mxu0 %v553
      %832 = vmatprep.subr.mxu0 0.0
      %833 = vmatpush1.msra.mxu0 %v552
      %834 = vmatprep.subr.mxu0 0.0
      %835 = vmatpush1.msra.mxu0 %v551
      %836 = vmatprep.subr.mxu0 0.0
      %837 = vmatpush1.msra.mxu0 %v550
      %838 = vmatprep.subr.mxu0 0.0
      %839 = vmatpush2.msra.mxu0 0.0
      %840 = vmatprep.subr.mxu0 0.0
      %841 = vmatpush2.msra.mxu0 0.0
      %842 = vmatprep.subr.mxu0 0.0
      %843 = vmatpush2.msra.mxu0 0.0
      %844 = vmatprep.subr.mxu0 0.0
      %845 = vmatpush2.msra.mxu0 0.0
      %846 = vmatprep.subr.mxu0 0.0
      %847 = vmatpush2.msra.mxu0 0.0
      %848 = vmatprep.subr.mxu0 0.0
      %849 = vmatpush2.msra.mxu0 0.0
      %850 = vmatprep.subr.mxu0 0.0
      %851 = vmatpush2.msra.mxu0 0.0
      %852 = vmatprep.subr.mxu0 0.0
      %853 = vmatpush2.msra.mxu0 0.0
      %854 = vmatprep.subr.mxu0 0.0
      %855 = vmatpush2.msra.mxu0 0.0
      %856 = vmatprep.subr.mxu0 0.0
      %857 = vmatpush2.msra.mxu0 0.0
      %858 = vmatprep.subr.mxu0 0.0
      %859 = vmatpush2.msra.mxu0 0.0
      %860 = vmatprep.subr.mxu0 0.0
      %861 = vmatpush2.msra.mxu0 0.0
      %862 = vmatprep.subr.mxu0 0.0
      %863 = vmatpush2.msra.mxu0 0.0
      %864 = vmatprep.subr.mxu0 0.0
      %865 = vmatpush2.msra.mxu0 0.0
      %866 = vmatprep.subr.mxu0 0.0
      %867 = vmatpush2.msra.mxu0 0.0
      %868 = vmatprep.subr.mxu0 0.0
      %869 = vmatpush2.msra.mxu0 0.0
      %870 = vmatprep.mubr.f32.mxu0 0.0
      %871 = vmatmul.mubr.f32.gmra.mxu0 %v776
      %v872 = vpop.f32.mrf.mxu0
      %v873 = vadd.f32 0.0, %v872
      %v874 = vpop.f32.mrf.mxu0
      %875 = vdwg.mxu0
      %v876 = vrot.slane %v873, 4
      %v877 = vadd.f32 %v873, %v876
      %v878 = vrot.slane %v877, 2
      %v879 = vadd.f32 %v877, %v878
      %v880 = vrot.slane %v879, 1
      %v881 = vadd.f32 %v879, %v880
      %v882 = vmul.f32 %v881, 0.2
      %v883 = vsub.f32 %v776, %v882
      %v884 = vmul.f32 %v883, %v802
      %v885 = vmul.f32 %v884, %v884
      %886 = vmatprep.subr.mxu0 0.0
      %887 = vmatpush1.msra.mxu0 %v565
      %888 = vmatprep.subr.mxu0 0.0
      %889 = vmatpush1.msra.mxu0 %v564
      %890 = vmatprep.subr.mxu0 0.0
      %891 = vmatpush1.msra.mxu0 %v563
      %892 = vmatprep.subr.mxu0 0.0
      %893 = vmatpush1.msra.mxu0 %v562
      %894 = vmatprep.subr.mxu0 0.0
      %895 = vmatpush1.msra.mxu0 %v561
      %896 = vmatprep.subr.mxu0 0.0
      %897 = vmatpush1.msra.mxu0 %v560
      %898 = vmatprep.subr.mxu0 0.0
      %899 = vmatpush1.msra.mxu0 %v559
      %900 = vmatprep.subr.mxu0 0.0
      %901 = vmatpush1.msra.mxu0 %v558
      %902 = vmatprep.subr.mxu0 0.0
      %903 = vmatpush1.msra.mxu0 %v557
      %904 = vmatprep.subr.mxu0 0.0
      %905 = vmatpush1.msra.mxu0 %v556
      %906 = vmatprep.subr.mxu0 0.0
      %907 = vmatpush1.msra.mxu0 %v555
      %908 = vmatprep.subr.mxu0 0.0
      %909 = vmatpush1.msra.mxu0 %v554
      %910 = vmatprep.subr.mxu0 0.0
      %911 = vmatpush1.msra.mxu0 %v553
      %912 = vmatprep.subr.mxu0 0.0
      %913 = vmatpush1.msra.mxu0 %v552
      %914 = vmatprep.subr.mxu0 0.0
      %915 = vmatpush1.msra.mxu0 %v551
      %916 = vmatprep.subr.mxu0 0.0
      %917 = vmatpush1.msra.mxu0 %v550
      %918 = vmatprep.subr.mxu0 0.0
      %919 = vmatpush2.msra.mxu0 0.0
      %920 = vmatprep.subr.mxu0 0.0
      %921 = vmatpush2.msra.mxu0 0.0
      %922 = vmatprep.subr.mxu0 0.0
      %923 = vmatpush2.msra.mxu0 0.0
      %924 = vmatprep.subr.mxu0 0.0
      %925 = vmatpush2.msra.mxu0 0.0
      %926 = vmatprep.subr.mxu0 0.0
      %927 = vmatpush2.msra.mxu0 0.0
      %928 = vmatprep.subr.mxu0 0.0
      %929 = vmatpush2.msra.mxu0 0.0
      %930 = vmatprep.subr.mxu0 0.0
      %931 = vmatpush2.msra.mxu0 0.0
      %932 = vmatprep.subr.mxu0 0.0
      %933 = vmatpush2.msra.mxu0 0.0
      %934 = vmatprep.subr.mxu0 0.0
      %935 = vmatpush2.msra.mxu0 0.0
      %936 = vmatprep.subr.mxu0 0.0
      %937 = vmatpush2.msra.mxu0 0.0
      %938 = vmatprep.subr.mxu0 0.0
      %939 = vmatpush2.msra.mxu0 0.0
      %940 = vmatprep.subr.mxu0 0.0
      %941 = vmatpush2.msra.mxu0 0.0
      %942 = vmatprep.subr.mxu0 0.0
      %943 = vmatpush2.msra.mxu0 0.0
      %944 = vmatprep.subr.mxu0 0.0
      %945 = vmatpush2.msra.mxu0 0.0
      %946 = vmatprep.subr.mxu0 0.0
      %947 = vmatpush2.msra.mxu0 0.0
      %948 = vmatprep.subr.mxu0 0.0
      %949 = vmatpush2.msra.mxu0 0.0
      %950 = vmatprep.mubr.f32.mxu0 0.0
      %951 = vmatmul.mubr.f32.gmra.mxu0 %v885
      %v952 = vpop.f32.mrf.mxu0
      %v953 = vadd.f32 0.0, %v952
      %v954 = vpop.f32.mrf.mxu0
      %955 = vdwg.mxu0
      %v956 = vrot.slane %v953, 4
      %v957 = vadd.f32 %v953, %v956
      %v958 = vrot.slane %v957, 2
      %v959 = vadd.f32 %v957, %v958
      %v960 = vrot.slane %v959, 1
      %v961 = vadd.f32 %v959, %v960
      %v962 = vmul.f32 %v961, 0.2
      %v963 = vadd.f32 %v962, 1e-05
      %v964 = vrsqrt.pop %v963
      %v965 = vmul.f32 %v884, %v964
      %966 = vmatprep.subr.mxu0 0.0
      %967 = vmatpush1.msra.mxu0 %v565
      %968 = vmatprep.subr.mxu0 0.0
      %969 = vmatpush1.msra.mxu0 %v564
      %970 = vmatprep.subr.mxu0 0.0
      %971 = vmatpush1.msra.mxu0 %v563
      %972 = vmatprep.subr.mxu0 0.0
      %973 = vmatpush1.msra.mxu0 %v562
      %974 = vmatprep.subr.mxu0 0.0
      %975 = vmatpush1.msra.mxu0 %v561
      %976 = vmatprep.subr.mxu0 0.0
      %977 = vmatpush1.msra.mxu0 %v560
      %978 = vmatprep.subr.mxu0 0.0
      %979 = vmatpush1.msra.mxu0 %v559
      %980 = vmatprep.subr.mxu0 0.0
      %981 = vmatpush1.msra.mxu0 %v558
      %982 = vmatprep.subr.mxu0 0.0
      %983 = vmatpush1.msra.mxu0 %v557
      %984 = vmatprep.subr.mxu0 0.0
      %985 = vmatpush1.msra.mxu0 %v556
      %986 = vmatprep.subr.mxu0 0.0
      %987 = vmatpush1.msra.mxu0 %v555
      %988 = vmatprep.subr.mxu0 0.0
      %989 = vmatpush1.msra.mxu0 %v554
      %990 = vmatprep.subr.mxu0 0.0
      %991 = vmatpush1.msra.mxu0 %v553
      %992 = vmatprep.subr.mxu0 0.0
      %993 = vmatpush1.msra.mxu0 %v552
      %994 = vmatprep.subr.mxu0 0.0
      %995 = vmatpush1.msra.mxu0 %v551
      %996 = vmatprep.subr.mxu0 0.0
      %997 = vmatpush1.msra.mxu0 %v550
      %998 = vmatprep.subr.mxu0 0.0
      %999 = vmatpush2.msra.mxu0 0.0
      %1000 = vmatprep.subr.mxu0 0.0
      %1001 = vmatpush2.msra.mxu0 0.0
      %1002 = vmatprep.subr.mxu0 0.0
      %1003 = vmatpush2.msra.mxu0 0.0
      %1004 = vmatprep.subr.mxu0 0.0
      %1005 = vmatpush2.msra.mxu0 0.0
      %1006 = vmatprep.subr.mxu0 0.0
      %1007 = vmatpush2.msra.mxu0 0.0
      %1008 = vmatprep.subr.mxu0 0.0
      %1009 = vmatpush2.msra.mxu0 0.0
      %1010 = vmatprep.subr.mxu0 0.0
      %1011 = vmatpush2.msra.mxu0 0.0
      %1012 = vmatprep.subr.mxu0 0.0
      %1013 = vmatpush2.msra.mxu0 0.0
      %1014 = vmatprep.subr.mxu0 0.0
      %1015 = vmatpush2.msra.mxu0 0.0
      %1016 = vmatprep.subr.mxu0 0.0
      %1017 = vmatpush2.msra.mxu0 0.0
      %1018 = vmatprep.subr.mxu0 0.0
      %1019 = vmatpush2.msra.mxu0 0.0
      %1020 = vmatprep.subr.mxu0 0.0
      %1021 = vmatpush2.msra.mxu0 0.0
      %1022 = vmatprep.subr.mxu0 0.0
      %1023 = vmatpush2.msra.mxu0 0.0
      %1024 = vmatprep.subr.mxu0 0.0
      %1025 = vmatpush2.msra.mxu0 0.0
      %1026 = vmatprep.subr.mxu0 0.0
      %1027 = vmatpush2.msra.mxu0 0.0
      %1028 = vmatprep.subr.mxu0 0.0
      %1029 = vmatpush2.msra.mxu0 0.0
      %1030 = vmatprep.mubr.f32.mxu0 0.0
      %1031 = vmatmul.mubr.f32.gmra.mxu0 %v784
      %v1032 = vpop.f32.mrf.mxu0
      %v1033 = vadd.f32 0.0, %v1032
      %v1034 = vpop.f32.mrf.mxu0
      %1035 = vdwg.mxu0
      %v1036 = vrot.slane %v1033, 4
      %v1037 = vadd.f32 %v1033, %v1036
      %v1038 = vrot.slane %v1037, 2
      %v1039 = vadd.f32 %v1037, %v1038
      %v1040 = vrot.slane %v1039, 1
      %v1041 = vadd.f32 %v1039, %v1040
      %v1042 = vmul.f32 %v1041, 0.16666667
      %v1043 = vsub.f32 %v784, %v1042
      %v1044 = vmul.f32 %v1043, %v805
      %v1045 = vmul.f32 %v1044, %v1044
      %1046 = vmatprep.subr.mxu0 0.0
      %1047 = vmatpush1.msra.mxu0 %v565
      %1048 = vmatprep.subr.mxu0 0.0
      %1049 = vmatpush1.msra.mxu0 %v564
      %1050 = vmatprep.subr.mxu0 0.0
      %1051 = vmatpush1.msra.mxu0 %v563
      %1052 = vmatprep.subr.mxu0 0.0
      %1053 = vmatpush1.msra.mxu0 %v562
      %1054 = vmatprep.subr.mxu0 0.0
      %1055 = vmatpush1.msra.mxu0 %v561
      %1056 = vmatprep.subr.mxu0 0.0
      %1057 = vmatpush1.msra.mxu0 %v560
      %1058 = vmatprep.subr.mxu0 0.0
      %1059 = vmatpush1.msra.mxu0 %v559
      %1060 = vmatprep.subr.mxu0 0.0
      %1061 = vmatpush1.msra.mxu0 %v558
      %1062 = vmatprep.subr.mxu0 0.0
      %1063 = vmatpush1.msra.mxu0 %v557
      %1064 = vmatprep.subr.mxu0 0.0
      %1065 = vmatpush1.msra.mxu0 %v556
      %1066 = vmatprep.subr.mxu0 0.0
      %1067 = vmatpush1.msra.mxu0 %v555
      %1068 = vmatprep.subr.mxu0 0.0
      %1069 = vmatpush1.msra.mxu0 %v554
      %1070 = vmatprep.subr.mxu0 0.0
      %1071 = vmatpush1.msra.mxu0 %v553
      %1072 = vmatprep.subr.mxu0 0.0
      %1073 = vmatpush1.msra.mxu0 %v552
      %1074 = vmatprep.subr.mxu0 0.0
      %1075 = vmatpush1.msra.mxu0 %v551
      %1076 = vmatprep.subr.mxu0 0.0
      %1077 = vmatpush1.msra.mxu0 %v550
      %1078 = vmatprep.subr.mxu0 0.0
      %1079 = vmatpush2.msra.mxu0 0.0
      %1080 = vmatprep.subr.mxu0 0.0
      %1081 = vmatpush2.msra.mxu0 0.0
      %1082 = vmatprep.subr.mxu0 0.0
      %1083 = vmatpush2.msra.mxu0 0.0
      %1084 = vmatprep.subr.mxu0 0.0
      %1085 = vmatpush2.msra.mxu0 0.0
      %1086 = vmatprep.subr.mxu0 0.0
      %1087 = vmatpush2.msra.mxu0 0.0
      %1088 = vmatprep.subr.mxu0 0.0
      %1089 = vmatpush2.msra.mxu0 0.0
      %1090 = vmatprep.subr.mxu0 0.0
      %1091 = vmatpush2.msra.mxu0 0.0
      %1092 = vmatprep.subr.mxu0 0.0
      %1093 = vmatpush2.msra.mxu0 0.0
      %1094 = vmatprep.subr.mxu0 0.0
      %1095 = vmatpush2.msra.mxu0 0.0
      %1096 = vmatprep.subr.mxu0 0.0
      %1097 = vmatpush2.msra.mxu0 0.0
      %1098 = vmatprep.subr.mxu0 0.0
      %1099 = vmatpush2.msra.mxu0 0.0
      %1100 = vmatprep.subr.mxu0 0.0
      %1101 = vmatpush2.msra.mxu0 0.0
      %1102 = vmatprep.subr.mxu0 0.0
      %1103 = vmatpush2.msra.mxu0 0.0
      %1104 = vmatprep.subr.mxu0 0.0
      %1105 = vmatpush2.msra.mxu0 0.0
      %1106 = vmatprep.subr.mxu0 0.0
      %1107 = vmatpush2.msra.mxu0 0.0
      %1108 = vmatprep.subr.mxu0 0.0
      %1109 = vmatpush2.msra.mxu0 0.0
      %1110 = vmatprep.mubr.f32.mxu0 0.0
      %1111 = vmatmul.mubr.f32.gmra.mxu0 %v1045
      %v1112 = vpop.f32.mrf.mxu0
      %v1113 = vadd.f32 0.0, %v1112
      %v1114 = vpop.f32.mrf.mxu0
      %1115 = vdwg.mxu0
      %v1116 = vrot.slane %v1113, 4
      %v1117 = vadd.f32 %v1113, %v1116
      %v1118 = vrot.slane %v1117, 2
      %v1119 = vadd.f32 %v1117, %v1118
      %v1120 = vrot.slane %v1119, 1
      %v1121 = vadd.f32 %v1119, %v1120
      %v1122 = vmul.f32 %v1121, 0.16666667
      %v1123 = vadd.f32 %v1122, 1e-05
      %v1124 = vrsqrt.pop %v1123
      %v1125 = vmul.f32 %v1044, %v1124
      %1126 = vmatprep.subr.mxu0 0.0
      %1127 = vmatpush1.msra.mxu0 %v565
      %1128 = vmatprep.subr.mxu0 0.0
      %1129 = vmatpush1.msra.mxu0 %v564
      %1130 = vmatprep.subr.mxu0 0.0
      %1131 = vmatpush1.msra.mxu0 %v563
      %1132 = vmatprep.subr.mxu0 0.0
      %1133 = vmatpush1.msra.mxu0 %v562
      %1134 = vmatprep.subr.mxu0 0.0
      %1135 = vmatpush1.msra.mxu0 %v561
      %1136 = vmatprep.subr.mxu0 0.0
      %1137 = vmatpush1.msra.mxu0 %v560
      %1138 = vmatprep.subr.mxu0 0.0
      %1139 = vmatpush1.msra.mxu0 %v559
      %1140 = vmatprep.subr.mxu0 0.0
      %1141 = vmatpush1.msra.mxu0 %v558
      %1142 = vmatprep.subr.mxu0 0.0
      %1143 = vmatpush1.msra.mxu0 %v557
      %1144 = vmatprep.subr.mxu0 0.0
      %1145 = vmatpush1.msra.mxu0 %v556
      %1146 = vmatprep.subr.mxu0 0.0
      %1147 = vmatpush1.msra.mxu0 %v555
      %1148 = vmatprep.subr.mxu0 0.0
      %1149 = vmatpush1.msra.mxu0 %v554
      %1150 = vmatprep.subr.mxu0 0.0
      %1151 = vmatpush1.msra.mxu0 %v553
      %1152 = vmatprep.subr.mxu0 0.0
      %1153 = vmatpush1.msra.mxu0 %v552
      %1154 = vmatprep.subr.mxu0 0.0
      %1155 = vmatpush1.msra.mxu0 %v551
      %1156 = vmatprep.subr.mxu0 0.0
      %1157 = vmatpush1.msra.mxu0 %v550
      %1158 = vmatprep.subr.mxu0 0.0
      %1159 = vmatpush2.msra.mxu0 0.0
      %1160 = vmatprep.subr.mxu0 0.0
      %1161 = vmatpush2.msra.mxu0 0.0
      %1162 = vmatprep.subr.mxu0 0.0
      %1163 = vmatpush2.msra.mxu0 0.0
      %1164 = vmatprep.subr.mxu0 0.0
      %1165 = vmatpush2.msra.mxu0 0.0
      %1166 = vmatprep.subr.mxu0 0.0
      %1167 = vmatpush2.msra.mxu0 0.0
      %1168 = vmatprep.subr.mxu0 0.0
      %1169 = vmatpush2.msra.mxu0 0.0
      %1170 = vmatprep.subr.mxu0 0.0
      %1171 = vmatpush2.msra.mxu0 0.0
      %1172 = vmatprep.subr.mxu0 0.0
      %1173 = vmatpush2.msra.mxu0 0.0
      %1174 = vmatprep.subr.mxu0 0.0
      %1175 = vmatpush2.msra.mxu0 0.0
      %1176 = vmatprep.subr.mxu0 0.0
      %1177 = vmatpush2.msra.mxu0 0.0
      %1178 = vmatprep.subr.mxu0 0.0
      %1179 = vmatpush2.msra.mxu0 0.0
      %1180 = vmatprep.subr.mxu0 0.0
      %1181 = vmatpush2.msra.mxu0 0.0
      %1182 = vmatprep.subr.mxu0 0.0
      %1183 = vmatpush2.msra.mxu0 0.0
      %1184 = vmatprep.subr.mxu0 0.0
      %1185 = vmatpush2.msra.mxu0 0.0
      %1186 = vmatprep.subr.mxu0 0.0
      %1187 = vmatpush2.msra.mxu0 0.0
      %1188 = vmatprep.subr.mxu0 0.0
      %1189 = vmatpush2.msra.mxu0 0.0
      %1190 = vmatprep.mubr.f32.mxu0 0.0
      %1191 = vmatmul.mubr.f32.gmra.mxu0 %v792
      %v1192 = vpop.f32.mrf.mxu0
      %v1193 = vadd.f32 0.0, %v1192
      %v1194 = vpop.f32.mrf.mxu0
      %1195 = vdwg.mxu0
      %v1196 = vrot.slane %v1193, 4
      %v1197 = vadd.f32 %v1193, %v1196
      %v1198 = vrot.slane %v1197, 2
      %v1199 = vadd.f32 %v1197, %v1198
      %v1200 = vrot.slane %v1199, 1
      %v1201 = vadd.f32 %v1199, %v1200
      %v1202 = vmul.f32 %v1201, 0.2
      %v1203 = vsub.f32 %v792, %v1202
      %v1204 = vmul.f32 %v1203, %v802
      %v1205 = vmul.f32 %v1204, %v1204
      %1206 = vmatprep.subr.mxu0 0.0
      %1207 = vmatpush1.msra.mxu0 %v565
      %1208 = vmatprep.subr.mxu0 0.0
      %1209 = vmatpush1.msra.mxu0 %v564
      %1210 = vmatprep.subr.mxu0 0.0
      %1211 = vmatpush1.msra.mxu0 %v563
      %1212 = vmatprep.subr.mxu0 0.0
      %1213 = vmatpush1.msra.mxu0 %v562
      %1214 = vmatprep.subr.mxu0 0.0
      %1215 = vmatpush1.msra.mxu0 %v561
      %1216 = vmatprep.subr.mxu0 0.0
      %1217 = vmatpush1.msra.mxu0 %v560
      %1218 = vmatprep.subr.mxu0 0.0
      %1219 = vmatpush1.msra.mxu0 %v559
      %1220 = vmatprep.subr.mxu0 0.0
      %1221 = vmatpush1.msra.mxu0 %v558
      %1222 = vmatprep.subr.mxu0 0.0
      %1223 = vmatpush1.msra.mxu0 %v557
      %1224 = vmatprep.subr.mxu0 0.0
      %1225 = vmatpush1.msra.mxu0 %v556
      %1226 = vmatprep.subr.mxu0 0.0
      %1227 = vmatpush1.msra.mxu0 %v555
      %1228 = vmatprep.subr.mxu0 0.0
      %1229 = vmatpush1.msra.mxu0 %v554
      %1230 = vmatprep.subr.mxu0 0.0
      %1231 = vmatpush1.msra.mxu0 %v553
      %1232 = vmatprep.subr.mxu0 0.0
      %1233 = vmatpush1.msra.mxu0 %v552
      %1234 = vmatprep.subr.mxu0 0.0
      %1235 = vmatpush1.msra.mxu0 %v551
      %1236 = vmatprep.subr.mxu0 0.0
      %1237 = vmatpush1.msra.mxu0 %v550
      %1238 = vmatprep.subr.mxu0 0.0
      %1239 = vmatpush2.msra.mxu0 0.0
      %1240 = vmatprep.subr.mxu0 0.0
      %1241 = vmatpush2.msra.mxu0 0.0
      %1242 = vmatprep.subr.mxu0 0.0
      %1243 = vmatpush2.msra.mxu0 0.0
      %1244 = vmatprep.subr.mxu0 0.0
      %1245 = vmatpush2.msra.mxu0 0.0
      %1246 = vmatprep.subr.mxu0 0.0
      %1247 = vmatpush2.msra.mxu0 0.0
      %1248 = vmatprep.subr.mxu0 0.0
      %1249 = vmatpush2.msra.mxu0 0.0
      %1250 = vmatprep.subr.mxu0 0.0
      %1251 = vmatpush2.msra.mxu0 0.0
      %1252 = vmatprep.subr.mxu0 0.0
      %1253 = vmatpush2.msra.mxu0 0.0
      %1254 = vmatprep.subr.mxu0 0.0
      %1255 = vmatpush2.msra.mxu0 0.0
      %1256 = vmatprep.subr.mxu0 0.0
      %1257 = vmatpush2.msra.mxu0 0.0
      %1258 = vmatprep.subr.mxu0 0.0
      %1259 = vmatpush2.msra.mxu0 0.0
      %1260 = vmatprep.subr.mxu0 0.0
      %1261 = vmatpush2.msra.mxu0 0.0
      %1262 = vmatprep.subr.mxu0 0.0
      %1263 = vmatpush2.msra.mxu0 0.0
      %1264 = vmatprep.subr.mxu0 0.0
      %1265 = vmatpush2.msra.mxu0 0.0
      %1266 = vmatprep.subr.mxu0 0.0
      %1267 = vmatpush2.msra.mxu0 0.0
      %1268 = vmatprep.subr.mxu0 0.0
      %1269 = vmatpush2.msra.mxu0 0.0
      %1270 = vmatprep.mubr.f32.mxu0 0.0
      %1271 = vmatmul.mubr.f32.gmra.mxu0 %v1205
      %v1272 = vpop.f32.mrf.mxu0
      %v1273 = vadd.f32 0.0, %v1272
      %v1274 = vpop.f32.mrf.mxu0
      %1275 = vdwg.mxu0
      %v1276 = vrot.slane %v1273, 4
      %v1277 = vadd.f32 %v1273, %v1276
      %v1278 = vrot.slane %v1277, 2
      %v1279 = vadd.f32 %v1277, %v1278
      %v1280 = vrot.slane %v1279, 1
      %v1281 = vadd.f32 %v1279, %v1280
      %v1282 = vmul.f32 %v1281, 0.2
      %v1283 = vadd.f32 %v1282, 1e-05
      %v1284 = vrsqrt.pop %v1283
      %v1285 = vmul.f32 %v1204, %v1284
      %v1286 = vld [vmem:[%s3] sm:$0xff]
      %v1287 = vld [vmem:[%s3 + $0x8] sm:$0xff]
      %v1288 = vld [vmem:[%s3 + $0x10] sm:$0xff]
      %v1289 = vld [vmem:[%s3 + $0x18] sm:$0xff]
      %v1290 = vld [vmem:[%s3 + $0x20] sm:$0xff]
      %v1291 = vld [vmem:[%s3 + $0x28] sm:$0xff]
      %v1292 = vld [vmem:[%s3 + $0x30] sm:$0xff]
      %v1293 = vld [vmem:[%s3 + $0x38] sm:$0xff]
      %v1294 = vld [vmem:[%s3 + $0x40] sm:$0xff]
      %v1295 = vld [vmem:[%s3 + $0x48] sm:$0xff]
      %v1296 = vld [vmem:[%s3 + $0x50] sm:$0xff]
      %v1297 = vld [vmem:[%s3 + $0x58] sm:$0xff]
      %v1298 = vld [vmem:[%s3 + $0x60] sm:$0xff]
      %v1299 = vld [vmem:[%s3 + $0x68] sm:$0xff]
      %v1300 = vld [vmem:[%s3 + $0x70] sm:$0xff]
      %v1301 = vld [vmem:[%s3 + $0x78] sm:$0xff]
      %1302 = vxpose.xlu0.b32.start [1/16] %v965, 128
      %1303 = vxpose.xlu0.b32.cont [2/16] 0.0, 128
      %1304 = vxpose.xlu0.b32.cont [3/16] 0.0, 128
      %1305 = vxpose.xlu0.b32.cont [4/16] 0.0, 128
      %1306 = vxpose.xlu0.b32.cont [5/16] 0.0, 128
      %1307 = vxpose.xlu0.b32.cont [6/16] 0.0, 128
      %1308 = vxpose.xlu0.b32.cont [7/16] 0.0, 128
      %1309 = vxpose.xlu0.b32.cont [8/16] 0.0, 128
      %1310 = vxpose.xlu0.b32.cont [9/16] 0.0, 128
      %1311 = vxpose.xlu0.b32.cont [10/16] 0.0, 128
      %1312 = vxpose.xlu0.b32.cont [11/16] 0.0, 128
      %1313 = vxpose.xlu0.b32.cont [12/16] 0.0, 128
      %1314 = vxpose.xlu0.b32.cont [13/16] 0.0, 128
      %1315 = vxpose.xlu0.b32.cont [14/16] 0.0, 128
      %1316 = vxpose.xlu0.b32.cont [15/16] 0.0, 128
      %1317 = vxpose.xlu0.b32.end [16/16] 0.0, 128
      %v1318 = vpop.trf.xlu0
      %v1319 = vpop.trf.xlu0
      %v1320 = vpop.trf.xlu0
      %v1321 = vpop.trf.xlu0
      %v1322 = vpop.trf.xlu0
      %v1323 = vpop.trf.xlu0
      %v1324 = vpop.trf.xlu0
      %v1325 = vpop.trf.xlu0
      %v1326 = vpop.trf.xlu0
      %v1327 = vpop.trf.xlu0
      %v1328 = vpop.trf.xlu0
      %v1329 = vpop.trf.xlu0
      %v1330 = vpop.trf.xlu0
      %v1331 = vpop.trf.xlu0
      %v1332 = vpop.trf.xlu0
      %v1333 = vpop.trf.xlu0
      %vm1334 = vcmask 64512
      %v1336 = vsel %vm1334, %v1318, 0
      %v1339 = vsel %vm1334, %v1319, 0
      %v1342 = vsel %vm1334, %v1320, 0
      %v1345 = vsel %vm1334, %v1321, 0
      %v1348 = vsel %vm1334, %v1322, 0
      %v1351 = vsel %vm1334, %v1323, 0
      %v1354 = vsel %vm1334, %v1324, 0
      %v1357 = vsel %vm1334, %v1325, 0
      %v1360 = vsel %vm1334, %v1326, 0
      %v1363 = vsel %vm1334, %v1327, 0
      %v1366 = vsel %vm1334, %v1328, 0
      %v1369 = vsel %vm1334, %v1329, 0
      %v1372 = vsel %vm1334, %v1330, 0
      %v1375 = vsel %vm1334, %v1331, 0
      %v1378 = vsel %vm1334, %v1332, 0
      %v1381 = vsel %vm1334, %v1333, 0
      %1383 = vmatprep.subr.mxu0 0.0
      %1384 = vmatpush1.msra.mxu0 0.0
      %1385 = vmatprep.subr.mxu0 0.0
      %1386 = vmatpush1.msra.mxu0 0.0
      %1387 = vmatprep.subr.mxu0 0.0
      %1388 = vmatpush1.msra.mxu0 0.0
      %1389 = vmatprep.subr.mxu0 0.0
      %1390 = vmatpush1.msra.mxu0 0.0
      %1391 = vmatprep.subr.mxu0 0.0
      %1392 = vmatpush1.msra.mxu0 0.0
      %1393 = vmatprep.subr.mxu0 0.0
      %1394 = vmatpush1.msra.mxu0 0.0
      %1395 = vmatprep.subr.mxu0 0.0
      %1396 = vmatpush1.msra.mxu0 0.0
      %1397 = vmatprep.subr.mxu0 0.0
      %1398 = vmatpush1.msra.mxu0 0.0
      %1399 = vmatprep.subr.mxu0 0.0
      %1400 = vmatpush1.msra.mxu0 0.0
      %1401 = vmatprep.subr.mxu0 0.0
      %1402 = vmatpush1.msra.mxu0 0.0
      %1403 = vmatprep.subr.mxu0 0.0
      %1404 = vmatpush1.msra.mxu0 0.0
      %1405 = vmatprep.subr.mxu0 0.0
      %1406 = vmatpush1.msra.mxu0 0.0
      %1407 = vmatprep.subr.mxu0 0.0
      %1408 = vmatpush1.msra.mxu0 0.0
      %1409 = vmatprep.subr.mxu0 0.0
      %1410 = vmatpush1.msra.mxu0 0.0
      %1411 = vmatprep.subr.mxu0 0.0
      %1412 = vmatpush1.msra.mxu0 0.0
      %1413 = vmatprep.subr.mxu0 0.0
      %1414 = vmatpush1.msra.mxu0 %v1285
      %1415 = vmatprep.subr.mxu0 0.0
      %1416 = vmatpush2.msra.mxu0 0.0
      %1417 = vmatprep.subr.mxu0 0.0
      %1418 = vmatpush2.msra.mxu0 0.0
      %1419 = vmatprep.subr.mxu0 0.0
      %1420 = vmatpush2.msra.mxu0 0.0
      %1421 = vmatprep.subr.mxu0 0.0
      %1422 = vmatpush2.msra.mxu0 0.0
      %1423 = vmatprep.subr.mxu0 0.0
      %1424 = vmatpush2.msra.mxu0 0.0
      %1425 = vmatprep.subr.mxu0 0.0
      %1426 = vmatpush2.msra.mxu0 0.0
      %1427 = vmatprep.subr.mxu0 0.0
      %1428 = vmatpush2.msra.mxu0 0.0
      %1429 = vmatprep.subr.mxu0 0.0
      %1430 = vmatpush2.msra.mxu0 0.0
      %1431 = vmatprep.subr.mxu0 0.0
      %1432 = vmatpush2.msra.mxu0 0.0
      %1433 = vmatprep.subr.mxu0 0.0
      %1434 = vmatpush2.msra.mxu0 0.0
      %1435 = vmatprep.subr.mxu0 0.0
      %1436 = vmatpush2.msra.mxu0 0.0
      %1437 = vmatprep.subr.mxu0 0.0
      %1438 = vmatpush2.msra.mxu0 0.0
      %1439 = vmatprep.subr.mxu0 0.0
      %1440 = vmatpush2.msra.mxu0 0.0
      %1441 = vmatprep.subr.mxu0 0.0
      %1442 = vmatpush2.msra.mxu0 0.0
      %1443 = vmatprep.subr.mxu0 0.0
      %1444 = vmatpush2.msra.mxu0 0.0
      %1445 = vmatprep.subr.mxu0 0.0
      %1446 = vmatpush2.msra.mxu0 0.0
      %1447 = vmatprep.mubr.f32.mxu0 0.0
      %1448 = vmatmul.mubr.f32.gmra.mxu0 %v1336
      %v1449 = vpop.f32.mrf.mxu0
      %v1450 = vadd.f32 %v1286, %v1449
      %v1451 = vpop.f32.mrf.mxu0
      %1452 = vmatprep.mubr.f32.mxu0 0.0
      %1453 = vmatmul.mubr.f32.gmra.mxu0 %v1339
      %v1454 = vpop.f32.mrf.mxu0
      %v1455 = vadd.f32 %v1287, %v1454
      %v1456 = vpop.f32.mrf.mxu0
      %1457 = vmatprep.mubr.f32.mxu0 0.0
      %1458 = vmatmul.mubr.f32.gmra.mxu0 %v1342
      %v1459 = vpop.f32.mrf.mxu0
      %v1460 = vadd.f32 %v1288, %v1459
      %v1461 = vpop.f32.mrf.mxu0
      %1462 = vmatprep.mubr.f32.mxu0 0.0
      %1463 = vmatmul.mubr.f32.gmra.mxu0 %v1345
      %v1464 = vpop.f32.mrf.mxu0
      %v1465 = vadd.f32 %v1289, %v1464
      %v1466 = vpop.f32.mrf.mxu0
      %1467 = vmatprep.mubr.f32.mxu0 0.0
      %1468 = vmatmul.mubr.f32.gmra.mxu0 %v1348
      %v1469 = vpop.f32.mrf.mxu0
      %v1470 = vadd.f32 %v1290, %v1469
      %v1471 = vpop.f32.mrf.mxu0
      %1472 = vmatprep.mubr.f32.mxu0 0.0
      %1473 = vmatmul.mubr.f32.gmra.mxu0 %v1351
      %v1474 = vpop.f32.mrf.mxu0
      %v1475 = vadd.f32 %v1291, %v1474
      %v1476 = vpop.f32.mrf.mxu0
      %1477 = vmatprep.mubr.f32.mxu0 0.0
      %1478 = vmatmul.mubr.f32.gmra.mxu0 %v1354
      %v1479 = vpop.f32.mrf.mxu0
      %v1480 = vadd.f32 %v1292, %v1479
      %v1481 = vpop.f32.mrf.mxu0
      %1482 = vmatprep.mubr.f32.mxu0 0.0
      %1483 = vmatmul.mubr.f32.gmra.mxu0 %v1357
      %v1484 = vpop.f32.mrf.mxu0
      %v1485 = vadd.f32 %v1293, %v1484
      %v1486 = vpop.f32.mrf.mxu0
      %1487 = vmatprep.mubr.f32.mxu0 0.0
      %1488 = vmatmul.mubr.f32.gmra.mxu0 %v1360
      %v1489 = vpop.f32.mrf.mxu0
      %v1490 = vadd.f32 %v1294, %v1489
      %v1491 = vpop.f32.mrf.mxu0
      %1492 = vmatprep.mubr.f32.mxu0 0.0
      %1493 = vmatmul.mubr.f32.gmra.mxu0 %v1363
      %v1494 = vpop.f32.mrf.mxu0
      %v1495 = vadd.f32 %v1295, %v1494
      %v1496 = vpop.f32.mrf.mxu0
      %1497 = vmatprep.mubr.f32.mxu0 0.0
      %1498 = vmatmul.mubr.f32.gmra.mxu0 %v1366
      %v1499 = vpop.f32.mrf.mxu0
      %v1500 = vadd.f32 %v1296, %v1499
      %v1501 = vpop.f32.mrf.mxu0
      %1502 = vmatprep.mubr.f32.mxu0 0.0
      %1503 = vmatmul.mubr.f32.gmra.mxu0 %v1369
      %v1504 = vpop.f32.mrf.mxu0
      %v1505 = vadd.f32 %v1297, %v1504
      %v1506 = vpop.f32.mrf.mxu0
      %1507 = vmatprep.mubr.f32.mxu0 0.0
      %1508 = vmatmul.mubr.f32.gmra.mxu0 %v1372
      %v1509 = vpop.f32.mrf.mxu0
      %v1510 = vadd.f32 %v1298, %v1509
      %v1511 = vpop.f32.mrf.mxu0
      %1512 = vmatprep.mubr.f32.mxu0 0.0
      %1513 = vmatmul.mubr.f32.gmra.mxu0 %v1375
      %v1514 = vpop.f32.mrf.mxu0
      %v1515 = vadd.f32 %v1299, %v1514
      %v1516 = vpop.f32.mrf.mxu0
      %1517 = vmatprep.mubr.f32.mxu0 0.0
      %1518 = vmatmul.mubr.f32.gmra.mxu0 %v1378
      %v1519 = vpop.f32.mrf.mxu0
      %v1520 = vadd.f32 %v1300, %v1519
      %v1521 = vpop.f32.mrf.mxu0
      %1522 = vmatprep.mubr.f32.mxu0 0.0
      %1523 = vmatmul.mubr.f32.gmra.mxu0 %v1381
      %v1524 = vpop.f32.mrf.mxu0
      %v1525 = vadd.f32 %v1301, %v1524
      %v1526 = vpop.f32.mrf.mxu0
      %1527 = vdwg.mxu0
      %v1528 = vmax.f32 %v1450, %v1470
      %v1529 = vmax.f32 %v1455, %v1475
      %v1530 = vmax.f32 %v1460, %v1480
      %v1531 = vmax.f32 %v1465, %v1485
      %v1532 = vmax.f32 %v1528, %v1490
      %v1533 = vmax.f32 %v1529, %v1495
      %v1534 = vmax.f32 %v1530, %v1500
      %v1535 = vmax.f32 %v1531, %v1505
      %v1536 = vmax.f32 %v1532, %v1510
      %v1537 = vmax.f32 %v1533, %v1515
      %v1538 = vmax.f32 %v1534, %v1520
      %v1539 = vmax.f32 %v1535, %v1525
      %v1540 = vmax.f32 %v1536, %v1537
      %v1541 = vmax.f32 %v1538, %v1539
      %v1542 = vmax.f32 %v1540, %v1541
      %v1543 = vrot.slane %v1542, 4
      %v1544 = vmax.f32 %v1542, %v1543
      %v1545 = vrot.slane %v1544, 2
      %v1546 = vmax.f32 %v1544, %v1545
      %v1547 = vrot.slane %v1546, 1
      %v1548 = vmax.f32 %v1546, %v1547
      %v1549 = vsub.f32 %v1450, %v1548
      %v1550 = vsub.f32 %v1455, %v1548
      %v1551 = vsub.f32 %v1460, %v1548
      %v1552 = vsub.f32 %v1465, %v1548
      %v1553 = vsub.f32 %v1470, %v1548
      %v1554 = vsub.f32 %v1475, %v1548
      %v1555 = vsub.f32 %v1480, %v1548
      %v1556 = vsub.f32 %v1485, %v1548
      %v1557 = vsub.f32 %v1490, %v1548
      %v1558 = vsub.f32 %v1495, %v1548
      %v1559 = vsub.f32 %v1500, %v1548
      %v1560 = vsub.f32 %v1505, %v1548
      %v1561 = vsub.f32 %v1510, %v1548
      %v1562 = vsub.f32 %v1515, %v1548
      %v1563 = vsub.f32 %v1520, %v1548
      %v1564 = vsub.f32 %v1525, %v1548
      %v1565 = vmul.f32 %v1549, 1.442695
      %v1566 = vpow.pop %v1565
      %v1567 = vmul.f32 %v1550, 1.442695
      %v1568 = vpow.pop %v1567
      %v1569 = vmul.f32 %v1551, 1.442695
      %v1570 = vpow.pop %v1569
      %v1571 = vmul.f32 %v1552, 1.442695
      %v1572 = vpow.pop %v1571
      %v1573 = vmul.f32 %v1553, 1.442695
      %v1574 = vpow.pop %v1573
      %v1575 = vmul.f32 %v1554, 1.442695
      %v1576 = vpow.pop %v1575
      %v1577 = vmul.f32 %v1555, 1.442695
      %v1578 = vpow.pop %v1577
      %v1579 = vmul.f32 %v1556, 1.442695
      %v1580 = vpow.pop %v1579
      %v1581 = vmul.f32 %v1557, 1.442695
      %v1582 = vpow.pop %v1581
      %v1583 = vmul.f32 %v1558, 1.442695
      %v1584 = vpow.pop %v1583
      %v1585 = vmul.f32 %v1559, 1.442695
      %v1586 = vpow.pop %v1585
      %v1587 = vmul.f32 %v1560, 1.442695
      %v1588 = vpow.pop %v1587
      %v1589 = vmul.f32 %v1561, 1.442695
      %v1590 = vpow.pop %v1589
      %v1591 = vmul.f32 %v1562, 1.442695
      %v1592 = vpow.pop %v1591
      %v1593 = vmul.f32 %v1563, 1.442695
      %v1594 = vpow.pop %v1593
      %v1595 = vmul.f32 %v1564, 1.442695
      %v1596 = vpow.pop %v1595
      %v1597 = vadd.f32 %v1566, %v1568
      %v1598 = vadd.f32 %v1597, %v1570
      %v1599 = vadd.f32 %v1598, %v1572
      %v1600 = vadd.f32 %v1599, %v1574
      %v1601 = vadd.f32 %v1600, %v1576
      %v1602 = vadd.f32 %v1601, %v1578
      %v1603 = vadd.f32 %v1602, %v1580
      %v1604 = vadd.f32 %v1603, %v1582
      %v1605 = vadd.f32 %v1604, %v1584
      %v1606 = vadd.f32 %v1605, %v1586
      %v1607 = vadd.f32 %v1606, %v1588
      %v1608 = vadd.f32 %v1607, %v1590
      %v1609 = vadd.f32 %v1608, %v1592
      %v1610 = vadd.f32 %v1609, %v1594
      %v1611 = vadd.f32 %v1610, %v1596
      %v1612 = vrot.slane %v1611, 4
      %v1613 = vadd.f32 %v1611, %v1612
      %v1614 = vrot.slane %v1613, 2
      %v1615 = vadd.f32 %v1613, %v1614
      %v1616 = vrot.slane %v1615, 1
      %v1617 = vadd.f32 %v1615, %v1616
      %v1618 = vrcp.pop %v1617
      %v1619 = vmul.f32 1.0, %v1618
      %v1620 = vmul.f32 %v1566, %v1619
      %v1621 = vmul.f32 %v1568, %v1619
      %v1622 = vmul.f32 %v1570, %v1619
      %v1623 = vmul.f32 %v1572, %v1619
      %v1624 = vmul.f32 %v1574, %v1619
      %v1625 = vmul.f32 %v1576, %v1619
      %v1626 = vmul.f32 %v1578, %v1619
      %v1627 = vmul.f32 %v1580, %v1619
      %v1628 = vmul.f32 %v1582, %v1619
      %v1629 = vmul.f32 %v1584, %v1619
      %v1630 = vmul.f32 %v1586, %v1619
      %v1631 = vmul.f32 %v1588, %v1619
      %v1632 = vmul.f32 %v1590, %v1619
      %v1633 = vmul.f32 %v1592, %v1619
      %v1634 = vmul.f32 %v1594, %v1619
      %v1635 = vmul.f32 %v1596, %v1619
      %1636 = vmatprep.subr.mxu0 0.0
      %1637 = vmatpush1.msra.mxu0 %v1635
      %1638 = vmatprep.subr.mxu0 0.0
      %1639 = vmatpush1.msra.mxu0 %v1634
      %1640 = vmatprep.subr.mxu0 0.0
      %1641 = vmatpush1.msra.mxu0 %v1633
      %1642 = vmatprep.subr.mxu0 0.0
      %1643 = vmatpush1.msra.mxu0 %v1632
      %1644 = vmatprep.subr.mxu0 0.0
      %1645 = vmatpush1.msra.mxu0 %v1631
      %1646 = vmatprep.subr.mxu0 0.0
      %1647 = vmatpush1.msra.mxu0 %v1630
      %1648 = vmatprep.subr.mxu0 0.0
      %1649 = vmatpush1.msra.mxu0 %v1629
      %1650 = vmatprep.subr.mxu0 0.0
      %1651 = vmatpush1.msra.mxu0 %v1628
      %1652 = vmatprep.subr.mxu0 0.0
      %1653 = vmatpush1.msra.mxu0 %v1627
      %1654 = vmatprep.subr.mxu0 0.0
      %1655 = vmatpush1.msra.mxu0 %v1626
      %1656 = vmatprep.subr.mxu0 0.0
      %1657 = vmatpush1.msra.mxu0 %v1625
      %1658 = vmatprep.subr.mxu0 0.0
      %1659 = vmatpush1.msra.mxu0 %v1624
      %1660 = vmatprep.subr.mxu0 0.0
      %1661 = vmatpush1.msra.mxu0 %v1623
      %1662 = vmatprep.subr.mxu0 0.0
      %1663 = vmatpush1.msra.mxu0 %v1622
      %1664 = vmatprep.subr.mxu0 0.0
      %1665 = vmatpush1.msra.mxu0 %v1621
      %1666 = vmatprep.subr.mxu0 0.0
      %1667 = vmatpush1.msra.mxu0 %v1620
      %1668 = vmatprep.subr.mxu0 0.0
      %1669 = vmatpush2.msra.mxu0 0.0
      %1670 = vmatprep.subr.mxu0 0.0
      %1671 = vmatpush2.msra.mxu0 0.0
      %1672 = vmatprep.subr.mxu0 0.0
      %1673 = vmatpush2.msra.mxu0 0.0
      %1674 = vmatprep.subr.mxu0 0.0
      %1675 = vmatpush2.msra.mxu0 0.0
      %1676 = vmatprep.subr.mxu0 0.0
      %1677 = vmatpush2.msra.mxu0 0.0
      %1678 = vmatprep.subr.mxu0 0.0
      %1679 = vmatpush2.msra.mxu0 0.0
      %1680 = vmatprep.subr.mxu0 0.0
      %1681 = vmatpush2.msra.mxu0 0.0
      %1682 = vmatprep.subr.mxu0 0.0
      %1683 = vmatpush2.msra.mxu0 0.0
      %1684 = vmatprep.subr.mxu0 0.0
      %1685 = vmatpush2.msra.mxu0 0.0
      %1686 = vmatprep.subr.mxu0 0.0
      %1687 = vmatpush2.msra.mxu0 0.0
      %1688 = vmatprep.subr.mxu0 0.0
      %1689 = vmatpush2.msra.mxu0 0.0
      %1690 = vmatprep.subr.mxu0 0.0
      %1691 = vmatpush2.msra.mxu0 0.0
      %1692 = vmatprep.subr.mxu0 0.0
      %1693 = vmatpush2.msra.mxu0 0.0
      %1694 = vmatprep.subr.mxu0 0.0
      %1695 = vmatpush2.msra.mxu0 0.0
      %1696 = vmatprep.subr.mxu0 0.0
      %1697 = vmatpush2.msra.mxu0 0.0
      %1698 = vmatprep.subr.mxu0 0.0
      %1699 = vmatpush2.msra.mxu0 0.0
      %1700 = vmatprep.mubr.f32.mxu0 0.0
      %1701 = vmatmul.mubr.f32.gmra.mxu0 %v1125
      %v1702 = vpop.f32.mrf.mxu0
      %v1703 = vadd.f32 %v1125, %v1702
      %v1704 = vpop.f32.mrf.mxu0
      %1705 = vdwg.mxu0
      %1706 = vmatprep.subr.mxu0 0.0
      %1707 = vmatpush1.msra.mxu0 %v565
      %1708 = vmatprep.subr.mxu0 0.0
      %1709 = vmatpush1.msra.mxu0 %v564
      %1710 = vmatprep.subr.mxu0 0.0
      %1711 = vmatpush1.msra.mxu0 %v563
      %1712 = vmatprep.subr.mxu0 0.0
      %1713 = vmatpush1.msra.mxu0 %v562
      %1714 = vmatprep.subr.mxu0 0.0
      %1715 = vmatpush1.msra.mxu0 %v561
      %1716 = vmatprep.subr.mxu0 0.0
      %1717 = vmatpush1.msra.mxu0 %v560
      %1718 = vmatprep.subr.mxu0 0.0
      %1719 = vmatpush1.msra.mxu0 %v559
      %1720 = vmatprep.subr.mxu0 0.0
      %1721 = vmatpush1.msra.mxu0 %v558
      %1722 = vmatprep.subr.mxu0 0.0
      %1723 = vmatpush1.msra.mxu0 %v557
      %1724 = vmatprep.subr.mxu0 0.0
      %1725 = vmatpush1.msra.mxu0 %v556
      %1726 = vmatprep.subr.mxu0 0.0
      %1727 = vmatpush1.msra.mxu0 %v555
      %1728 = vmatprep.subr.mxu0 0.0
      %1729 = vmatpush1.msra.mxu0 %v554
      %1730 = vmatprep.subr.mxu0 0.0
      %1731 = vmatpush1.msra.mxu0 %v553
      %1732 = vmatprep.subr.mxu0 0.0
      %1733 = vmatpush1.msra.mxu0 %v552
      %1734 = vmatprep.subr.mxu0 0.0
      %1735 = vmatpush1.msra.mxu0 %v551
      %1736 = vmatprep.subr.mxu0 0.0
      %1737 = vmatpush1.msra.mxu0 %v550
      %1738 = vmatprep.subr.mxu0 0.0
      %1739 = vmatpush2.msra.mxu0 0.0
      %1740 = vmatprep.subr.mxu0 0.0
      %1741 = vmatpush2.msra.mxu0 0.0
      %1742 = vmatprep.subr.mxu0 0.0
      %1743 = vmatpush2.msra.mxu0 0.0
      %1744 = vmatprep.subr.mxu0 0.0
      %1745 = vmatpush2.msra.mxu0 0.0
      %1746 = vmatprep.subr.mxu0 0.0
      %1747 = vmatpush2.msra.mxu0 0.0
      %1748 = vmatprep.subr.mxu0 0.0
      %1749 = vmatpush2.msra.mxu0 0.0
      %1750 = vmatprep.subr.mxu0 0.0
      %1751 = vmatpush2.msra.mxu0 0.0
      %1752 = vmatprep.subr.mxu0 0.0
      %1753 = vmatpush2.msra.mxu0 0.0
      %1754 = vmatprep.subr.mxu0 0.0
      %1755 = vmatpush2.msra.mxu0 0.0
      %1756 = vmatprep.subr.mxu0 0.0
      %1757 = vmatpush2.msra.mxu0 0.0
      %1758 = vmatprep.subr.mxu0 0.0
      %1759 = vmatpush2.msra.mxu0 0.0
      %1760 = vmatprep.subr.mxu0 0.0
      %1761 = vmatpush2.msra.mxu0 0.0
      %1762 = vmatprep.subr.mxu0 0.0
      %1763 = vmatpush2.msra.mxu0 0.0
      %1764 = vmatprep.subr.mxu0 0.0
      %1765 = vmatpush2.msra.mxu0 0.0
      %1766 = vmatprep.subr.mxu0 0.0
      %1767 = vmatpush2.msra.mxu0 0.0
      %1768 = vmatprep.subr.mxu0 0.0
      %1769 = vmatpush2.msra.mxu0 0.0
      %1770 = vmatprep.mubr.f32.mxu0 0.0
      %1771 = vmatmul.mubr.f32.gmra.mxu0 %v779
      %v1772 = vpop.f32.mrf.mxu0
      %v1773 = vadd.f32 0.0, %v1772
      %v1774 = vpop.f32.mrf.mxu0
      %1775 = vdwg.mxu0
      %v1776 = vrot.slane %v1773, 4
      %v1777 = vadd.f32 %v1773, %v1776
      %v1778 = vrot.slane %v1777, 2
      %v1779 = vadd.f32 %v1777, %v1778
      %v1780 = vrot.slane %v1779, 1
      %v1781 = vadd.f32 %v1779, %v1780
      %v1782 = vmul.f32 %v1781, 0.2
      %v1783 = vsub.f32 %v779, %v1782
      %v1784 = vmul.f32 %v1783, %v802
      %v1785 = vmul.f32 %v1784, %v1784
      %1786 = vmatprep.subr.mxu0 0.0
      %1787 = vmatpush1.msra.mxu0 %v565
      %1788 = vmatprep.subr.mxu0 0.0
      %1789 = vmatpush1.msra.mxu0 %v564
      %1790 = vmatprep.subr.mxu0 0.0
      %1791 = vmatpush1.msra.mxu0 %v563
      %1792 = vmatprep.subr.mxu0 0.0
      %1793 = vmatpush1.msra.mxu0 %v562
      %1794 = vmatprep.subr.mxu0 0.0
      %1795 = vmatpush1.msra.mxu0 %v561
      %1796 = vmatprep.subr.mxu0 0.0
      %1797 = vmatpush1.msra.mxu0 %v560
      %1798 = vmatprep.subr.mxu0 0.0
      %1799 = vmatpush1.msra.mxu0 %v559
      %1800 = vmatprep.subr.mxu0 0.0
      %1801 = vmatpush1.msra.mxu0 %v558
      %1802 = vmatprep.subr.mxu0 0.0
      %1803 = vmatpush1.msra.mxu0 %v557
      %1804 = vmatprep.subr.mxu0 0.0
      %1805 = vmatpush1.msra.mxu0 %v556
      %1806 = vmatprep.subr.mxu0 0.0
      %1807 = vmatpush1.msra.mxu0 %v555
      %1808 = vmatprep.subr.mxu0 0.0
      %1809 = vmatpush1.msra.mxu0 %v554
      %1810 = vmatprep.subr.mxu0 0.0
      %1811 = vmatpush1.msra.mxu0 %v553
      %1812 = vmatprep.subr.mxu0 0.0
      %1813 = vmatpush1.msra.mxu0 %v552
      %1814 = vmatprep.subr.mxu0 0.0
      %1815 = vmatpush1.msra.mxu0 %v551
      %1816 = vmatprep.subr.mxu0 0.0
      %1817 = vmatpush1.msra.mxu0 %v550
      %1818 = vmatprep.subr.mxu0 0.0
      %1819 = vmatpush2.msra.mxu0 0.0
      %1820 = vmatprep.subr.mxu0 0.0
      %1821 = vmatpush2.msra.mxu0 0.0
      %1822 = vmatprep.subr.mxu0 0.0
      %1823 = vmatpush2.msra.mxu0 0.0
      %1824 = vmatprep.subr.mxu0 0.0
      %1825 = vmatpush2.msra.mxu0 0.0
      %1826 = vmatprep.subr.mxu0 0.0
      %1827 = vmatpush2.msra.mxu0 0.0
      %1828 = vmatprep.subr.mxu0 0.0
      %1829 = vmatpush2.msra.mxu0 0.0
      %1830 = vmatprep.subr.mxu0 0.0
      %1831 = vmatpush2.msra.mxu0 0.0
      %1832 = vmatprep.subr.mxu0 0.0
      %1833 = vmatpush2.msra.mxu0 0.0
      %1834 = vmatprep.subr.mxu0 0.0
      %1835 = vmatpush2.msra.mxu0 0.0
      %1836 = vmatprep.subr.mxu0 0.0
      %1837 = vmatpush2.msra.mxu0 0.0
      %1838 = vmatprep.subr.mxu0 0.0
      %1839 = vmatpush2.msra.mxu0 0.0
      %1840 = vmatprep.subr.mxu0 0.0
      %1841 = vmatpush2.msra.mxu0 0.0
      %1842 = vmatprep.subr.mxu0 0.0
      %1843 = vmatpush2.msra.mxu0 0.0
      %1844 = vmatprep.subr.mxu0 0.0
      %1845 = vmatpush2.msra.mxu0 0.0
      %1846 = vmatprep.subr.mxu0 0.0
      %1847 = vmatpush2.msra.mxu0 0.0
      %1848 = vmatprep.subr.mxu0 0.0
      %1849 = vmatpush2.msra.mxu0 0.0
      %1850 = vmatprep.mubr.f32.mxu0 0.0
      %1851 = vmatmul.mubr.f32.gmra.mxu0 %v1785
      %v1852 = vpop.f32.mrf.mxu0
      %v1853 = vadd.f32 0.0, %v1852
      %v1854 = vpop.f32.mrf.mxu0
      %1855 = vdwg.mxu0
      %v1856 = vrot.slane %v1853, 4
      %v1857 = vadd.f32 %v1853, %v1856
      %v1858 = vrot.slane %v1857, 2
      %v1859 = vadd.f32 %v1857, %v1858
      %v1860 = vrot.slane %v1859, 1
      %v1861 = vadd.f32 %v1859, %v1860
      %v1862 = vmul.f32 %v1861, 0.2
      %v1863 = vadd.f32 %v1862, 1e-05
      %v1864 = vrsqrt.pop %v1863
      %v1865 = vmul.f32 %v1784, %v1864
      %1866 = vmatprep.subr.mxu0 0.0
      %1867 = vmatpush1.msra.mxu0 %v565
      %1868 = vmatprep.subr.mxu0 0.0
      %1869 = vmatpush1.msra.mxu0 %v564
      %1870 = vmatprep.subr.mxu0 0.0
      %1871 = vmatpush1.msra.mxu0 %v563
      %1872 = vmatprep.subr.mxu0 0.0
      %1873 = vmatpush1.msra.mxu0 %v562
      %1874 = vmatprep.subr.mxu0 0.0
      %1875 = vmatpush1.msra.mxu0 %v561
      %1876 = vmatprep.subr.mxu0 0.0
      %1877 = vmatpush1.msra.mxu0 %v560
      %1878 = vmatprep.subr.mxu0 0.0
      %1879 = vmatpush1.msra.mxu0 %v559
      %1880 = vmatprep.subr.mxu0 0.0
      %1881 = vmatpush1.msra.mxu0 %v558
      %1882 = vmatprep.subr.mxu0 0.0
      %1883 = vmatpush1.msra.mxu0 %v557
      %1884 = vmatprep.subr.mxu0 0.0
      %1885 = vmatpush1.msra.mxu0 %v556
      %1886 = vmatprep.subr.mxu0 0.0
      %1887 = vmatpush1.msra.mxu0 %v555
      %1888 = vmatprep.subr.mxu0 0.0
      %1889 = vmatpush1.msra.mxu0 %v554
      %1890 = vmatprep.subr.mxu0 0.0
      %1891 = vmatpush1.msra.mxu0 %v553
      %1892 = vmatprep.subr.mxu0 0.0
      %1893 = vmatpush1.msra.mxu0 %v552
      %1894 = vmatprep.subr.mxu0 0.0
      %1895 = vmatpush1.msra.mxu0 %v551
      %1896 = vmatprep.subr.mxu0 0.0
      %1897 = vmatpush1.msra.mxu0 %v550
      %1898 = vmatprep.subr.mxu0 0.0
      %1899 = vmatpush2.msra.mxu0 0.0
      %1900 = vmatprep.subr.mxu0 0.0
      %1901 = vmatpush2.msra.mxu0 0.0
      %1902 = vmatprep.subr.mxu0 0.0
      %1903 = vmatpush2.msra.mxu0 0.0
      %1904 = vmatprep.subr.mxu0 0.0
      %1905 = vmatpush2.msra.mxu0 0.0
      %1906 = vmatprep.subr.mxu0 0.0
      %1907 = vmatpush2.msra.mxu0 0.0
      %1908 = vmatprep.subr.mxu0 0.0
      %1909 = vmatpush2.msra.mxu0 0.0
      %1910 = vmatprep.subr.mxu0 0.0
      %1911 = vmatpush2.msra.mxu0 0.0
      %1912 = vmatprep.subr.mxu0 0.0
      %1913 = vmatpush2.msra.mxu0 0.0
      %1914 = vmatprep.subr.mxu0 0.0
      %1915 = vmatpush2.msra.mxu0 0.0
      %1916 = vmatprep.subr.mxu0 0.0
      %1917 = vmatpush2.msra.mxu0 0.0
      %1918 = vmatprep.subr.mxu0 0.0
      %1919 = vmatpush2.msra.mxu0 0.0
      %1920 = vmatprep.subr.mxu0 0.0
      %1921 = vmatpush2.msra.mxu0 0.0
      %1922 = vmatprep.subr.mxu0 0.0
      %1923 = vmatpush2.msra.mxu0 0.0
      %1924 = vmatprep.subr.mxu0 0.0
      %1925 = vmatpush2.msra.mxu0 0.0
      %1926 = vmatprep.subr.mxu0 0.0
      %1927 = vmatpush2.msra.mxu0 0.0
      %1928 = vmatprep.subr.mxu0 0.0
      %1929 = vmatpush2.msra.mxu0 0.0
      %1930 = vmatprep.mubr.f32.mxu0 0.0
      %1931 = vmatmul.mubr.f32.gmra.mxu0 %v787
      %v1932 = vpop.f32.mrf.mxu0
      %v1933 = vadd.f32 0.0, %v1932
      %v1934 = vpop.f32.mrf.mxu0
      %1935 = vdwg.mxu0
      %v1936 = vrot.slane %v1933, 4
      %v1937 = vadd.f32 %v1933, %v1936
      %v1938 = vrot.slane %v1937, 2
      %v1939 = vadd.f32 %v1937, %v1938
      %v1940 = vrot.slane %v1939, 1
      %v1941 = vadd.f32 %v1939, %v1940
      %v1942 = vmul.f32 %v1941, 0.16666667
      %v1943 = vsub.f32 %v787, %v1942
      %v1944 = vmul.f32 %v1943, %v805
      %v1945 = vmul.f32 %v1944, %v1944
      %1946 = vmatprep.subr.mxu0 0.0
      %1947 = vmatpush1.msra.mxu0 %v565
      %1948 = vmatprep.subr.mxu0 0.0
      %1949 = vmatpush1.msra.mxu0 %v564
      %1950 = vmatprep.subr.mxu0 0.0
      %1951 = vmatpush1.msra.mxu0 %v563
      %1952 = vmatprep.subr.mxu0 0.0
      %1953 = vmatpush1.msra.mxu0 %v562
      %1954 = vmatprep.subr.mxu0 0.0
      %1955 = vmatpush1.msra.mxu0 %v561
      %1956 = vmatprep.subr.mxu0 0.0
      %1957 = vmatpush1.msra.mxu0 %v560
      %1958 = vmatprep.subr.mxu0 0.0
      %1959 = vmatpush1.msra.mxu0 %v559
      %1960 = vmatprep.subr.mxu0 0.0
      %1961 = vmatpush1.msra.mxu0 %v558
      %1962 = vmatprep.subr.mxu0 0.0
      %1963 = vmatpush1.msra.mxu0 %v557
      %1964 = vmatprep.subr.mxu0 0.0
      %1965 = vmatpush1.msra.mxu0 %v556
      %1966 = vmatprep.subr.mxu0 0.0
      %1967 = vmatpush1.msra.mxu0 %v555
      %1968 = vmatprep.subr.mxu0 0.0
      %1969 = vmatpush1.msra.mxu0 %v554
      %1970 = vmatprep.subr.mxu0 0.0
      %1971 = vmatpush1.msra.mxu0 %v553
      %1972 = vmatprep.subr.mxu0 0.0
      %1973 = vmatpush1.msra.mxu0 %v552
      %1974 = vmatprep.subr.mxu0 0.0
      %1975 = vmatpush1.msra.mxu0 %v551
      %1976 = vmatprep.subr.mxu0 0.0
      %1977 = vmatpush1.msra.mxu0 %v550
      %1978 = vmatprep.subr.mxu0 0.0
      %1979 = vmatpush2.msra.mxu0 0.0
      %1980 = vmatprep.subr.mxu0 0.0
      %1981 = vmatpush2.msra.mxu0 0.0
      %1982 = vmatprep.subr.mxu0 0.0
      %1983 = vmatpush2.msra.mxu0 0.0
      %1984 = vmatprep.subr.mxu0 0.0
      %1985 = vmatpush2.msra.mxu0 0.0
      %1986 = vmatprep.subr.mxu0 0.0
      %1987 = vmatpush2.msra.mxu0 0.0
      %1988 = vmatprep.subr.mxu0 0.0
      %1989 = vmatpush2.msra.mxu0 0.0
      %1990 = vmatprep.subr.mxu0 0.0
      %1991 = vmatpush2.msra.mxu0 0.0
      %1992 = vmatprep.subr.mxu0 0.0
      %1993 = vmatpush2.msra.mxu0 0.0
      %1994 = vmatprep.subr.mxu0 0.0
      %1995 = vmatpush2.msra.mxu0 0.0
      %1996 = vmatprep.subr.mxu0 0.0
      %1997 = vmatpush2.msra.mxu0 0.0
      %1998 = vmatprep.subr.mxu0 0.0
      %1999 = vmatpush2.msra.mxu0 0.0
      %2000 = vmatprep.subr.mxu0 0.0
      %2001 = vmatpush2.msra.mxu0 0.0
      %2002 = vmatprep.subr.mxu0 0.0
      %2003 = vmatpush2.msra.mxu0 0.0
      %2004 = vmatprep.subr.mxu0 0.0
      %2005 = vmatpush2.msra.mxu0 0.0
      %2006 = vmatprep.subr.mxu0 0.0
      %2007 = vmatpush2.msra.mxu0 0.0
      %2008 = vmatprep.subr.mxu0 0.0
      %2009 = vmatpush2.msra.mxu0 0.0
      %2010 = vmatprep.mubr.f32.mxu0 0.0
      %2011 = vmatmul.mubr.f32.gmra.mxu0 %v1945
      %v2012 = vpop.f32.mrf.mxu0
      %v2013 = vadd.f32 0.0, %v2012
      %v2014 = vpop.f32.mrf.mxu0
      %2015 = vdwg.mxu0
      %v2016 = vrot.slane %v2013, 4
      %v2017 = vadd.f32 %v2013, %v2016
      %v2018 = vrot.slane %v2017, 2
      %v2019 = vadd.f32 %v2017, %v2018
      %v2020 = vrot.slane %v2019, 1
      %v2021 = vadd.f32 %v2019, %v2020
      %v2022 = vmul.f32 %v2021, 0.16666667
      %v2023 = vadd.f32 %v2022, 1e-05
      %v2024 = vrsqrt.pop %v2023
      %v2025 = vmul.f32 %v1944, %v2024
      %2026 = vmatprep.subr.mxu0 0.0
      %2027 = vmatpush1.msra.mxu0 %v565
      %2028 = vmatprep.subr.mxu0 0.0
      %2029 = vmatpush1.msra.mxu0 %v564
      %2030 = vmatprep.subr.mxu0 0.0
      %2031 = vmatpush1.msra.mxu0 %v563
      %2032 = vmatprep.subr.mxu0 0.0
      %2033 = vmatpush1.msra.mxu0 %v562
      %2034 = vmatprep.subr.mxu0 0.0
      %2035 = vmatpush1.msra.mxu0 %v561
      %2036 = vmatprep.subr.mxu0 0.0
      %2037 = vmatpush1.msra.mxu0 %v560
      %2038 = vmatprep.subr.mxu0 0.0
      %2039 = vmatpush1.msra.mxu0 %v559
      %2040 = vmatprep.subr.mxu0 0.0
      %2041 = vmatpush1.msra.mxu0 %v558
      %2042 = vmatprep.subr.mxu0 0.0
      %2043 = vmatpush1.msra.mxu0 %v557
      %2044 = vmatprep.subr.mxu0 0.0
      %2045 = vmatpush1.msra.mxu0 %v556
      %2046 = vmatprep.subr.mxu0 0.0
      %2047 = vmatpush1.msra.mxu0 %v555
      %2048 = vmatprep.subr.mxu0 0.0
      %2049 = vmatpush1.msra.mxu0 %v554
      %2050 = vmatprep.subr.mxu0 0.0
      %2051 = vmatpush1.msra.mxu0 %v553
      %2052 = vmatprep.subr.mxu0 0.0
      %2053 = vmatpush1.msra.mxu0 %v552
      %2054 = vmatprep.subr.mxu0 0.0
      %2055 = vmatpush1.msra.mxu0 %v551
      %2056 = vmatprep.subr.mxu0 0.0
      %2057 = vmatpush1.msra.mxu0 %v550
      %2058 = vmatprep.subr.mxu0 0.0
      %2059 = vmatpush2.msra.mxu0 0.0
      %2060 = vmatprep.subr.mxu0 0.0
      %2061 = vmatpush2.msra.mxu0 0.0
      %2062 = vmatprep.subr.mxu0 0.0
      %2063 = vmatpush2.msra.mxu0 0.0
      %2064 = vmatprep.subr.mxu0 0.0
      %2065 = vmatpush2.msra.mxu0 0.0
      %2066 = vmatprep.subr.mxu0 0.0
      %2067 = vmatpush2.msra.mxu0 0.0
      %2068 = vmatprep.subr.mxu0 0.0
      %2069 = vmatpush2.msra.mxu0 0.0
      %2070 = vmatprep.subr.mxu0 0.0
      %2071 = vmatpush2.msra.mxu0 0.0
      %2072 = vmatprep.subr.mxu0 0.0
      %2073 = vmatpush2.msra.mxu0 0.0
      %2074 = vmatprep.subr.mxu0 0.0
      %2075 = vmatpush2.msra.mxu0 0.0
      %2076 = vmatprep.subr.mxu0 0.0
      %2077 = vmatpush2.msra.mxu0 0.0
      %2078 = vmatprep.subr.mxu0 0.0
      %2079 = vmatpush2.msra.mxu0 0.0
      %2080 = vmatprep.subr.mxu0 0.0
      %2081 = vmatpush2.msra.mxu0 0.0
      %2082 = vmatprep.subr.mxu0 0.0
      %2083 = vmatpush2.msra.mxu0 0.0
      %2084 = vmatprep.subr.mxu0 0.0
      %2085 = vmatpush2.msra.mxu0 0.0
      %2086 = vmatprep.subr.mxu0 0.0
      %2087 = vmatpush2.msra.mxu0 0.0
      %2088 = vmatprep.subr.mxu0 0.0
      %2089 = vmatpush2.msra.mxu0 0.0
      %2090 = vmatprep.mubr.f32.mxu0 0.0
      %2091 = vmatmul.mubr.f32.gmra.mxu0 %v795
      %v2092 = vpop.f32.mrf.mxu0
      %v2093 = vadd.f32 0.0, %v2092
      %v2094 = vpop.f32.mrf.mxu0
      %2095 = vdwg.mxu0
      %v2096 = vrot.slane %v2093, 4
      %v2097 = vadd.f32 %v2093, %v2096
      %v2098 = vrot.slane %v2097, 2
      %v2099 = vadd.f32 %v2097, %v2098
      %v2100 = vrot.slane %v2099, 1
      %v2101 = vadd.f32 %v2099, %v2100
      %v2102 = vmul.f32 %v2101, 0.2
      %v2103 = vsub.f32 %v795, %v2102
      %v2104 = vmul.f32 %v2103, %v802
      %v2105 = vmul.f32 %v2104, %v2104
      %2106 = vmatprep.subr.mxu0 0.0
      %2107 = vmatpush1.msra.mxu0 %v565
      %2108 = vmatprep.subr.mxu0 0.0
      %2109 = vmatpush1.msra.mxu0 %v564
      %2110 = vmatprep.subr.mxu0 0.0
      %2111 = vmatpush1.msra.mxu0 %v563
      %2112 = vmatprep.subr.mxu0 0.0
      %2113 = vmatpush1.msra.mxu0 %v562
      %2114 = vmatprep.subr.mxu0 0.0
      %2115 = vmatpush1.msra.mxu0 %v561
      %2116 = vmatprep.subr.mxu0 0.0
      %2117 = vmatpush1.msra.mxu0 %v560
      %2118 = vmatprep.subr.mxu0 0.0
      %2119 = vmatpush1.msra.mxu0 %v559
      %2120 = vmatprep.subr.mxu0 0.0
      %2121 = vmatpush1.msra.mxu0 %v558
      %2122 = vmatprep.subr.mxu0 0.0
      %2123 = vmatpush1.msra.mxu0 %v557
      %2124 = vmatprep.subr.mxu0 0.0
      %2125 = vmatpush1.msra.mxu0 %v556
      %2126 = vmatprep.subr.mxu0 0.0
      %2127 = vmatpush1.msra.mxu0 %v555
      %2128 = vmatprep.subr.mxu0 0.0
      %2129 = vmatpush1.msra.mxu0 %v554
      %2130 = vmatprep.subr.mxu0 0.0
      %2131 = vmatpush1.msra.mxu0 %v553
      %2132 = vmatprep.subr.mxu0 0.0
      %2133 = vmatpush1.msra.mxu0 %v552
      %2134 = vmatprep.subr.mxu0 0.0
      %2135 = vmatpush1.msra.mxu0 %v551
      %2136 = vmatprep.subr.mxu0 0.0
      %2137 = vmatpush1.msra.mxu0 %v550
      %2138 = vmatprep.subr.mxu0 0.0
      %2139 = vmatpush2.msra.mxu0 0.0
      %2140 = vmatprep.subr.mxu0 0.0
      %2141 = vmatpush2.msra.mxu0 0.0
      %2142 = vmatprep.subr.mxu0 0.0
      %2143 = vmatpush2.msra.mxu0 0.0
      %2144 = vmatprep.subr.mxu0 0.0
      %2145 = vmatpush2.msra.mxu0 0.0
      %2146 = vmatprep.subr.mxu0 0.0
      %2147 = vmatpush2.msra.mxu0 0.0
      %2148 = vmatprep.subr.mxu0 0.0
      %2149 = vmatpush2.msra.mxu0 0.0
      %2150 = vmatprep.subr.mxu0 0.0
      %2151 = vmatpush2.msra.mxu0 0.0
      %2152 = vmatprep.subr.mxu0 0.0
      %2153 = vmatpush2.msra.mxu0 0.0
      %2154 = vmatprep.subr.mxu0 0.0
      %2155 = vmatpush2.msra.mxu0 0.0
      %2156 = vmatprep.subr.mxu0 0.0
      %2157 = vmatpush2.msra.mxu0 0.0
      %2158 = vmatprep.subr.mxu0 0.0
      %2159 = vmatpush2.msra.mxu0 0.0
      %2160 = vmatprep.subr.mxu0 0.0
      %2161 = vmatpush2.msra.mxu0 0.0
      %2162 = vmatprep.subr.mxu0 0.0
      %2163 = vmatpush2.msra.mxu0 0.0
      %2164 = vmatprep.subr.mxu0 0.0
      %2165 = vmatpush2.msra.mxu0 0.0
      %2166 = vmatprep.subr.mxu0 0.0
      %2167 = vmatpush2.msra.mxu0 0.0
      %2168 = vmatprep.subr.mxu0 0.0
      %2169 = vmatpush2.msra.mxu0 0.0
      %2170 = vmatprep.mubr.f32.mxu0 0.0
      %2171 = vmatmul.mubr.f32.gmra.mxu0 %v2105
      %v2172 = vpop.f32.mrf.mxu0
      %v2173 = vadd.f32 0.0, %v2172
      %v2174 = vpop.f32.mrf.mxu0
      %2175 = vdwg.mxu0
      %v2176 = vrot.slane %v2173, 4
      %v2177 = vadd.f32 %v2173, %v2176
      %v2178 = vrot.slane %v2177, 2
      %v2179 = vadd.f32 %v2177, %v2178
      %v2180 = vrot.slane %v2179, 1
      %v2181 = vadd.f32 %v2179, %v2180
      %v2182 = vmul.f32 %v2181, 0.2
      %v2183 = vadd.f32 %v2182, 1e-05
      %v2184 = vrsqrt.pop %v2183
      %v2185 = vmul.f32 %v2104, %v2184
      %2186 = vxpose.xlu0.b32.start [1/16] %v1865, 128
      %2187 = vxpose.xlu0.b32.cont [2/16] 0.0, 128
      %2188 = vxpose.xlu0.b32.cont [3/16] 0.0, 128
      %2189 = vxpose.xlu0.b32.cont [4/16] 0.0, 128
      %2190 = vxpose.xlu0.b32.cont [5/16] 0.0, 128
      %2191 = vxpose.xlu0.b32.cont [6/16] 0.0, 128
      %2192 = vxpose.xlu0.b32.cont [7/16] 0.0, 128
      %2193 = vxpose.xlu0.b32.cont [8/16] 0.0, 128
      %2194 = vxpose.xlu0.b32.cont [9/16] 0.0, 128
      %2195 = vxpose.xlu0.b32.cont [10/16] 0.0, 128
      %2196 = vxpose.xlu0.b32.cont [11/16] 0.0, 128
      %2197 = vxpose.xlu0.b32.cont [12/16] 0.0, 128
      %2198 = vxpose.xlu0.b32.cont [13/16] 0.0, 128
      %2199 = vxpose.xlu0.b32.cont [14/16] 0.0, 128
      %2200 = vxpose.xlu0.b32.cont [15/16] 0.0, 128
      %2201 = vxpose.xlu0.b32.end [16/16] 0.0, 128
      %v2202 = vpop.trf.xlu0
      %v2203 = vpop.trf.xlu0
      %v2204 = vpop.trf.xlu0
      %v2205 = vpop.trf.xlu0
      %v2206 = vpop.trf.xlu0
      %v2207 = vpop.trf.xlu0
      %v2208 = vpop.trf.xlu0
      %v2209 = vpop.trf.xlu0
      %v2210 = vpop.trf.xlu0
      %v2211 = vpop.trf.xlu0
      %v2212 = vpop.trf.xlu0
      %v2213 = vpop.trf.xlu0
      %v2214 = vpop.trf.xlu0
      %v2215 = vpop.trf.xlu0
      %v2216 = vpop.trf.xlu0
      %v2217 = vpop.trf.xlu0
      %v2219 = vsel %vm1334, %v2202, 0
      %v2222 = vsel %vm1334, %v2203, 0
      %v2225 = vsel %vm1334, %v2204, 0
      %v2228 = vsel %vm1334, %v2205, 0
      %v2231 = vsel %vm1334, %v2206, 0
      %v2234 = vsel %vm1334, %v2207, 0
      %v2237 = vsel %vm1334, %v2208, 0
      %v2240 = vsel %vm1334, %v2209, 0
      %v2243 = vsel %vm1334, %v2210, 0
      %v2246 = vsel %vm1334, %v2211, 0
      %v2249 = vsel %vm1334, %v2212, 0
      %v2252 = vsel %vm1334, %v2213, 0
      %v2255 = vsel %vm1334, %v2214, 0
      %v2258 = vsel %vm1334, %v2215, 0
      %v2261 = vsel %vm1334, %v2216, 0
      %v2264 = vsel %vm1334, %v2217, 0
      %2266 = vmatprep.subr.mxu0 0.0
      %2267 = vmatpush1.msra.mxu0 0.0
      %2268 = vmatprep.subr.mxu0 0.0
      %2269 = vmatpush1.msra.mxu0 0.0
      %2270 = vmatprep.subr.mxu0 0.0
      %2271 = vmatpush1.msra.mxu0 0.0
      %2272 = vmatprep.subr.mxu0 0.0
      %2273 = vmatpush1.msra.mxu0 0.0
      %2274 = vmatprep.subr.mxu0 0.0
      %2275 = vmatpush1.msra.mxu0 0.0
      %2276 = vmatprep.subr.mxu0 0.0
      %2277 = vmatpush1.msra.mxu0 0.0
      %2278 = vmatprep.subr.mxu0 0.0
      %2279 = vmatpush1.msra.mxu0 0.0
      %2280 = vmatprep.subr.mxu0 0.0
      %2281 = vmatpush1.msra.mxu0 0.0
      %2282 = vmatprep.subr.mxu0 0.0
      %2283 = vmatpush1.msra.mxu0 0.0
      %2284 = vmatprep.subr.mxu0 0.0
      %2285 = vmatpush1.msra.mxu0 0.0
      %2286 = vmatprep.subr.mxu0 0.0
      %2287 = vmatpush1.msra.mxu0 0.0
      %2288 = vmatprep.subr.mxu0 0.0
      %2289 = vmatpush1.msra.mxu0 0.0
      %2290 = vmatprep.subr.mxu0 0.0
      %2291 = vmatpush1.msra.mxu0 0.0
      %2292 = vmatprep.subr.mxu0 0.0
      %2293 = vmatpush1.msra.mxu0 0.0
      %2294 = vmatprep.subr.mxu0 0.0
      %2295 = vmatpush1.msra.mxu0 0.0
      %2296 = vmatprep.subr.mxu0 0.0
      %2297 = vmatpush1.msra.mxu0 %v2185
      %2298 = vmatprep.subr.mxu0 0.0
      %2299 = vmatpush2.msra.mxu0 0.0
      %2300 = vmatprep.subr.mxu0 0.0
      %2301 = vmatpush2.msra.mxu0 0.0
      %2302 = vmatprep.subr.mxu0 0.0
      %2303 = vmatpush2.msra.mxu0 0.0
      %2304 = vmatprep.subr.mxu0 0.0
      %2305 = vmatpush2.msra.mxu0 0.0
      %2306 = vmatprep.subr.mxu0 0.0
      %2307 = vmatpush2.msra.mxu0 0.0
      %2308 = vmatprep.subr.mxu0 0.0
      %2309 = vmatpush2.msra.mxu0 0.0
      %2310 = vmatprep.subr.mxu0 0.0
      %2311 = vmatpush2.msra.mxu0 0.0
      %2312 = vmatprep.subr.mxu0 0.0
      %2313 = vmatpush2.msra.mxu0 0.0
      %2314 = vmatprep.subr.mxu0 0.0
      %2315 = vmatpush2.msra.mxu0 0.0
      %2316 = vmatprep.subr.mxu0 0.0
      %2317 = vmatpush2.msra.mxu0 0.0
      %2318 = vmatprep.subr.mxu0 0.0
      %2319 = vmatpush2.msra.mxu0 0.0
      %2320 = vmatprep.subr.mxu0 0.0
      %2321 = vmatpush2.msra.mxu0 0.0
      %2322 = vmatprep.subr.mxu0 0.0
      %2323 = vmatpush2.msra.mxu0 0.0
      %2324 = vmatprep.subr.mxu0 0.0
      %2325 = vmatpush2.msra.mxu0 0.0
      %2326 = vmatprep.subr.mxu0 0.0
      %2327 = vmatpush2.msra.mxu0 0.0
      %2328 = vmatprep.subr.mxu0 0.0
      %2329 = vmatpush2.msra.mxu0 0.0
      %2330 = vmatprep.mubr.f32.mxu0 0.0
      %2331 = vmatmul.mubr.f32.gmra.mxu0 %v2219
      %v2332 = vpop.f32.mrf.mxu0
      %v2333 = vadd.f32 %v1286, %v2332
      %v2334 = vpop.f32.mrf.mxu0
      %2335 = vmatprep.mubr.f32.mxu0 0.0
      %2336 = vmatmul.mubr.f32.gmra.mxu0 %v2222
      %v2337 = vpop.f32.mrf.mxu0
      %v2338 = vadd.f32 %v1287, %v2337
      %v2339 = vpop.f32.mrf.mxu0
      %2340 = vmatprep.mubr.f32.mxu0 0.0
      %2341 = vmatmul.mubr.f32.gmra.mxu0 %v2225
      %v2342 = vpop.f32.mrf.mxu0
      %v2343 = vadd.f32 %v1288, %v2342
      %v2344 = vpop.f32.mrf.mxu0
      %2345 = vmatprep.mubr.f32.mxu0 0.0
      %2346 = vmatmul.mubr.f32.gmra.mxu0 %v2228
      %v2347 = vpop.f32.mrf.mxu0
      %v2348 = vadd.f32 %v1289, %v2347
      %v2349 = vpop.f32.mrf.mxu0
      %2350 = vmatprep.mubr.f32.mxu0 0.0
      %2351 = vmatmul.mubr.f32.gmra.mxu0 %v2231
      %v2352 = vpop.f32.mrf.mxu0
      %v2353 = vadd.f32 %v1290, %v2352
      %v2354 = vpop.f32.mrf.mxu0
      %2355 = vmatprep.mubr.f32.mxu0 0.0
      %2356 = vmatmul.mubr.f32.gmra.mxu0 %v2234
      %v2357 = vpop.f32.mrf.mxu0
      %v2358 = vadd.f32 %v1291, %v2357
      %v2359 = vpop.f32.mrf.mxu0
      %2360 = vmatprep.mubr.f32.mxu0 0.0
      %2361 = vmatmul.mubr.f32.gmra.mxu0 %v2237
      %v2362 = vpop.f32.mrf.mxu0
      %v2363 = vadd.f32 %v1292, %v2362
      %v2364 = vpop.f32.mrf.mxu0
      %2365 = vmatprep.mubr.f32.mxu0 0.0
      %2366 = vmatmul.mubr.f32.gmra.mxu0 %v2240
      %v2367 = vpop.f32.mrf.mxu0
      %v2368 = vadd.f32 %v1293, %v2367
      %v2369 = vpop.f32.mrf.mxu0
      %2370 = vmatprep.mubr.f32.mxu0 0.0
      %2371 = vmatmul.mubr.f32.gmra.mxu0 %v2243
      %v2372 = vpop.f32.mrf.mxu0
      %v2373 = vadd.f32 %v1294, %v2372
      %v2374 = vpop.f32.mrf.mxu0
      %2375 = vmatprep.mubr.f32.mxu0 0.0
      %2376 = vmatmul.mubr.f32.gmra.mxu0 %v2246
      %v2377 = vpop.f32.mrf.mxu0
      %v2378 = vadd.f32 %v1295, %v2377
      %v2379 = vpop.f32.mrf.mxu0
      %2380 = vmatprep.mubr.f32.mxu0 0.0
      %2381 = vmatmul.mubr.f32.gmra.mxu0 %v2249
      %v2382 = vpop.f32.mrf.mxu0
      %v2383 = vadd.f32 %v1296, %v2382
      %v2384 = vpop.f32.mrf.mxu0
      %2385 = vmatprep.mubr.f32.mxu0 0.0
      %2386 = vmatmul.mubr.f32.gmra.mxu0 %v2252
      %v2387 = vpop.f32.mrf.mxu0
      %v2388 = vadd.f32 %v1297, %v2387
      %v2389 = vpop.f32.mrf.mxu0
      %2390 = vmatprep.mubr.f32.mxu0 0.0
      %2391 = vmatmul.mubr.f32.gmra.mxu0 %v2255
      %v2392 = vpop.f32.mrf.mxu0
      %v2393 = vadd.f32 %v1298, %v2392
      %v2394 = vpop.f32.mrf.mxu0
      %2395 = vmatprep.mubr.f32.mxu0 0.0
      %2396 = vmatmul.mubr.f32.gmra.mxu0 %v2258
      %v2397 = vpop.f32.mrf.mxu0
      %v2398 = vadd.f32 %v1299, %v2397
      %v2399 = vpop.f32.mrf.mxu0
      %2400 = vmatprep.mubr.f32.mxu0 0.0
      %2401 = vmatmul.mubr.f32.gmra.mxu0 %v2261
      %v2402 = vpop.f32.mrf.mxu0
      %v2403 = vadd.f32 %v1300, %v2402
      %v2404 = vpop.f32.mrf.mxu0
      %2405 = vmatprep.mubr.f32.mxu0 0.0
      %2406 = vmatmul.mubr.f32.gmra.mxu0 %v2264
      %v2407 = vpop.f32.mrf.mxu0
      %v2408 = vadd.f32 %v1301, %v2407
      %v2409 = vpop.f32.mrf.mxu0
      %2410 = vdwg.mxu0
      %v2411 = vmax.f32 %v2333, %v2353
      %v2412 = vmax.f32 %v2338, %v2358
      %v2413 = vmax.f32 %v2343, %v2363
      %v2414 = vmax.f32 %v2348, %v2368
      %v2415 = vmax.f32 %v2411, %v2373
      %v2416 = vmax.f32 %v2412, %v2378
      %v2417 = vmax.f32 %v2413, %v2383
      %v2418 = vmax.f32 %v2414, %v2388
      %v2419 = vmax.f32 %v2415, %v2393
      %v2420 = vmax.f32 %v2416, %v2398
      %v2421 = vmax.f32 %v2417, %v2403
      %v2422 = vmax.f32 %v2418, %v2408
      %v2423 = vmax.f32 %v2419, %v2420
      %v2424 = vmax.f32 %v2421, %v2422
      %v2425 = vmax.f32 %v2423, %v2424
      %v2426 = vrot.slane %v2425, 4
      %v2427 = vmax.f32 %v2425, %v2426
      %v2428 = vrot.slane %v2427, 2
      %v2429 = vmax.f32 %v2427, %v2428
      %v2430 = vrot.slane %v2429, 1
      %v2431 = vmax.f32 %v2429, %v2430
      %v2432 = vsub.f32 %v2333, %v2431
      %v2433 = vsub.f32 %v2338, %v2431
      %v2434 = vsub.f32 %v2343, %v2431
      %v2435 = vsub.f32 %v2348, %v2431
      %v2436 = vsub.f32 %v2353, %v2431
      %v2437 = vsub.f32 %v2358, %v2431
      %v2438 = vsub.f32 %v2363, %v2431
      %v2439 = vsub.f32 %v2368, %v2431
      %v2440 = vsub.f32 %v2373, %v2431
      %v2441 = vsub.f32 %v2378, %v2431
      %v2442 = vsub.f32 %v2383, %v2431
      %v2443 = vsub.f32 %v2388, %v2431
      %v2444 = vsub.f32 %v2393, %v2431
      %v2445 = vsub.f32 %v2398, %v2431
      %v2446 = vsub.f32 %v2403, %v2431
      %v2447 = vsub.f32 %v2408, %v2431
      %v2448 = vmul.f32 %v2432, 1.442695
      %v2449 = vpow.pop %v2448
      %v2450 = vmul.f32 %v2433, 1.442695
      %v2451 = vpow.pop %v2450
      %v2452 = vmul.f32 %v2434, 1.442695
      %v2453 = vpow.pop %v2452
      %v2454 = vmul.f32 %v2435, 1.442695
      %v2455 = vpow.pop %v2454
      %v2456 = vmul.f32 %v2436, 1.442695
      %v2457 = vpow.pop %v2456
      %v2458 = vmul.f32 %v2437, 1.442695
      %v2459 = vpow.pop %v2458
      %v2460 = vmul.f32 %v2438, 1.442695
      %v2461 = vpow.pop %v2460
      %v2462 = vmul.f32 %v2439, 1.442695
      %v2463 = vpow.pop %v2462
      %v2464 = vmul.f32 %v2440, 1.442695
      %v2465 = vpow.pop %v2464
      %v2466 = vmul.f32 %v2441, 1.442695
      %v2467 = vpow.pop %v2466
      %v2468 = vmul.f32 %v2442, 1.442695
      %v2469 = vpow.pop %v2468
      %v2470 = vmul.f32 %v2443, 1.442695
      %v2471 = vpow.pop %v2470
      %v2472 = vmul.f32 %v2444, 1.442695
      %v2473 = vpow.pop %v2472
      %v2474 = vmul.f32 %v2445, 1.442695
      %v2475 = vpow.pop %v2474
      %v2476 = vmul.f32 %v2446, 1.442695
      %v2477 = vpow.pop %v2476
      %v2478 = vmul.f32 %v2447, 1.442695
      %v2479 = vpow.pop %v2478
      %v2480 = vadd.f32 %v2449, %v2451
      %v2481 = vadd.f32 %v2480, %v2453
      %v2482 = vadd.f32 %v2481, %v2455
      %v2483 = vadd.f32 %v2482, %v2457
      %v2484 = vadd.f32 %v2483, %v2459
      %v2485 = vadd.f32 %v2484, %v2461
      %v2486 = vadd.f32 %v2485, %v2463
      %v2487 = vadd.f32 %v2486, %v2465
      %v2488 = vadd.f32 %v2487, %v2467
      %v2489 = vadd.f32 %v2488, %v2469
      %v2490 = vadd.f32 %v2489, %v2471
      %v2491 = vadd.f32 %v2490, %v2473
      %v2492 = vadd.f32 %v2491, %v2475
      %v2493 = vadd.f32 %v2492, %v2477
      %v2494 = vadd.f32 %v2493, %v2479
      %v2495 = vrot.slane %v2494, 4
      %v2496 = vadd.f32 %v2494, %v2495
      %v2497 = vrot.slane %v2496, 2
      %v2498 = vadd.f32 %v2496, %v2497
      %v2499 = vrot.slane %v2498, 1
      %v2500 = vadd.f32 %v2498, %v2499
      %v2501 = vrcp.pop %v2500
      %v2502 = vmul.f32 1.0, %v2501
      %v2503 = vmul.f32 %v2449, %v2502
      %v2504 = vmul.f32 %v2451, %v2502
      %v2505 = vmul.f32 %v2453, %v2502
      %v2506 = vmul.f32 %v2455, %v2502
      %v2507 = vmul.f32 %v2457, %v2502
      %v2508 = vmul.f32 %v2459, %v2502
      %v2509 = vmul.f32 %v2461, %v2502
      %v2510 = vmul.f32 %v2463, %v2502
      %v2511 = vmul.f32 %v2465, %v2502
      %v2512 = vmul.f32 %v2467, %v2502
      %v2513 = vmul.f32 %v2469, %v2502
      %v2514 = vmul.f32 %v2471, %v2502
      %v2515 = vmul.f32 %v2473, %v2502
      %v2516 = vmul.f32 %v2475, %v2502
      %v2517 = vmul.f32 %v2477, %v2502
      %v2518 = vmul.f32 %v2479, %v2502
      %2519 = vmatprep.subr.mxu0 0.0
      %2520 = vmatpush1.msra.mxu0 %v2518
      %2521 = vmatprep.subr.mxu0 0.0
      %2522 = vmatpush1.msra.mxu0 %v2517
      %2523 = vmatprep.subr.mxu0 0.0
      %2524 = vmatpush1.msra.mxu0 %v2516
      %2525 = vmatprep.subr.mxu0 0.0
      %2526 = vmatpush1.msra.mxu0 %v2515
      %2527 = vmatprep.subr.mxu0 0.0
      %2528 = vmatpush1.msra.mxu0 %v2514
      %2529 = vmatprep.subr.mxu0 0.0
      %2530 = vmatpush1.msra.mxu0 %v2513
      %2531 = vmatprep.subr.mxu0 0.0
      %2532 = vmatpush1.msra.mxu0 %v2512
      %2533 = vmatprep.subr.mxu0 0.0
      %2534 = vmatpush1.msra.mxu0 %v2511
      %2535 = vmatprep.subr.mxu0 0.0
      %2536 = vmatpush1.msra.mxu0 %v2510
      %2537 = vmatprep.subr.mxu0 0.0
      %2538 = vmatpush1.msra.mxu0 %v2509
      %2539 = vmatprep.subr.mxu0 0.0
      %2540 = vmatpush1.msra.mxu0 %v2508
      %2541 = vmatprep.subr.mxu0 0.0
      %2542 = vmatpush1.msra.mxu0 %v2507
      %2543 = vmatprep.subr.mxu0 0.0
      %2544 = vmatpush1.msra.mxu0 %v2506
      %2545 = vmatprep.subr.mxu0 0.0
      %2546 = vmatpush1.msra.mxu0 %v2505
      %2547 = vmatprep.subr.mxu0 0.0
      %2548 = vmatpush1.msra.mxu0 %v2504
      %2549 = vmatprep.subr.mxu0 0.0
      %2550 = vmatpush1.msra.mxu0 %v2503
      %2551 = vmatprep.subr.mxu0 0.0
      %2552 = vmatpush2.msra.mxu0 0.0
      %2553 = vmatprep.subr.mxu0 0.0
      %2554 = vmatpush2.msra.mxu0 0.0
      %2555 = vmatprep.subr.mxu0 0.0
      %2556 = vmatpush2.msra.mxu0 0.0
      %2557 = vmatprep.subr.mxu0 0.0
      %2558 = vmatpush2.msra.mxu0 0.0
      %2559 = vmatprep.subr.mxu0 0.0
      %2560 = vmatpush2.msra.mxu0 0.0
      %2561 = vmatprep.subr.mxu0 0.0
      %2562 = vmatpush2.msra.mxu0 0.0
      %2563 = vmatprep.subr.mxu0 0.0
      %2564 = vmatpush2.msra.mxu0 0.0
      %2565 = vmatprep.subr.mxu0 0.0
      %2566 = vmatpush2.msra.mxu0 0.0
      %2567 = vmatprep.subr.mxu0 0.0
      %2568 = vmatpush2.msra.mxu0 0.0
      %2569 = vmatprep.subr.mxu0 0.0
      %2570 = vmatpush2.msra.mxu0 0.0
      %2571 = vmatprep.subr.mxu0 0.0
      %2572 = vmatpush2.msra.mxu0 0.0
      %2573 = vmatprep.subr.mxu0 0.0
      %2574 = vmatpush2.msra.mxu0 0.0
      %2575 = vmatprep.subr.mxu0 0.0
      %2576 = vmatpush2.msra.mxu0 0.0
      %2577 = vmatprep.subr.mxu0 0.0
      %2578 = vmatpush2.msra.mxu0 0.0
      %2579 = vmatprep.subr.mxu0 0.0
      %2580 = vmatpush2.msra.mxu0 0.0
      %2581 = vmatprep.subr.mxu0 0.0
      %2582 = vmatpush2.msra.mxu0 0.0
      %2583 = vmatprep.mubr.f32.mxu0 0.0
      %2584 = vmatmul.mubr.f32.gmra.mxu0 %v2025
      %v2585 = vpop.f32.mrf.mxu0
      %v2586 = vadd.f32 %v2025, %v2585
      %v2587 = vpop.f32.mrf.mxu0
      %2588 = vdwg.mxu0
      %2589 = vmatprep.subr.mxu0 0.0
      %2590 = vmatpush1.msra.mxu0 %v565
      %2591 = vmatprep.subr.mxu0 0.0
      %2592 = vmatpush1.msra.mxu0 %v564
      %2593 = vmatprep.subr.mxu0 0.0
      %2594 = vmatpush1.msra.mxu0 %v563
      %2595 = vmatprep.subr.mxu0 0.0
      %2596 = vmatpush1.msra.mxu0 %v562
      %2597 = vmatprep.subr.mxu0 0.0
      %2598 = vmatpush1.msra.mxu0 %v561
      %2599 = vmatprep.subr.mxu0 0.0
      %2600 = vmatpush1.msra.mxu0 %v560
      %2601 = vmatprep.subr.mxu0 0.0
      %2602 = vmatpush1.msra.mxu0 %v559
      %2603 = vmatprep.subr.mxu0 0.0
      %2604 = vmatpush1.msra.mxu0 %v558
      %2605 = vmatprep.subr.mxu0 0.0
      %2606 = vmatpush1.msra.mxu0 %v557
      %2607 = vmatprep.subr.mxu0 0.0
      %2608 = vmatpush1.msra.mxu0 %v556
      %2609 = vmatprep.subr.mxu0 0.0
      %2610 = vmatpush1.msra.mxu0 %v555
      %2611 = vmatprep.subr.mxu0 0.0
      %2612 = vmatpush1.msra.mxu0 %v554
      %2613 = vmatprep.subr.mxu0 0.0
      %2614 = vmatpush1.msra.mxu0 %v553
      %2615 = vmatprep.subr.mxu0 0.0
      %2616 = vmatpush1.msra.mxu0 %v552
      %2617 = vmatprep.subr.mxu0 0.0
      %2618 = vmatpush1.msra.mxu0 %v551
      %2619 = vmatprep.subr.mxu0 0.0
      %2620 = vmatpush1.msra.mxu0 %v550
      %2621 = vmatprep.subr.mxu0 0.0
      %2622 = vmatpush2.msra.mxu0 0.0
      %2623 = vmatprep.subr.mxu0 0.0
      %2624 = vmatpush2.msra.mxu0 0.0
      %2625 = vmatprep.subr.mxu0 0.0
      %2626 = vmatpush2.msra.mxu0 0.0
      %2627 = vmatprep.subr.mxu0 0.0
      %2628 = vmatpush2.msra.mxu0 0.0
      %2629 = vmatprep.subr.mxu0 0.0
      %2630 = vmatpush2.msra.mxu0 0.0
      %2631 = vmatprep.subr.mxu0 0.0
      %2632 = vmatpush2.msra.mxu0 0.0
      %2633 = vmatprep.subr.mxu0 0.0
      %2634 = vmatpush2.msra.mxu0 0.0
      %2635 = vmatprep.subr.mxu0 0.0
      %2636 = vmatpush2.msra.mxu0 0.0
      %2637 = vmatprep.subr.mxu0 0.0
      %2638 = vmatpush2.msra.mxu0 0.0
      %2639 = vmatprep.subr.mxu0 0.0
      %2640 = vmatpush2.msra.mxu0 0.0
      %2641 = vmatprep.subr.mxu0 0.0
      %2642 = vmatpush2.msra.mxu0 0.0
      %2643 = vmatprep.subr.mxu0 0.0
      %2644 = vmatpush2.msra.mxu0 0.0
      %2645 = vmatprep.subr.mxu0 0.0
      %2646 = vmatpush2.msra.mxu0 0.0
      %2647 = vmatprep.subr.mxu0 0.0
      %2648 = vmatpush2.msra.mxu0 0.0
      %2649 = vmatprep.subr.mxu0 0.0
      %2650 = vmatpush2.msra.mxu0 0.0
      %2651 = vmatprep.subr.mxu0 0.0
      %2652 = vmatpush2.msra.mxu0 0.0
      %2653 = vmatprep.mubr.f32.mxu0 0.0
      %2654 = vmatmul.mubr.f32.gmra.mxu0 %v1703
      %v2655 = vpop.f32.mrf.mxu0
      %v2656 = vadd.f32 0.0, %v2655
      %v2657 = vpop.f32.mrf.mxu0
      %2658 = vmatprep.mubr.f32.mxu0 0.0
      %2659 = vmatmul.mubr.f32.gmra.mxu0 %v2586
      %v2660 = vpop.f32.mrf.mxu0
      %v2661 = vadd.f32 0.0, %v2660
      %v2662 = vpop.f32.mrf.mxu0
      %2663 = vdwg.mxu0
      %v2664 = vsub.f32 %v1703, %v2656
      %v2665 = vsub.f32 %v2586, %v2661
      %v2666 = vmul.f32 %v2664, %v2664
      %v2667 = vmul.f32 %v2665, %v2665
      %2668 = vmatprep.subr.mxu0 0.0
      %2669 = vmatpush1.msra.mxu0 %v565
      %2670 = vmatprep.subr.mxu0 0.0
      %2671 = vmatpush1.msra.mxu0 %v564
      %2672 = vmatprep.subr.mxu0 0.0
      %2673 = vmatpush1.msra.mxu0 %v563
      %2674 = vmatprep.subr.mxu0 0.0
      %2675 = vmatpush1.msra.mxu0 %v562
      %2676 = vmatprep.subr.mxu0 0.0
      %2677 = vmatpush1.msra.mxu0 %v561
      %2678 = vmatprep.subr.mxu0 0.0
      %2679 = vmatpush1.msra.mxu0 %v560
      %2680 = vmatprep.subr.mxu0 0.0
      %2681 = vmatpush1.msra.mxu0 %v559
      %2682 = vmatprep.subr.mxu0 0.0
      %2683 = vmatpush1.msra.mxu0 %v558
      %2684 = vmatprep.subr.mxu0 0.0
      %2685 = vmatpush1.msra.mxu0 %v557
      %2686 = vmatprep.subr.mxu0 0.0
      %2687 = vmatpush1.msra.mxu0 %v556
      %2688 = vmatprep.subr.mxu0 0.0
      %2689 = vmatpush1.msra.mxu0 %v555
      %2690 = vmatprep.subr.mxu0 0.0
      %2691 = vmatpush1.msra.mxu0 %v554
      %2692 = vmatprep.subr.mxu0 0.0
      %2693 = vmatpush1.msra.mxu0 %v553
      %2694 = vmatprep.subr.mxu0 0.0
      %2695 = vmatpush1.msra.mxu0 %v552
      %2696 = vmatprep.subr.mxu0 0.0
      %2697 = vmatpush1.msra.mxu0 %v551
      %2698 = vmatprep.subr.mxu0 0.0
      %2699 = vmatpush1.msra.mxu0 %v550
      %2700 = vmatprep.subr.mxu0 0.0
      %2701 = vmatpush2.msra.mxu0 0.0
      %2702 = vmatprep.subr.mxu0 0.0
      %2703 = vmatpush2.msra.mxu0 0.0
      %2704 = vmatprep.subr.mxu0 0.0
      %2705 = vmatpush2.msra.mxu0 0.0
      %2706 = vmatprep.subr.mxu0 0.0
      %2707 = vmatpush2.msra.mxu0 0.0
      %2708 = vmatprep.subr.mxu0 0.0
      %2709 = vmatpush2.msra.mxu0 0.0
      %2710 = vmatprep.subr.mxu0 0.0
      %2711 = vmatpush2.msra.mxu0 0.0
      %2712 = vmatprep.subr.mxu0 0.0
      %2713 = vmatpush2.msra.mxu0 0.0
      %2714 = vmatprep.subr.mxu0 0.0
      %2715 = vmatpush2.msra.mxu0 0.0
      %2716 = vmatprep.subr.mxu0 0.0
      %2717 = vmatpush2.msra.mxu0 0.0
      %2718 = vmatprep.subr.mxu0 0.0
      %2719 = vmatpush2.msra.mxu0 0.0
      %2720 = vmatprep.subr.mxu0 0.0
      %2721 = vmatpush2.msra.mxu0 0.0
      %2722 = vmatprep.subr.mxu0 0.0
      %2723 = vmatpush2.msra.mxu0 0.0
      %2724 = vmatprep.subr.mxu0 0.0
      %2725 = vmatpush2.msra.mxu0 0.0
      %2726 = vmatprep.subr.mxu0 0.0
      %2727 = vmatpush2.msra.mxu0 0.0
      %2728 = vmatprep.subr.mxu0 0.0
      %2729 = vmatpush2.msra.mxu0 0.0
      %2730 = vmatprep.subr.mxu0 0.0
      %2731 = vmatpush2.msra.mxu0 0.0
      %2732 = vmatprep.mubr.f32.mxu0 0.0
      %2733 = vmatmul.mubr.f32.gmra.mxu0 %v2666
      %v2734 = vpop.f32.mrf.mxu0
      %v2735 = vadd.f32 1e-05, %v2734
      %v2736 = vpop.f32.mrf.mxu0
      %2737 = vmatprep.mubr.f32.mxu0 0.0
      %2738 = vmatmul.mubr.f32.gmra.mxu0 %v2667
      %v2739 = vpop.f32.mrf.mxu0
      %v2740 = vadd.f32 1e-05, %v2739
      %v2741 = vpop.f32.mrf.mxu0
      %2742 = vdwg.mxu0
      %v2743 = vrsqrt.pop %v2735
      %v2744 = vrsqrt.pop %v2740
      %v2745 = vmul.f32 %v2664, %v2743
      %v2746 = vmul.f32 %v2665, %v2744
      %v2747 = vld [vmem:[%s5] sm:$0xf]
      %v2748 = vld [vmem:[%s5 + $0x4] sm:$0xf]
      %v2749 = vld [vmem:[%s5 + $0x8] sm:$0xf]
      %v2750 = vld [vmem:[%s5 + $0xc] sm:$0xf]
      %v2751 = vld [vmem:[%s5 + $0x10] sm:$0xf]
      %v2752 = vld [vmem:[%s5 + $0x14] sm:$0xf]
      %v2753 = vpack.c.bf16 %v2746, %v2745
      %v2754 = vld [vmem:[%s6] sm:$0xff]
      %v2755 = vld [vmem:[%s6 + $0x8] sm:$0xff]
      %v2756 = vld [vmem:[%s6 + $0x10] sm:$0xff]
      %v2757 = vld [vmem:[%s6 + $0x18] sm:$0xff]
      %v2758 = vld [vmem:[%s6 + $0x20] sm:$0xff]
      %v2759 = vld [vmem:[%s6 + $0x28] sm:$0xff]
      %2761 = vset.pattern.permute.xlu0 0
      %2762 = vperm.xlu0 %2761, %v2754
      %v2763 = vpop.permute.xlu0 %2762
      %2766 = vset.pattern.permute.xlu0 0
      %2767 = vperm.xlu0 %2766, %v2755
      %v2768 = vpop.permute.xlu0 %2767
      %2771 = vset.pattern.permute.xlu0 0
      %2772 = vperm.xlu0 %2771, %v2756
      %v2773 = vpop.permute.xlu0 %2772
      %2776 = vset.pattern.permute.xlu0 0
      %2777 = vperm.xlu0 %2776, %v2757
      %v2778 = vpop.permute.xlu0 %2777
      %2781 = vset.pattern.permute.xlu0 0
      %2782 = vperm.xlu0 %2781, %v2758
      %v2783 = vpop.permute.xlu0 %2782
      %2786 = vset.pattern.permute.xlu0 0
      %2787 = vperm.xlu0 %2786, %v2759
      %v2788 = vpop.permute.xlu0 %2787
      %v2796 = vunpack.c.l.b16 %v2747
      %v2797 = vunpack.c.l.b16 %v2748
      %v2798 = vunpack.c.l.b16 %v2749
      %v2799 = vunpack.c.l.b16 %v2750
      %v2800 = vunpack.c.l.b16 %v2751
      %v2801 = vunpack.c.l.b16 %v2752
      %v2802 = vpack.c.b16 %v2797, %v2796
      %v2803 = vpack.c.b16 %v2799, %v2798
      %v2804 = vpack.c.b16 %v2801, %v2800
      %vm2805 = vcmask 130048
      %v2807 = vsel %vm2805, %v2802, 0
      %v2810 = vsel %vm2805, %v2803, 0
      %v2813 = vsel %vm2805, %v2804, 0
      %2815 = vmatprep.subr.bf16.mxu0 0
      %2816 = vmatpush1.bf16.msra.mxu0 0
      %2817 = vmatprep.subr.bf16.mxu0 0
      %2818 = vmatpush1.bf16.msra.mxu0 0
      %2819 = vmatprep.subr.bf16.mxu0 0
      %2820 = vmatpush1.bf16.msra.mxu0 0
      %2821 = vmatprep.subr.bf16.mxu0 0
      %2822 = vmatpush1.bf16.msra.mxu0 0
      %2823 = vmatprep.subr.bf16.mxu0 0
      %2824 = vmatpush1.bf16.msra.mxu0 0
      %2825 = vmatprep.subr.bf16.mxu0 0
      %2826 = vmatpush1.bf16.msra.mxu0 0
      %2827 = vmatprep.subr.bf16.mxu0 0
      %2828 = vmatpush1.bf16.msra.mxu0 0
      %2829 = vmatprep.subr.bf16.mxu0 0
      %2830 = vmatpush1.bf16.msra.mxu0 %v2753
      %2831 = vmatprep.subr.bf16.mxu0 0
      %2832 = vmatpush2.bf16.msra.mxu0 0
      %2833 = vmatprep.subr.bf16.mxu0 0
      %2834 = vmatpush2.bf16.msra.mxu0 0
      %2835 = vmatprep.subr.bf16.mxu0 0
      %2836 = vmatpush2.bf16.msra.mxu0 0
      %2837 = vmatprep.subr.bf16.mxu0 0
      %2838 = vmatpush2.bf16.msra.mxu0 0
      %2839 = vmatprep.subr.bf16.mxu0 0
      %2840 = vmatpush2.bf16.msra.mxu0 0
      %2841 = vmatprep.subr.bf16.mxu0 0
      %2842 = vmatpush2.bf16.msra.mxu0 0
      %2843 = vmatprep.subr.bf16.mxu0 0
      %2844 = vmatpush2.bf16.msra.mxu0 0
      %2845 = vmatprep.subr.bf16.mxu0 0
      %2846 = vmatpush2.bf16.msra.mxu0 0
      %2847 = vmatprep.mubr.bf16.mxu0 0
      %2848 = vmatmul.mubr.bf16.gmra.mxu0 %v2807
      %v2849 = vpop.f32.mrf.mxu0
      %v2850 = vadd.f32 %v2763, %v2849
      %v2851 = vpop.f32.mrf.mxu0
      %v2852 = vpop.f32.mrf.mxu0
      %v2853 = vadd.f32 %v2768, %v2852
      %v2854 = vpop.f32.mrf.mxu0
      %2855 = vmatprep.mubr.bf16.mxu0 0
      %2856 = vmatmul.mubr.bf16.gmra.mxu0 %v2810
      %v2857 = vpop.f32.mrf.mxu0
      %v2858 = vadd.f32 %v2773, %v2857
      %v2859 = vpop.f32.mrf.mxu0
      %v2860 = vpop.f32.mrf.mxu0
      %v2861 = vadd.f32 %v2778, %v2860
      %v2862 = vpop.f32.mrf.mxu0
      %2863 = vmatprep.mubr.bf16.mxu0 0
      %2864 = vmatmul.mubr.bf16.gmra.mxu0 %v2813
      %v2865 = vpop.f32.mrf.mxu0
      %v2866 = vadd.f32 %v2783, %v2865
      %v2867 = vpop.f32.mrf.mxu0
      %v2868 = vpop.f32.mrf.mxu0
      %v2869 = vadd.f32 %v2788, %v2868
      %v2870 = vpop.f32.mrf.mxu0
      %2871 = vdwg.mxu0
      %v2872 = vld [vmem:[%s7] sm:$0xff]
      %v2873 = vld [vmem:[%s7 + $0x8] sm:$0xf]
      %vm2874 = vcmask 392192
      %v2876 = vsel %vm2874, %v2872, 0
      %v2879 = vsel %vm2874, %v2873, 0
      %2881 = vmatprep.subr.mxu0 0.0
      %2882 = vmatpush1.msra.mxu0 0.0
      %2883 = vmatprep.subr.mxu0 0.0
      %2884 = vmatpush1.msra.mxu0 0.0
      %2885 = vmatprep.subr.mxu0 0.0
      %2886 = vmatpush1.msra.mxu0 0.0
      %2887 = vmatprep.subr.mxu0 0.0
      %2888 = vmatpush1.msra.mxu0 0.0
      %2889 = vmatprep.subr.mxu0 0.0
      %2890 = vmatpush1.msra.mxu0 0.0
      %2891 = vmatprep.subr.mxu0 0.0
      %2892 = vmatpush1.msra.mxu0 0.0
      %2893 = vmatprep.subr.mxu0 0.0
      %2894 = vmatpush1.msra.mxu0 0.0
      %2895 = vmatprep.subr.mxu0 0.0
      %2896 = vmatpush1.msra.mxu0 0.0
      %2897 = vmatprep.subr.mxu0 0.0
      %2898 = vmatpush1.msra.mxu0 0.0
      %2899 = vmatprep.subr.mxu0 0.0
      %2900 = vmatpush1.msra.mxu0 0.0
      %2901 = vmatprep.subr.mxu0 0.0
      %2902 = vmatpush1.msra.mxu0 %v2869
      %2903 = vmatprep.subr.mxu0 0.0
      %2904 = vmatpush1.msra.mxu0 %v2866
      %2905 = vmatprep.subr.mxu0 0.0
      %2906 = vmatpush1.msra.mxu0 %v2861
      %2907 = vmatprep.subr.mxu0 0.0
      %2908 = vmatpush1.msra.mxu0 %v2858
      %2909 = vmatprep.subr.mxu0 0.0
      %2910 = vmatpush1.msra.mxu0 %v2853
      %2911 = vmatprep.subr.mxu0 0.0
      %2912 = vmatpush1.msra.mxu0 %v2850
      %2913 = vmatprep.subr.mxu0 0.0
      %2914 = vmatpush2.msra.mxu0 0.0
      %2915 = vmatprep.subr.mxu0 0.0
      %2916 = vmatpush2.msra.mxu0 0.0
      %2917 = vmatprep.subr.mxu0 0.0
      %2918 = vmatpush2.msra.mxu0 0.0
      %2919 = vmatprep.subr.mxu0 0.0
      %2920 = vmatpush2.msra.mxu0 0.0
      %2921 = vmatprep.subr.mxu0 0.0
      %2922 = vmatpush2.msra.mxu0 0.0
      %2923 = vmatprep.subr.mxu0 0.0
      %2924 = vmatpush2.msra.mxu0 0.0
      %2925 = vmatprep.subr.mxu0 0.0
      %2926 = vmatpush2.msra.mxu0 0.0
      %2927 = vmatprep.subr.mxu0 0.0
      %2928 = vmatpush2.msra.mxu0 0.0
      %2929 = vmatprep.subr.mxu0 0.0
      %2930 = vmatpush2.msra.mxu0 0.0
      %2931 = vmatprep.subr.mxu0 0.0
      %2932 = vmatpush2.msra.mxu0 0.0
      %2933 = vmatprep.subr.mxu0 0.0
      %2934 = vmatpush2.msra.mxu0 0.0
      %2935 = vmatprep.subr.mxu0 0.0
      %2936 = vmatpush2.msra.mxu0 0.0
      %2937 = vmatprep.subr.mxu0 0.0
      %2938 = vmatpush2.msra.mxu0 0.0
      %2939 = vmatprep.subr.mxu0 0.0
      %2940 = vmatpush2.msra.mxu0 0.0
      %2941 = vmatprep.subr.mxu0 0.0
      %2942 = vmatpush2.msra.mxu0 0.0
      %2943 = vmatprep.subr.mxu0 0.0
      %2944 = vmatpush2.msra.mxu0 0.0
      %2945 = vmatprep.mubr.f32.mxu0 0.0
      %2946 = vmatmul.mubr.f32.gmra.mxu0 %v2876
      %v2947 = vpop.f32.mrf.mxu0
      %v2948 = vadd.f32 0.0, %v2947
      %v2949 = vpop.f32.mrf.mxu0
      %2950 = vmatprep.mubr.f32.mxu0 0.0
      %2951 = vmatmul.mubr.f32.gmra.mxu0 %v2879
      %v2952 = vpop.f32.mrf.mxu0
      %v2953 = vadd.f32 0.0, %v2952
      %v2954 = vpop.f32.mrf.mxu0
      %2955 = vdwg.mxu0
      %2956 = vmatprep.subr.mxu0 0.0
      %2957 = vmatpush1.msra.mxu0 %v565
      %2958 = vmatprep.subr.mxu0 0.0
      %2959 = vmatpush1.msra.mxu0 %v564
      %2960 = vmatprep.subr.mxu0 0.0
      %2961 = vmatpush1.msra.mxu0 %v563
      %2962 = vmatprep.subr.mxu0 0.0
      %2963 = vmatpush1.msra.mxu0 %v562
      %2964 = vmatprep.subr.mxu0 0.0
      %2965 = vmatpush1.msra.mxu0 %v561
      %2966 = vmatprep.subr.mxu0 0.0
      %2967 = vmatpush1.msra.mxu0 %v560
      %2968 = vmatprep.subr.mxu0 0.0
      %2969 = vmatpush1.msra.mxu0 %v559
      %2970 = vmatprep.subr.mxu0 0.0
      %2971 = vmatpush1.msra.mxu0 %v558
      %2972 = vmatprep.subr.mxu0 0.0
      %2973 = vmatpush1.msra.mxu0 %v557
      %2974 = vmatprep.subr.mxu0 0.0
      %2975 = vmatpush1.msra.mxu0 %v556
      %2976 = vmatprep.subr.mxu0 0.0
      %2977 = vmatpush1.msra.mxu0 %v555
      %2978 = vmatprep.subr.mxu0 0.0
      %2979 = vmatpush1.msra.mxu0 %v554
      %2980 = vmatprep.subr.mxu0 0.0
      %2981 = vmatpush1.msra.mxu0 %v553
      %2982 = vmatprep.subr.mxu0 0.0
      %2983 = vmatpush1.msra.mxu0 %v552
      %2984 = vmatprep.subr.mxu0 0.0
      %2985 = vmatpush1.msra.mxu0 %v551
      %2986 = vmatprep.subr.mxu0 0.0
      %2987 = vmatpush1.msra.mxu0 %v550
      %2988 = vmatprep.subr.mxu0 0.0
      %2989 = vmatpush2.msra.mxu0 0.0
      %2990 = vmatprep.subr.mxu0 0.0
      %2991 = vmatpush2.msra.mxu0 0.0
      %2992 = vmatprep.subr.mxu0 0.0
      %2993 = vmatpush2.msra.mxu0 0.0
      %2994 = vmatprep.subr.mxu0 0.0
      %2995 = vmatpush2.msra.mxu0 0.0
      %2996 = vmatprep.subr.mxu0 0.0
      %2997 = vmatpush2.msra.mxu0 0.0
      %2998 = vmatprep.subr.mxu0 0.0
      %2999 = vmatpush2.msra.mxu0 0.0
      %3000 = vmatprep.subr.mxu0 0.0
      %3001 = vmatpush2.msra.mxu0 0.0
      %3002 = vmatprep.subr.mxu0 0.0
      %3003 = vmatpush2.msra.mxu0 0.0
      %3004 = vmatprep.subr.mxu0 0.0
      %3005 = vmatpush2.msra.mxu0 0.0
      %3006 = vmatprep.subr.mxu0 0.0
      %3007 = vmatpush2.msra.mxu0 0.0
      %3008 = vmatprep.subr.mxu0 0.0
      %3009 = vmatpush2.msra.mxu0 0.0
      %3010 = vmatprep.subr.mxu0 0.0
      %3011 = vmatpush2.msra.mxu0 0.0
      %3012 = vmatprep.subr.mxu0 0.0
      %3013 = vmatpush2.msra.mxu0 0.0
      %3014 = vmatprep.subr.mxu0 0.0
      %3015 = vmatpush2.msra.mxu0 0.0
      %3016 = vmatprep.subr.mxu0 0.0
      %3017 = vmatpush2.msra.mxu0 0.0
      %3018 = vmatprep.subr.mxu0 0.0
      %3019 = vmatpush2.msra.mxu0 0.0
      %3020 = vmatprep.mubr.f32.mxu0 0.0
      %3021 = vmatmul.mubr.f32.gmra.mxu0 %v2948
      %v3022 = vpop.f32.mrf.mxu0
      %v3023 = vadd.f32 0.0, %v3022
      %v3024 = vpop.f32.mrf.mxu0
      %3025 = vmatprep.mubr.f32.mxu0 0.0
      %3026 = vmatmul.mubr.f32.gmra.mxu0 %v2953
      %v3027 = vpop.f32.mrf.mxu0
      %v3028 = vadd.f32 0.0, %v3027
      %v3029 = vpop.f32.mrf.mxu0
      %3030 = vdwg.mxu0
      %v3031 = vmul.f32 %v2850, %v2850
      %v3032 = vmul.f32 %v2853, %v2853
      %v3033 = vmul.f32 %v2858, %v2858
      %v3034 = vmul.f32 %v2861, %v2861
      %v3035 = vmul.f32 %v2866, %v2866
      %v3036 = vmul.f32 %v2869, %v2869
      %3037 = vmatprep.subr.mxu0 0.0
      %3038 = vmatpush1.msra.mxu0 0.0
      %3039 = vmatprep.subr.mxu0 0.0
      %3040 = vmatpush1.msra.mxu0 0.0
      %3041 = vmatprep.subr.mxu0 0.0
      %3042 = vmatpush1.msra.mxu0 0.0
      %3043 = vmatprep.subr.mxu0 0.0
      %3044 = vmatpush1.msra.mxu0 0.0
      %3045 = vmatprep.subr.mxu0 0.0
      %3046 = vmatpush1.msra.mxu0 0.0
      %3047 = vmatprep.subr.mxu0 0.0
      %3048 = vmatpush1.msra.mxu0 0.0
      %3049 = vmatprep.subr.mxu0 0.0
      %3050 = vmatpush1.msra.mxu0 0.0
      %3051 = vmatprep.subr.mxu0 0.0
      %3052 = vmatpush1.msra.mxu0 0.0
      %3053 = vmatprep.subr.mxu0 0.0
      %3054 = vmatpush1.msra.mxu0 0.0
      %3055 = vmatprep.subr.mxu0 0.0
      %3056 = vmatpush1.msra.mxu0 0.0
      %3057 = vmatprep.subr.mxu0 0.0
      %3058 = vmatpush1.msra.mxu0 %v3036
      %3059 = vmatprep.subr.mxu0 0.0
      %3060 = vmatpush1.msra.mxu0 %v3035
      %3061 = vmatprep.subr.mxu0 0.0
      %3062 = vmatpush1.msra.mxu0 %v3034
      %3063 = vmatprep.subr.mxu0 0.0
      %3064 = vmatpush1.msra.mxu0 %v3033
      %3065 = vmatprep.subr.mxu0 0.0
      %3066 = vmatpush1.msra.mxu0 %v3032
      %3067 = vmatprep.subr.mxu0 0.0
      %3068 = vmatpush1.msra.mxu0 %v3031
      %3069 = vmatprep.subr.mxu0 0.0
      %3070 = vmatpush2.msra.mxu0 0.0
      %3071 = vmatprep.subr.mxu0 0.0
      %3072 = vmatpush2.msra.mxu0 0.0
      %3073 = vmatprep.subr.mxu0 0.0
      %3074 = vmatpush2.msra.mxu0 0.0
      %3075 = vmatprep.subr.mxu0 0.0
      %3076 = vmatpush2.msra.mxu0 0.0
      %3077 = vmatprep.subr.mxu0 0.0
      %3078 = vmatpush2.msra.mxu0 0.0
      %3079 = vmatprep.subr.mxu0 0.0
      %3080 = vmatpush2.msra.mxu0 0.0
      %3081 = vmatprep.subr.mxu0 0.0
      %3082 = vmatpush2.msra.mxu0 0.0
      %3083 = vmatprep.subr.mxu0 0.0
      %3084 = vmatpush2.msra.mxu0 0.0
      %3085 = vmatprep.subr.mxu0 0.0
      %3086 = vmatpush2.msra.mxu0 0.0
      %3087 = vmatprep.subr.mxu0 0.0
      %3088 = vmatpush2.msra.mxu0 0.0
      %3089 = vmatprep.subr.mxu0 0.0
      %3090 = vmatpush2.msra.mxu0 0.0
      %3091 = vmatprep.subr.mxu0 0.0
      %3092 = vmatpush2.msra.mxu0 0.0
      %3093 = vmatprep.subr.mxu0 0.0
      %3094 = vmatpush2.msra.mxu0 0.0
      %3095 = vmatprep.subr.mxu0 0.0
      %3096 = vmatpush2.msra.mxu0 0.0
      %3097 = vmatprep.subr.mxu0 0.0
      %3098 = vmatpush2.msra.mxu0 0.0
      %3099 = vmatprep.subr.mxu0 0.0
      %3100 = vmatpush2.msra.mxu0 0.0
      %3101 = vmatprep.mubr.f32.mxu0 0.0
      %3102 = vmatmul.mubr.f32.gmra.mxu0 %v2876
      %v3103 = vpop.f32.mrf.mxu0
      %v3104 = vadd.f32 0.0, %v3103
      %v3105 = vpop.f32.mrf.mxu0
      %3106 = vmatprep.mubr.f32.mxu0 0.0
      %3107 = vmatmul.mubr.f32.gmra.mxu0 %v2879
      %v3108 = vpop.f32.mrf.mxu0
      %v3109 = vadd.f32 0.0, %v3108
      %v3110 = vpop.f32.mrf.mxu0
      %3111 = vdwg.mxu0
      %3112 = vmatprep.subr.mxu0 0.0
      %3113 = vmatpush1.msra.mxu0 %v565
      %3114 = vmatprep.subr.mxu0 0.0
      %3115 = vmatpush1.msra.mxu0 %v564
      %3116 = vmatprep.subr.mxu0 0.0
      %3117 = vmatpush1.msra.mxu0 %v563
      %3118 = vmatprep.subr.mxu0 0.0
      %3119 = vmatpush1.msra.mxu0 %v562
      %3120 = vmatprep.subr.mxu0 0.0
      %3121 = vmatpush1.msra.mxu0 %v561
      %3122 = vmatprep.subr.mxu0 0.0
      %3123 = vmatpush1.msra.mxu0 %v560
      %3124 = vmatprep.subr.mxu0 0.0
      %3125 = vmatpush1.msra.mxu0 %v559
      %3126 = vmatprep.subr.mxu0 0.0
      %3127 = vmatpush1.msra.mxu0 %v558
      %3128 = vmatprep.subr.mxu0 0.0
      %3129 = vmatpush1.msra.mxu0 %v557
      %3130 = vmatprep.subr.mxu0 0.0
      %3131 = vmatpush1.msra.mxu0 %v556
      %3132 = vmatprep.subr.mxu0 0.0
      %3133 = vmatpush1.msra.mxu0 %v555
      %3134 = vmatprep.subr.mxu0 0.0
      %3135 = vmatpush1.msra.mxu0 %v554
      %3136 = vmatprep.subr.mxu0 0.0
      %3137 = vmatpush1.msra.mxu0 %v553
      %3138 = vmatprep.subr.mxu0 0.0
      %3139 = vmatpush1.msra.mxu0 %v552
      %3140 = vmatprep.subr.mxu0 0.0
      %3141 = vmatpush1.msra.mxu0 %v551
      %3142 = vmatprep.subr.mxu0 0.0
      %3143 = vmatpush1.msra.mxu0 %v550
      %3144 = vmatprep.subr.mxu0 0.0
      %3145 = vmatpush2.msra.mxu0 0.0
      %3146 = vmatprep.subr.mxu0 0.0
      %3147 = vmatpush2.msra.mxu0 0.0
      %3148 = vmatprep.subr.mxu0 0.0
      %3149 = vmatpush2.msra.mxu0 0.0
      %3150 = vmatprep.subr.mxu0 0.0
      %3151 = vmatpush2.msra.mxu0 0.0
      %3152 = vmatprep.subr.mxu0 0.0
      %3153 = vmatpush2.msra.mxu0 0.0
      %3154 = vmatprep.subr.mxu0 0.0
      %3155 = vmatpush2.msra.mxu0 0.0
      %3156 = vmatprep.subr.mxu0 0.0
      %3157 = vmatpush2.msra.mxu0 0.0
      %3158 = vmatprep.subr.mxu0 0.0
      %3159 = vmatpush2.msra.mxu0 0.0
      %3160 = vmatprep.subr.mxu0 0.0
      %3161 = vmatpush2.msra.mxu0 0.0
      %3162 = vmatprep.subr.mxu0 0.0
      %3163 = vmatpush2.msra.mxu0 0.0
      %3164 = vmatprep.subr.mxu0 0.0
      %3165 = vmatpush2.msra.mxu0 0.0
      %3166 = vmatprep.subr.mxu0 0.0
      %3167 = vmatpush2.msra.mxu0 0.0
      %3168 = vmatprep.subr.mxu0 0.0
      %3169 = vmatpush2.msra.mxu0 0.0
      %3170 = vmatprep.subr.mxu0 0.0
      %3171 = vmatpush2.msra.mxu0 0.0
      %3172 = vmatprep.subr.mxu0 0.0
      %3173 = vmatpush2.msra.mxu0 0.0
      %3174 = vmatprep.subr.mxu0 0.0
      %3175 = vmatpush2.msra.mxu0 0.0
      %3176 = vmatprep.mubr.f32.mxu0 0.0
      %3177 = vmatmul.mubr.f32.gmra.mxu0 %v3104
      %v3178 = vpop.f32.mrf.mxu0
      %v3179 = vadd.f32 0.0, %v3178
      %v3180 = vpop.f32.mrf.mxu0
      %3181 = vmatprep.mubr.f32.mxu0 0.0
      %3182 = vmatmul.mubr.f32.gmra.mxu0 %v3109
      %v3183 = vpop.f32.mrf.mxu0
      %v3184 = vadd.f32 0.0, %v3183
      %v3185 = vpop.f32.mrf.mxu0
      %3186 = vdwg.mxu0
      %v3187 = vmul.f32 %v3023, %v3023
      %v3188 = vmul.f32 %v3028, %v3028
      %v3189 = vsub.f32 %v3179, %v3187
      %v3190 = vsub.f32 %v3184, %v3188
      %v3191 = vmax.f32 %v3189, 0.0
      %v3192 = vmax.f32 %v3190, 0.0
      %v3193 = vadd.f32 %v3191, 1e-05
      %v3194 = vadd.f32 %v3192, 1e-05
      %v3195 = vrsqrt.pop %v3193
      %v3196 = vrsqrt.pop %v3194
      %v3197 = vld [vmem:[%s8] sm:$0xff]
      %v3198 = vld [vmem:[%s8 + $0x8] sm:$0xff]
      %v3199 = vld [vmem:[%s8 + $0x10] sm:$0xff]
      %v3200 = vld [vmem:[%s8 + $0x18] sm:$0xff]
      %v3201 = vld [vmem:[%s8 + $0x20] sm:$0xff]
      %v3202 = vld [vmem:[%s8 + $0x28] sm:$0xff]
      %vm3203 = vcmask 97280
      %v3205 = vsel %vm3203, %v3197, 0
      %v3208 = vsel %vm3203, %v3198, 0
      %v3211 = vsel %vm3203, %v3199, 0
      %v3214 = vsel %vm3203, %v3200, 0
      %v3217 = vsel %vm3203, %v3201, 0
      %v3220 = vsel %vm3203, %v3202, 0
      %vm3222 = vcmask 1043456
      %v3224 = vsel %vm3222, %v3028, 0
      %3226 = vmatprep.subr.mxu0 0.0
      %3227 = vmatpush1.msra.mxu0 0.0
      %3228 = vmatprep.subr.mxu0 0.0
      %3229 = vmatpush1.msra.mxu0 0.0
      %3230 = vmatprep.subr.mxu0 0.0
      %3231 = vmatpush1.msra.mxu0 0.0
      %3232 = vmatprep.subr.mxu0 0.0
      %3233 = vmatpush1.msra.mxu0 0.0
      %3234 = vmatprep.subr.mxu0 0.0
      %3235 = vmatpush1.msra.mxu0 0.0
      %3236 = vmatprep.subr.mxu0 0.0
      %3237 = vmatpush1.msra.mxu0 0.0
      %3238 = vmatprep.subr.mxu0 0.0
      %3239 = vmatpush1.msra.mxu0 0.0
      %3240 = vmatprep.subr.mxu0 0.0
      %3241 = vmatpush1.msra.mxu0 0.0
      %3242 = vmatprep.subr.mxu0 0.0
      %3243 = vmatpush1.msra.mxu0 0.0
      %3244 = vmatprep.subr.mxu0 0.0
      %3245 = vmatpush1.msra.mxu0 0.0
      %3246 = vmatprep.subr.mxu0 0.0
      %3247 = vmatpush1.msra.mxu0 0.0
      %3248 = vmatprep.subr.mxu0 0.0
      %3249 = vmatpush1.msra.mxu0 0.0
      %3250 = vmatprep.subr.mxu0 0.0
      %3251 = vmatpush1.msra.mxu0 0.0
      %3252 = vmatprep.subr.mxu0 0.0
      %3253 = vmatpush1.msra.mxu0 0.0
      %3254 = vmatprep.subr.mxu0 0.0
      %3255 = vmatpush1.msra.mxu0 %v3224
      %3256 = vmatprep.subr.mxu0 0.0
      %3257 = vmatpush1.msra.mxu0 %v3023
      %3258 = vmatprep.subr.mxu0 0.0
      %3259 = vmatpush2.msra.mxu0 0.0
      %3260 = vmatprep.subr.mxu0 0.0
      %3261 = vmatpush2.msra.mxu0 0.0
      %3262 = vmatprep.subr.mxu0 0.0
      %3263 = vmatpush2.msra.mxu0 0.0
      %3264 = vmatprep.subr.mxu0 0.0
      %3265 = vmatpush2.msra.mxu0 0.0
      %3266 = vmatprep.subr.mxu0 0.0
      %3267 = vmatpush2.msra.mxu0 0.0
      %3268 = vmatprep.subr.mxu0 0.0
      %3269 = vmatpush2.msra.mxu0 0.0
      %3270 = vmatprep.subr.mxu0 0.0
      %3271 = vmatpush2.msra.mxu0 0.0
      %3272 = vmatprep.subr.mxu0 0.0
      %3273 = vmatpush2.msra.mxu0 0.0
      %3274 = vmatprep.subr.mxu0 0.0
      %3275 = vmatpush2.msra.mxu0 0.0
      %3276 = vmatprep.subr.mxu0 0.0
      %3277 = vmatpush2.msra.mxu0 0.0
      %3278 = vmatprep.subr.mxu0 0.0
      %3279 = vmatpush2.msra.mxu0 0.0
      %3280 = vmatprep.subr.mxu0 0.0
      %3281 = vmatpush2.msra.mxu0 0.0
      %3282 = vmatprep.subr.mxu0 0.0
      %3283 = vmatpush2.msra.mxu0 0.0
      %3284 = vmatprep.subr.mxu0 0.0
      %3285 = vmatpush2.msra.mxu0 0.0
      %3286 = vmatprep.subr.mxu0 0.0
      %3287 = vmatpush2.msra.mxu0 0.0
      %3288 = vmatprep.subr.mxu0 0.0
      %3289 = vmatpush2.msra.mxu0 0.0
      %3290 = vmatprep.mubr.f32.mxu0 0.0
      %3291 = vmatmul.mubr.f32.gmra.mxu0 %v3205
      %v3292 = vpop.f32.mrf.mxu0
      %v3293 = vadd.f32 0.0, %v3292
      %v3294 = vpop.f32.mrf.mxu0
      %3295 = vmatprep.mubr.f32.mxu0 0.0
      %3296 = vmatmul.mubr.f32.gmra.mxu0 %v3208
      %v3297 = vpop.f32.mrf.mxu0
      %v3298 = vadd.f32 0.0, %v3297
      %v3299 = vpop.f32.mrf.mxu0
      %3300 = vmatprep.mubr.f32.mxu0 0.0
      %3301 = vmatmul.mubr.f32.gmra.mxu0 %v3211
      %v3302 = vpop.f32.mrf.mxu0
      %v3303 = vadd.f32 0.0, %v3302
      %v3304 = vpop.f32.mrf.mxu0
      %3305 = vmatprep.mubr.f32.mxu0 0.0
      %3306 = vmatmul.mubr.f32.gmra.mxu0 %v3214
      %v3307 = vpop.f32.mrf.mxu0
      %v3308 = vadd.f32 0.0, %v3307
      %v3309 = vpop.f32.mrf.mxu0
      %3310 = vmatprep.mubr.f32.mxu0 0.0
      %3311 = vmatmul.mubr.f32.gmra.mxu0 %v3217
      %v3312 = vpop.f32.mrf.mxu0
      %v3313 = vadd.f32 0.0, %v3312
      %v3314 = vpop.f32.mrf.mxu0
      %3315 = vmatprep.mubr.f32.mxu0 0.0
      %3316 = vmatmul.mubr.f32.gmra.mxu0 %v3220
      %v3317 = vpop.f32.mrf.mxu0
      %v3318 = vadd.f32 0.0, %v3317
      %v3319 = vpop.f32.mrf.mxu0
      %3320 = vdwg.mxu0
      %v3321 = vsub.f32 %v2850, %v3293
      %v3322 = vsub.f32 %v2853, %v3298
      %v3323 = vsub.f32 %v2858, %v3303
      %v3324 = vsub.f32 %v2861, %v3308
      %v3325 = vsub.f32 %v2866, %v3313
      %v3326 = vsub.f32 %v2869, %v3318
      %v3328 = vsel %vm3222, %v3196, 0
      %3330 = vmatprep.subr.mxu0 0.0
      %3331 = vmatpush1.msra.mxu0 0.0
      %3332 = vmatprep.subr.mxu0 0.0
      %3333 = vmatpush1.msra.mxu0 0.0
      %3334 = vmatprep.subr.mxu0 0.0
      %3335 = vmatpush1.msra.mxu0 0.0
      %3336 = vmatprep.subr.mxu0 0.0
      %3337 = vmatpush1.msra.mxu0 0.0
      %3338 = vmatprep.subr.mxu0 0.0
      %3339 = vmatpush1.msra.mxu0 0.0
      %3340 = vmatprep.subr.mxu0 0.0
      %3341 = vmatpush1.msra.mxu0 0.0
      %3342 = vmatprep.subr.mxu0 0.0
      %3343 = vmatpush1.msra.mxu0 0.0
      %3344 = vmatprep.subr.mxu0 0.0
      %3345 = vmatpush1.msra.mxu0 0.0
      %3346 = vmatprep.subr.mxu0 0.0
      %3347 = vmatpush1.msra.mxu0 0.0
      %3348 = vmatprep.subr.mxu0 0.0
      %3349 = vmatpush1.msra.mxu0 0.0
      %3350 = vmatprep.subr.mxu0 0.0
      %3351 = vmatpush1.msra.mxu0 0.0
      %3352 = vmatprep.subr.mxu0 0.0
      %3353 = vmatpush1.msra.mxu0 0.0
      %3354 = vmatprep.subr.mxu0 0.0
      %3355 = vmatpush1.msra.mxu0 0.0
      %3356 = vmatprep.subr.mxu0 0.0
      %3357 = vmatpush1.msra.mxu0 0.0
      %3358 = vmatprep.subr.mxu0 0.0
      %3359 = vmatpush1.msra.mxu0 %v3328
      %3360 = vmatprep.subr.mxu0 0.0
      %3361 = vmatpush1.msra.mxu0 %v3195
      %3362 = vmatprep.subr.mxu0 0.0
      %3363 = vmatpush2.msra.mxu0 0.0
      %3364 = vmatprep.subr.mxu0 0.0
      %3365 = vmatpush2.msra.mxu0 0.0
      %3366 = vmatprep.subr.mxu0 0.0
      %3367 = vmatpush2.msra.mxu0 0.0
      %3368 = vmatprep.subr.mxu0 0.0
      %3369 = vmatpush2.msra.mxu0 0.0
      %3370 = vmatprep.subr.mxu0 0.0
      %3371 = vmatpush2.msra.mxu0 0.0
      %3372 = vmatprep.subr.mxu0 0.0
      %3373 = vmatpush2.msra.mxu0 0.0
      %3374 = vmatprep.subr.mxu0 0.0
      %3375 = vmatpush2.msra.mxu0 0.0
      %3376 = vmatprep.subr.mxu0 0.0
      %3377 = vmatpush2.msra.mxu0 0.0
      %3378 = vmatprep.subr.mxu0 0.0
      %3379 = vmatpush2.msra.mxu0 0.0
      %3380 = vmatprep.subr.mxu0 0.0
      %3381 = vmatpush2.msra.mxu0 0.0
      %3382 = vmatprep.subr.mxu0 0.0
      %3383 = vmatpush2.msra.mxu0 0.0
      %3384 = vmatprep.subr.mxu0 0.0
      %3385 = vmatpush2.msra.mxu0 0.0
      %3386 = vmatprep.subr.mxu0 0.0
      %3387 = vmatpush2.msra.mxu0 0.0
      %3388 = vmatprep.subr.mxu0 0.0
      %3389 = vmatpush2.msra.mxu0 0.0
      %3390 = vmatprep.subr.mxu0 0.0
      %3391 = vmatpush2.msra.mxu0 0.0
      %3392 = vmatprep.subr.mxu0 0.0
      %3393 = vmatpush2.msra.mxu0 0.0
      %3394 = vmatprep.mubr.f32.mxu0 0.0
      %3395 = vmatmul.mubr.f32.gmra.mxu0 %v3205
      %v3396 = vpop.f32.mrf.mxu0
      %v3397 = vadd.f32 0.0, %v3396
      %v3398 = vpop.f32.mrf.mxu0
      %3399 = vmatprep.mubr.f32.mxu0 0.0
      %3400 = vmatmul.mubr.f32.gmra.mxu0 %v3208
      %v3401 = vpop.f32.mrf.mxu0
      %v3402 = vadd.f32 0.0, %v3401
      %v3403 = vpop.f32.mrf.mxu0
      %3404 = vmatprep.mubr.f32.mxu0 0.0
      %3405 = vmatmul.mubr.f32.gmra.mxu0 %v3211
      %v3406 = vpop.f32.mrf.mxu0
      %v3407 = vadd.f32 0.0, %v3406
      %v3408 = vpop.f32.mrf.mxu0
      %3409 = vmatprep.mubr.f32.mxu0 0.0
      %3410 = vmatmul.mubr.f32.gmra.mxu0 %v3214
      %v3411 = vpop.f32.mrf.mxu0
      %v3412 = vadd.f32 0.0, %v3411
      %v3413 = vpop.f32.mrf.mxu0
      %3414 = vmatprep.mubr.f32.mxu0 0.0
      %3415 = vmatmul.mubr.f32.gmra.mxu0 %v3217
      %v3416 = vpop.f32.mrf.mxu0
      %v3417 = vadd.f32 0.0, %v3416
      %v3418 = vpop.f32.mrf.mxu0
      %3419 = vmatprep.mubr.f32.mxu0 0.0
      %3420 = vmatmul.mubr.f32.gmra.mxu0 %v3220
      %v3421 = vpop.f32.mrf.mxu0
      %v3422 = vadd.f32 0.0, %v3421
      %v3423 = vpop.f32.mrf.mxu0
      %3424 = vdwg.mxu0
      %v3425 = vmul.f32 %v3321, %v3397
      %v3426 = vmul.f32 %v3322, %v3402
      %v3427 = vmul.f32 %v3323, %v3407
      %v3428 = vmul.f32 %v3324, %v3412
      %v3429 = vmul.f32 %v3325, %v3417
      %v3430 = vmul.f32 %v3326, %v3422
      %vm3431 = vcmp.ge.f32.partialorder %v3425, 0.0
      %vm3432 = vcmp.ge.f32.partialorder %v3426, 0.0
      %vm3433 = vcmp.ge.f32.partialorder %v3427, 0.0
      %vm3434 = vcmp.ge.f32.partialorder %v3428, 0.0
      %vm3435 = vcmp.ge.f32.partialorder %v3429, 0.0
      %vm3436 = vcmp.ge.f32.partialorder %v3430, 0.0
      %v3437 = vmul.f32 %v3425, 0.01
      %v3438 = vmul.f32 %v3426, 0.01
      %v3439 = vmul.f32 %v3427, 0.01
      %v3440 = vmul.f32 %v3428, 0.01
      %v3441 = vmul.f32 %v3429, 0.01
      %v3442 = vmul.f32 %v3430, 0.01
      %v3443 = vsel %vm3431, %v3425, %v3437
      %v3444 = vsel %vm3432, %v3426, %v3438
      %v3445 = vsel %vm3433, %v3427, %v3439
      %v3446 = vsel %vm3434, %v3428, %v3440
      %v3447 = vsel %vm3435, %v3429, %v3441
      %v3448 = vsel %vm3436, %v3430, %v3442
      %v3449 = vld [vmem:[%s9] sm:$0xf]
      %v3450 = vld [vmem:[%s9 + $0x4] sm:$0xf]
      %v3451 = vld [vmem:[%s9 + $0x8] sm:$0xf]
      %v3452 = vld [vmem:[%s9 + $0xc] sm:$0xf]
      %v3453 = vld [vmem:[%s9 + $0x10] sm:$0xf]
      %v3454 = vld [vmem:[%s9 + $0x14] sm:$0xf]
      %v3455 = vld [vmem:[%s9 + $0x18] sm:$0xf]
      %v3456 = vld [vmem:[%s9 + $0x1c] sm:$0xf]
      %v3457 = vld [vmem:[%s9 + $0x20] sm:$0xf]
      %v3458 = vld [vmem:[%s9 + $0x24] sm:$0xf]
      %v3459 = vld [vmem:[%s9 + $0x28] sm:$0xf]
      %v3460 = vld [vmem:[%s9 + $0x2c] sm:$0xf]
      %v3461 = vld [vmem:[%s9 + $0x30] sm:$0xf]
      %v3462 = vld [vmem:[%s9 + $0x34] sm:$0xf]
      %v3463 = vld [vmem:[%s9 + $0x38] sm:$0xf]
      %v3464 = vld [vmem:[%s9 + $0x3c] sm:$0xf]
      %v3465 = vld [vmem:[%s9 + $0x40] sm:$0xf]
      %v3466 = vld [vmem:[%s9 + $0x44] sm:$0xf]
      %v3467 = vld [vmem:[%s9 + $0x48] sm:$0xf]
      %v3468 = vld [vmem:[%s9 + $0x4c] sm:$0xf]
      %v3469 = vld [vmem:[%s9 + $0x50] sm:$0xf]
      %v3470 = vld [vmem:[%s9 + $0x54] sm:$0xf]
      %v3471 = vld [vmem:[%s9 + $0x58] sm:$0xf]
      %v3472 = vld [vmem:[%s9 + $0x5c] sm:$0xf]
      %v3473 = vpack.c.bf16 %v3444, %v3443
      %v3474 = vpack.c.bf16 %v3446, %v3445
      %v3475 = vpack.c.bf16 %v3448, %v3447
      %v3476 = vld [vmem:[%s10] sm:$0xff]
      %v3477 = vld [vmem:[%s10 + $0x8] sm:$0xff]
      %v3478 = vld [vmem:[%s10 + $0x10] sm:$0xff]
      %v3479 = vld [vmem:[%s10 + $0x18] sm:$0xff]
      %v3480 = vld [vmem:[%s10 + $0x20] sm:$0xff]
      %v3481 = vld [vmem:[%s10 + $0x28] sm:$0xff]
      %v3482 = vld [vmem:[%s10 + $0x30] sm:$0xff]
      %v3483 = vld [vmem:[%s10 + $0x38] sm:$0xff]
      %v3484 = vld [vmem:[%s10 + $0x40] sm:$0xff]
      %v3485 = vld [vmem:[%s10 + $0x48] sm:$0xff]
      %v3486 = vld [vmem:[%s10 + $0x50] sm:$0xff]
      %v3487 = vld [vmem:[%s10 + $0x58] sm:$0xff]
      %v3488 = vld [vmem:[%s10 + $0x60] sm:$0xff]
      %v3489 = vld [vmem:[%s10 + $0x68] sm:$0xff]
      %v3490 = vld [vmem:[%s10 + $0x70] sm:$0xff]
      %v3491 = vld [vmem:[%s10 + $0x78] sm:$0xff]
      %v3492 = vld [vmem:[%s10 + $0x80] sm:$0xff]
      %v3493 = vld [vmem:[%s10 + $0x88] sm:$0xff]
      %v3494 = vld [vmem:[%s10 + $0x90] sm:$0xff]
      %v3495 = vld [vmem:[%s10 + $0x98] sm:$0xff]
      %v3496 = vld [vmem:[%s10 + $0xa0] sm:$0xff]
      %v3497 = vld [vmem:[%s10 + $0xa8] sm:$0xff]
      %v3498 = vld [vmem:[%s10 + $0xb0] sm:$0xff]
      %v3499 = vld [vmem:[%s10 + $0xb8] sm:$0xff]
      %3501 = vset.pattern.permute.xlu0 0
      %3502 = vperm.xlu0 %3501, %v3476
      %v3503 = vpop.permute.xlu0 %3502
      %3506 = vset.pattern.permute.xlu0 0
      %3507 = vperm.xlu0 %3506, %v3477
      %v3508 = vpop.permute.xlu0 %3507
      %3511 = vset.pattern.permute.xlu0 0
      %3512 = vperm.xlu0 %3511, %v3478
      %v3513 = vpop.permute.xlu0 %3512
      %3516 = vset.pattern.permute.xlu0 0
      %3517 = vperm.xlu0 %3516, %v3479
      %v3518 = vpop.permute.xlu0 %3517
      %3521 = vset.pattern.permute.xlu0 0
      %3522 = vperm.xlu0 %3521, %v3480
      %v3523 = vpop.permute.xlu0 %3522
      %3526 = vset.pattern.permute.xlu0 0
      %3527 = vperm.xlu0 %3526, %v3481
      %v3528 = vpop.permute.xlu0 %3527
      %3531 = vset.pattern.permute.xlu0 0
      %3532 = vperm.xlu0 %3531, %v3482
      %v3533 = vpop.permute.xlu0 %3532
      %3536 = vset.pattern.permute.xlu0 0
      %3537 = vperm.xlu0 %3536, %v3483
      %v3538 = vpop.permute.xlu0 %3537
      %3541 = vset.pattern.permute.xlu0 0
      %3542 = vperm.xlu0 %3541, %v3484
      %v3543 = vpop.permute.xlu0 %3542
      %3546 = vset.pattern.permute.xlu0 0
      %3547 = vperm.xlu0 %3546, %v3485
      %v3548 = vpop.permute.xlu0 %3547
      %3551 = vset.pattern.permute.xlu0 0
      %3552 = vperm.xlu0 %3551, %v3486
      %v3553 = vpop.permute.xlu0 %3552
      %3556 = vset.pattern.permute.xlu0 0
      %3557 = vperm.xlu0 %3556, %v3487
      %v3558 = vpop.permute.xlu0 %3557
      %3561 = vset.pattern.permute.xlu0 0
      %3562 = vperm.xlu0 %3561, %v3488
      %v3563 = vpop.permute.xlu0 %3562
      %3566 = vset.pattern.permute.xlu0 0
      %3567 = vperm.xlu0 %3566, %v3489
      %v3568 = vpop.permute.xlu0 %3567
      %3571 = vset.pattern.permute.xlu0 0
      %3572 = vperm.xlu0 %3571, %v3490
      %v3573 = vpop.permute.xlu0 %3572
      %3576 = vset.pattern.permute.xlu0 0
      %3577 = vperm.xlu0 %3576, %v3491
      %v3578 = vpop.permute.xlu0 %3577
      %3581 = vset.pattern.permute.xlu0 0
      %3582 = vperm.xlu0 %3581, %v3492
      %v3583 = vpop.permute.xlu0 %3582
      %3586 = vset.pattern.permute.xlu0 0
      %3587 = vperm.xlu0 %3586, %v3493
      %v3588 = vpop.permute.xlu0 %3587
      %3591 = vset.pattern.permute.xlu0 0
      %3592 = vperm.xlu0 %3591, %v3494
      %v3593 = vpop.permute.xlu0 %3592
      %3596 = vset.pattern.permute.xlu0 0
      %3597 = vperm.xlu0 %3596, %v3495
      %v3598 = vpop.permute.xlu0 %3597
      %3601 = vset.pattern.permute.xlu0 0
      %3602 = vperm.xlu0 %3601, %v3496
      %v3603 = vpop.permute.xlu0 %3602
      %3606 = vset.pattern.permute.xlu0 0
      %3607 = vperm.xlu0 %3606, %v3497
      %v3608 = vpop.permute.xlu0 %3607
      %3611 = vset.pattern.permute.xlu0 0
      %3612 = vperm.xlu0 %3611, %v3498
      %v3613 = vpop.permute.xlu0 %3612
      %3616 = vset.pattern.permute.xlu0 0
      %3617 = vperm.xlu0 %3616, %v3499
      %v3618 = vpop.permute.xlu0 %3617
      %v3644 = vunpack.c.l.b16 %v3449
      %v3645 = vunpack.c.l.b16 %v3450
      %v3646 = vunpack.c.l.b16 %v3451
      %v3647 = vunpack.c.l.b16 %v3452
      %v3648 = vunpack.c.l.b16 %v3453
      %v3649 = vunpack.c.l.b16 %v3454
      %v3650 = vunpack.c.l.b16 %v3455
      %v3651 = vunpack.c.l.b16 %v3456
      %v3652 = vunpack.c.l.b16 %v3457
      %v3653 = vunpack.c.l.b16 %v3458
      %v3654 = vunpack.c.l.b16 %v3459
      %v3655 = vunpack.c.l.b16 %v3460
      %v3656 = vunpack.c.l.b16 %v3461
      %v3657 = vunpack.c.l.b16 %v3462
      %v3658 = vunpack.c.l.b16 %v3463
      %v3659 = vunpack.c.l.b16 %v3464
      %v3660 = vunpack.c.l.b16 %v3465
      %v3661 = vunpack.c.l.b16 %v3466
      %v3662 = vunpack.c.l.b16 %v3467
      %v3663 = vunpack.c.l.b16 %v3468
      %v3664 = vunpack.c.l.b16 %v3469
      %v3665 = vunpack.c.l.b16 %v3470
      %v3666 = vunpack.c.l.b16 %v3471
      %v3667 = vunpack.c.l.b16 %v3472
      %v3668 = vpack.c.b16 %v3645, %v3644
      %v3669 = vpack.c.b16 %v3647, %v3646
      %v3670 = vpack.c.b16 %v3649, %v3648
      %v3671 = vpack.c.b16 %v3651, %v3650
      %v3672 = vpack.c.b16 %v3653, %v3652
      %v3673 = vpack.c.b16 %v3655, %v3654
      %v3674 = vpack.c.b16 %v3657, %v3656
      %v3675 = vpack.c.b16 %v3659, %v3658
      %v3676 = vpack.c.b16 %v3661, %v3660
      %v3677 = vpack.c.b16 %v3663, %v3662
      %v3678 = vpack.c.b16 %v3665, %v3664
      %v3679 = vpack.c.b16 %v3667, %v3666
      %v3681 = vsel %vm2874, %v3668, 0
      %v3684 = vsel %vm2874, %v3669, 0
      %v3687 = vsel %vm2874, %v3670, 0
      %v3690 = vsel %vm2874, %v3671, 0
      %v3693 = vsel %vm2874, %v3672, 0
      %v3696 = vsel %vm2874, %v3673, 0
      %v3699 = vsel %vm2874, %v3674, 0
      %v3702 = vsel %vm2874, %v3675, 0
      %v3705 = vsel %vm2874, %v3676, 0
      %v3708 = vsel %vm2874, %v3677, 0
      %v3711 = vsel %vm2874, %v3678, 0
      %v3714 = vsel %vm2874, %v3679, 0
      %3716 = vmatprep.subr.bf16.mxu0 0
      %3717 = vmatpush1.bf16.msra.mxu0 0
      %3718 = vmatprep.subr.bf16.mxu0 0
      %3719 = vmatpush1.bf16.msra.mxu0 0
      %3720 = vmatprep.subr.bf16.mxu0 0
      %3721 = vmatpush1.bf16.msra.mxu0 0
      %3722 = vmatprep.subr.bf16.mxu0 0
      %3723 = vmatpush1.bf16.msra.mxu0 0
      %3724 = vmatprep.subr.bf16.mxu0 0
      %3725 = vmatpush1.bf16.msra.mxu0 0
      %3726 = vmatprep.subr.bf16.mxu0 0
      %3727 = vmatpush1.bf16.msra.mxu0 %v3475
      %3728 = vmatprep.subr.bf16.mxu0 0
      %3729 = vmatpush1.bf16.msra.mxu0 %v3474
      %3730 = vmatprep.subr.bf16.mxu0 0
      %3731 = vmatpush1.bf16.msra.mxu0 %v3473
      %3732 = vmatprep.subr.bf16.mxu0 0
      %3733 = vmatpush2.bf16.msra.mxu0 0
      %3734 = vmatprep.subr.bf16.mxu0 0
      %3735 = vmatpush2.bf16.msra.mxu0 0
      %3736 = vmatprep.subr.bf16.mxu0 0
      %3737 = vmatpush2.bf16.msra.mxu0 0
      %3738 = vmatprep.subr.bf16.mxu0 0
      %3739 = vmatpush2.bf16.msra.mxu0 0
      %3740 = vmatprep.subr.bf16.mxu0 0
      %3741 = vmatpush2.bf16.msra.mxu0 0
      %3742 = vmatprep.subr.bf16.mxu0 0
      %3743 = vmatpush2.bf16.msra.mxu0 0
      %3744 = vmatprep.subr.bf16.mxu0 0
      %3745 = vmatpush2.bf16.msra.mxu0 0
      %3746 = vmatprep.subr.bf16.mxu0 0
      %3747 = vmatpush2.bf16.msra.mxu0 0
      %3748 = vmatprep.mubr.bf16.mxu0 0
      %3749 = vmatmul.mubr.bf16.gmra.mxu0 %v3681
      %v3750 = vpop.f32.mrf.mxu0
      %v3751 = vadd.f32 %v3503, %v3750
      %v3752 = vpop.f32.mrf.mxu0
      %v3753 = vpop.f32.mrf.mxu0
      %v3754 = vadd.f32 %v3508, %v3753
      %v3755 = vpop.f32.mrf.mxu0
      %3756 = vmatprep.mubr.bf16.mxu0 0
      %3757 = vmatmul.mubr.bf16.gmra.mxu0 %v3684
      %v3758 = vpop.f32.mrf.mxu0
      %v3759 = vadd.f32 %v3513, %v3758
      %v3760 = vpop.f32.mrf.mxu0
      %v3761 = vpop.f32.mrf.mxu0
      %v3762 = vadd.f32 %v3518, %v3761
      %v3763 = vpop.f32.mrf.mxu0
      %3764 = vmatprep.mubr.bf16.mxu0 0
      %3765 = vmatmul.mubr.bf16.gmra.mxu0 %v3687
      %v3766 = vpop.f32.mrf.mxu0
      %v3767 = vadd.f32 %v3523, %v3766
      %v3768 = vpop.f32.mrf.mxu0
      %v3769 = vpop.f32.mrf.mxu0
      %v3770 = vadd.f32 %v3528, %v3769
      %v3771 = vpop.f32.mrf.mxu0
      %3772 = vmatprep.mubr.bf16.mxu0 0
      %3773 = vmatmul.mubr.bf16.gmra.mxu0 %v3690
      %v3774 = vpop.f32.mrf.mxu0
      %v3775 = vadd.f32 %v3533, %v3774
      %v3776 = vpop.f32.mrf.mxu0
      %v3777 = vpop.f32.mrf.mxu0
      %v3778 = vadd.f32 %v3538, %v3777
      %v3779 = vpop.f32.mrf.mxu0
      %3780 = vmatprep.mubr.bf16.mxu0 0
      %3781 = vmatmul.mubr.bf16.gmra.mxu0 %v3693
      %v3782 = vpop.f32.mrf.mxu0
      %v3783 = vadd.f32 %v3543, %v3782
      %v3784 = vpop.f32.mrf.mxu0
      %v3785 = vpop.f32.mrf.mxu0
      %v3786 = vadd.f32 %v3548, %v3785
      %v3787 = vpop.f32.mrf.mxu0
      %3788 = vmatprep.mubr.bf16.mxu0 0
      %3789 = vmatmul.mubr.bf16.gmra.mxu0 %v3696
      %v3790 = vpop.f32.mrf.mxu0
      %v3791 = vadd.f32 %v3553, %v3790
      %v3792 = vpop.f32.mrf.mxu0
      %v3793 = vpop.f32.mrf.mxu0
      %v3794 = vadd.f32 %v3558, %v3793
      %v3795 = vpop.f32.mrf.mxu0
      %3796 = vmatprep.mubr.bf16.mxu0 0
      %3797 = vmatmul.mubr.bf16.gmra.mxu0 %v3699
      %v3798 = vpop.f32.mrf.mxu0
      %v3799 = vadd.f32 %v3563, %v3798
      %v3800 = vpop.f32.mrf.mxu0
      %v3801 = vpop.f32.mrf.mxu0
      %v3802 = vadd.f32 %v3568, %v3801
      %v3803 = vpop.f32.mrf.mxu0
      %3804 = vmatprep.mubr.bf16.mxu0 0
      %3805 = vmatmul.mubr.bf16.gmra.mxu0 %v3702
      %v3806 = vpop.f32.mrf.mxu0
      %v3807 = vadd.f32 %v3573, %v3806
      %v3808 = vpop.f32.mrf.mxu0
      %v3809 = vpop.f32.mrf.mxu0
      %v3810 = vadd.f32 %v3578, %v3809
      %v3811 = vpop.f32.mrf.mxu0
      %3812 = vmatprep.mubr.bf16.mxu0 0
      %3813 = vmatmul.mubr.bf16.gmra.mxu0 %v3705
      %v3814 = vpop.f32.mrf.mxu0
      %v3815 = vadd.f32 %v3583, %v3814
      %v3816 = vpop.f32.mrf.mxu0
      %v3817 = vpop.f32.mrf.mxu0
      %v3818 = vadd.f32 %v3588, %v3817
      %v3819 = vpop.f32.mrf.mxu0
      %3820 = vmatprep.mubr.bf16.mxu0 0
      %3821 = vmatmul.mubr.bf16.gmra.mxu0 %v3708
      %v3822 = vpop.f32.mrf.mxu0
      %v3823 = vadd.f32 %v3593, %v3822
      %v3824 = vpop.f32.mrf.mxu0
      %v3825 = vpop.f32.mrf.mxu0
      %v3826 = vadd.f32 %v3598, %v3825
      %v3827 = vpop.f32.mrf.mxu0
      %3828 = vmatprep.mubr.bf16.mxu0 0
      %3829 = vmatmul.mubr.bf16.gmra.mxu0 %v3711
      %v3830 = vpop.f32.mrf.mxu0
      %v3831 = vadd.f32 %v3603, %v3830
      %v3832 = vpop.f32.mrf.mxu0
      %v3833 = vpop.f32.mrf.mxu0
      %v3834 = vadd.f32 %v3608, %v3833
      %v3835 = vpop.f32.mrf.mxu0
      %3836 = vmatprep.mubr.bf16.mxu0 0
      %3837 = vmatmul.mubr.bf16.gmra.mxu0 %v3714
      %v3838 = vpop.f32.mrf.mxu0
      %v3839 = vadd.f32 %v3613, %v3838
      %v3840 = vpop.f32.mrf.mxu0
      %v3841 = vpop.f32.mrf.mxu0
      %v3842 = vadd.f32 %v3618, %v3841
      %v3843 = vpop.f32.mrf.mxu0
      %3844 = vdwg.mxu0
      %v3845 = vld [vmem:[%s11] sm:$0xff]
      %v3846 = vld [vmem:[%s11 + $0x8] sm:$0xff]
      %v3847 = vld [vmem:[%s11 + $0x10] sm:$0xf]
      %v3848 = vld [vmem:[%s11 + $0x18] sm:$0xf]
      %v3850 = vsel %vm731, %v3846, 0
      %v3853 = vsel %vm731, %v3848, 0
      %3855 = vmatprep.subr.mxu0 0.0
      %3856 = vmatpush1.msra.mxu0 %v3810
      %3857 = vmatprep.subr.mxu0 0.0
      %3858 = vmatpush1.msra.mxu0 %v3807
      %3859 = vmatprep.subr.mxu0 0.0
      %3860 = vmatpush1.msra.mxu0 %v3802
      %3861 = vmatprep.subr.mxu0 0.0
      %3862 = vmatpush1.msra.mxu0 %v3799
      %3863 = vmatprep.subr.mxu0 0.0
      %3864 = vmatpush1.msra.mxu0 %v3794
      %3865 = vmatprep.subr.mxu0 0.0
      %3866 = vmatpush1.msra.mxu0 %v3791
      %3867 = vmatprep.subr.mxu0 0.0
      %3868 = vmatpush1.msra.mxu0 %v3786
      %3869 = vmatprep.subr.mxu0 0.0
      %3870 = vmatpush1.msra.mxu0 %v3783
      %3871 = vmatprep.subr.mxu0 0.0
      %3872 = vmatpush1.msra.mxu0 %v3778
      %3873 = vmatprep.subr.mxu0 0.0
      %3874 = vmatpush1.msra.mxu0 %v3775
      %3875 = vmatprep.subr.mxu0 0.0
      %3876 = vmatpush1.msra.mxu0 %v3770
      %3877 = vmatprep.subr.mxu0 0.0
      %3878 = vmatpush1.msra.mxu0 %v3767
      %3879 = vmatprep.subr.mxu0 0.0
      %3880 = vmatpush1.msra.mxu0 %v3762
      %3881 = vmatprep.subr.mxu0 0.0
      %3882 = vmatpush1.msra.mxu0 %v3759
      %3883 = vmatprep.subr.mxu0 0.0
      %3884 = vmatpush1.msra.mxu0 %v3754
      %3885 = vmatprep.subr.mxu0 0.0
      %3886 = vmatpush1.msra.mxu0 %v3751
      %3887 = vmatprep.subr.mxu0 0.0
      %3888 = vmatpush2.msra.mxu0 0.0
      %3889 = vmatprep.subr.mxu0 0.0
      %3890 = vmatpush2.msra.mxu0 0.0
      %3891 = vmatprep.subr.mxu0 0.0
      %3892 = vmatpush2.msra.mxu0 0.0
      %3893 = vmatprep.subr.mxu0 0.0
      %3894 = vmatpush2.msra.mxu0 0.0
      %3895 = vmatprep.subr.mxu0 0.0
      %3896 = vmatpush2.msra.mxu0 0.0
      %3897 = vmatprep.subr.mxu0 0.0
      %3898 = vmatpush2.msra.mxu0 0.0
      %3899 = vmatprep.subr.mxu0 0.0
      %3900 = vmatpush2.msra.mxu0 0.0
      %3901 = vmatprep.subr.mxu0 0.0
      %3902 = vmatpush2.msra.mxu0 0.0
      %3903 = vmatprep.subr.mxu0 0.0
      %3904 = vmatpush2.msra.mxu0 %v3842
      %3905 = vmatprep.subr.mxu0 0.0
      %3906 = vmatpush2.msra.mxu0 %v3839
      %3907 = vmatprep.subr.mxu0 0.0
      %3908 = vmatpush2.msra.mxu0 %v3834
      %3909 = vmatprep.subr.mxu0 0.0
      %3910 = vmatpush2.msra.mxu0 %v3831
      %3911 = vmatprep.subr.mxu0 0.0
      %3912 = vmatpush2.msra.mxu0 %v3826
      %3913 = vmatprep.subr.mxu0 0.0
      %3914 = vmatpush2.msra.mxu0 %v3823
      %3915 = vmatprep.subr.mxu0 0.0
      %3916 = vmatpush2.msra.mxu0 %v3818
      %3917 = vmatprep.subr.mxu0 0.0
      %3918 = vmatpush2.msra.mxu0 %v3815
      %3919 = vmatprep.mubr.f32.mxu0 %v3850
      %3920 = vmatmul.mubr.f32.gmra.mxu0 %v3845
      %v3921 = vpop.f32.mrf.mxu0
      %v3922 = vadd.f32 0.0, %v3921
      %v3923 = vpop.f32.mrf.mxu0
      %3924 = vmatprep.mubr.f32.mxu0 %v3853
      %3925 = vmatmul.mubr.f32.gmra.mxu0 %v3847
      %v3926 = vpop.f32.mrf.mxu0
      %v3927 = vadd.f32 0.0, %v3926
      %v3928 = vpop.f32.mrf.mxu0
      %3929 = vdwg.mxu0
      %3930 = vmatprep.subr.mxu0 0.0
      %3931 = vmatpush1.msra.mxu0 %v565
      %3932 = vmatprep.subr.mxu0 0.0
      %3933 = vmatpush1.msra.mxu0 %v564
      %3934 = vmatprep.subr.mxu0 0.0
      %3935 = vmatpush1.msra.mxu0 %v563
      %3936 = vmatprep.subr.mxu0 0.0
      %3937 = vmatpush1.msra.mxu0 %v562
      %3938 = vmatprep.subr.mxu0 0.0
      %3939 = vmatpush1.msra.mxu0 %v561
      %3940 = vmatprep.subr.mxu0 0.0
      %3941 = vmatpush1.msra.mxu0 %v560
      %3942 = vmatprep.subr.mxu0 0.0
      %3943 = vmatpush1.msra.mxu0 %v559
      %3944 = vmatprep.subr.mxu0 0.0
      %3945 = vmatpush1.msra.mxu0 %v558
      %3946 = vmatprep.subr.mxu0 0.0
      %3947 = vmatpush1.msra.mxu0 %v557
      %3948 = vmatprep.subr.mxu0 0.0
      %3949 = vmatpush1.msra.mxu0 %v556
      %3950 = vmatprep.subr.mxu0 0.0
      %3951 = vmatpush1.msra.mxu0 %v555
      %3952 = vmatprep.subr.mxu0 0.0
      %3953 = vmatpush1.msra.mxu0 %v554
      %3954 = vmatprep.subr.mxu0 0.0
      %3955 = vmatpush1.msra.mxu0 %v553
      %3956 = vmatprep.subr.mxu0 0.0
      %3957 = vmatpush1.msra.mxu0 %v552
      %3958 = vmatprep.subr.mxu0 0.0
      %3959 = vmatpush1.msra.mxu0 %v551
      %3960 = vmatprep.subr.mxu0 0.0
      %3961 = vmatpush1.msra.mxu0 %v550
      %3962 = vmatprep.subr.mxu0 0.0
      %3963 = vmatpush2.msra.mxu0 0.0
      %3964 = vmatprep.subr.mxu0 0.0
      %3965 = vmatpush2.msra.mxu0 0.0
      %3966 = vmatprep.subr.mxu0 0.0
      %3967 = vmatpush2.msra.mxu0 0.0
      %3968 = vmatprep.subr.mxu0 0.0
      %3969 = vmatpush2.msra.mxu0 0.0
      %3970 = vmatprep.subr.mxu0 0.0
      %3971 = vmatpush2.msra.mxu0 0.0
      %3972 = vmatprep.subr.mxu0 0.0
      %3973 = vmatpush2.msra.mxu0 0.0
      %3974 = vmatprep.subr.mxu0 0.0
      %3975 = vmatpush2.msra.mxu0 0.0
      %3976 = vmatprep.subr.mxu0 0.0
      %3977 = vmatpush2.msra.mxu0 0.0
      %3978 = vmatprep.subr.mxu0 0.0
      %3979 = vmatpush2.msra.mxu0 0.0
      %3980 = vmatprep.subr.mxu0 0.0
      %3981 = vmatpush2.msra.mxu0 0.0
      %3982 = vmatprep.subr.mxu0 0.0
      %3983 = vmatpush2.msra.mxu0 0.0
      %3984 = vmatprep.subr.mxu0 0.0
      %3985 = vmatpush2.msra.mxu0 0.0
      %3986 = vmatprep.subr.mxu0 0.0
      %3987 = vmatpush2.msra.mxu0 0.0
      %3988 = vmatprep.subr.mxu0 0.0
      %3989 = vmatpush2.msra.mxu0 0.0
      %3990 = vmatprep.subr.mxu0 0.0
      %3991 = vmatpush2.msra.mxu0 0.0
      %3992 = vmatprep.subr.mxu0 0.0
      %3993 = vmatpush2.msra.mxu0 0.0
      %3994 = vmatprep.mubr.f32.mxu0 0.0
      %3995 = vmatmul.mubr.f32.gmra.mxu0 %v3922
      %v3996 = vpop.f32.mrf.mxu0
      %v3997 = vadd.f32 0.0, %v3996
      %v3998 = vpop.f32.mrf.mxu0
      %3999 = vmatprep.mubr.f32.mxu0 0.0
      %4000 = vmatmul.mubr.f32.gmra.mxu0 %v3927
      %v4001 = vpop.f32.mrf.mxu0
      %v4002 = vadd.f32 0.0, %v4001
      %v4003 = vpop.f32.mrf.mxu0
      %4004 = vdwg.mxu0
      %v4005 = vmul.f32 %v3751, %v3751
      %v4006 = vmul.f32 %v3754, %v3754
      %v4007 = vmul.f32 %v3759, %v3759
      %v4008 = vmul.f32 %v3762, %v3762
      %v4009 = vmul.f32 %v3767, %v3767
      %v4010 = vmul.f32 %v3770, %v3770
      %v4011 = vmul.f32 %v3775, %v3775
      %v4012 = vmul.f32 %v3778, %v3778
      %v4013 = vmul.f32 %v3783, %v3783
      %v4014 = vmul.f32 %v3786, %v3786
      %v4015 = vmul.f32 %v3791, %v3791
      %v4016 = vmul.f32 %v3794, %v3794
      %v4017 = vmul.f32 %v3799, %v3799
      %v4018 = vmul.f32 %v3802, %v3802
      %v4019 = vmul.f32 %v3807, %v3807
      %v4020 = vmul.f32 %v3810, %v3810
      %v4021 = vmul.f32 %v3815, %v3815
      %v4022 = vmul.f32 %v3818, %v3818
      %v4023 = vmul.f32 %v3823, %v3823
      %v4024 = vmul.f32 %v3826, %v3826
      %v4025 = vmul.f32 %v3831, %v3831
      %v4026 = vmul.f32 %v3834, %v3834
      %v4027 = vmul.f32 %v3839, %v3839
      %v4028 = vmul.f32 %v3842, %v3842
      %4029 = vmatprep.subr.mxu0 0.0
      %4030 = vmatpush1.msra.mxu0 %v4020
      %4031 = vmatprep.subr.mxu0 0.0
      %4032 = vmatpush1.msra.mxu0 %v4019
      %4033 = vmatprep.subr.mxu0 0.0
      %4034 = vmatpush1.msra.mxu0 %v4018
      %4035 = vmatprep.subr.mxu0 0.0
      %4036 = vmatpush1.msra.mxu0 %v4017
      %4037 = vmatprep.subr.mxu0 0.0
      %4038 = vmatpush1.msra.mxu0 %v4016
      %4039 = vmatprep.subr.mxu0 0.0
      %4040 = vmatpush1.msra.mxu0 %v4015
      %4041 = vmatprep.subr.mxu0 0.0
      %4042 = vmatpush1.msra.mxu0 %v4014
      %4043 = vmatprep.subr.mxu0 0.0
      %4044 = vmatpush1.msra.mxu0 %v4013
      %4045 = vmatprep.subr.mxu0 0.0
      %4046 = vmatpush1.msra.mxu0 %v4012
      %4047 = vmatprep.subr.mxu0 0.0
      %4048 = vmatpush1.msra.mxu0 %v4011
      %4049 = vmatprep.subr.mxu0 0.0
      %4050 = vmatpush1.msra.mxu0 %v4010
      %4051 = vmatprep.subr.mxu0 0.0
      %4052 = vmatpush1.msra.mxu0 %v4009
      %4053 = vmatprep.subr.mxu0 0.0
      %4054 = vmatpush1.msra.mxu0 %v4008
      %4055 = vmatprep.subr.mxu0 0.0
      %4056 = vmatpush1.msra.mxu0 %v4007
      %4057 = vmatprep.subr.mxu0 0.0
      %4058 = vmatpush1.msra.mxu0 %v4006
      %4059 = vmatprep.subr.mxu0 0.0
      %4060 = vmatpush1.msra.mxu0 %v4005
      %4061 = vmatprep.subr.mxu0 0.0
      %4062 = vmatpush2.msra.mxu0 0.0
      %4063 = vmatprep.subr.mxu0 0.0
      %4064 = vmatpush2.msra.mxu0 0.0
      %4065 = vmatprep.subr.mxu0 0.0
      %4066 = vmatpush2.msra.mxu0 0.0
      %4067 = vmatprep.subr.mxu0 0.0
      %4068 = vmatpush2.msra.mxu0 0.0
      %4069 = vmatprep.subr.mxu0 0.0
      %4070 = vmatpush2.msra.mxu0 0.0
      %4071 = vmatprep.subr.mxu0 0.0
      %4072 = vmatpush2.msra.mxu0 0.0
      %4073 = vmatprep.subr.mxu0 0.0
      %4074 = vmatpush2.msra.mxu0 0.0
      %4075 = vmatprep.subr.mxu0 0.0
      %4076 = vmatpush2.msra.mxu0 0.0
      %4077 = vmatprep.subr.mxu0 0.0
      %4078 = vmatpush2.msra.mxu0 %v4028
      %4079 = vmatprep.subr.mxu0 0.0
      %4080 = vmatpush2.msra.mxu0 %v4027
      %4081 = vmatprep.subr.mxu0 0.0
      %4082 = vmatpush2.msra.mxu0 %v4026
      %4083 = vmatprep.subr.mxu0 0.0
      %4084 = vmatpush2.msra.mxu0 %v4025
      %4085 = vmatprep.subr.mxu0 0.0
      %4086 = vmatpush2.msra.mxu0 %v4024
      %4087 = vmatprep.subr.mxu0 0.0
      %4088 = vmatpush2.msra.mxu0 %v4023
      %4089 = vmatprep.subr.mxu0 0.0
      %4090 = vmatpush2.msra.mxu0 %v4022
      %4091 = vmatprep.subr.mxu0 0.0
      %4092 = vmatpush2.msra.mxu0 %v4021
      %4093 = vmatprep.mubr.f32.mxu0 %v3850
      %4094 = vmatmul.mubr.f32.gmra.mxu0 %v3845
      %v4095 = vpop.f32.mrf.mxu0
      %v4096 = vadd.f32 0.0, %v4095
      %v4097 = vpop.f32.mrf.mxu0
      %4098 = vmatprep.mubr.f32.mxu0 %v3853
      %4099 = vmatmul.mubr.f32.gmra.mxu0 %v3847
      %v4100 = vpop.f32.mrf.mxu0
      %v4101 = vadd.f32 0.0, %v4100
      %v4102 = vpop.f32.mrf.mxu0
      %4103 = vdwg.mxu0
      %4104 = vmatprep.subr.mxu0 0.0
      %4105 = vmatpush1.msra.mxu0 %v565
      %4106 = vmatprep.subr.mxu0 0.0
      %4107 = vmatpush1.msra.mxu0 %v564
      %4108 = vmatprep.subr.mxu0 0.0
      %4109 = vmatpush1.msra.mxu0 %v563
      %4110 = vmatprep.subr.mxu0 0.0
      %4111 = vmatpush1.msra.mxu0 %v562
      %4112 = vmatprep.subr.mxu0 0.0
      %4113 = vmatpush1.msra.mxu0 %v561
      %4114 = vmatprep.subr.mxu0 0.0
      %4115 = vmatpush1.msra.mxu0 %v560
      %4116 = vmatprep.subr.mxu0 0.0
      %4117 = vmatpush1.msra.mxu0 %v559
      %4118 = vmatprep.subr.mxu0 0.0
      %4119 = vmatpush1.msra.mxu0 %v558
      %4120 = vmatprep.subr.mxu0 0.0
      %4121 = vmatpush1.msra.mxu0 %v557
      %4122 = vmatprep.subr.mxu0 0.0
      %4123 = vmatpush1.msra.mxu0 %v556
      %4124 = vmatprep.subr.mxu0 0.0
      %4125 = vmatpush1.msra.mxu0 %v555
      %4126 = vmatprep.subr.mxu0 0.0
      %4127 = vmatpush1.msra.mxu0 %v554
      %4128 = vmatprep.subr.mxu0 0.0
      %4129 = vmatpush1.msra.mxu0 %v553
      %4130 = vmatprep.subr.mxu0 0.0
      %4131 = vmatpush1.msra.mxu0 %v552
      %4132 = vmatprep.subr.mxu0 0.0
      %4133 = vmatpush1.msra.mxu0 %v551
      %4134 = vmatprep.subr.mxu0 0.0
      %4135 = vmatpush1.msra.mxu0 %v550
      %4136 = vmatprep.subr.mxu0 0.0
      %4137 = vmatpush2.msra.mxu0 0.0
      %4138 = vmatprep.subr.mxu0 0.0
      %4139 = vmatpush2.msra.mxu0 0.0
      %4140 = vmatprep.subr.mxu0 0.0
      %4141 = vmatpush2.msra.mxu0 0.0
      %4142 = vmatprep.subr.mxu0 0.0
      %4143 = vmatpush2.msra.mxu0 0.0
      %4144 = vmatprep.subr.mxu0 0.0
      %4145 = vmatpush2.msra.mxu0 0.0
      %4146 = vmatprep.subr.mxu0 0.0
      %4147 = vmatpush2.msra.mxu0 0.0
      %4148 = vmatprep.subr.mxu0 0.0
      %4149 = vmatpush2.msra.mxu0 0.0
      %4150 = vmatprep.subr.mxu0 0.0
      %4151 = vmatpush2.msra.mxu0 0.0
      %4152 = vmatprep.subr.mxu0 0.0
      %4153 = vmatpush2.msra.mxu0 0.0
      %4154 = vmatprep.subr.mxu0 0.0
      %4155 = vmatpush2.msra.mxu0 0.0
      %4156 = vmatprep.subr.mxu0 0.0
      %4157 = vmatpush2.msra.mxu0 0.0
      %4158 = vmatprep.subr.mxu0 0.0
      %4159 = vmatpush2.msra.mxu0 0.0
      %4160 = vmatprep.subr.mxu0 0.0
      %4161 = vmatpush2.msra.mxu0 0.0
      %4162 = vmatprep.subr.mxu0 0.0
      %4163 = vmatpush2.msra.mxu0 0.0
      %4164 = vmatprep.subr.mxu0 0.0
      %4165 = vmatpush2.msra.mxu0 0.0
      %4166 = vmatprep.subr.mxu0 0.0
      %4167 = vmatpush2.msra.mxu0 0.0
      %4168 = vmatprep.mubr.f32.mxu0 0.0
      %4169 = vmatmul.mubr.f32.gmra.mxu0 %v4096
      %v4170 = vpop.f32.mrf.mxu0
      %v4171 = vadd.f32 0.0, %v4170
      %v4172 = vpop.f32.mrf.mxu0
      %4173 = vmatprep.mubr.f32.mxu0 0.0
      %4174 = vmatmul.mubr.f32.gmra.mxu0 %v4101
      %v4175 = vpop.f32.mrf.mxu0
      %v4176 = vadd.f32 0.0, %v4175
      %v4177 = vpop.f32.mrf.mxu0
      %4178 = vdwg.mxu0
      %v4179 = vmul.f32 %v3997, %v3997
      %v4180 = vmul.f32 %v4002, %v4002
      %v4181 = vsub.f32 %v4171, %v4179
      %v4182 = vsub.f32 %v4176, %v4180
      %v4183 = vmax.f32 %v4181, 0.0
      %v4184 = vmax.f32 %v4182, 0.0
      %v4185 = vadd.f32 %v4183, 1e-05
      %v4186 = vadd.f32 %v4184, 1e-05
      %v4187 = vrsqrt.pop %v4185
      %v4188 = vrsqrt.pop %v4186
      %v4189 = vld [vmem:[%s12] sm:$0xff]
      %v4190 = vld [vmem:[%s12 + $0x8] sm:$0xff]
      %v4191 = vld [vmem:[%s12 + $0x10] sm:$0xff]
      %v4192 = vld [vmem:[%s12 + $0x18] sm:$0xff]
      %v4193 = vld [vmem:[%s12 + $0x20] sm:$0xff]
      %v4194 = vld [vmem:[%s12 + $0x28] sm:$0xff]
      %v4195 = vld [vmem:[%s12 + $0x30] sm:$0xff]
      %v4196 = vld [vmem:[%s12 + $0x38] sm:$0xff]
      %v4198 = vsel %vm3203, %v4189, 0
      %v4201 = vsel %vm3203, %v4190, 0
      %v4204 = vsel %vm3203, %v4191, 0
      %v4207 = vsel %vm3203, %v4192, 0
      %v4210 = vsel %vm3203, %v4193, 0
      %v4213 = vsel %vm3203, %v4194, 0
      %v4216 = vsel %vm3203, %v4195, 0
      %v4219 = vsel %vm3203, %v4196, 0
      %v4222 = vsel %vm3222, %v4002, 0
      %4224 = vmatprep.subr.mxu0 0.0
      %4225 = vmatpush1.msra.mxu0 0.0
      %4226 = vmatprep.subr.mxu0 0.0
      %4227 = vmatpush1.msra.mxu0 0.0
      %4228 = vmatprep.subr.mxu0 0.0
      %4229 = vmatpush1.msra.mxu0 0.0
      %4230 = vmatprep.subr.mxu0 0.0
      %4231 = vmatpush1.msra.mxu0 0.0
      %4232 = vmatprep.subr.mxu0 0.0
      %4233 = vmatpush1.msra.mxu0 0.0
      %4234 = vmatprep.subr.mxu0 0.0
      %4235 = vmatpush1.msra.mxu0 0.0
      %4236 = vmatprep.subr.mxu0 0.0
      %4237 = vmatpush1.msra.mxu0 0.0
      %4238 = vmatprep.subr.mxu0 0.0
      %4239 = vmatpush1.msra.mxu0 0.0
      %4240 = vmatprep.subr.mxu0 0.0
      %4241 = vmatpush1.msra.mxu0 0.0
      %4242 = vmatprep.subr.mxu0 0.0
      %4243 = vmatpush1.msra.mxu0 0.0
      %4244 = vmatprep.subr.mxu0 0.0
      %4245 = vmatpush1.msra.mxu0 0.0
      %4246 = vmatprep.subr.mxu0 0.0
      %4247 = vmatpush1.msra.mxu0 0.0
      %4248 = vmatprep.subr.mxu0 0.0
      %4249 = vmatpush1.msra.mxu0 0.0
      %4250 = vmatprep.subr.mxu0 0.0
      %4251 = vmatpush1.msra.mxu0 0.0
      %4252 = vmatprep.subr.mxu0 0.0
      %4253 = vmatpush1.msra.mxu0 %v4222
      %4254 = vmatprep.subr.mxu0 0.0
      %4255 = vmatpush1.msra.mxu0 %v3997
      %4256 = vmatprep.subr.mxu0 0.0
      %4257 = vmatpush2.msra.mxu0 0.0
      %4258 = vmatprep.subr.mxu0 0.0
      %4259 = vmatpush2.msra.mxu0 0.0
      %4260 = vmatprep.subr.mxu0 0.0
      %4261 = vmatpush2.msra.mxu0 0.0
      %4262 = vmatprep.subr.mxu0 0.0
      %4263 = vmatpush2.msra.mxu0 0.0
      %4264 = vmatprep.subr.mxu0 0.0
      %4265 = vmatpush2.msra.mxu0 0.0
      %4266 = vmatprep.subr.mxu0 0.0
      %4267 = vmatpush2.msra.mxu0 0.0
      %4268 = vmatprep.subr.mxu0 0.0
      %4269 = vmatpush2.msra.mxu0 0.0
      %4270 = vmatprep.subr.mxu0 0.0
      %4271 = vmatpush2.msra.mxu0 0.0
      %4272 = vmatprep.subr.mxu0 0.0
      %4273 = vmatpush2.msra.mxu0 0.0
      %4274 = vmatprep.subr.mxu0 0.0
      %4275 = vmatpush2.msra.mxu0 0.0
      %4276 = vmatprep.subr.mxu0 0.0
      %4277 = vmatpush2.msra.mxu0 0.0
      %4278 = vmatprep.subr.mxu0 0.0
      %4279 = vmatpush2.msra.mxu0 0.0
      %4280 = vmatprep.subr.mxu0 0.0
      %4281 = vmatpush2.msra.mxu0 0.0
      %4282 = vmatprep.subr.mxu0 0.0
      %4283 = vmatpush2.msra.mxu0 0.0
      %4284 = vmatprep.subr.mxu0 0.0
      %4285 = vmatpush2.msra.mxu0 0.0
      %4286 = vmatprep.subr.mxu0 0.0
      %4287 = vmatpush2.msra.mxu0 0.0
      %4288 = vmatprep.mubr.f32.mxu0 0.0
      %4289 = vmatmul.mubr.f32.gmra.mxu0 %v4198
      %v4290 = vpop.f32.mrf.mxu0
      %v4291 = vadd.f32 0.0, %v4290
      %v4292 = vpop.f32.mrf.mxu0
      %4293 = vmatprep.mubr.f32.mxu0 0.0
      %4294 = vmatmul.mubr.f32.gmra.mxu0 %v4201
      %v4295 = vpop.f32.mrf.mxu0
      %v4296 = vadd.f32 0.0, %v4295
      %v4297 = vpop.f32.mrf.mxu0
      %4298 = vmatprep.mubr.f32.mxu0 0.0
      %4299 = vmatmul.mubr.f32.gmra.mxu0 %v4204
      %v4300 = vpop.f32.mrf.mxu0
      %v4301 = vadd.f32 0.0, %v4300
      %v4302 = vpop.f32.mrf.mxu0
      %4303 = vmatprep.mubr.f32.mxu0 0.0
      %4304 = vmatmul.mubr.f32.gmra.mxu0 %v4207
      %v4305 = vpop.f32.mrf.mxu0
      %v4306 = vadd.f32 0.0, %v4305
      %v4307 = vpop.f32.mrf.mxu0
      %4308 = vmatprep.mubr.f32.mxu0 0.0
      %4309 = vmatmul.mubr.f32.gmra.mxu0 %v4210
      %v4310 = vpop.f32.mrf.mxu0
      %v4311 = vadd.f32 0.0, %v4310
      %v4312 = vpop.f32.mrf.mxu0
      %4313 = vmatprep.mubr.f32.mxu0 0.0
      %4314 = vmatmul.mubr.f32.gmra.mxu0 %v4213
      %v4315 = vpop.f32.mrf.mxu0
      %v4316 = vadd.f32 0.0, %v4315
      %v4317 = vpop.f32.mrf.mxu0
      %4318 = vmatprep.mubr.f32.mxu0 0.0
      %4319 = vmatmul.mubr.f32.gmra.mxu0 %v4216
      %v4320 = vpop.f32.mrf.mxu0
      %v4321 = vadd.f32 0.0, %v4320
      %v4322 = vpop.f32.mrf.mxu0
      %4323 = vmatprep.mubr.f32.mxu0 0.0
      %4324 = vmatmul.mubr.f32.gmra.mxu0 %v4219
      %v4325 = vpop.f32.mrf.mxu0
      %v4326 = vadd.f32 0.0, %v4325
      %v4327 = vpop.f32.mrf.mxu0
      %4328 = vdwg.mxu0
      %v4329 = vsub.f32 %v3751, %v4291
      %v4330 = vsub.f32 %v3754, %v4296
      %v4331 = vsub.f32 %v3759, %v4301
      %v4332 = vsub.f32 %v3762, %v4306
      %v4333 = vsub.f32 %v3767, %v4311
      %v4334 = vsub.f32 %v3770, %v4316
      %v4335 = vsub.f32 %v3775, %v4321
      %v4336 = vsub.f32 %v3778, %v4326
      %v4338 = vsel %vm3222, %v4188, 0
      %4340 = vmatprep.subr.mxu0 0.0
      %4341 = vmatpush1.msra.mxu0 0.0
      %4342 = vmatprep.subr.mxu0 0.0
      %4343 = vmatpush1.msra.mxu0 0.0
      %4344 = vmatprep.subr.mxu0 0.0
      %4345 = vmatpush1.msra.mxu0 0.0
      %4346 = vmatprep.subr.mxu0 0.0
      %4347 = vmatpush1.msra.mxu0 0.0
      %4348 = vmatprep.subr.mxu0 0.0
      %4349 = vmatpush1.msra.mxu0 0.0
      %4350 = vmatprep.subr.mxu0 0.0
      %4351 = vmatpush1.msra.mxu0 0.0
      %4352 = vmatprep.subr.mxu0 0.0
      %4353 = vmatpush1.msra.mxu0 0.0
      %4354 = vmatprep.subr.mxu0 0.0
      %4355 = vmatpush1.msra.mxu0 0.0
      %4356 = vmatprep.subr.mxu0 0.0
      %4357 = vmatpush1.msra.mxu0 0.0
      %4358 = vmatprep.subr.mxu0 0.0
      %4359 = vmatpush1.msra.mxu0 0.0
      %4360 = vmatprep.subr.mxu0 0.0
      %4361 = vmatpush1.msra.mxu0 0.0
      %4362 = vmatprep.subr.mxu0 0.0
      %4363 = vmatpush1.msra.mxu0 0.0
      %4364 = vmatprep.subr.mxu0 0.0
      %4365 = vmatpush1.msra.mxu0 0.0
      %4366 = vmatprep.subr.mxu0 0.0
      %4367 = vmatpush1.msra.mxu0 0.0
      %4368 = vmatprep.subr.mxu0 0.0
      %4369 = vmatpush1.msra.mxu0 %v4338
      %4370 = vmatprep.subr.mxu0 0.0
      %4371 = vmatpush1.msra.mxu0 %v4187
      %4372 = vmatprep.subr.mxu0 0.0
      %4373 = vmatpush2.msra.mxu0 0.0
      %4374 = vmatprep.subr.mxu0 0.0
      %4375 = vmatpush2.msra.mxu0 0.0
      %4376 = vmatprep.subr.mxu0 0.0
      %4377 = vmatpush2.msra.mxu0 0.0
      %4378 = vmatprep.subr.mxu0 0.0
      %4379 = vmatpush2.msra.mxu0 0.0
      %4380 = vmatprep.subr.mxu0 0.0
      %4381 = vmatpush2.msra.mxu0 0.0
      %4382 = vmatprep.subr.mxu0 0.0
      %4383 = vmatpush2.msra.mxu0 0.0
      %4384 = vmatprep.subr.mxu0 0.0
      %4385 = vmatpush2.msra.mxu0 0.0
      %4386 = vmatprep.subr.mxu0 0.0
      %4387 = vmatpush2.msra.mxu0 0.0
      %4388 = vmatprep.subr.mxu0 0.0
      %4389 = vmatpush2.msra.mxu0 0.0
      %4390 = vmatprep.subr.mxu0 0.0
      %4391 = vmatpush2.msra.mxu0 0.0
      %4392 = vmatprep.subr.mxu0 0.0
      %4393 = vmatpush2.msra.mxu0 0.0
      %4394 = vmatprep.subr.mxu0 0.0
      %4395 = vmatpush2.msra.mxu0 0.0
      %4396 = vmatprep.subr.mxu0 0.0
      %4397 = vmatpush2.msra.mxu0 0.0
      %4398 = vmatprep.subr.mxu0 0.0
      %4399 = vmatpush2.msra.mxu0 0.0
      %4400 = vmatprep.subr.mxu0 0.0
      %4401 = vmatpush2.msra.mxu0 0.0
      %4402 = vmatprep.subr.mxu0 0.0
      %4403 = vmatpush2.msra.mxu0 0.0
      %4404 = vmatprep.mubr.f32.mxu0 0.0
      %4405 = vmatmul.mubr.f32.gmra.mxu0 %v4198
      %v4406 = vpop.f32.mrf.mxu0
      %v4407 = vadd.f32 0.0, %v4406
      %v4408 = vpop.f32.mrf.mxu0
      %4409 = vmatprep.mubr.f32.mxu0 0.0
      %4410 = vmatmul.mubr.f32.gmra.mxu0 %v4201
      %v4411 = vpop.f32.mrf.mxu0
      %v4412 = vadd.f32 0.0, %v4411
      %v4413 = vpop.f32.mrf.mxu0
      %4414 = vmatprep.mubr.f32.mxu0 0.0
      %4415 = vmatmul.mubr.f32.gmra.mxu0 %v4204
      %v4416 = vpop.f32.mrf.mxu0
      %v4417 = vadd.f32 0.0, %v4416
      %v4418 = vpop.f32.mrf.mxu0
      %4419 = vmatprep.mubr.f32.mxu0 0.0
      %4420 = vmatmul.mubr.f32.gmra.mxu0 %v4207
      %v4421 = vpop.f32.mrf.mxu0
      %v4422 = vadd.f32 0.0, %v4421
      %v4423 = vpop.f32.mrf.mxu0
      %4424 = vmatprep.mubr.f32.mxu0 0.0
      %4425 = vmatmul.mubr.f32.gmra.mxu0 %v4210
      %v4426 = vpop.f32.mrf.mxu0
      %v4427 = vadd.f32 0.0, %v4426
      %v4428 = vpop.f32.mrf.mxu0
      %4429 = vmatprep.mubr.f32.mxu0 0.0
      %4430 = vmatmul.mubr.f32.gmra.mxu0 %v4213
      %v4431 = vpop.f32.mrf.mxu0
      %v4432 = vadd.f32 0.0, %v4431
      %v4433 = vpop.f32.mrf.mxu0
      %4434 = vmatprep.mubr.f32.mxu0 0.0
      %4435 = vmatmul.mubr.f32.gmra.mxu0 %v4216
      %v4436 = vpop.f32.mrf.mxu0
      %v4437 = vadd.f32 0.0, %v4436
      %v4438 = vpop.f32.mrf.mxu0
      %4439 = vmatprep.mubr.f32.mxu0 0.0
      %4440 = vmatmul.mubr.f32.gmra.mxu0 %v4219
      %v4441 = vpop.f32.mrf.mxu0
      %v4442 = vadd.f32 0.0, %v4441
      %v4443 = vpop.f32.mrf.mxu0
      %4444 = vdwg.mxu0
      %v4445 = vmul.f32 %v4329, %v4407
      %v4446 = vmul.f32 %v4330, %v4412
      %v4447 = vmul.f32 %v4331, %v4417
      %v4448 = vmul.f32 %v4332, %v4422
      %v4449 = vmul.f32 %v4333, %v4427
      %v4450 = vmul.f32 %v4334, %v4432
      %v4451 = vmul.f32 %v4335, %v4437
      %v4452 = vmul.f32 %v4336, %v4442
      %vm4453 = vcmp.ge.f32.partialorder %v4445, 0.0
      %vm4454 = vcmp.ge.f32.partialorder %v4446, 0.0
      %vm4455 = vcmp.ge.f32.partialorder %v4447, 0.0
      %vm4456 = vcmp.ge.f32.partialorder %v4448, 0.0
      %vm4457 = vcmp.ge.f32.partialorder %v4449, 0.0
      %vm4458 = vcmp.ge.f32.partialorder %v4450, 0.0
      %vm4459 = vcmp.ge.f32.partialorder %v4451, 0.0
      %vm4460 = vcmp.ge.f32.partialorder %v4452, 0.0
      %v4461 = vmul.f32 %v4445, 0.01
      %v4462 = vmul.f32 %v4446, 0.01
      %v4463 = vmul.f32 %v4447, 0.01
      %v4464 = vmul.f32 %v4448, 0.01
      %v4465 = vmul.f32 %v4449, 0.01
      %v4466 = vmul.f32 %v4450, 0.01
      %v4467 = vmul.f32 %v4451, 0.01
      %v4468 = vmul.f32 %v4452, 0.01
      %v4469 = vsel %vm4453, %v4445, %v4461
      %v4470 = vsel %vm4454, %v4446, %v4462
      %v4471 = vsel %vm4455, %v4447, %v4463
      %v4472 = vsel %vm4456, %v4448, %v4464
      %v4473 = vsel %vm4457, %v4449, %v4465
      %v4474 = vsel %vm4458, %v4450, %v4466
      %v4475 = vsel %vm4459, %v4451, %v4467
      %v4476 = vsel %vm4460, %v4452, %v4468
      %v4477 = vld [vmem:[%s13] sm:$0xf]
      %v4478 = vld [vmem:[%s13 + $0x4] sm:$0xf]
      %v4479 = vld [vmem:[%s13 + $0x8] sm:$0xf]
      %v4480 = vld [vmem:[%s13 + $0xc] sm:$0xf]
      %v4481 = vld [vmem:[%s13 + $0x10] sm:$0xf]
      %v4482 = vld [vmem:[%s13 + $0x14] sm:$0xf]
      %v4483 = vld [vmem:[%s13 + $0x18] sm:$0xf]
      %v4484 = vld [vmem:[%s13 + $0x1c] sm:$0xf]
      %v4485 = vld [vmem:[%s13 + $0x20] sm:$0xf]
      %v4486 = vld [vmem:[%s13 + $0x24] sm:$0xf]
      %v4487 = vld [vmem:[%s13 + $0x28] sm:$0xf]
      %v4488 = vld [vmem:[%s13 + $0x2c] sm:$0xf]
      %v4489 = vld [vmem:[%s13 + $0x30] sm:$0xf]
      %v4490 = vld [vmem:[%s13 + $0x34] sm:$0xf]
      %v4491 = vld [vmem:[%s13 + $0x38] sm:$0xf]
      %v4492 = vld [vmem:[%s13 + $0x3c] sm:$0xf]
      %v4493 = vld [vmem:[%s13 + $0x40] sm:$0xf]
      %v4494 = vld [vmem:[%s13 + $0x44] sm:$0xf]
      %v4495 = vld [vmem:[%s13 + $0x48] sm:$0xf]
      %v4496 = vld [vmem:[%s13 + $0x4c] sm:$0xf]
      %v4497 = vld [vmem:[%s13 + $0x50] sm:$0xf]
      %v4498 = vld [vmem:[%s13 + $0x54] sm:$0xf]
      %v4499 = vld [vmem:[%s13 + $0x58] sm:$0xf]
      %v4500 = vld [vmem:[%s13 + $0x5c] sm:$0xf]
      %v4501 = vpack.c.bf16 %v4470, %v4469
      %v4502 = vpack.c.bf16 %v4472, %v4471
      %v4503 = vpack.c.bf16 %v4474, %v4473
      %v4504 = vpack.c.bf16 %v4476, %v4475
      %v4505 = vld [vmem:[%s12 + $0x40] sm:$0xff]
      %v4506 = vld [vmem:[%s12 + $0x48] sm:$0xff]
      %v4507 = vld [vmem:[%s12 + $0x50] sm:$0xff]
      %v4508 = vld [vmem:[%s12 + $0x58] sm:$0xff]
      %v4509 = vld [vmem:[%s12 + $0x60] sm:$0xff]
      %v4510 = vld [vmem:[%s12 + $0x68] sm:$0xff]
      %v4511 = vld [vmem:[%s12 + $0x70] sm:$0xff]
      %v4512 = vld [vmem:[%s12 + $0x78] sm:$0xff]
      %v4514 = vsel %vm3203, %v4505, 0
      %v4517 = vsel %vm3203, %v4506, 0
      %v4520 = vsel %vm3203, %v4507, 0
      %v4523 = vsel %vm3203, %v4508, 0
      %v4526 = vsel %vm3203, %v4509, 0
      %v4529 = vsel %vm3203, %v4510, 0
      %v4532 = vsel %vm3203, %v4511, 0
      %v4535 = vsel %vm3203, %v4512, 0
      %4537 = vmatprep.subr.mxu0 0.0
      %4538 = vmatpush1.msra.mxu0 0.0
      %4539 = vmatprep.subr.mxu0 0.0
      %4540 = vmatpush1.msra.mxu0 0.0
      %4541 = vmatprep.subr.mxu0 0.0
      %4542 = vmatpush1.msra.mxu0 0.0
      %4543 = vmatprep.subr.mxu0 0.0
      %4544 = vmatpush1.msra.mxu0 0.0
      %4545 = vmatprep.subr.mxu0 0.0
      %4546 = vmatpush1.msra.mxu0 0.0
      %4547 = vmatprep.subr.mxu0 0.0
      %4548 = vmatpush1.msra.mxu0 0.0
      %4549 = vmatprep.subr.mxu0 0.0
      %4550 = vmatpush1.msra.mxu0 0.0
      %4551 = vmatprep.subr.mxu0 0.0
      %4552 = vmatpush1.msra.mxu0 0.0
      %4553 = vmatprep.subr.mxu0 0.0
      %4554 = vmatpush1.msra.mxu0 0.0
      %4555 = vmatprep.subr.mxu0 0.0
      %4556 = vmatpush1.msra.mxu0 0.0
      %4557 = vmatprep.subr.mxu0 0.0
      %4558 = vmatpush1.msra.mxu0 0.0
      %4559 = vmatprep.subr.mxu0 0.0
      %4560 = vmatpush1.msra.mxu0 0.0
      %4561 = vmatprep.subr.mxu0 0.0
      %4562 = vmatpush1.msra.mxu0 0.0
      %4563 = vmatprep.subr.mxu0 0.0
      %4564 = vmatpush1.msra.mxu0 0.0
      %4565 = vmatprep.subr.mxu0 0.0
      %4566 = vmatpush1.msra.mxu0 %v4222
      %4567 = vmatprep.subr.mxu0 0.0
      %4568 = vmatpush1.msra.mxu0 %v3997
      %4569 = vmatprep.subr.mxu0 0.0
      %4570 = vmatpush2.msra.mxu0 0.0
      %4571 = vmatprep.subr.mxu0 0.0
      %4572 = vmatpush2.msra.mxu0 0.0
      %4573 = vmatprep.subr.mxu0 0.0
      %4574 = vmatpush2.msra.mxu0 0.0
      %4575 = vmatprep.subr.mxu0 0.0
      %4576 = vmatpush2.msra.mxu0 0.0
      %4577 = vmatprep.subr.mxu0 0.0
      %4578 = vmatpush2.msra.mxu0 0.0
      %4579 = vmatprep.subr.mxu0 0.0
      %4580 = vmatpush2.msra.mxu0 0.0
      %4581 = vmatprep.subr.mxu0 0.0
      %4582 = vmatpush2.msra.mxu0 0.0
      %4583 = vmatprep.subr.mxu0 0.0
      %4584 = vmatpush2.msra.mxu0 0.0
      %4585 = vmatprep.subr.mxu0 0.0
      %4586 = vmatpush2.msra.mxu0 0.0
      %4587 = vmatprep.subr.mxu0 0.0
      %4588 = vmatpush2.msra.mxu0 0.0
      %4589 = vmatprep.subr.mxu0 0.0
      %4590 = vmatpush2.msra.mxu0 0.0
      %4591 = vmatprep.subr.mxu0 0.0
      %4592 = vmatpush2.msra.mxu0 0.0
      %4593 = vmatprep.subr.mxu0 0.0
      %4594 = vmatpush2.msra.mxu0 0.0
      %4595 = vmatprep.subr.mxu0 0.0
      %4596 = vmatpush2.msra.mxu0 0.0
      %4597 = vmatprep.subr.mxu0 0.0
      %4598 = vmatpush2.msra.mxu0 0.0
      %4599 = vmatprep.subr.mxu0 0.0
      %4600 = vmatpush2.msra.mxu0 0.0
      %4601 = vmatprep.mubr.f32.mxu0 0.0
      %4602 = vmatmul.mubr.f32.gmra.mxu0 %v4514
      %v4603 = vpop.f32.mrf.mxu0
      %v4604 = vadd.f32 0.0, %v4603
      %v4605 = vpop.f32.mrf.mxu0
      %4606 = vmatprep.mubr.f32.mxu0 0.0
      %4607 = vmatmul.mubr.f32.gmra.mxu0 %v4517
      %v4608 = vpop.f32.mrf.mxu0
      %v4609 = vadd.f32 0.0, %v4608
      %v4610 = vpop.f32.mrf.mxu0
      %4611 = vmatprep.mubr.f32.mxu0 0.0
      %4612 = vmatmul.mubr.f32.gmra.mxu0 %v4520
      %v4613 = vpop.f32.mrf.mxu0
      %v4614 = vadd.f32 0.0, %v4613
      %v4615 = vpop.f32.mrf.mxu0
      %4616 = vmatprep.mubr.f32.mxu0 0.0
      %4617 = vmatmul.mubr.f32.gmra.mxu0 %v4523
      %v4618 = vpop.f32.mrf.mxu0
      %v4619 = vadd.f32 0.0, %v4618
      %v4620 = vpop.f32.mrf.mxu0
      %4621 = vmatprep.mubr.f32.mxu0 0.0
      %4622 = vmatmul.mubr.f32.gmra.mxu0 %v4526
      %v4623 = vpop.f32.mrf.mxu0
      %v4624 = vadd.f32 0.0, %v4623
      %v4625 = vpop.f32.mrf.mxu0
      %4626 = vmatprep.mubr.f32.mxu0 0.0
      %4627 = vmatmul.mubr.f32.gmra.mxu0 %v4529
      %v4628 = vpop.f32.mrf.mxu0
      %v4629 = vadd.f32 0.0, %v4628
      %v4630 = vpop.f32.mrf.mxu0
      %4631 = vmatprep.mubr.f32.mxu0 0.0
      %4632 = vmatmul.mubr.f32.gmra.mxu0 %v4532
      %v4633 = vpop.f32.mrf.mxu0
      %v4634 = vadd.f32 0.0, %v4633
      %v4635 = vpop.f32.mrf.mxu0
      %4636 = vmatprep.mubr.f32.mxu0 0.0
      %4637 = vmatmul.mubr.f32.gmra.mxu0 %v4535
      %v4638 = vpop.f32.mrf.mxu0
      %v4639 = vadd.f32 0.0, %v4638
      %v4640 = vpop.f32.mrf.mxu0
      %4641 = vdwg.mxu0
      %v4642 = vsub.f32 %v3783, %v4604
      %v4643 = vsub.f32 %v3786, %v4609
      %v4644 = vsub.f32 %v3791, %v4614
      %v4645 = vsub.f32 %v3794, %v4619
      %v4646 = vsub.f32 %v3799, %v4624
      %v4647 = vsub.f32 %v3802, %v4629
      %v4648 = vsub.f32 %v3807, %v4634
      %v4649 = vsub.f32 %v3810, %v4639
      %4650 = vmatprep.subr.mxu0 0.0
      %4651 = vmatpush1.msra.mxu0 0.0
      %4652 = vmatprep.subr.mxu0 0.0
      %4653 = vmatpush1.msra.mxu0 0.0
      %4654 = vmatprep.subr.mxu0 0.0
      %4655 = vmatpush1.msra.mxu0 0.0
      %4656 = vmatprep.subr.mxu0 0.0
      %4657 = vmatpush1.msra.mxu0 0.0
      %4658 = vmatprep.subr.mxu0 0.0
      %4659 = vmatpush1.msra.mxu0 0.0
      %4660 = vmatprep.subr.mxu0 0.0
      %4661 = vmatpush1.msra.mxu0 0.0
      %4662 = vmatprep.subr.mxu0 0.0
      %4663 = vmatpush1.msra.mxu0 0.0
      %4664 = vmatprep.subr.mxu0 0.0
      %4665 = vmatpush1.msra.mxu0 0.0
      %4666 = vmatprep.subr.mxu0 0.0
      %4667 = vmatpush1.msra.mxu0 0.0
      %4668 = vmatprep.subr.mxu0 0.0
      %4669 = vmatpush1.msra.mxu0 0.0
      %4670 = vmatprep.subr.mxu0 0.0
      %4671 = vmatpush1.msra.mxu0 0.0
      %4672 = vmatprep.subr.mxu0 0.0
      %4673 = vmatpush1.msra.mxu0 0.0
      %4674 = vmatprep.subr.mxu0 0.0
      %4675 = vmatpush1.msra.mxu0 0.0
      %4676 = vmatprep.subr.mxu0 0.0
      %4677 = vmatpush1.msra.mxu0 0.0
      %4678 = vmatprep.subr.mxu0 0.0
      %4679 = vmatpush1.msra.mxu0 %v4338
      %4680 = vmatprep.subr.mxu0 0.0
      %4681 = vmatpush1.msra.mxu0 %v4187
      %4682 = vmatprep.subr.mxu0 0.0
      %4683 = vmatpush2.msra.mxu0 0.0
      %4684 = vmatprep.subr.mxu0 0.0
      %4685 = vmatpush2.msra.mxu0 0.0
      %4686 = vmatprep.subr.mxu0 0.0
      %4687 = vmatpush2.msra.mxu0 0.0
      %4688 = vmatprep.subr.mxu0 0.0
      %4689 = vmatpush2.msra.mxu0 0.0
      %4690 = vmatprep.subr.mxu0 0.0
      %4691 = vmatpush2.msra.mxu0 0.0
      %4692 = vmatprep.subr.mxu0 0.0
      %4693 = vmatpush2.msra.mxu0 0.0
      %4694 = vmatprep.subr.mxu0 0.0
      %4695 = vmatpush2.msra.mxu0 0.0
      %4696 = vmatprep.subr.mxu0 0.0
      %4697 = vmatpush2.msra.mxu0 0.0
      %4698 = vmatprep.subr.mxu0 0.0
      %4699 = vmatpush2.msra.mxu0 0.0
      %4700 = vmatprep.subr.mxu0 0.0
      %4701 = vmatpush2.msra.mxu0 0.0
      %4702 = vmatprep.subr.mxu0 0.0
      %4703 = vmatpush2.msra.mxu0 0.0
      %4704 = vmatprep.subr.mxu0 0.0
      %4705 = vmatpush2.msra.mxu0 0.0
      %4706 = vmatprep.subr.mxu0 0.0
      %4707 = vmatpush2.msra.mxu0 0.0
      %4708 = vmatprep.subr.mxu0 0.0
      %4709 = vmatpush2.msra.mxu0 0.0
      %4710 = vmatprep.subr.mxu0 0.0
      %4711 = vmatpush2.msra.mxu0 0.0
      %4712 = vmatprep.subr.mxu0 0.0
      %4713 = vmatpush2.msra.mxu0 0.0
      %4714 = vmatprep.mubr.f32.mxu0 0.0
      %4715 = vmatmul.mubr.f32.gmra.mxu0 %v4514
      %v4716 = vpop.f32.mrf.mxu0
      %v4717 = vadd.f32 0.0, %v4716
      %v4718 = vpop.f32.mrf.mxu0
      %4719 = vmatprep.mubr.f32.mxu0 0.0
      %4720 = vmatmul.mubr.f32.gmra.mxu0 %v4517
      %v4721 = vpop.f32.mrf.mxu0
      %v4722 = vadd.f32 0.0, %v4721
      %v4723 = vpop.f32.mrf.mxu0
      %4724 = vmatprep.mubr.f32.mxu0 0.0
      %4725 = vmatmul.mubr.f32.gmra.mxu0 %v4520
      %v4726 = vpop.f32.mrf.mxu0
      %v4727 = vadd.f32 0.0, %v4726
      %v4728 = vpop.f32.mrf.mxu0
      %4729 = vmatprep.mubr.f32.mxu0 0.0
      %4730 = vmatmul.mubr.f32.gmra.mxu0 %v4523
      %v4731 = vpop.f32.mrf.mxu0
      %v4732 = vadd.f32 0.0, %v4731
      %v4733 = vpop.f32.mrf.mxu0
      %4734 = vmatprep.mubr.f32.mxu0 0.0
      %4735 = vmatmul.mubr.f32.gmra.mxu0 %v4526
      %v4736 = vpop.f32.mrf.mxu0
      %v4737 = vadd.f32 0.0, %v4736
      %v4738 = vpop.f32.mrf.mxu0
      %4739 = vmatprep.mubr.f32.mxu0 0.0
      %4740 = vmatmul.mubr.f32.gmra.mxu0 %v4529
      %v4741 = vpop.f32.mrf.mxu0
      %v4742 = vadd.f32 0.0, %v4741
      %v4743 = vpop.f32.mrf.mxu0
      %4744 = vmatprep.mubr.f32.mxu0 0.0
      %4745 = vmatmul.mubr.f32.gmra.mxu0 %v4532
      %v4746 = vpop.f32.mrf.mxu0
      %v4747 = vadd.f32 0.0, %v4746
      %v4748 = vpop.f32.mrf.mxu0
      %4749 = vmatprep.mubr.f32.mxu0 0.0
      %4750 = vmatmul.mubr.f32.gmra.mxu0 %v4535
      %v4751 = vpop.f32.mrf.mxu0
      %v4752 = vadd.f32 0.0, %v4751
      %v4753 = vpop.f32.mrf.mxu0
      %4754 = vdwg.mxu0
      %v4755 = vmul.f32 %v4642, %v4717
      %v4756 = vmul.f32 %v4643, %v4722
      %v4757 = vmul.f32 %v4644, %v4727
      %v4758 = vmul.f32 %v4645, %v4732
      %v4759 = vmul.f32 %v4646, %v4737
      %v4760 = vmul.f32 %v4647, %v4742
      %v4761 = vmul.f32 %v4648, %v4747
      %v4762 = vmul.f32 %v4649, %v4752
      %vm4763 = vcmp.ge.f32.partialorder %v4755, 0.0
      %vm4764 = vcmp.ge.f32.partialorder %v4756, 0.0
      %vm4765 = vcmp.ge.f32.partialorder %v4757, 0.0
      %vm4766 = vcmp.ge.f32.partialorder %v4758, 0.0
      %vm4767 = vcmp.ge.f32.partialorder %v4759, 0.0
      %vm4768 = vcmp.ge.f32.partialorder %v4760, 0.0
      %vm4769 = vcmp.ge.f32.partialorder %v4761, 0.0
      %vm4770 = vcmp.ge.f32.partialorder %v4762, 0.0
      %v4771 = vmul.f32 %v4755, 0.01
      %v4772 = vmul.f32 %v4756, 0.01
      %v4773 = vmul.f32 %v4757, 0.01
      %v4774 = vmul.f32 %v4758, 0.01
      %v4775 = vmul.f32 %v4759, 0.01
      %v4776 = vmul.f32 %v4760, 0.01
      %v4777 = vmul.f32 %v4761, 0.01
      %v4778 = vmul.f32 %v4762, 0.01
      %v4779 = vsel %vm4763, %v4755, %v4771
      %v4780 = vsel %vm4764, %v4756, %v4772
      %v4781 = vsel %vm4765, %v4757, %v4773
      %v4782 = vsel %vm4766, %v4758, %v4774
      %v4783 = vsel %vm4767, %v4759, %v4775
      %v4784 = vsel %vm4768, %v4760, %v4776
      %v4785 = vsel %vm4769, %v4761, %v4777
      %v4786 = vsel %vm4770, %v4762, %v4778
      %s4787 = scalar_lea.vmem %s13, 96
      %v4788 = vld [vmem:[%s4787] sm:$0xf]
      %v4789 = vld [vmem:[%s4787 + $0x4] sm:$0xf]
      %v4790 = vld [vmem:[%s4787 + $0x8] sm:$0xf]
      %v4791 = vld [vmem:[%s4787 + $0xc] sm:$0xf]
      %v4792 = vld [vmem:[%s4787 + $0x10] sm:$0xf]
      %v4793 = vld [vmem:[%s4787 + $0x14] sm:$0xf]
      %v4794 = vld [vmem:[%s4787 + $0x18] sm:$0xf]
      %v4795 = vld [vmem:[%s4787 + $0x1c] sm:$0xf]
      %v4796 = vld [vmem:[%s4787 + $0x20] sm:$0xf]
      %v4797 = vld [vmem:[%s4787 + $0x24] sm:$0xf]
      %v4798 = vld [vmem:[%s4787 + $0x28] sm:$0xf]
      %v4799 = vld [vmem:[%s4787 + $0x2c] sm:$0xf]
      %v4800 = vld [vmem:[%s4787 + $0x30] sm:$0xf]
      %v4801 = vld [vmem:[%s4787 + $0x34] sm:$0xf]
      %v4802 = vld [vmem:[%s4787 + $0x38] sm:$0xf]
      %v4803 = vld [vmem:[%s4787 + $0x3c] sm:$0xf]
      %v4804 = vld [vmem:[%s4787 + $0x40] sm:$0xf]
      %v4805 = vld [vmem:[%s4787 + $0x44] sm:$0xf]
      %v4806 = vld [vmem:[%s4787 + $0x48] sm:$0xf]
      %v4807 = vld [vmem:[%s4787 + $0x4c] sm:$0xf]
      %v4808 = vld [vmem:[%s4787 + $0x50] sm:$0xf]
      %v4809 = vld [vmem:[%s4787 + $0x54] sm:$0xf]
      %v4810 = vld [vmem:[%s4787 + $0x58] sm:$0xf]
      %v4811 = vld [vmem:[%s4787 + $0x5c] sm:$0xf]
      %v4812 = vpack.c.bf16 %v4780, %v4779
      %v4813 = vpack.c.bf16 %v4782, %v4781
      %v4814 = vpack.c.bf16 %v4784, %v4783
      %v4815 = vpack.c.bf16 %v4786, %v4785
      %v4840 = vunpack.c.l.b16 %v4788
      %v4841 = vunpack.c.l.b16 %v4789
      %v4842 = vunpack.c.l.b16 %v4790
      %v4843 = vunpack.c.l.b16 %v4791
      %v4844 = vunpack.c.l.b16 %v4792
      %v4845 = vunpack.c.l.b16 %v4793
      %v4846 = vunpack.c.l.b16 %v4794
      %v4847 = vunpack.c.l.b16 %v4795
      %v4848 = vunpack.c.l.b16 %v4796
      %v4849 = vunpack.c.l.b16 %v4797
      %v4850 = vunpack.c.l.b16 %v4798
      %v4851 = vunpack.c.l.b16 %v4799
      %v4852 = vunpack.c.l.b16 %v4800
      %v4853 = vunpack.c.l.b16 %v4801
      %v4854 = vunpack.c.l.b16 %v4802
      %v4855 = vunpack.c.l.b16 %v4803
      %v4856 = vunpack.c.l.b16 %v4804
      %v4857 = vunpack.c.l.b16 %v4805
      %v4858 = vunpack.c.l.b16 %v4806
      %v4859 = vunpack.c.l.b16 %v4807
      %v4860 = vunpack.c.l.b16 %v4808
      %v4861 = vunpack.c.l.b16 %v4809
      %v4862 = vunpack.c.l.b16 %v4810
      %v4863 = vunpack.c.l.b16 %v4811
      %v4864 = vpack.c.b16 %v4841, %v4840
      %v4865 = vpack.c.b16 %v4843, %v4842
      %v4866 = vpack.c.b16 %v4845, %v4844
      %v4867 = vpack.c.b16 %v4847, %v4846
      %v4868 = vpack.c.b16 %v4849, %v4848
      %v4869 = vpack.c.b16 %v4851, %v4850
      %v4870 = vpack.c.b16 %v4853, %v4852
      %v4871 = vpack.c.b16 %v4855, %v4854
      %v4872 = vpack.c.b16 %v4857, %v4856
      %v4873 = vpack.c.b16 %v4859, %v4858
      %v4874 = vpack.c.b16 %v4861, %v4860
      %v4875 = vpack.c.b16 %v4863, %v4862
      %v4877 = vsel %vm731, %v4864, 0
      %v4880 = vsel %vm731, %v4865, 0
      %v4883 = vsel %vm731, %v4866, 0
      %v4886 = vsel %vm731, %v4867, 0
      %v4889 = vsel %vm731, %v4868, 0
      %v4892 = vsel %vm731, %v4869, 0
      %v4895 = vsel %vm731, %v4870, 0
      %v4898 = vsel %vm731, %v4871, 0
      %v4901 = vsel %vm731, %v4872, 0
      %v4904 = vsel %vm731, %v4873, 0
      %v4907 = vsel %vm731, %v4874, 0
      %v4910 = vsel %vm731, %v4875, 0
      %4912 = vmatprep.subr.bf16.mxu0 0
      %4913 = vmatpush1.bf16.msra.mxu0 0
      %4914 = vmatprep.subr.bf16.mxu0 0
      %4915 = vmatpush1.bf16.msra.mxu0 0
      %4916 = vmatprep.subr.bf16.mxu0 0
      %4917 = vmatpush1.bf16.msra.mxu0 0
      %4918 = vmatprep.subr.bf16.mxu0 0
      %4919 = vmatpush1.bf16.msra.mxu0 0
      %4920 = vmatprep.subr.bf16.mxu0 0
      %4921 = vmatpush1.bf16.msra.mxu0 %v4815
      %4922 = vmatprep.subr.bf16.mxu0 0
      %4923 = vmatpush1.bf16.msra.mxu0 %v4814
      %4924 = vmatprep.subr.bf16.mxu0 0
      %4925 = vmatpush1.bf16.msra.mxu0 %v4813
      %4926 = vmatprep.subr.bf16.mxu0 0
      %4927 = vmatpush1.bf16.msra.mxu0 %v4812
      %4928 = vmatprep.subr.bf16.mxu0 0
      %4929 = vmatpush2.bf16.msra.mxu0 0
      %4930 = vmatprep.subr.bf16.mxu0 0
      %4931 = vmatpush2.bf16.msra.mxu0 0
      %4932 = vmatprep.subr.bf16.mxu0 0
      %4933 = vmatpush2.bf16.msra.mxu0 0
      %4934 = vmatprep.subr.bf16.mxu0 0
      %4935 = vmatpush2.bf16.msra.mxu0 0
      %4936 = vmatprep.subr.bf16.mxu0 0
      %4937 = vmatpush2.bf16.msra.mxu0 0
      %4938 = vmatprep.subr.bf16.mxu0 0
      %4939 = vmatpush2.bf16.msra.mxu0 0
      %4940 = vmatprep.subr.bf16.mxu0 0
      %4941 = vmatpush2.bf16.msra.mxu0 0
      %4942 = vmatprep.subr.bf16.mxu0 0
      %4943 = vmatpush2.bf16.msra.mxu0 0
      %4944 = vmatprep.mubr.bf16.mxu0 0
      %4945 = vmatmul.mubr.bf16.gmra.mxu0 %v4877
      %v4946 = vpop.f32.mrf.mxu0
      %v4947 = vadd.f32 0.0, %v4946
      %v4948 = vpop.f32.mrf.mxu0
      %v4949 = vpop.f32.mrf.mxu0
      %v4950 = vadd.f32 0.0, %v4949
      %v4951 = vpop.f32.mrf.mxu0
      %4952 = vmatprep.mubr.bf16.mxu0 0
      %4953 = vmatmul.mubr.bf16.gmra.mxu0 %v4880
      %v4954 = vpop.f32.mrf.mxu0
      %v4955 = vadd.f32 0.0, %v4954
      %v4956 = vpop.f32.mrf.mxu0
      %v4957 = vpop.f32.mrf.mxu0
      %v4958 = vadd.f32 0.0, %v4957
      %v4959 = vpop.f32.mrf.mxu0
      %4960 = vmatprep.mubr.bf16.mxu0 0
      %4961 = vmatmul.mubr.bf16.gmra.mxu0 %v4883
      %v4962 = vpop.f32.mrf.mxu0
      %v4963 = vadd.f32 0.0, %v4962
      %v4964 = vpop.f32.mrf.mxu0
      %v4965 = vpop.f32.mrf.mxu0
      %v4966 = vadd.f32 0.0, %v4965
      %v4967 = vpop.f32.mrf.mxu0
      %4968 = vmatprep.mubr.bf16.mxu0 0
      %4969 = vmatmul.mubr.bf16.gmra.mxu0 %v4886
      %v4970 = vpop.f32.mrf.mxu0
      %v4971 = vadd.f32 0.0, %v4970
      %v4972 = vpop.f32.mrf.mxu0
      %v4973 = vpop.f32.mrf.mxu0
      %v4974 = vadd.f32 0.0, %v4973
      %v4975 = vpop.f32.mrf.mxu0
      %4976 = vmatprep.mubr.bf16.mxu0 0
      %4977 = vmatmul.mubr.bf16.gmra.mxu0 %v4889
      %v4978 = vpop.f32.mrf.mxu0
      %v4979 = vadd.f32 0.0, %v4978
      %v4980 = vpop.f32.mrf.mxu0
      %v4981 = vpop.f32.mrf.mxu0
      %v4982 = vadd.f32 0.0, %v4981
      %v4983 = vpop.f32.mrf.mxu0
      %4984 = vmatprep.mubr.bf16.mxu0 0
      %4985 = vmatmul.mubr.bf16.gmra.mxu0 %v4892
      %v4986 = vpop.f32.mrf.mxu0
      %v4987 = vadd.f32 0.0, %v4986
      %v4988 = vpop.f32.mrf.mxu0
      %v4989 = vpop.f32.mrf.mxu0
      %v4990 = vadd.f32 0.0, %v4989
      %v4991 = vpop.f32.mrf.mxu0
      %4992 = vmatprep.mubr.bf16.mxu0 0
      %4993 = vmatmul.mubr.bf16.gmra.mxu0 %v4895
      %v4994 = vpop.f32.mrf.mxu0
      %v4995 = vadd.f32 0.0, %v4994
      %v4996 = vpop.f32.mrf.mxu0
      %v4997 = vpop.f32.mrf.mxu0
      %v4998 = vadd.f32 0.0, %v4997
      %v4999 = vpop.f32.mrf.mxu0
      %5000 = vmatprep.mubr.bf16.mxu0 0
      %5001 = vmatmul.mubr.bf16.gmra.mxu0 %v4898
      %v5002 = vpop.f32.mrf.mxu0
      %v5003 = vadd.f32 0.0, %v5002
      %v5004 = vpop.f32.mrf.mxu0
      %v5005 = vpop.f32.mrf.mxu0
      %v5006 = vadd.f32 0.0, %v5005
      %v5007 = vpop.f32.mrf.mxu0
      %5008 = vmatprep.mubr.bf16.mxu0 0
      %5009 = vmatmul.mubr.bf16.gmra.mxu0 %v4901
      %v5010 = vpop.f32.mrf.mxu0
      %v5011 = vadd.f32 0.0, %v5010
      %v5012 = vpop.f32.mrf.mxu0
      %v5013 = vpop.f32.mrf.mxu0
      %v5014 = vadd.f32 0.0, %v5013
      %v5015 = vpop.f32.mrf.mxu0
      %5016 = vmatprep.mubr.bf16.mxu0 0
      %5017 = vmatmul.mubr.bf16.gmra.mxu0 %v4904
      %v5018 = vpop.f32.mrf.mxu0
      %v5019 = vadd.f32 0.0, %v5018
      %v5020 = vpop.f32.mrf.mxu0
      %v5021 = vpop.f32.mrf.mxu0
      %v5022 = vadd.f32 0.0, %v5021
      %v5023 = vpop.f32.mrf.mxu0
      %5024 = vmatprep.mubr.bf16.mxu0 0
      %5025 = vmatmul.mubr.bf16.gmra.mxu0 %v4907
      %v5026 = vpop.f32.mrf.mxu0
      %v5027 = vadd.f32 0.0, %v5026
      %v5028 = vpop.f32.mrf.mxu0
      %v5029 = vpop.f32.mrf.mxu0
      %v5030 = vadd.f32 0.0, %v5029
      %v5031 = vpop.f32.mrf.mxu0
      %5032 = vmatprep.mubr.bf16.mxu0 0
      %5033 = vmatmul.mubr.bf16.gmra.mxu0 %v4910
      %v5034 = vpop.f32.mrf.mxu0
      %v5035 = vadd.f32 0.0, %v5034
      %v5036 = vpop.f32.mrf.mxu0
      %v5037 = vpop.f32.mrf.mxu0
      %v5038 = vadd.f32 0.0, %v5037
      %v5039 = vpop.f32.mrf.mxu0
      %5040 = vdwg.mxu0
      %v5065 = vunpack.c.l.b16 %v4477
      %v5066 = vunpack.c.l.b16 %v4478
      %v5067 = vunpack.c.l.b16 %v4479
      %v5068 = vunpack.c.l.b16 %v4480
      %v5069 = vunpack.c.l.b16 %v4481
      %v5070 = vunpack.c.l.b16 %v4482
      %v5071 = vunpack.c.l.b16 %v4483
      %v5072 = vunpack.c.l.b16 %v4484
      %v5073 = vunpack.c.l.b16 %v4485
      %v5074 = vunpack.c.l.b16 %v4486
      %v5075 = vunpack.c.l.b16 %v4487
      %v5076 = vunpack.c.l.b16 %v4488
      %v5077 = vunpack.c.l.b16 %v4489
      %v5078 = vunpack.c.l.b16 %v4490
      %v5079 = vunpack.c.l.b16 %v4491
      %v5080 = vunpack.c.l.b16 %v4492
      %v5081 = vunpack.c.l.b16 %v4493
      %v5082 = vunpack.c.l.b16 %v4494
      %v5083 = vunpack.c.l.b16 %v4495
      %v5084 = vunpack.c.l.b16 %v4496
      %v5085 = vunpack.c.l.b16 %v4497
      %v5086 = vunpack.c.l.b16 %v4498
      %v5087 = vunpack.c.l.b16 %v4499
      %v5088 = vunpack.c.l.b16 %v4500
      %v5089 = vpack.c.b16 %v5066, %v5065
      %v5090 = vpack.c.b16 %v5068, %v5067
      %v5091 = vpack.c.b16 %v5070, %v5069
      %v5092 = vpack.c.b16 %v5072, %v5071
      %v5093 = vpack.c.b16 %v5074, %v5073
      %v5094 = vpack.c.b16 %v5076, %v5075
      %v5095 = vpack.c.b16 %v5078, %v5077
      %v5096 = vpack.c.b16 %v5080, %v5079
      %v5097 = vpack.c.b16 %v5082, %v5081
      %v5098 = vpack.c.b16 %v5084, %v5083
      %v5099 = vpack.c.b16 %v5086, %v5085
      %v5100 = vpack.c.b16 %v5088, %v5087
      %v5102 = vsel %vm731, %v5089, 0
      %v5105 = vsel %vm731, %v5090, 0
      %v5108 = vsel %vm731, %v5091, 0
      %v5111 = vsel %vm731, %v5092, 0
      %v5114 = vsel %vm731, %v5093, 0
      %v5117 = vsel %vm731, %v5094, 0
      %v5120 = vsel %vm731, %v5095, 0
      %v5123 = vsel %vm731, %v5096, 0
      %v5126 = vsel %vm731, %v5097, 0
      %v5129 = vsel %vm731, %v5098, 0
      %v5132 = vsel %vm731, %v5099, 0
      %v5135 = vsel %vm731, %v5100, 0
      %5137 = vmatprep.subr.bf16.mxu0 0
      %5138 = vmatpush1.bf16.msra.mxu0 0
      %5139 = vmatprep.subr.bf16.mxu0 0
      %5140 = vmatpush1.bf16.msra.mxu0 0
      %5141 = vmatprep.subr.bf16.mxu0 0
      %5142 = vmatpush1.bf16.msra.mxu0 0
      %5143 = vmatprep.subr.bf16.mxu0 0
      %5144 = vmatpush1.bf16.msra.mxu0 0
      %5145 = vmatprep.subr.bf16.mxu0 0
      %5146 = vmatpush1.bf16.msra.mxu0 %v4504
      %5147 = vmatprep.subr.bf16.mxu0 0
      %5148 = vmatpush1.bf16.msra.mxu0 %v4503
      %5149 = vmatprep.subr.bf16.mxu0 0
      %5150 = vmatpush1.bf16.msra.mxu0 %v4502
      %5151 = vmatprep.subr.bf16.mxu0 0
      %5152 = vmatpush1.bf16.msra.mxu0 %v4501
      %5153 = vmatprep.subr.bf16.mxu0 0
      %5154 = vmatpush2.bf16.msra.mxu0 0
      %5155 = vmatprep.subr.bf16.mxu0 0
      %5156 = vmatpush2.bf16.msra.mxu0 0
      %5157 = vmatprep.subr.bf16.mxu0 0
      %5158 = vmatpush2.bf16.msra.mxu0 0
      %5159 = vmatprep.subr.bf16.mxu0 0
      %5160 = vmatpush2.bf16.msra.mxu0 0
      %5161 = vmatprep.subr.bf16.mxu0 0
      %5162 = vmatpush2.bf16.msra.mxu0 0
      %5163 = vmatprep.subr.bf16.mxu0 0
      %5164 = vmatpush2.bf16.msra.mxu0 0
      %5165 = vmatprep.subr.bf16.mxu0 0
      %5166 = vmatpush2.bf16.msra.mxu0 0
      %5167 = vmatprep.subr.bf16.mxu0 0
      %5168 = vmatpush2.bf16.msra.mxu0 0
      %5169 = vmatprep.mubr.bf16.mxu0 0
      %5170 = vmatmul.mubr.bf16.gmra.mxu0 %v5102
      %v5171 = vpop.f32.mrf.mxu0
      %v5172 = vadd.f32 %v4947, %v5171
      %v5173 = vpop.f32.mrf.mxu0
      %v5174 = vpop.f32.mrf.mxu0
      %v5175 = vadd.f32 %v4950, %v5174
      %v5176 = vpop.f32.mrf.mxu0
      %5177 = vmatprep.mubr.bf16.mxu0 0
      %5178 = vmatmul.mubr.bf16.gmra.mxu0 %v5105
      %v5179 = vpop.f32.mrf.mxu0
      %v5180 = vadd.f32 %v4955, %v5179
      %v5181 = vpop.f32.mrf.mxu0
      %v5182 = vpop.f32.mrf.mxu0
      %v5183 = vadd.f32 %v4958, %v5182
      %v5184 = vpop.f32.mrf.mxu0
      %5185 = vmatprep.mubr.bf16.mxu0 0
      %5186 = vmatmul.mubr.bf16.gmra.mxu0 %v5108
      %v5187 = vpop.f32.mrf.mxu0
      %v5188 = vadd.f32 %v4963, %v5187
      %v5189 = vpop.f32.mrf.mxu0
      %v5190 = vpop.f32.mrf.mxu0
      %v5191 = vadd.f32 %v4966, %v5190
      %v5192 = vpop.f32.mrf.mxu0
      %5193 = vmatprep.mubr.bf16.mxu0 0
      %5194 = vmatmul.mubr.bf16.gmra.mxu0 %v5111
      %v5195 = vpop.f32.mrf.mxu0
      %v5196 = vadd.f32 %v4971, %v5195
      %v5197 = vpop.f32.mrf.mxu0
      %v5198 = vpop.f32.mrf.mxu0
      %v5199 = vadd.f32 %v4974, %v5198
      %v5200 = vpop.f32.mrf.mxu0
      %5201 = vmatprep.mubr.bf16.mxu0 0
      %5202 = vmatmul.mubr.bf16.gmra.mxu0 %v5114
      %v5203 = vpop.f32.mrf.mxu0
      %v5204 = vadd.f32 %v4979, %v5203
      %v5205 = vpop.f32.mrf.mxu0
      %v5206 = vpop.f32.mrf.mxu0
      %v5207 = vadd.f32 %v4982, %v5206
      %v5208 = vpop.f32.mrf.mxu0
      %5209 = vmatprep.mubr.bf16.mxu0 0
      %5210 = vmatmul.mubr.bf16.gmra.mxu0 %v5117
      %v5211 = vpop.f32.mrf.mxu0
      %v5212 = vadd.f32 %v4987, %v5211
      %v5213 = vpop.f32.mrf.mxu0
      %v5214 = vpop.f32.mrf.mxu0
      %v5215 = vadd.f32 %v4990, %v5214
      %v5216 = vpop.f32.mrf.mxu0
      %5217 = vmatprep.mubr.bf16.mxu0 0
      %5218 = vmatmul.mubr.bf16.gmra.mxu0 %v5120
      %v5219 = vpop.f32.mrf.mxu0
      %v5220 = vadd.f32 %v4995, %v5219
      %v5221 = vpop.f32.mrf.mxu0
      %v5222 = vpop.f32.mrf.mxu0
      %v5223 = vadd.f32 %v4998, %v5222
      %v5224 = vpop.f32.mrf.mxu0
      %5225 = vmatprep.mubr.bf16.mxu0 0
      %5226 = vmatmul.mubr.bf16.gmra.mxu0 %v5123
      %v5227 = vpop.f32.mrf.mxu0
      %v5228 = vadd.f32 %v5003, %v5227
      %v5229 = vpop.f32.mrf.mxu0
      %v5230 = vpop.f32.mrf.mxu0
      %v5231 = vadd.f32 %v5006, %v5230
      %v5232 = vpop.f32.mrf.mxu0
      %5233 = vmatprep.mubr.bf16.mxu0 0
      %5234 = vmatmul.mubr.bf16.gmra.mxu0 %v5126
      %v5235 = vpop.f32.mrf.mxu0
      %v5236 = vadd.f32 %v5011, %v5235
      %v5237 = vpop.f32.mrf.mxu0
      %v5238 = vpop.f32.mrf.mxu0
      %v5239 = vadd.f32 %v5014, %v5238
      %v5240 = vpop.f32.mrf.mxu0
      %5241 = vmatprep.mubr.bf16.mxu0 0
      %5242 = vmatmul.mubr.bf16.gmra.mxu0 %v5129
      %v5243 = vpop.f32.mrf.mxu0
      %v5244 = vadd.f32 %v5019, %v5243
      %v5245 = vpop.f32.mrf.mxu0
      %v5246 = vpop.f32.mrf.mxu0
      %v5247 = vadd.f32 %v5022, %v5246
      %v5248 = vpop.f32.mrf.mxu0
      %5249 = vmatprep.mubr.bf16.mxu0 0
      %5250 = vmatmul.mubr.bf16.gmra.mxu0 %v5132
      %v5251 = vpop.f32.mrf.mxu0
      %v5252 = vadd.f32 %v5027, %v5251
      %v5253 = vpop.f32.mrf.mxu0
      %v5254 = vpop.f32.mrf.mxu0
      %v5255 = vadd.f32 %v5030, %v5254
      %v5256 = vpop.f32.mrf.mxu0
      %5257 = vmatprep.mubr.bf16.mxu0 0
      %5258 = vmatmul.mubr.bf16.gmra.mxu0 %v5135
      %v5259 = vpop.f32.mrf.mxu0
      %v5260 = vadd.f32 %v5035, %v5259
      %v5261 = vpop.f32.mrf.mxu0
      %v5262 = vpop.f32.mrf.mxu0
      %v5263 = vadd.f32 %v5038, %v5262
      %v5264 = vpop.f32.mrf.mxu0
      %5265 = vdwg.mxu0
      %v5266 = vld [vmem:[%s12 + $0x80] sm:$0xff]
      %v5267 = vld [vmem:[%s12 + $0x88] sm:$0xff]
      %v5268 = vld [vmem:[%s12 + $0x90] sm:$0xff]
      %v5269 = vld [vmem:[%s12 + $0x98] sm:$0xff]
      %v5270 = vld [vmem:[%s12 + $0xa0] sm:$0xff]
      %v5271 = vld [vmem:[%s12 + $0xa8] sm:$0xff]
      %v5272 = vld [vmem:[%s12 + $0xb0] sm:$0xff]
      %v5273 = vld [vmem:[%s12 + $0xb8] sm:$0xff]
      %v5275 = vsel %vm3203, %v5266, 0
      %v5278 = vsel %vm3203, %v5267, 0
      %v5281 = vsel %vm3203, %v5268, 0
      %v5284 = vsel %vm3203, %v5269, 0
      %v5287 = vsel %vm3203, %v5270, 0
      %v5290 = vsel %vm3203, %v5271, 0
      %v5293 = vsel %vm3203, %v5272, 0
      %v5296 = vsel %vm3203, %v5273, 0
      %5298 = vmatprep.subr.mxu0 0.0
      %5299 = vmatpush1.msra.mxu0 0.0
      %5300 = vmatprep.subr.mxu0 0.0
      %5301 = vmatpush1.msra.mxu0 0.0
      %5302 = vmatprep.subr.mxu0 0.0
      %5303 = vmatpush1.msra.mxu0 0.0
      %5304 = vmatprep.subr.mxu0 0.0
      %5305 = vmatpush1.msra.mxu0 0.0
      %5306 = vmatprep.subr.mxu0 0.0
      %5307 = vmatpush1.msra.mxu0 0.0
      %5308 = vmatprep.subr.mxu0 0.0
      %5309 = vmatpush1.msra.mxu0 0.0
      %5310 = vmatprep.subr.mxu0 0.0
      %5311 = vmatpush1.msra.mxu0 0.0
      %5312 = vmatprep.subr.mxu0 0.0
      %5313 = vmatpush1.msra.mxu0 0.0
      %5314 = vmatprep.subr.mxu0 0.0
      %5315 = vmatpush1.msra.mxu0 0.0
      %5316 = vmatprep.subr.mxu0 0.0
      %5317 = vmatpush1.msra.mxu0 0.0
      %5318 = vmatprep.subr.mxu0 0.0
      %5319 = vmatpush1.msra.mxu0 0.0
      %5320 = vmatprep.subr.mxu0 0.0
      %5321 = vmatpush1.msra.mxu0 0.0
      %5322 = vmatprep.subr.mxu0 0.0
      %5323 = vmatpush1.msra.mxu0 0.0
      %5324 = vmatprep.subr.mxu0 0.0
      %5325 = vmatpush1.msra.mxu0 0.0
      %5326 = vmatprep.subr.mxu0 0.0
      %5327 = vmatpush1.msra.mxu0 %v4222
      %5328 = vmatprep.subr.mxu0 0.0
      %5329 = vmatpush1.msra.mxu0 %v3997
      %5330 = vmatprep.subr.mxu0 0.0
      %5331 = vmatpush2.msra.mxu0 0.0
      %5332 = vmatprep.subr.mxu0 0.0
      %5333 = vmatpush2.msra.mxu0 0.0
      %5334 = vmatprep.subr.mxu0 0.0
      %5335 = vmatpush2.msra.mxu0 0.0
      %5336 = vmatprep.subr.mxu0 0.0
      %5337 = vmatpush2.msra.mxu0 0.0
      %5338 = vmatprep.subr.mxu0 0.0
      %5339 = vmatpush2.msra.mxu0 0.0
      %5340 = vmatprep.subr.mxu0 0.0
      %5341 = vmatpush2.msra.mxu0 0.0
      %5342 = vmatprep.subr.mxu0 0.0
      %5343 = vmatpush2.msra.mxu0 0.0
      %5344 = vmatprep.subr.mxu0 0.0
      %5345 = vmatpush2.msra.mxu0 0.0
      %5346 = vmatprep.subr.mxu0 0.0
      %5347 = vmatpush2.msra.mxu0 0.0
      %5348 = vmatprep.subr.mxu0 0.0
      %5349 = vmatpush2.msra.mxu0 0.0
      %5350 = vmatprep.subr.mxu0 0.0
      %5351 = vmatpush2.msra.mxu0 0.0
      %5352 = vmatprep.subr.mxu0 0.0
      %5353 = vmatpush2.msra.mxu0 0.0
      %5354 = vmatprep.subr.mxu0 0.0
      %5355 = vmatpush2.msra.mxu0 0.0
      %5356 = vmatprep.subr.mxu0 0.0
      %5357 = vmatpush2.msra.mxu0 0.0
      %5358 = vmatprep.subr.mxu0 0.0
      %5359 = vmatpush2.msra.mxu0 0.0
      %5360 = vmatprep.subr.mxu0 0.0
      %5361 = vmatpush2.msra.mxu0 0.0
      %5362 = vmatprep.mubr.f32.mxu0 0.0
      %5363 = vmatmul.mubr.f32.gmra.mxu0 %v5275
      %v5364 = vpop.f32.mrf.mxu0
      %v5365 = vadd.f32 0.0, %v5364
      %v5366 = vpop.f32.mrf.mxu0
      %5367 = vmatprep.mubr.f32.mxu0 0.0
      %5368 = vmatmul.mubr.f32.gmra.mxu0 %v5278
      %v5369 = vpop.f32.mrf.mxu0
      %v5370 = vadd.f32 0.0, %v5369
      %v5371 = vpop.f32.mrf.mxu0
      %5372 = vmatprep.mubr.f32.mxu0 0.0
      %5373 = vmatmul.mubr.f32.gmra.mxu0 %v5281
      %v5374 = vpop.f32.mrf.mxu0
      %v5375 = vadd.f32 0.0, %v5374
      %v5376 = vpop.f32.mrf.mxu0
      %5377 = vmatprep.mubr.f32.mxu0 0.0
      %5378 = vmatmul.mubr.f32.gmra.mxu0 %v5284
      %v5379 = vpop.f32.mrf.mxu0
      %v5380 = vadd.f32 0.0, %v5379
      %v5381 = vpop.f32.mrf.mxu0
      %5382 = vmatprep.mubr.f32.mxu0 0.0
      %5383 = vmatmul.mubr.f32.gmra.mxu0 %v5287
      %v5384 = vpop.f32.mrf.mxu0
      %v5385 = vadd.f32 0.0, %v5384
      %v5386 = vpop.f32.mrf.mxu0
      %5387 = vmatprep.mubr.f32.mxu0 0.0
      %5388 = vmatmul.mubr.f32.gmra.mxu0 %v5290
      %v5389 = vpop.f32.mrf.mxu0
      %v5390 = vadd.f32 0.0, %v5389
      %v5391 = vpop.f32.mrf.mxu0
      %5392 = vmatprep.mubr.f32.mxu0 0.0
      %5393 = vmatmul.mubr.f32.gmra.mxu0 %v5293
      %v5394 = vpop.f32.mrf.mxu0
      %v5395 = vadd.f32 0.0, %v5394
      %v5396 = vpop.f32.mrf.mxu0
      %5397 = vmatprep.mubr.f32.mxu0 0.0
      %5398 = vmatmul.mubr.f32.gmra.mxu0 %v5296
      %v5399 = vpop.f32.mrf.mxu0
      %v5400 = vadd.f32 0.0, %v5399
      %v5401 = vpop.f32.mrf.mxu0
      %5402 = vdwg.mxu0
      %v5403 = vsub.f32 %v3815, %v5365
      %v5404 = vsub.f32 %v3818, %v5370
      %v5405 = vsub.f32 %v3823, %v5375
      %v5406 = vsub.f32 %v3826, %v5380
      %v5407 = vsub.f32 %v3831, %v5385
      %v5408 = vsub.f32 %v3834, %v5390
      %v5409 = vsub.f32 %v3839, %v5395
      %v5410 = vsub.f32 %v3842, %v5400
      %5411 = vmatprep.subr.mxu0 0.0
      %5412 = vmatpush1.msra.mxu0 0.0
      %5413 = vmatprep.subr.mxu0 0.0
      %5414 = vmatpush1.msra.mxu0 0.0
      %5415 = vmatprep.subr.mxu0 0.0
      %5416 = vmatpush1.msra.mxu0 0.0
      %5417 = vmatprep.subr.mxu0 0.0
      %5418 = vmatpush1.msra.mxu0 0.0
      %5419 = vmatprep.subr.mxu0 0.0
      %5420 = vmatpush1.msra.mxu0 0.0
      %5421 = vmatprep.subr.mxu0 0.0
      %5422 = vmatpush1.msra.mxu0 0.0
      %5423 = vmatprep.subr.mxu0 0.0
      %5424 = vmatpush1.msra.mxu0 0.0
      %5425 = vmatprep.subr.mxu0 0.0
      %5426 = vmatpush1.msra.mxu0 0.0
      %5427 = vmatprep.subr.mxu0 0.0
      %5428 = vmatpush1.msra.mxu0 0.0
      %5429 = vmatprep.subr.mxu0 0.0
      %5430 = vmatpush1.msra.mxu0 0.0
      %5431 = vmatprep.subr.mxu0 0.0
      %5432 = vmatpush1.msra.mxu0 0.0
      %5433 = vmatprep.subr.mxu0 0.0
      %5434 = vmatpush1.msra.mxu0 0.0
      %5435 = vmatprep.subr.mxu0 0.0
      %5436 = vmatpush1.msra.mxu0 0.0
      %5437 = vmatprep.subr.mxu0 0.0
      %5438 = vmatpush1.msra.mxu0 0.0
      %5439 = vmatprep.subr.mxu0 0.0
      %5440 = vmatpush1.msra.mxu0 %v4338
      %5441 = vmatprep.subr.mxu0 0.0
      %5442 = vmatpush1.msra.mxu0 %v4187
      %5443 = vmatprep.subr.mxu0 0.0
      %5444 = vmatpush2.msra.mxu0 0.0
      %5445 = vmatprep.subr.mxu0 0.0
      %5446 = vmatpush2.msra.mxu0 0.0
      %5447 = vmatprep.subr.mxu0 0.0
      %5448 = vmatpush2.msra.mxu0 0.0
      %5449 = vmatprep.subr.mxu0 0.0
      %5450 = vmatpush2.msra.mxu0 0.0
      %5451 = vmatprep.subr.mxu0 0.0
      %5452 = vmatpush2.msra.mxu0 0.0
      %5453 = vmatprep.subr.mxu0 0.0
      %5454 = vmatpush2.msra.mxu0 0.0
      %5455 = vmatprep.subr.mxu0 0.0
      %5456 = vmatpush2.msra.mxu0 0.0
      %5457 = vmatprep.subr.mxu0 0.0
      %5458 = vmatpush2.msra.mxu0 0.0
      %5459 = vmatprep.subr.mxu0 0.0
      %5460 = vmatpush2.msra.mxu0 0.0
      %5461 = vmatprep.subr.mxu0 0.0
      %5462 = vmatpush2.msra.mxu0 0.0
      %5463 = vmatprep.subr.mxu0 0.0
      %5464 = vmatpush2.msra.mxu0 0.0
      %5465 = vmatprep.subr.mxu0 0.0
      %5466 = vmatpush2.msra.mxu0 0.0
      %5467 = vmatprep.subr.mxu0 0.0
      %5468 = vmatpush2.msra.mxu0 0.0
      %5469 = vmatprep.subr.mxu0 0.0
      %5470 = vmatpush2.msra.mxu0 0.0
      %5471 = vmatprep.subr.mxu0 0.0
      %5472 = vmatpush2.msra.mxu0 0.0
      %5473 = vmatprep.subr.mxu0 0.0
      %5474 = vmatpush2.msra.mxu0 0.0
      %5475 = vmatprep.mubr.f32.mxu0 0.0
      %5476 = vmatmul.mubr.f32.gmra.mxu0 %v5275
      %v5477 = vpop.f32.mrf.mxu0
      %v5478 = vadd.f32 0.0, %v5477
      %v5479 = vpop.f32.mrf.mxu0
      %5480 = vmatprep.mubr.f32.mxu0 0.0
      %5481 = vmatmul.mubr.f32.gmra.mxu0 %v5278
      %v5482 = vpop.f32.mrf.mxu0
      %v5483 = vadd.f32 0.0, %v5482
      %v5484 = vpop.f32.mrf.mxu0
      %5485 = vmatprep.mubr.f32.mxu0 0.0
      %5486 = vmatmul.mubr.f32.gmra.mxu0 %v5281
      %v5487 = vpop.f32.mrf.mxu0
      %v5488 = vadd.f32 0.0, %v5487
      %v5489 = vpop.f32.mrf.mxu0
      %5490 = vmatprep.mubr.f32.mxu0 0.0
      %5491 = vmatmul.mubr.f32.gmra.mxu0 %v5284
      %v5492 = vpop.f32.mrf.mxu0
      %v5493 = vadd.f32 0.0, %v5492
      %v5494 = vpop.f32.mrf.mxu0
      %5495 = vmatprep.mubr.f32.mxu0 0.0
      %5496 = vmatmul.mubr.f32.gmra.mxu0 %v5287
      %v5497 = vpop.f32.mrf.mxu0
      %v5498 = vadd.f32 0.0, %v5497
      %v5499 = vpop.f32.mrf.mxu0
      %5500 = vmatprep.mubr.f32.mxu0 0.0
      %5501 = vmatmul.mubr.f32.gmra.mxu0 %v5290
      %v5502 = vpop.f32.mrf.mxu0
      %v5503 = vadd.f32 0.0, %v5502
      %v5504 = vpop.f32.mrf.mxu0
      %5505 = vmatprep.mubr.f32.mxu0 0.0
      %5506 = vmatmul.mubr.f32.gmra.mxu0 %v5293
      %v5507 = vpop.f32.mrf.mxu0
      %v5508 = vadd.f32 0.0, %v5507
      %v5509 = vpop.f32.mrf.mxu0
      %5510 = vmatprep.mubr.f32.mxu0 0.0
      %5511 = vmatmul.mubr.f32.gmra.mxu0 %v5296
      %v5512 = vpop.f32.mrf.mxu0
      %v5513 = vadd.f32 0.0, %v5512
      %v5514 = vpop.f32.mrf.mxu0
      %5515 = vdwg.mxu0
      %v5516 = vmul.f32 %v5403, %v5478
      %v5517 = vmul.f32 %v5404, %v5483
      %v5518 = vmul.f32 %v5405, %v5488
      %v5519 = vmul.f32 %v5406, %v5493
      %v5520 = vmul.f32 %v5407, %v5498
      %v5521 = vmul.f32 %v5408, %v5503
      %v5522 = vmul.f32 %v5409, %v5508
      %v5523 = vmul.f32 %v5410, %v5513
      %vm5524 = vcmp.ge.f32.partialorder %v5516, 0.0
      %vm5525 = vcmp.ge.f32.partialorder %v5517, 0.0
      %vm5526 = vcmp.ge.f32.partialorder %v5518, 0.0
      %vm5527 = vcmp.ge.f32.partialorder %v5519, 0.0
      %vm5528 = vcmp.ge.f32.partialorder %v5520, 0.0
      %vm5529 = vcmp.ge.f32.partialorder %v5521, 0.0
      %vm5530 = vcmp.ge.f32.partialorder %v5522, 0.0
      %vm5531 = vcmp.ge.f32.partialorder %v5523, 0.0
      %v5532 = vmul.f32 %v5516, 0.01
      %v5533 = vmul.f32 %v5517, 0.01
      %v5534 = vmul.f32 %v5518, 0.01
      %v5535 = vmul.f32 %v5519, 0.01
      %v5536 = vmul.f32 %v5520, 0.01
      %v5537 = vmul.f32 %v5521, 0.01
      %v5538 = vmul.f32 %v5522, 0.01
      %v5539 = vmul.f32 %v5523, 0.01
      %v5540 = vsel %vm5524, %v5516, %v5532
      %v5541 = vsel %vm5525, %v5517, %v5533
      %v5542 = vsel %vm5526, %v5518, %v5534
      %v5543 = vsel %vm5527, %v5519, %v5535
      %v5544 = vsel %vm5528, %v5520, %v5536
      %v5545 = vsel %vm5529, %v5521, %v5537
      %v5546 = vsel %vm5530, %v5522, %v5538
      %v5547 = vsel %vm5531, %v5523, %v5539
      %s5548 = scalar_lea.vmem %s13, 192
      %v5549 = vld [vmem:[%s5548] sm:$0xf]
      %v5550 = vld [vmem:[%s5548 + $0x4] sm:$0xf]
      %v5551 = vld [vmem:[%s5548 + $0x8] sm:$0xf]
      %v5552 = vld [vmem:[%s5548 + $0xc] sm:$0xf]
      %v5553 = vld [vmem:[%s5548 + $0x10] sm:$0xf]
      %v5554 = vld [vmem:[%s5548 + $0x14] sm:$0xf]
      %v5555 = vld [vmem:[%s5548 + $0x18] sm:$0xf]
      %v5556 = vld [vmem:[%s5548 + $0x1c] sm:$0xf]
      %v5557 = vld [vmem:[%s5548 + $0x20] sm:$0xf]
      %v5558 = vld [vmem:[%s5548 + $0x24] sm:$0xf]
      %v5559 = vld [vmem:[%s5548 + $0x28] sm:$0xf]
      %v5560 = vld [vmem:[%s5548 + $0x2c] sm:$0xf]
      %v5561 = vld [vmem:[%s5548 + $0x30] sm:$0xf]
      %v5562 = vld [vmem:[%s5548 + $0x34] sm:$0xf]
      %v5563 = vld [vmem:[%s5548 + $0x38] sm:$0xf]
      %v5564 = vld [vmem:[%s5548 + $0x3c] sm:$0xf]
      %v5565 = vld [vmem:[%s5548 + $0x40] sm:$0xf]
      %v5566 = vld [vmem:[%s5548 + $0x44] sm:$0xf]
      %v5567 = vld [vmem:[%s5548 + $0x48] sm:$0xf]
      %v5568 = vld [vmem:[%s5548 + $0x4c] sm:$0xf]
      %v5569 = vld [vmem:[%s5548 + $0x50] sm:$0xf]
      %v5570 = vld [vmem:[%s5548 + $0x54] sm:$0xf]
      %v5571 = vld [vmem:[%s5548 + $0x58] sm:$0xf]
      %v5572 = vld [vmem:[%s5548 + $0x5c] sm:$0xf]
      %v5573 = vpack.c.bf16 %v5541, %v5540
      %v5574 = vpack.c.bf16 %v5543, %v5542
      %v5575 = vpack.c.bf16 %v5545, %v5544
      %v5576 = vpack.c.bf16 %v5547, %v5546
      %v5601 = vunpack.c.l.b16 %v5549
      %v5602 = vunpack.c.l.b16 %v5550
      %v5603 = vunpack.c.l.b16 %v5551
      %v5604 = vunpack.c.l.b16 %v5552
      %v5605 = vunpack.c.l.b16 %v5553
      %v5606 = vunpack.c.l.b16 %v5554
      %v5607 = vunpack.c.l.b16 %v5555
      %v5608 = vunpack.c.l.b16 %v5556
      %v5609 = vunpack.c.l.b16 %v5557
      %v5610 = vunpack.c.l.b16 %v5558
      %v5611 = vunpack.c.l.b16 %v5559
      %v5612 = vunpack.c.l.b16 %v5560
      %v5613 = vunpack.c.l.b16 %v5561
      %v5614 = vunpack.c.l.b16 %v5562
      %v5615 = vunpack.c.l.b16 %v5563
      %v5616 = vunpack.c.l.b16 %v5564
      %v5617 = vunpack.c.l.b16 %v5565
      %v5618 = vunpack.c.l.b16 %v5566
      %v5619 = vunpack.c.l.b16 %v5567
      %v5620 = vunpack.c.l.b16 %v5568
      %v5621 = vunpack.c.l.b16 %v5569
      %v5622 = vunpack.c.l.b16 %v5570
      %v5623 = vunpack.c.l.b16 %v5571
      %v5624 = vunpack.c.l.b16 %v5572
      %v5625 = vpack.c.b16 %v5602, %v5601
      %v5626 = vpack.c.b16 %v5604, %v5603
      %v5627 = vpack.c.b16 %v5606, %v5605
      %v5628 = vpack.c.b16 %v5608, %v5607
      %v5629 = vpack.c.b16 %v5610, %v5609
      %v5630 = vpack.c.b16 %v5612, %v5611
      %v5631 = vpack.c.b16 %v5614, %v5613
      %v5632 = vpack.c.b16 %v5616, %v5615
      %v5633 = vpack.c.b16 %v5618, %v5617
      %v5634 = vpack.c.b16 %v5620, %v5619
      %v5635 = vpack.c.b16 %v5622, %v5621
      %v5636 = vpack.c.b16 %v5624, %v5623
      %v5638 = vsel %vm731, %v5625, 0
      %v5641 = vsel %vm731, %v5626, 0
      %v5644 = vsel %vm731, %v5627, 0
      %v5647 = vsel %vm731, %v5628, 0
      %v5650 = vsel %vm731, %v5629, 0
      %v5653 = vsel %vm731, %v5630, 0
      %v5656 = vsel %vm731, %v5631, 0
      %v5659 = vsel %vm731, %v5632, 0
      %v5662 = vsel %vm731, %v5633, 0
      %v5665 = vsel %vm731, %v5634, 0
      %v5668 = vsel %vm731, %v5635, 0
      %v5671 = vsel %vm731, %v5636, 0
      %5673 = vmatprep.subr.bf16.mxu0 0
      %5674 = vmatpush1.bf16.msra.mxu0 0
      %5675 = vmatprep.subr.bf16.mxu0 0
      %5676 = vmatpush1.bf16.msra.mxu0 0
      %5677 = vmatprep.subr.bf16.mxu0 0
      %5678 = vmatpush1.bf16.msra.mxu0 0
      %5679 = vmatprep.subr.bf16.mxu0 0
      %5680 = vmatpush1.bf16.msra.mxu0 0
      %5681 = vmatprep.subr.bf16.mxu0 0
      %5682 = vmatpush1.bf16.msra.mxu0 %v5576
      %5683 = vmatprep.subr.bf16.mxu0 0
      %5684 = vmatpush1.bf16.msra.mxu0 %v5575
      %5685 = vmatprep.subr.bf16.mxu0 0
      %5686 = vmatpush1.bf16.msra.mxu0 %v5574
      %5687 = vmatprep.subr.bf16.mxu0 0
      %5688 = vmatpush1.bf16.msra.mxu0 %v5573
      %5689 = vmatprep.subr.bf16.mxu0 0
      %5690 = vmatpush2.bf16.msra.mxu0 0
      %5691 = vmatprep.subr.bf16.mxu0 0
      %5692 = vmatpush2.bf16.msra.mxu0 0
      %5693 = vmatprep.subr.bf16.mxu0 0
      %5694 = vmatpush2.bf16.msra.mxu0 0
      %5695 = vmatprep.subr.bf16.mxu0 0
      %5696 = vmatpush2.bf16.msra.mxu0 0
      %5697 = vmatprep.subr.bf16.mxu0 0
      %5698 = vmatpush2.bf16.msra.mxu0 0
      %5699 = vmatprep.subr.bf16.mxu0 0
      %5700 = vmatpush2.bf16.msra.mxu0 0
      %5701 = vmatprep.subr.bf16.mxu0 0
      %5702 = vmatpush2.bf16.msra.mxu0 0
      %5703 = vmatprep.subr.bf16.mxu0 0
      %5704 = vmatpush2.bf16.msra.mxu0 0
      %5705 = vmatprep.mubr.bf16.mxu0 0
      %5706 = vmatmul.mubr.bf16.gmra.mxu0 %v5638
      %v5707 = vpop.f32.mrf.mxu0
      %v5708 = vadd.f32 0.0, %v5707
      %v5709 = vpop.f32.mrf.mxu0
      %v5710 = vpop.f32.mrf.mxu0
      %v5711 = vadd.f32 0.0, %v5710
      %v5712 = vpop.f32.mrf.mxu0
      %5713 = vmatprep.mubr.bf16.mxu0 0
      %5714 = vmatmul.mubr.bf16.gmra.mxu0 %v5641
      %v5715 = vpop.f32.mrf.mxu0
      %v5716 = vadd.f32 0.0, %v5715
      %v5717 = vpop.f32.mrf.mxu0
      %v5718 = vpop.f32.mrf.mxu0
      %v5719 = vadd.f32 0.0, %v5718
      %v5720 = vpop.f32.mrf.mxu0
      %5721 = vmatprep.mubr.bf16.mxu0 0
      %5722 = vmatmul.mubr.bf16.gmra.mxu0 %v5644
      %v5723 = vpop.f32.mrf.mxu0
      %v5724 = vadd.f32 0.0, %v5723
      %v5725 = vpop.f32.mrf.mxu0
      %v5726 = vpop.f32.mrf.mxu0
      %v5727 = vadd.f32 0.0, %v5726
      %v5728 = vpop.f32.mrf.mxu0
      %5729 = vmatprep.mubr.bf16.mxu0 0
      %5730 = vmatmul.mubr.bf16.gmra.mxu0 %v5647
      %v5731 = vpop.f32.mrf.mxu0
      %v5732 = vadd.f32 0.0, %v5731
      %v5733 = vpop.f32.mrf.mxu0
      %v5734 = vpop.f32.mrf.mxu0
      %v5735 = vadd.f32 0.0, %v5734
      %v5736 = vpop.f32.mrf.mxu0
      %5737 = vmatprep.mubr.bf16.mxu0 0
      %5738 = vmatmul.mubr.bf16.gmra.mxu0 %v5650
      %v5739 = vpop.f32.mrf.mxu0
      %v5740 = vadd.f32 0.0, %v5739
      %v5741 = vpop.f32.mrf.mxu0
      %v5742 = vpop.f32.mrf.mxu0
      %v5743 = vadd.f32 0.0, %v5742
      %v5744 = vpop.f32.mrf.mxu0
      %5745 = vmatprep.mubr.bf16.mxu0 0
      %5746 = vmatmul.mubr.bf16.gmra.mxu0 %v5653
      %v5747 = vpop.f32.mrf.mxu0
      %v5748 = vadd.f32 0.0, %v5747
      %v5749 = vpop.f32.mrf.mxu0
      %v5750 = vpop.f32.mrf.mxu0
      %v5751 = vadd.f32 0.0, %v5750
      %v5752 = vpop.f32.mrf.mxu0
      %5753 = vmatprep.mubr.bf16.mxu0 0
      %5754 = vmatmul.mubr.bf16.gmra.mxu0 %v5656
      %v5755 = vpop.f32.mrf.mxu0
      %v5756 = vadd.f32 0.0, %v5755
      %v5757 = vpop.f32.mrf.mxu0
      %v5758 = vpop.f32.mrf.mxu0
      %v5759 = vadd.f32 0.0, %v5758
      %v5760 = vpop.f32.mrf.mxu0
      %5761 = vmatprep.mubr.bf16.mxu0 0
      %5762 = vmatmul.mubr.bf16.gmra.mxu0 %v5659
      %v5763 = vpop.f32.mrf.mxu0
      %v5764 = vadd.f32 0.0, %v5763
      %v5765 = vpop.f32.mrf.mxu0
      %v5766 = vpop.f32.mrf.mxu0
      %v5767 = vadd.f32 0.0, %v5766
      %v5768 = vpop.f32.mrf.mxu0
      %5769 = vmatprep.mubr.bf16.mxu0 0
      %5770 = vmatmul.mubr.bf16.gmra.mxu0 %v5662
      %v5771 = vpop.f32.mrf.mxu0
      %v5772 = vadd.f32 0.0, %v5771
      %v5773 = vpop.f32.mrf.mxu0
      %v5774 = vpop.f32.mrf.mxu0
      %v5775 = vadd.f32 0.0, %v5774
      %v5776 = vpop.f32.mrf.mxu0
      %5777 = vmatprep.mubr.bf16.mxu0 0
      %5778 = vmatmul.mubr.bf16.gmra.mxu0 %v5665
      %v5779 = vpop.f32.mrf.mxu0
      %v5780 = vadd.f32 0.0, %v5779
      %v5781 = vpop.f32.mrf.mxu0
      %v5782 = vpop.f32.mrf.mxu0
      %v5783 = vadd.f32 0.0, %v5782
      %v5784 = vpop.f32.mrf.mxu0
      %5785 = vmatprep.mubr.bf16.mxu0 0
      %5786 = vmatmul.mubr.bf16.gmra.mxu0 %v5668
      %v5787 = vpop.f32.mrf.mxu0
      %v5788 = vadd.f32 0.0, %v5787
      %v5789 = vpop.f32.mrf.mxu0
      %v5790 = vpop.f32.mrf.mxu0
      %v5791 = vadd.f32 0.0, %v5790
      %v5792 = vpop.f32.mrf.mxu0
      %5793 = vmatprep.mubr.bf16.mxu0 0
      %5794 = vmatmul.mubr.bf16.gmra.mxu0 %v5671
      %v5795 = vpop.f32.mrf.mxu0
      %v5796 = vadd.f32 0.0, %v5795
      %v5797 = vpop.f32.mrf.mxu0
      %v5798 = vpop.f32.mrf.mxu0
      %v5799 = vadd.f32 0.0, %v5798
      %v5800 = vpop.f32.mrf.mxu0
      %5801 = vdwg.mxu0
      %v5802 = vadd.f32 %v5172, %v5708
      %v5803 = vadd.f32 %v5175, %v5711
      %v5804 = vadd.f32 %v5180, %v5716
      %v5805 = vadd.f32 %v5183, %v5719
      %v5806 = vadd.f32 %v5188, %v5724
      %v5807 = vadd.f32 %v5191, %v5727
      %v5808 = vadd.f32 %v5196, %v5732
      %v5809 = vadd.f32 %v5199, %v5735
      %v5810 = vadd.f32 %v5204, %v5740
      %v5811 = vadd.f32 %v5207, %v5743
      %v5812 = vadd.f32 %v5212, %v5748
      %v5813 = vadd.f32 %v5215, %v5751
      %v5814 = vadd.f32 %v5220, %v5756
      %v5815 = vadd.f32 %v5223, %v5759
      %v5816 = vadd.f32 %v5228, %v5764
      %v5817 = vadd.f32 %v5231, %v5767
      %v5818 = vadd.f32 %v5236, %v5772
      %v5819 = vadd.f32 %v5239, %v5775
      %v5820 = vadd.f32 %v5244, %v5780
      %v5821 = vadd.f32 %v5247, %v5783
      %v5822 = vadd.f32 %v5252, %v5788
      %v5823 = vadd.f32 %v5255, %v5791
      %v5824 = vadd.f32 %v5260, %v5796
      %v5825 = vadd.f32 %v5263, %v5799
      %v5826 = vld [vmem:[%s14] sm:$0xff]
      %v5827 = vld [vmem:[%s14 + $0x8] sm:$0xff]
      %v5828 = vld [vmem:[%s14 + $0x10] sm:$0xff]
      %v5829 = vld [vmem:[%s14 + $0x18] sm:$0xff]
      %v5830 = vld [vmem:[%s14 + $0x20] sm:$0xff]
      %v5831 = vld [vmem:[%s14 + $0x28] sm:$0xff]
      %v5832 = vld [vmem:[%s14 + $0x30] sm:$0xff]
      %v5833 = vld [vmem:[%s14 + $0x38] sm:$0xff]
      %v5834 = vld [vmem:[%s14 + $0x40] sm:$0xff]
      %v5835 = vld [vmem:[%s14 + $0x48] sm:$0xff]
      %v5836 = vld [vmem:[%s14 + $0x50] sm:$0xff]
      %v5837 = vld [vmem:[%s14 + $0x58] sm:$0xff]
      %v5838 = vld [vmem:[%s14 + $0x60] sm:$0xff]
      %v5839 = vld [vmem:[%s14 + $0x68] sm:$0xff]
      %v5840 = vld [vmem:[%s14 + $0x70] sm:$0xff]
      %v5841 = vld [vmem:[%s14 + $0x78] sm:$0xff]
      %v5842 = vld [vmem:[%s14 + $0x80] sm:$0xff]
      %v5843 = vld [vmem:[%s14 + $0x88] sm:$0xff]
      %v5844 = vld [vmem:[%s14 + $0x90] sm:$0xff]
      %v5845 = vld [vmem:[%s14 + $0x98] sm:$0xff]
      %v5846 = vld [vmem:[%s14 + $0xa0] sm:$0xff]
      %v5847 = vld [vmem:[%s14 + $0xa8] sm:$0xff]
      %v5848 = vld [vmem:[%s14 + $0xb0] sm:$0xff]
      %v5849 = vld [vmem:[%s14 + $0xb8] sm:$0xff]
      %5851 = vset.pattern.permute.xlu0 0
      %5852 = vperm.xlu0 %5851, %v5826
      %v5853 = vpop.permute.xlu0 %5852
      %5856 = vset.pattern.permute.xlu0 0
      %5857 = vperm.xlu0 %5856, %v5827
      %v5858 = vpop.permute.xlu0 %5857
      %5861 = vset.pattern.permute.xlu0 0
      %5862 = vperm.xlu0 %5861, %v5828
      %v5863 = vpop.permute.xlu0 %5862
      %5866 = vset.pattern.permute.xlu0 0
      %5867 = vperm.xlu0 %5866, %v5829
      %v5868 = vpop.permute.xlu0 %5867
      %5871 = vset.pattern.permute.xlu0 0
      %5872 = vperm.xlu0 %5871, %v5830
      %v5873 = vpop.permute.xlu0 %5872
      %5876 = vset.pattern.permute.xlu0 0
      %5877 = vperm.xlu0 %5876, %v5831
      %v5878 = vpop.permute.xlu0 %5877
      %5881 = vset.pattern.permute.xlu0 0
      %5882 = vperm.xlu0 %5881, %v5832
      %v5883 = vpop.permute.xlu0 %5882
      %5886 = vset.pattern.permute.xlu0 0
      %5887 = vperm.xlu0 %5886, %v5833
      %v5888 = vpop.permute.xlu0 %5887
      %5891 = vset.pattern.permute.xlu0 0
      %5892 = vperm.xlu0 %5891, %v5834
      %v5893 = vpop.permute.xlu0 %5892
      %5896 = vset.pattern.permute.xlu0 0
      %5897 = vperm.xlu0 %5896, %v5835
      %v5898 = vpop.permute.xlu0 %5897
      %5901 = vset.pattern.permute.xlu0 0
      %5902 = vperm.xlu0 %5901, %v5836
      %v5903 = vpop.permute.xlu0 %5902
      %5906 = vset.pattern.permute.xlu0 0
      %5907 = vperm.xlu0 %5906, %v5837
      %v5908 = vpop.permute.xlu0 %5907
      %5911 = vset.pattern.permute.xlu0 0
      %5912 = vperm.xlu0 %5911, %v5838
      %v5913 = vpop.permute.xlu0 %5912
      %5916 = vset.pattern.permute.xlu0 0
      %5917 = vperm.xlu0 %5916, %v5839
      %v5918 = vpop.permute.xlu0 %5917
      %5921 = vset.pattern.permute.xlu0 0
      %5922 = vperm.xlu0 %5921, %v5840
      %v5923 = vpop.permute.xlu0 %5922
      %5926 = vset.pattern.permute.xlu0 0
      %5927 = vperm.xlu0 %5926, %v5841
      %v5928 = vpop.permute.xlu0 %5927
      %5931 = vset.pattern.permute.xlu0 0
      %5932 = vperm.xlu0 %5931, %v5842
      %v5933 = vpop.permute.xlu0 %5932
      %5936 = vset.pattern.permute.xlu0 0
      %5937 = vperm.xlu0 %5936, %v5843
      %v5938 = vpop.permute.xlu0 %5937
      %5941 = vset.pattern.permute.xlu0 0
      %5942 = vperm.xlu0 %5941, %v5844
      %v5943 = vpop.permute.xlu0 %5942
      %5946 = vset.pattern.permute.xlu0 0
      %5947 = vperm.xlu0 %5946, %v5845
      %v5948 = vpop.permute.xlu0 %5947
      %5951 = vset.pattern.permute.xlu0 0
      %5952 = vperm.xlu0 %5951, %v5846
      %v5953 = vpop.permute.xlu0 %5952
      %5956 = vset.pattern.permute.xlu0 0
      %5957 = vperm.xlu0 %5956, %v5847
      %v5958 = vpop.permute.xlu0 %5957
      %5961 = vset.pattern.permute.xlu0 0
      %5962 = vperm.xlu0 %5961, %v5848
      %v5963 = vpop.permute.xlu0 %5962
      %5966 = vset.pattern.permute.xlu0 0
      %5967 = vperm.xlu0 %5966, %v5849
      %v5968 = vpop.permute.xlu0 %5967
      %v5970 = vadd.f32 %v5802, %v5853
      %v5971 = vadd.f32 %v5803, %v5858
      %v5972 = vadd.f32 %v5804, %v5863
      %v5973 = vadd.f32 %v5805, %v5868
      %v5974 = vadd.f32 %v5806, %v5873
      %v5975 = vadd.f32 %v5807, %v5878
      %v5976 = vadd.f32 %v5808, %v5883
      %v5977 = vadd.f32 %v5809, %v5888
      %v5978 = vadd.f32 %v5810, %v5893
      %v5979 = vadd.f32 %v5811, %v5898
      %v5980 = vadd.f32 %v5812, %v5903
      %v5981 = vadd.f32 %v5813, %v5908
      %v5982 = vadd.f32 %v5814, %v5913
      %v5983 = vadd.f32 %v5815, %v5918
      %v5984 = vadd.f32 %v5816, %v5923
      %v5985 = vadd.f32 %v5817, %v5928
      %v5986 = vadd.f32 %v5818, %v5933
      %v5987 = vadd.f32 %v5819, %v5938
      %v5988 = vadd.f32 %v5820, %v5943
      %v5989 = vadd.f32 %v5821, %v5948
      %v5990 = vadd.f32 %v5822, %v5953
      %v5991 = vadd.f32 %v5823, %v5958
      %v5992 = vadd.f32 %v5824, %v5963
      %v5993 = vadd.f32 %v5825, %v5968
      %v5994 = vld [vmem:[%s15] sm:$0x77]
      %v5996 = vcombine.high %v5994, %v5994
      %v5997 = vsel %vm731, %v5996, 0
      %5999 = vmatprep.subr.mxu0 0.0
      %6000 = vmatpush1.msra.mxu0 %v5985
      %6001 = vmatprep.subr.mxu0 0.0
      %6002 = vmatpush1.msra.mxu0 %v5984
      %6003 = vmatprep.subr.mxu0 0.0
      %6004 = vmatpush1.msra.mxu0 %v5983
      %6005 = vmatprep.subr.mxu0 0.0
      %6006 = vmatpush1.msra.mxu0 %v5982
      %6007 = vmatprep.subr.mxu0 0.0
      %6008 = vmatpush1.msra.mxu0 %v5981
      %6009 = vmatprep.subr.mxu0 0.0
      %6010 = vmatpush1.msra.mxu0 %v5980
      %6011 = vmatprep.subr.mxu0 0.0
      %6012 = vmatpush1.msra.mxu0 %v5979
      %6013 = vmatprep.subr.mxu0 0.0
      %6014 = vmatpush1.msra.mxu0 %v5978
      %6015 = vmatprep.subr.mxu0 0.0
      %6016 = vmatpush1.msra.mxu0 %v5977
      %6017 = vmatprep.subr.mxu0 0.0
      %6018 = vmatpush1.msra.mxu0 %v5976
      %6019 = vmatprep.subr.mxu0 0.0
      %6020 = vmatpush1.msra.mxu0 %v5975
      %6021 = vmatprep.subr.mxu0 0.0
      %6022 = vmatpush1.msra.mxu0 %v5974
      %6023 = vmatprep.subr.mxu0 0.0
      %6024 = vmatpush1.msra.mxu0 %v5973
      %6025 = vmatprep.subr.mxu0 0.0
      %6026 = vmatpush1.msra.mxu0 %v5972
      %6027 = vmatprep.subr.mxu0 0.0
      %6028 = vmatpush1.msra.mxu0 %v5971
      %6029 = vmatprep.subr.mxu0 0.0
      %6030 = vmatpush1.msra.mxu0 %v5970
      %6031 = vmatprep.subr.mxu0 0.0
      %6032 = vmatpush2.msra.mxu0 0.0
      %6033 = vmatprep.subr.mxu0 0.0
      %6034 = vmatpush2.msra.mxu0 0.0
      %6035 = vmatprep.subr.mxu0 0.0
      %6036 = vmatpush2.msra.mxu0 0.0
      %6037 = vmatprep.subr.mxu0 0.0
      %6038 = vmatpush2.msra.mxu0 0.0
      %6039 = vmatprep.subr.mxu0 0.0
      %6040 = vmatpush2.msra.mxu0 0.0
      %6041 = vmatprep.subr.mxu0 0.0
      %6042 = vmatpush2.msra.mxu0 0.0
      %6043 = vmatprep.subr.mxu0 0.0
      %6044 = vmatpush2.msra.mxu0 0.0
      %6045 = vmatprep.subr.mxu0 0.0
      %6046 = vmatpush2.msra.mxu0 0.0
      %6047 = vmatprep.subr.mxu0 0.0
      %6048 = vmatpush2.msra.mxu0 %v5993
      %6049 = vmatprep.subr.mxu0 0.0
      %6050 = vmatpush2.msra.mxu0 %v5992
      %6051 = vmatprep.subr.mxu0 0.0
      %6052 = vmatpush2.msra.mxu0 %v5991
      %6053 = vmatprep.subr.mxu0 0.0
      %6054 = vmatpush2.msra.mxu0 %v5990
      %6055 = vmatprep.subr.mxu0 0.0
      %6056 = vmatpush2.msra.mxu0 %v5989
      %6057 = vmatprep.subr.mxu0 0.0
      %6058 = vmatpush2.msra.mxu0 %v5988
      %6059 = vmatprep.subr.mxu0 0.0
      %6060 = vmatpush2.msra.mxu0 %v5987
      %6061 = vmatprep.subr.mxu0 0.0
      %6062 = vmatpush2.msra.mxu0 %v5986
      %6063 = vmatprep.mubr.f32.mxu0 %v5997
      %6064 = vmatmul.mubr.f32.gmra.mxu0 %v5994
      %v6065 = vpop.f32.mrf.mxu0
      %v6066 = vadd.f32 0.0, %v6065
      %v6067 = vpop.f32.mrf.mxu0
      %6068 = vdwg.mxu0
      %6069 = vmatprep.subr.mxu0 0.0
      %6070 = vmatpush1.msra.mxu0 %v565
      %6071 = vmatprep.subr.mxu0 0.0
      %6072 = vmatpush1.msra.mxu0 %v564
      %6073 = vmatprep.subr.mxu0 0.0
      %6074 = vmatpush1.msra.mxu0 %v563
      %6075 = vmatprep.subr.mxu0 0.0
      %6076 = vmatpush1.msra.mxu0 %v562
      %6077 = vmatprep.subr.mxu0 0.0
      %6078 = vmatpush1.msra.mxu0 %v561
      %6079 = vmatprep.subr.mxu0 0.0
      %6080 = vmatpush1.msra.mxu0 %v560
      %6081 = vmatprep.subr.mxu0 0.0
      %6082 = vmatpush1.msra.mxu0 %v559
      %6083 = vmatprep.subr.mxu0 0.0
      %6084 = vmatpush1.msra.mxu0 %v558
      %6085 = vmatprep.subr.mxu0 0.0
      %6086 = vmatpush1.msra.mxu0 %v557
      %6087 = vmatprep.subr.mxu0 0.0
      %6088 = vmatpush1.msra.mxu0 %v556
      %6089 = vmatprep.subr.mxu0 0.0
      %6090 = vmatpush1.msra.mxu0 %v555
      %6091 = vmatprep.subr.mxu0 0.0
      %6092 = vmatpush1.msra.mxu0 %v554
      %6093 = vmatprep.subr.mxu0 0.0
      %6094 = vmatpush1.msra.mxu0 %v553
      %6095 = vmatprep.subr.mxu0 0.0
      %6096 = vmatpush1.msra.mxu0 %v552
      %6097 = vmatprep.subr.mxu0 0.0
      %6098 = vmatpush1.msra.mxu0 %v551
      %6099 = vmatprep.subr.mxu0 0.0
      %6100 = vmatpush1.msra.mxu0 %v550
      %6101 = vmatprep.subr.mxu0 0.0
      %6102 = vmatpush2.msra.mxu0 0.0
      %6103 = vmatprep.subr.mxu0 0.0
      %6104 = vmatpush2.msra.mxu0 0.0
      %6105 = vmatprep.subr.mxu0 0.0
      %6106 = vmatpush2.msra.mxu0 0.0
      %6107 = vmatprep.subr.mxu0 0.0
      %6108 = vmatpush2.msra.mxu0 0.0
      %6109 = vmatprep.subr.mxu0 0.0
      %6110 = vmatpush2.msra.mxu0 0.0
      %6111 = vmatprep.subr.mxu0 0.0
      %6112 = vmatpush2.msra.mxu0 0.0
      %6113 = vmatprep.subr.mxu0 0.0
      %6114 = vmatpush2.msra.mxu0 0.0
      %6115 = vmatprep.subr.mxu0 0.0
      %6116 = vmatpush2.msra.mxu0 0.0
      %6117 = vmatprep.subr.mxu0 0.0
      %6118 = vmatpush2.msra.mxu0 0.0
      %6119 = vmatprep.subr.mxu0 0.0
      %6120 = vmatpush2.msra.mxu0 0.0
      %6121 = vmatprep.subr.mxu0 0.0
      %6122 = vmatpush2.msra.mxu0 0.0
      %6123 = vmatprep.subr.mxu0 0.0
      %6124 = vmatpush2.msra.mxu0 0.0
      %6125 = vmatprep.subr.mxu0 0.0
      %6126 = vmatpush2.msra.mxu0 0.0
      %6127 = vmatprep.subr.mxu0 0.0
      %6128 = vmatpush2.msra.mxu0 0.0
      %6129 = vmatprep.subr.mxu0 0.0
      %6130 = vmatpush2.msra.mxu0 0.0
      %6131 = vmatprep.subr.mxu0 0.0
      %6132 = vmatpush2.msra.mxu0 0.0
      %6133 = vmatprep.mubr.f32.mxu0 0.0
      %6134 = vmatmul.mubr.f32.gmra.mxu0 %v6066
      %v6135 = vpop.f32.mrf.mxu0
      %v6136 = vadd.f32 0.0, %v6135
      %v6137 = vpop.f32.mrf.mxu0
      %6138 = vdwg.mxu0
      %v6139 = vmul.f32 %v5970, %v5970
      %v6140 = vmul.f32 %v5971, %v5971
      %v6141 = vmul.f32 %v5972, %v5972
      %v6142 = vmul.f32 %v5973, %v5973
      %v6143 = vmul.f32 %v5974, %v5974
      %v6144 = vmul.f32 %v5975, %v5975
      %v6145 = vmul.f32 %v5976, %v5976
      %v6146 = vmul.f32 %v5977, %v5977
      %v6147 = vmul.f32 %v5978, %v5978
      %v6148 = vmul.f32 %v5979, %v5979
      %v6149 = vmul.f32 %v5980, %v5980
      %v6150 = vmul.f32 %v5981, %v5981
      %v6151 = vmul.f32 %v5982, %v5982
      %v6152 = vmul.f32 %v5983, %v5983
      %v6153 = vmul.f32 %v5984, %v5984
      %v6154 = vmul.f32 %v5985, %v5985
      %v6155 = vmul.f32 %v5986, %v5986
      %v6156 = vmul.f32 %v5987, %v5987
      %v6157 = vmul.f32 %v5988, %v5988
      %v6158 = vmul.f32 %v5989, %v5989
      %v6159 = vmul.f32 %v5990, %v5990
      %v6160 = vmul.f32 %v5991, %v5991
      %v6161 = vmul.f32 %v5992, %v5992
      %v6162 = vmul.f32 %v5993, %v5993
      %6163 = vmatprep.subr.mxu0 0.0
      %6164 = vmatpush1.msra.mxu0 %v6154
      %6165 = vmatprep.subr.mxu0 0.0
      %6166 = vmatpush1.msra.mxu0 %v6153
      %6167 = vmatprep.subr.mxu0 0.0
      %6168 = vmatpush1.msra.mxu0 %v6152
      %6169 = vmatprep.subr.mxu0 0.0
      %6170 = vmatpush1.msra.mxu0 %v6151
      %6171 = vmatprep.subr.mxu0 0.0
      %6172 = vmatpush1.msra.mxu0 %v6150
      %6173 = vmatprep.subr.mxu0 0.0
      %6174 = vmatpush1.msra.mxu0 %v6149
      %6175 = vmatprep.subr.mxu0 0.0
      %6176 = vmatpush1.msra.mxu0 %v6148
      %6177 = vmatprep.subr.mxu0 0.0
      %6178 = vmatpush1.msra.mxu0 %v6147
      %6179 = vmatprep.subr.mxu0 0.0
      %6180 = vmatpush1.msra.mxu0 %v6146
      %6181 = vmatprep.subr.mxu0 0.0
      %6182 = vmatpush1.msra.mxu0 %v6145
      %6183 = vmatprep.subr.mxu0 0.0
      %6184 = vmatpush1.msra.mxu0 %v6144
      %6185 = vmatprep.subr.mxu0 0.0
      %6186 = vmatpush1.msra.mxu0 %v6143
      %6187 = vmatprep.subr.mxu0 0.0
      %6188 = vmatpush1.msra.mxu0 %v6142
      %6189 = vmatprep.subr.mxu0 0.0
      %6190 = vmatpush1.msra.mxu0 %v6141
      %6191 = vmatprep.subr.mxu0 0.0
      %6192 = vmatpush1.msra.mxu0 %v6140
      %6193 = vmatprep.subr.mxu0 0.0
      %6194 = vmatpush1.msra.mxu0 %v6139
      %6195 = vmatprep.subr.mxu0 0.0
      %6196 = vmatpush2.msra.mxu0 0.0
      %6197 = vmatprep.subr.mxu0 0.0
      %6198 = vmatpush2.msra.mxu0 0.0
      %6199 = vmatprep.subr.mxu0 0.0
      %6200 = vmatpush2.msra.mxu0 0.0
      %6201 = vmatprep.subr.mxu0 0.0
      %6202 = vmatpush2.msra.mxu0 0.0
      %6203 = vmatprep.subr.mxu0 0.0
      %6204 = vmatpush2.msra.mxu0 0.0
      %6205 = vmatprep.subr.mxu0 0.0
      %6206 = vmatpush2.msra.mxu0 0.0
      %6207 = vmatprep.subr.mxu0 0.0
      %6208 = vmatpush2.msra.mxu0 0.0
      %6209 = vmatprep.subr.mxu0 0.0
      %6210 = vmatpush2.msra.mxu0 0.0
      %6211 = vmatprep.subr.mxu0 0.0
      %6212 = vmatpush2.msra.mxu0 %v6162
      %6213 = vmatprep.subr.mxu0 0.0
      %6214 = vmatpush2.msra.mxu0 %v6161
      %6215 = vmatprep.subr.mxu0 0.0
      %6216 = vmatpush2.msra.mxu0 %v6160
      %6217 = vmatprep.subr.mxu0 0.0
      %6218 = vmatpush2.msra.mxu0 %v6159
      %6219 = vmatprep.subr.mxu0 0.0
      %6220 = vmatpush2.msra.mxu0 %v6158
      %6221 = vmatprep.subr.mxu0 0.0
      %6222 = vmatpush2.msra.mxu0 %v6157
      %6223 = vmatprep.subr.mxu0 0.0
      %6224 = vmatpush2.msra.mxu0 %v6156
      %6225 = vmatprep.subr.mxu0 0.0
      %6226 = vmatpush2.msra.mxu0 %v6155
      %6227 = vmatprep.mubr.f32.mxu0 %v5997
      %6228 = vmatmul.mubr.f32.gmra.mxu0 %v5994
      %v6229 = vpop.f32.mrf.mxu0
      %v6230 = vadd.f32 0.0, %v6229
      %v6231 = vpop.f32.mrf.mxu0
      %6232 = vdwg.mxu0
      %6233 = vmatprep.subr.mxu0 0.0
      %6234 = vmatpush1.msra.mxu0 %v565
      %6235 = vmatprep.subr.mxu0 0.0
      %6236 = vmatpush1.msra.mxu0 %v564
      %6237 = vmatprep.subr.mxu0 0.0
      %6238 = vmatpush1.msra.mxu0 %v563
      %6239 = vmatprep.subr.mxu0 0.0
      %6240 = vmatpush1.msra.mxu0 %v562
      %6241 = vmatprep.subr.mxu0 0.0
      %6242 = vmatpush1.msra.mxu0 %v561
      %6243 = vmatprep.subr.mxu0 0.0
      %6244 = vmatpush1.msra.mxu0 %v560
      %6245 = vmatprep.subr.mxu0 0.0
      %6246 = vmatpush1.msra.mxu0 %v559
      %6247 = vmatprep.subr.mxu0 0.0
      %6248 = vmatpush1.msra.mxu0 %v558
      %6249 = vmatprep.subr.mxu0 0.0
      %6250 = vmatpush1.msra.mxu0 %v557
      %6251 = vmatprep.subr.mxu0 0.0
      %6252 = vmatpush1.msra.mxu0 %v556
      %6253 = vmatprep.subr.mxu0 0.0
      %6254 = vmatpush1.msra.mxu0 %v555
      %6255 = vmatprep.subr.mxu0 0.0
      %6256 = vmatpush1.msra.mxu0 %v554
      %6257 = vmatprep.subr.mxu0 0.0
      %6258 = vmatpush1.msra.mxu0 %v553
      %6259 = vmatprep.subr.mxu0 0.0
      %6260 = vmatpush1.msra.mxu0 %v552
      %6261 = vmatprep.subr.mxu0 0.0
      %6262 = vmatpush1.msra.mxu0 %v551
      %6263 = vmatprep.subr.mxu0 0.0
      %6264 = vmatpush1.msra.mxu0 %v550
      %6265 = vmatprep.subr.mxu0 0.0
      %6266 = vmatpush2.msra.mxu0 0.0
      %6267 = vmatprep.subr.mxu0 0.0
      %6268 = vmatpush2.msra.mxu0 0.0
      %6269 = vmatprep.subr.mxu0 0.0
      %6270 = vmatpush2.msra.mxu0 0.0
      %6271 = vmatprep.subr.mxu0 0.0
      %6272 = vmatpush2.msra.mxu0 0.0
      %6273 = vmatprep.subr.mxu0 0.0
      %6274 = vmatpush2.msra.mxu0 0.0
      %6275 = vmatprep.subr.mxu0 0.0
      %6276 = vmatpush2.msra.mxu0 0.0
      %6277 = vmatprep.subr.mxu0 0.0
      %6278 = vmatpush2.msra.mxu0 0.0
      %6279 = vmatprep.subr.mxu0 0.0
      %6280 = vmatpush2.msra.mxu0 0.0
      %6281 = vmatprep.subr.mxu0 0.0
      %6282 = vmatpush2.msra.mxu0 0.0
      %6283 = vmatprep.subr.mxu0 0.0
      %6284 = vmatpush2.msra.mxu0 0.0
      %6285 = vmatprep.subr.mxu0 0.0
      %6286 = vmatpush2.msra.mxu0 0.0
      %6287 = vmatprep.subr.mxu0 0.0
      %6288 = vmatpush2.msra.mxu0 0.0
      %6289 = vmatprep.subr.mxu0 0.0
      %6290 = vmatpush2.msra.mxu0 0.0
      %6291 = vmatprep.subr.mxu0 0.0
      %6292 = vmatpush2.msra.mxu0 0.0
      %6293 = vmatprep.subr.mxu0 0.0
      %6294 = vmatpush2.msra.mxu0 0.0
      %6295 = vmatprep.subr.mxu0 0.0
      %6296 = vmatpush2.msra.mxu0 0.0
      %6297 = vmatprep.mubr.f32.mxu0 0.0
      %6298 = vmatmul.mubr.f32.gmra.mxu0 %v6230
      %v6299 = vpop.f32.mrf.mxu0
      %v6300 = vadd.f32 0.0, %v6299
      %v6301 = vpop.f32.mrf.mxu0
      %6302 = vdwg.mxu0
      %v6303 = vmul.f32 %v6136, %v6136
      %v6304 = vsub.f32 %v6300, %v6303
      %v6305 = vmax.f32 %v6304, 0.0
      %v6306 = vadd.f32 %v6305, 1e-05
      %v6307 = vrsqrt.pop %v6306
      %v6308 = vld [vmem:[%s16] sm:$0xff]
      %v6309 = vld [vmem:[%s16 + $0x8] sm:$0xff]
      %v6310 = vld [vmem:[%s16 + $0x10] sm:$0xff]
      %v6311 = vld [vmem:[%s16 + $0x18] sm:$0xff]
      %v6312 = vld [vmem:[%s16 + $0x20] sm:$0xff]
      %v6313 = vld [vmem:[%s16 + $0x28] sm:$0xff]
      %v6314 = vld [vmem:[%s16 + $0x30] sm:$0xff]
      %v6315 = vld [vmem:[%s16 + $0x38] sm:$0xff]
      %vm6316 = vcmask 23552
      %v6318 = vsel %vm6316, %v6308, 0
      %v6321 = vsel %vm6316, %v6309, 0
      %v6324 = vsel %vm6316, %v6310, 0
      %v6327 = vsel %vm6316, %v6311, 0
      %v6330 = vsel %vm6316, %v6312, 0
      %v6333 = vsel %vm6316, %v6313, 0
      %v6336 = vsel %vm6316, %v6314, 0
      %v6339 = vsel %vm6316, %v6315, 0
      %vm6341 = vcmask 1042432
      %v6343 = vsel %vm6341, %v6136, 0
      %6345 = vmatprep.subr.mxu0 0.0
      %6346 = vmatpush1.msra.mxu0 0.0
      %6347 = vmatprep.subr.mxu0 0.0
      %6348 = vmatpush1.msra.mxu0 0.0
      %6349 = vmatprep.subr.mxu0 0.0
      %6350 = vmatpush1.msra.mxu0 0.0
      %6351 = vmatprep.subr.mxu0 0.0
      %6352 = vmatpush1.msra.mxu0 0.0
      %6353 = vmatprep.subr.mxu0 0.0
      %6354 = vmatpush1.msra.mxu0 0.0
      %6355 = vmatprep.subr.mxu0 0.0
      %6356 = vmatpush1.msra.mxu0 0.0
      %6357 = vmatprep.subr.mxu0 0.0
      %6358 = vmatpush1.msra.mxu0 0.0
      %6359 = vmatprep.subr.mxu0 0.0
      %6360 = vmatpush1.msra.mxu0 0.0
      %6361 = vmatprep.subr.mxu0 0.0
      %6362 = vmatpush1.msra.mxu0 0.0
      %6363 = vmatprep.subr.mxu0 0.0
      %6364 = vmatpush1.msra.mxu0 0.0
      %6365 = vmatprep.subr.mxu0 0.0
      %6366 = vmatpush1.msra.mxu0 0.0
      %6367 = vmatprep.subr.mxu0 0.0
      %6368 = vmatpush1.msra.mxu0 0.0
      %6369 = vmatprep.subr.mxu0 0.0
      %6370 = vmatpush1.msra.mxu0 0.0
      %6371 = vmatprep.subr.mxu0 0.0
      %6372 = vmatpush1.msra.mxu0 0.0
      %6373 = vmatprep.subr.mxu0 0.0
      %6374 = vmatpush1.msra.mxu0 0.0
      %6375 = vmatprep.subr.mxu0 0.0
      %6376 = vmatpush1.msra.mxu0 %v6343
      %6377 = vmatprep.subr.mxu0 0.0
      %6378 = vmatpush2.msra.mxu0 0.0
      %6379 = vmatprep.subr.mxu0 0.0
      %6380 = vmatpush2.msra.mxu0 0.0
      %6381 = vmatprep.subr.mxu0 0.0
      %6382 = vmatpush2.msra.mxu0 0.0
      %6383 = vmatprep.subr.mxu0 0.0
      %6384 = vmatpush2.msra.mxu0 0.0
      %6385 = vmatprep.subr.mxu0 0.0
      %6386 = vmatpush2.msra.mxu0 0.0
      %6387 = vmatprep.subr.mxu0 0.0
      %6388 = vmatpush2.msra.mxu0 0.0
      %6389 = vmatprep.subr.mxu0 0.0
      %6390 = vmatpush2.msra.mxu0 0.0
      %6391 = vmatprep.subr.mxu0 0.0
      %6392 = vmatpush2.msra.mxu0 0.0
      %6393 = vmatprep.subr.mxu0 0.0
      %6394 = vmatpush2.msra.mxu0 0.0
      %6395 = vmatprep.subr.mxu0 0.0
      %6396 = vmatpush2.msra.mxu0 0.0
      %6397 = vmatprep.subr.mxu0 0.0
      %6398 = vmatpush2.msra.mxu0 0.0
      %6399 = vmatprep.subr.mxu0 0.0
      %6400 = vmatpush2.msra.mxu0 0.0
      %6401 = vmatprep.subr.mxu0 0.0
      %6402 = vmatpush2.msra.mxu0 0.0
      %6403 = vmatprep.subr.mxu0 0.0
      %6404 = vmatpush2.msra.mxu0 0.0
      %6405 = vmatprep.subr.mxu0 0.0
      %6406 = vmatpush2.msra.mxu0 0.0
      %6407 = vmatprep.subr.mxu0 0.0
      %6408 = vmatpush2.msra.mxu0 0.0
      %6409 = vmatprep.mubr.f32.mxu0 0.0
      %6410 = vmatmul.mubr.f32.gmra.mxu0 %v6318
      %v6411 = vpop.f32.mrf.mxu0
      %v6412 = vadd.f32 0.0, %v6411
      %v6413 = vpop.f32.mrf.mxu0
      %6414 = vmatprep.mubr.f32.mxu0 0.0
      %6415 = vmatmul.mubr.f32.gmra.mxu0 %v6321
      %v6416 = vpop.f32.mrf.mxu0
      %v6417 = vadd.f32 0.0, %v6416
      %v6418 = vpop.f32.mrf.mxu0
      %6419 = vmatprep.mubr.f32.mxu0 0.0
      %6420 = vmatmul.mubr.f32.gmra.mxu0 %v6324
      %v6421 = vpop.f32.mrf.mxu0
      %v6422 = vadd.f32 0.0, %v6421
      %v6423 = vpop.f32.mrf.mxu0
      %6424 = vmatprep.mubr.f32.mxu0 0.0
      %6425 = vmatmul.mubr.f32.gmra.mxu0 %v6327
      %v6426 = vpop.f32.mrf.mxu0
      %v6427 = vadd.f32 0.0, %v6426
      %v6428 = vpop.f32.mrf.mxu0
      %6429 = vmatprep.mubr.f32.mxu0 0.0
      %6430 = vmatmul.mubr.f32.gmra.mxu0 %v6330
      %v6431 = vpop.f32.mrf.mxu0
      %v6432 = vadd.f32 0.0, %v6431
      %v6433 = vpop.f32.mrf.mxu0
      %6434 = vmatprep.mubr.f32.mxu0 0.0
      %6435 = vmatmul.mubr.f32.gmra.mxu0 %v6333
      %v6436 = vpop.f32.mrf.mxu0
      %v6437 = vadd.f32 0.0, %v6436
      %v6438 = vpop.f32.mrf.mxu0
      %6439 = vmatprep.mubr.f32.mxu0 0.0
      %6440 = vmatmul.mubr.f32.gmra.mxu0 %v6336
      %v6441 = vpop.f32.mrf.mxu0
      %v6442 = vadd.f32 0.0, %v6441
      %v6443 = vpop.f32.mrf.mxu0
      %6444 = vmatprep.mubr.f32.mxu0 0.0
      %6445 = vmatmul.mubr.f32.gmra.mxu0 %v6339
      %v6446 = vpop.f32.mrf.mxu0
      %v6447 = vadd.f32 0.0, %v6446
      %v6448 = vpop.f32.mrf.mxu0
      %6449 = vdwg.mxu0
      %v6450 = vsub.f32 %v5970, %v6412
      %v6451 = vsub.f32 %v5971, %v6417
      %v6452 = vsub.f32 %v5972, %v6422
      %v6453 = vsub.f32 %v5973, %v6427
      %v6454 = vsub.f32 %v5974, %v6432
      %v6455 = vsub.f32 %v5975, %v6437
      %v6456 = vsub.f32 %v5976, %v6442
      %v6457 = vsub.f32 %v5977, %v6447
      %v6459 = vsel %vm6341, %v6307, 0
      %6461 = vmatprep.subr.mxu0 0.0
      %6462 = vmatpush1.msra.mxu0 0.0
      %6463 = vmatprep.subr.mxu0 0.0
      %6464 = vmatpush1.msra.mxu0 0.0
      %6465 = vmatprep.subr.mxu0 0.0
      %6466 = vmatpush1.msra.mxu0 0.0
      %6467 = vmatprep.subr.mxu0 0.0
      %6468 = vmatpush1.msra.mxu0 0.0
      %6469 = vmatprep.subr.mxu0 0.0
      %6470 = vmatpush1.msra.mxu0 0.0
      %6471 = vmatprep.subr.mxu0 0.0
      %6472 = vmatpush1.msra.mxu0 0.0
      %6473 = vmatprep.subr.mxu0 0.0
      %6474 = vmatpush1.msra.mxu0 0.0
      %6475 = vmatprep.subr.mxu0 0.0
      %6476 = vmatpush1.msra.mxu0 0.0
      %6477 = vmatprep.subr.mxu0 0.0
      %6478 = vmatpush1.msra.mxu0 0.0
      %6479 = vmatprep.subr.mxu0 0.0
      %6480 = vmatpush1.msra.mxu0 0.0
      %6481 = vmatprep.subr.mxu0 0.0
      %6482 = vmatpush1.msra.mxu0 0.0
      %6483 = vmatprep.subr.mxu0 0.0
      %6484 = vmatpush1.msra.mxu0 0.0
      %6485 = vmatprep.subr.mxu0 0.0
      %6486 = vmatpush1.msra.mxu0 0.0
      %6487 = vmatprep.subr.mxu0 0.0
      %6488 = vmatpush1.msra.mxu0 0.0
      %6489 = vmatprep.subr.mxu0 0.0
      %6490 = vmatpush1.msra.mxu0 0.0
      %6491 = vmatprep.subr.mxu0 0.0
      %6492 = vmatpush1.msra.mxu0 %v6459
      %6493 = vmatprep.subr.mxu0 0.0
      %6494 = vmatpush2.msra.mxu0 0.0
      %6495 = vmatprep.subr.mxu0 0.0
      %6496 = vmatpush2.msra.mxu0 0.0
      %6497 = vmatprep.subr.mxu0 0.0
      %6498 = vmatpush2.msra.mxu0 0.0
      %6499 = vmatprep.subr.mxu0 0.0
      %6500 = vmatpush2.msra.mxu0 0.0
      %6501 = vmatprep.subr.mxu0 0.0
      %6502 = vmatpush2.msra.mxu0 0.0
      %6503 = vmatprep.subr.mxu0 0.0
      %6504 = vmatpush2.msra.mxu0 0.0
      %6505 = vmatprep.subr.mxu0 0.0
      %6506 = vmatpush2.msra.mxu0 0.0
      %6507 = vmatprep.subr.mxu0 0.0
      %6508 = vmatpush2.msra.mxu0 0.0
      %6509 = vmatprep.subr.mxu0 0.0
      %6510 = vmatpush2.msra.mxu0 0.0
      %6511 = vmatprep.subr.mxu0 0.0
      %6512 = vmatpush2.msra.mxu0 0.0
      %6513 = vmatprep.subr.mxu0 0.0
      %6514 = vmatpush2.msra.mxu0 0.0
      %6515 = vmatprep.subr.mxu0 0.0
      %6516 = vmatpush2.msra.mxu0 0.0
      %6517 = vmatprep.subr.mxu0 0.0
      %6518 = vmatpush2.msra.mxu0 0.0
      %6519 = vmatprep.subr.mxu0 0.0
      %6520 = vmatpush2.msra.mxu0 0.0
      %6521 = vmatprep.subr.mxu0 0.0
      %6522 = vmatpush2.msra.mxu0 0.0
      %6523 = vmatprep.subr.mxu0 0.0
      %6524 = vmatpush2.msra.mxu0 0.0
      %6525 = vmatprep.mubr.f32.mxu0 0.0
      %6526 = vmatmul.mubr.f32.gmra.mxu0 %v6318
      %v6527 = vpop.f32.mrf.mxu0
      %v6528 = vadd.f32 0.0, %v6527
      %v6529 = vpop.f32.mrf.mxu0
      %6530 = vmatprep.mubr.f32.mxu0 0.0
      %6531 = vmatmul.mubr.f32.gmra.mxu0 %v6321
      %v6532 = vpop.f32.mrf.mxu0
      %v6533 = vadd.f32 0.0, %v6532
      %v6534 = vpop.f32.mrf.mxu0
      %6535 = vmatprep.mubr.f32.mxu0 0.0
      %6536 = vmatmul.mubr.f32.gmra.mxu0 %v6324
      %v6537 = vpop.f32.mrf.mxu0
      %v6538 = vadd.f32 0.0, %v6537
      %v6539 = vpop.f32.mrf.mxu0
      %6540 = vmatprep.mubr.f32.mxu0 0.0
      %6541 = vmatmul.mubr.f32.gmra.mxu0 %v6327
      %v6542 = vpop.f32.mrf.mxu0
      %v6543 = vadd.f32 0.0, %v6542
      %v6544 = vpop.f32.mrf.mxu0
      %6545 = vmatprep.mubr.f32.mxu0 0.0
      %6546 = vmatmul.mubr.f32.gmra.mxu0 %v6330
      %v6547 = vpop.f32.mrf.mxu0
      %v6548 = vadd.f32 0.0, %v6547
      %v6549 = vpop.f32.mrf.mxu0
      %6550 = vmatprep.mubr.f32.mxu0 0.0
      %6551 = vmatmul.mubr.f32.gmra.mxu0 %v6333
      %v6552 = vpop.f32.mrf.mxu0
      %v6553 = vadd.f32 0.0, %v6552
      %v6554 = vpop.f32.mrf.mxu0
      %6555 = vmatprep.mubr.f32.mxu0 0.0
      %6556 = vmatmul.mubr.f32.gmra.mxu0 %v6336
      %v6557 = vpop.f32.mrf.mxu0
      %v6558 = vadd.f32 0.0, %v6557
      %v6559 = vpop.f32.mrf.mxu0
      %6560 = vmatprep.mubr.f32.mxu0 0.0
      %6561 = vmatmul.mubr.f32.gmra.mxu0 %v6339
      %v6562 = vpop.f32.mrf.mxu0
      %v6563 = vadd.f32 0.0, %v6562
      %v6564 = vpop.f32.mrf.mxu0
      %6565 = vdwg.mxu0
      %v6566 = vmul.f32 %v6450, %v6528
      %v6567 = vmul.f32 %v6451, %v6533
      %v6568 = vmul.f32 %v6452, %v6538
      %v6569 = vmul.f32 %v6453, %v6543
      %v6570 = vmul.f32 %v6454, %v6548
      %v6571 = vmul.f32 %v6455, %v6553
      %v6572 = vmul.f32 %v6456, %v6558
      %v6573 = vmul.f32 %v6457, %v6563
      %vm6574 = vcmp.ge.f32.partialorder %v6566, 0.0
      %vm6575 = vcmp.ge.f32.partialorder %v6567, 0.0
      %vm6576 = vcmp.ge.f32.partialorder %v6568, 0.0
      %vm6577 = vcmp.ge.f32.partialorder %v6569, 0.0
      %vm6578 = vcmp.ge.f32.partialorder %v6570, 0.0
      %vm6579 = vcmp.ge.f32.partialorder %v6571, 0.0
      %vm6580 = vcmp.ge.f32.partialorder %v6572, 0.0
      %vm6581 = vcmp.ge.f32.partialorder %v6573, 0.0
      %v6582 = vmul.f32 %v6566, 0.01
      %v6583 = vmul.f32 %v6567, 0.01
      %v6584 = vmul.f32 %v6568, 0.01
      %v6585 = vmul.f32 %v6569, 0.01
      %v6586 = vmul.f32 %v6570, 0.01
      %v6587 = vmul.f32 %v6571, 0.01
      %v6588 = vmul.f32 %v6572, 0.01
      %v6589 = vmul.f32 %v6573, 0.01
      %v6590 = vsel %vm6574, %v6566, %v6582
      %v6591 = vsel %vm6575, %v6567, %v6583
      %v6592 = vsel %vm6576, %v6568, %v6584
      %v6593 = vsel %vm6577, %v6569, %v6585
      %v6594 = vsel %vm6578, %v6570, %v6586
      %v6595 = vsel %vm6579, %v6571, %v6587
      %v6596 = vsel %vm6580, %v6572, %v6588
      %v6597 = vsel %vm6581, %v6573, %v6589
      %6598 = vst [vmem:[%s548] sm:$0xff] %v6590
      %6599 = vst [vmem:[%s548 + $0x8] sm:$0xff] %v6591
      %6600 = vst [vmem:[%s548 + $0x10] sm:$0xff] %v6592
      %6601 = vst [vmem:[%s548 + $0x18] sm:$0xff] %v6593
      %6602 = vst [vmem:[%s548 + $0x20] sm:$0xff] %v6594
      %6603 = vst [vmem:[%s548 + $0x28] sm:$0xff] %v6595
      %6604 = vst [vmem:[%s548 + $0x30] sm:$0xff] %v6596
      %6605 = vst [vmem:[%s548 + $0x38] sm:$0xff] %v6597
      %v6606 = vld [vmem:[%s16 + $0x40] sm:$0xff]
      %v6607 = vld [vmem:[%s16 + $0x48] sm:$0xff]
      %v6608 = vld [vmem:[%s16 + $0x50] sm:$0xff]
      %v6609 = vld [vmem:[%s16 + $0x58] sm:$0xff]
      %v6610 = vld [vmem:[%s16 + $0x60] sm:$0xff]
      %v6611 = vld [vmem:[%s16 + $0x68] sm:$0xff]
      %v6612 = vld [vmem:[%s16 + $0x70] sm:$0xff]
      %v6613 = vld [vmem:[%s16 + $0x78] sm:$0xff]
      %v6615 = vsel %vm6316, %v6606, 0
      %v6618 = vsel %vm6316, %v6607, 0
      %v6621 = vsel %vm6316, %v6608, 0
      %v6624 = vsel %vm6316, %v6609, 0
      %v6627 = vsel %vm6316, %v6610, 0
      %v6630 = vsel %vm6316, %v6611, 0
      %v6633 = vsel %vm6316, %v6612, 0
      %v6636 = vsel %vm6316, %v6613, 0
      %6638 = vmatprep.subr.mxu0 0.0
      %6639 = vmatpush1.msra.mxu0 0.0
      %6640 = vmatprep.subr.mxu0 0.0
      %6641 = vmatpush1.msra.mxu0 0.0
      %6642 = vmatprep.subr.mxu0 0.0
      %6643 = vmatpush1.msra.mxu0 0.0
      %6644 = vmatprep.subr.mxu0 0.0
      %6645 = vmatpush1.msra.mxu0 0.0
      %6646 = vmatprep.subr.mxu0 0.0
      %6647 = vmatpush1.msra.mxu0 0.0
      %6648 = vmatprep.subr.mxu0 0.0
      %6649 = vmatpush1.msra.mxu0 0.0
      %6650 = vmatprep.subr.mxu0 0.0
      %6651 = vmatpush1.msra.mxu0 0.0
      %6652 = vmatprep.subr.mxu0 0.0
      %6653 = vmatpush1.msra.mxu0 0.0
      %6654 = vmatprep.subr.mxu0 0.0
      %6655 = vmatpush1.msra.mxu0 0.0
      %6656 = vmatprep.subr.mxu0 0.0
      %6657 = vmatpush1.msra.mxu0 0.0
      %6658 = vmatprep.subr.mxu0 0.0
      %6659 = vmatpush1.msra.mxu0 0.0
      %6660 = vmatprep.subr.mxu0 0.0
      %6661 = vmatpush1.msra.mxu0 0.0
      %6662 = vmatprep.subr.mxu0 0.0
      %6663 = vmatpush1.msra.mxu0 0.0
      %6664 = vmatprep.subr.mxu0 0.0
      %6665 = vmatpush1.msra.mxu0 0.0
      %6666 = vmatprep.subr.mxu0 0.0
      %6667 = vmatpush1.msra.mxu0 0.0
      %6668 = vmatprep.subr.mxu0 0.0
      %6669 = vmatpush1.msra.mxu0 %v6343
      %6670 = vmatprep.subr.mxu0 0.0
      %6671 = vmatpush2.msra.mxu0 0.0
      %6672 = vmatprep.subr.mxu0 0.0
      %6673 = vmatpush2.msra.mxu0 0.0
      %6674 = vmatprep.subr.mxu0 0.0
      %6675 = vmatpush2.msra.mxu0 0.0
      %6676 = vmatprep.subr.mxu0 0.0
      %6677 = vmatpush2.msra.mxu0 0.0
      %6678 = vmatprep.subr.mxu0 0.0
      %6679 = vmatpush2.msra.mxu0 0.0
      %6680 = vmatprep.subr.mxu0 0.0
      %6681 = vmatpush2.msra.mxu0 0.0
      %6682 = vmatprep.subr.mxu0 0.0
      %6683 = vmatpush2.msra.mxu0 0.0
      %6684 = vmatprep.subr.mxu0 0.0
      %6685 = vmatpush2.msra.mxu0 0.0
      %6686 = vmatprep.subr.mxu0 0.0
      %6687 = vmatpush2.msra.mxu0 0.0
      %6688 = vmatprep.subr.mxu0 0.0
      %6689 = vmatpush2.msra.mxu0 0.0
      %6690 = vmatprep.subr.mxu0 0.0
      %6691 = vmatpush2.msra.mxu0 0.0
      %6692 = vmatprep.subr.mxu0 0.0
      %6693 = vmatpush2.msra.mxu0 0.0
      %6694 = vmatprep.subr.mxu0 0.0
      %6695 = vmatpush2.msra.mxu0 0.0
      %6696 = vmatprep.subr.mxu0 0.0
      %6697 = vmatpush2.msra.mxu0 0.0
      %6698 = vmatprep.subr.mxu0 0.0
      %6699 = vmatpush2.msra.mxu0 0.0
      %6700 = vmatprep.subr.mxu0 0.0
      %6701 = vmatpush2.msra.mxu0 0.0
      %6702 = vmatprep.mubr.f32.mxu0 0.0
      %6703 = vmatmul.mubr.f32.gmra.mxu0 %v6615
      %v6704 = vpop.f32.mrf.mxu0
      %v6705 = vadd.f32 0.0, %v6704
      %v6706 = vpop.f32.mrf.mxu0
      %6707 = vmatprep.mubr.f32.mxu0 0.0
      %6708 = vmatmul.mubr.f32.gmra.mxu0 %v6618
      %v6709 = vpop.f32.mrf.mxu0
      %v6710 = vadd.f32 0.0, %v6709
      %v6711 = vpop.f32.mrf.mxu0
      %6712 = vmatprep.mubr.f32.mxu0 0.0
      %6713 = vmatmul.mubr.f32.gmra.mxu0 %v6621
      %v6714 = vpop.f32.mrf.mxu0
      %v6715 = vadd.f32 0.0, %v6714
      %v6716 = vpop.f32.mrf.mxu0
      %6717 = vmatprep.mubr.f32.mxu0 0.0
      %6718 = vmatmul.mubr.f32.gmra.mxu0 %v6624
      %v6719 = vpop.f32.mrf.mxu0
      %v6720 = vadd.f32 0.0, %v6719
      %v6721 = vpop.f32.mrf.mxu0
      %6722 = vmatprep.mubr.f32.mxu0 0.0
      %6723 = vmatmul.mubr.f32.gmra.mxu0 %v6627
      %v6724 = vpop.f32.mrf.mxu0
      %v6725 = vadd.f32 0.0, %v6724
      %v6726 = vpop.f32.mrf.mxu0
      %6727 = vmatprep.mubr.f32.mxu0 0.0
      %6728 = vmatmul.mubr.f32.gmra.mxu0 %v6630
      %v6729 = vpop.f32.mrf.mxu0
      %v6730 = vadd.f32 0.0, %v6729
      %v6731 = vpop.f32.mrf.mxu0
      %6732 = vmatprep.mubr.f32.mxu0 0.0
      %6733 = vmatmul.mubr.f32.gmra.mxu0 %v6633
      %v6734 = vpop.f32.mrf.mxu0
      %v6735 = vadd.f32 0.0, %v6734
      %v6736 = vpop.f32.mrf.mxu0
      %6737 = vmatprep.mubr.f32.mxu0 0.0
      %6738 = vmatmul.mubr.f32.gmra.mxu0 %v6636
      %v6739 = vpop.f32.mrf.mxu0
      %v6740 = vadd.f32 0.0, %v6739
      %v6741 = vpop.f32.mrf.mxu0
      %6742 = vdwg.mxu0
      %v6743 = vsub.f32 %v5978, %v6705
      %v6744 = vsub.f32 %v5979, %v6710
      %v6745 = vsub.f32 %v5980, %v6715
      %v6746 = vsub.f32 %v5981, %v6720
      %v6747 = vsub.f32 %v5982, %v6725
      %v6748 = vsub.f32 %v5983, %v6730
      %v6749 = vsub.f32 %v5984, %v6735
      %v6750 = vsub.f32 %v5985, %v6740
      %6751 = vmatprep.subr.mxu0 0.0
      %6752 = vmatpush1.msra.mxu0 0.0
      %6753 = vmatprep.subr.mxu0 0.0
      %6754 = vmatpush1.msra.mxu0 0.0
      %6755 = vmatprep.subr.mxu0 0.0
      %6756 = vmatpush1.msra.mxu0 0.0
      %6757 = vmatprep.subr.mxu0 0.0
      %6758 = vmatpush1.msra.mxu0 0.0
      %6759 = vmatprep.subr.mxu0 0.0
      %6760 = vmatpush1.msra.mxu0 0.0
      %6761 = vmatprep.subr.mxu0 0.0
      %6762 = vmatpush1.msra.mxu0 0.0
      %6763 = vmatprep.subr.mxu0 0.0
      %6764 = vmatpush1.msra.mxu0 0.0
      %6765 = vmatprep.subr.mxu0 0.0
      %6766 = vmatpush1.msra.mxu0 0.0
      %6767 = vmatprep.subr.mxu0 0.0
      %6768 = vmatpush1.msra.mxu0 0.0
      %6769 = vmatprep.subr.mxu0 0.0
      %6770 = vmatpush1.msra.mxu0 0.0
      %6771 = vmatprep.subr.mxu0 0.0
      %6772 = vmatpush1.msra.mxu0 0.0
      %6773 = vmatprep.subr.mxu0 0.0
      %6774 = vmatpush1.msra.mxu0 0.0
      %6775 = vmatprep.subr.mxu0 0.0
      %6776 = vmatpush1.msra.mxu0 0.0
      %6777 = vmatprep.subr.mxu0 0.0
      %6778 = vmatpush1.msra.mxu0 0.0
      %6779 = vmatprep.subr.mxu0 0.0
      %6780 = vmatpush1.msra.mxu0 0.0
      %6781 = vmatprep.subr.mxu0 0.0
      %6782 = vmatpush1.msra.mxu0 %v6459
      %6783 = vmatprep.subr.mxu0 0.0
      %6784 = vmatpush2.msra.mxu0 0.0
      %6785 = vmatprep.subr.mxu0 0.0
      %6786 = vmatpush2.msra.mxu0 0.0
      %6787 = vmatprep.subr.mxu0 0.0
      %6788 = vmatpush2.msra.mxu0 0.0
      %6789 = vmatprep.subr.mxu0 0.0
      %6790 = vmatpush2.msra.mxu0 0.0
      %6791 = vmatprep.subr.mxu0 0.0
      %6792 = vmatpush2.msra.mxu0 0.0
      %6793 = vmatprep.subr.mxu0 0.0
      %6794 = vmatpush2.msra.mxu0 0.0
      %6795 = vmatprep.subr.mxu0 0.0
      %6796 = vmatpush2.msra.mxu0 0.0
      %6797 = vmatprep.subr.mxu0 0.0
      %6798 = vmatpush2.msra.mxu0 0.0
      %6799 = vmatprep.subr.mxu0 0.0
      %6800 = vmatpush2.msra.mxu0 0.0
      %6801 = vmatprep.subr.mxu0 0.0
      %6802 = vmatpush2.msra.mxu0 0.0
      %6803 = vmatprep.subr.mxu0 0.0
      %6804 = vmatpush2.msra.mxu0 0.0
      %6805 = vmatprep.subr.mxu0 0.0
      %6806 = vmatpush2.msra.mxu0 0.0
      %6807 = vmatprep.subr.mxu0 0.0
      %6808 = vmatpush2.msra.mxu0 0.0
      %6809 = vmatprep.subr.mxu0 0.0
      %6810 = vmatpush2.msra.mxu0 0.0
      %6811 = vmatprep.subr.mxu0 0.0
      %6812 = vmatpush2.msra.mxu0 0.0
      %6813 = vmatprep.subr.mxu0 0.0
      %6814 = vmatpush2.msra.mxu0 0.0
      %6815 = vmatprep.mubr.f32.mxu0 0.0
      %6816 = vmatmul.mubr.f32.gmra.mxu0 %v6615
      %v6817 = vpop.f32.mrf.mxu0
      %v6818 = vadd.f32 0.0, %v6817
      %v6819 = vpop.f32.mrf.mxu0
      %6820 = vmatprep.mubr.f32.mxu0 0.0
      %6821 = vmatmul.mubr.f32.gmra.mxu0 %v6618
      %v6822 = vpop.f32.mrf.mxu0
      %v6823 = vadd.f32 0.0, %v6822
      %v6824 = vpop.f32.mrf.mxu0
      %6825 = vmatprep.mubr.f32.mxu0 0.0
      %6826 = vmatmul.mubr.f32.gmra.mxu0 %v6621
      %v6827 = vpop.f32.mrf.mxu0
      %v6828 = vadd.f32 0.0, %v6827
      %v6829 = vpop.f32.mrf.mxu0
      %6830 = vmatprep.mubr.f32.mxu0 0.0
      %6831 = vmatmul.mubr.f32.gmra.mxu0 %v6624
      %v6832 = vpop.f32.mrf.mxu0
      %v6833 = vadd.f32 0.0, %v6832
      %v6834 = vpop.f32.mrf.mxu0
      %6835 = vmatprep.mubr.f32.mxu0 0.0
      %6836 = vmatmul.mubr.f32.gmra.mxu0 %v6627
      %v6837 = vpop.f32.mrf.mxu0
      %v6838 = vadd.f32 0.0, %v6837
      %v6839 = vpop.f32.mrf.mxu0
      %6840 = vmatprep.mubr.f32.mxu0 0.0
      %6841 = vmatmul.mubr.f32.gmra.mxu0 %v6630
      %v6842 = vpop.f32.mrf.mxu0
      %v6843 = vadd.f32 0.0, %v6842
      %v6844 = vpop.f32.mrf.mxu0
      %6845 = vmatprep.mubr.f32.mxu0 0.0
      %6846 = vmatmul.mubr.f32.gmra.mxu0 %v6633
      %v6847 = vpop.f32.mrf.mxu0
      %v6848 = vadd.f32 0.0, %v6847
      %v6849 = vpop.f32.mrf.mxu0
      %6850 = vmatprep.mubr.f32.mxu0 0.0
      %6851 = vmatmul.mubr.f32.gmra.mxu0 %v6636
      %v6852 = vpop.f32.mrf.mxu0
      %v6853 = vadd.f32 0.0, %v6852
      %v6854 = vpop.f32.mrf.mxu0
      %6855 = vdwg.mxu0
      %v6856 = vmul.f32 %v6743, %v6818
      %v6857 = vmul.f32 %v6744, %v6823
      %v6858 = vmul.f32 %v6745, %v6828
      %v6859 = vmul.f32 %v6746, %v6833
      %v6860 = vmul.f32 %v6747, %v6838
      %v6861 = vmul.f32 %v6748, %v6843
      %v6862 = vmul.f32 %v6749, %v6848
      %v6863 = vmul.f32 %v6750, %v6853
      %vm6864 = vcmp.ge.f32.partialorder %v6856, 0.0
      %vm6865 = vcmp.ge.f32.partialorder %v6857, 0.0
      %vm6866 = vcmp.ge.f32.partialorder %v6858, 0.0
      %vm6867 = vcmp.ge.f32.partialorder %v6859, 0.0
      %vm6868 = vcmp.ge.f32.partialorder %v6860, 0.0
      %vm6869 = vcmp.ge.f32.partialorder %v6861, 0.0
      %vm6870 = vcmp.ge.f32.partialorder %v6862, 0.0
      %vm6871 = vcmp.ge.f32.partialorder %v6863, 0.0
      %v6872 = vmul.f32 %v6856, 0.01
      %v6873 = vmul.f32 %v6857, 0.01
      %v6874 = vmul.f32 %v6858, 0.01
      %v6875 = vmul.f32 %v6859, 0.01
      %v6876 = vmul.f32 %v6860, 0.01
      %v6877 = vmul.f32 %v6861, 0.01
      %v6878 = vmul.f32 %v6862, 0.01
      %v6879 = vmul.f32 %v6863, 0.01
      %v6880 = vsel %vm6864, %v6856, %v6872
      %v6881 = vsel %vm6865, %v6857, %v6873
      %v6882 = vsel %vm6866, %v6858, %v6874
      %v6883 = vsel %vm6867, %v6859, %v6875
      %v6884 = vsel %vm6868, %v6860, %v6876
      %v6885 = vsel %vm6869, %v6861, %v6877
      %v6886 = vsel %vm6870, %v6862, %v6878
      %v6887 = vsel %vm6871, %v6863, %v6879
      %6888 = vst [vmem:[%s548 + $0x40] sm:$0xff] %v6880
      %6889 = vst [vmem:[%s548 + $0x48] sm:$0xff] %v6881
      %6890 = vst [vmem:[%s548 + $0x50] sm:$0xff] %v6882
      %6891 = vst [vmem:[%s548 + $0x58] sm:$0xff] %v6883
      %6892 = vst [vmem:[%s548 + $0x60] sm:$0xff] %v6884
      %6893 = vst [vmem:[%s548 + $0x68] sm:$0xff] %v6885
      %6894 = vst [vmem:[%s548 + $0x70] sm:$0xff] %v6886
      %6895 = vst [vmem:[%s548 + $0x78] sm:$0xff] %v6887
      %v6896 = vld [vmem:[%s16 + $0x80] sm:$0xff]
      %v6897 = vld [vmem:[%s16 + $0x88] sm:$0xff]
      %v6898 = vld [vmem:[%s16 + $0x90] sm:$0xff]
      %v6899 = vld [vmem:[%s16 + $0x98] sm:$0xff]
      %v6900 = vld [vmem:[%s16 + $0xa0] sm:$0xff]
      %v6901 = vld [vmem:[%s16 + $0xa8] sm:$0xff]
      %v6902 = vld [vmem:[%s16 + $0xb0] sm:$0xff]
      %v6903 = vld [vmem:[%s16 + $0xb8] sm:$0xff]
      %v6905 = vsel %vm6316, %v6896, 0
      %v6908 = vsel %vm6316, %v6897, 0
      %v6911 = vsel %vm6316, %v6898, 0
      %v6914 = vsel %vm6316, %v6899, 0
      %v6917 = vsel %vm6316, %v6900, 0
      %v6920 = vsel %vm6316, %v6901, 0
      %v6923 = vsel %vm6316, %v6902, 0
      %v6926 = vsel %vm6316, %v6903, 0
      %6928 = vmatprep.subr.mxu0 0.0
      %6929 = vmatpush1.msra.mxu0 0.0
      %6930 = vmatprep.subr.mxu0 0.0
      %6931 = vmatpush1.msra.mxu0 0.0
      %6932 = vmatprep.subr.mxu0 0.0
      %6933 = vmatpush1.msra.mxu0 0.0
      %6934 = vmatprep.subr.mxu0 0.0
      %6935 = vmatpush1.msra.mxu0 0.0
      %6936 = vmatprep.subr.mxu0 0.0
      %6937 = vmatpush1.msra.mxu0 0.0
      %6938 = vmatprep.subr.mxu0 0.0
      %6939 = vmatpush1.msra.mxu0 0.0
      %6940 = vmatprep.subr.mxu0 0.0
      %6941 = vmatpush1.msra.mxu0 0.0
      %6942 = vmatprep.subr.mxu0 0.0
      %6943 = vmatpush1.msra.mxu0 0.0
      %6944 = vmatprep.subr.mxu0 0.0
      %6945 = vmatpush1.msra.mxu0 0.0
      %6946 = vmatprep.subr.mxu0 0.0
      %6947 = vmatpush1.msra.mxu0 0.0
      %6948 = vmatprep.subr.mxu0 0.0
      %6949 = vmatpush1.msra.mxu0 0.0
      %6950 = vmatprep.subr.mxu0 0.0
      %6951 = vmatpush1.msra.mxu0 0.0
      %6952 = vmatprep.subr.mxu0 0.0
      %6953 = vmatpush1.msra.mxu0 0.0
      %6954 = vmatprep.subr.mxu0 0.0
      %6955 = vmatpush1.msra.mxu0 0.0
      %6956 = vmatprep.subr.mxu0 0.0
      %6957 = vmatpush1.msra.mxu0 0.0
      %6958 = vmatprep.subr.mxu0 0.0
      %6959 = vmatpush1.msra.mxu0 %v6343
      %6960 = vmatprep.subr.mxu0 0.0
      %6961 = vmatpush2.msra.mxu0 0.0
      %6962 = vmatprep.subr.mxu0 0.0
      %6963 = vmatpush2.msra.mxu0 0.0
      %6964 = vmatprep.subr.mxu0 0.0
      %6965 = vmatpush2.msra.mxu0 0.0
      %6966 = vmatprep.subr.mxu0 0.0
      %6967 = vmatpush2.msra.mxu0 0.0
      %6968 = vmatprep.subr.mxu0 0.0
      %6969 = vmatpush2.msra.mxu0 0.0
      %6970 = vmatprep.subr.mxu0 0.0
      %6971 = vmatpush2.msra.mxu0 0.0
      %6972 = vmatprep.subr.mxu0 0.0
      %6973 = vmatpush2.msra.mxu0 0.0
      %6974 = vmatprep.subr.mxu0 0.0
      %6975 = vmatpush2.msra.mxu0 0.0
      %6976 = vmatprep.subr.mxu0 0.0
      %6977 = vmatpush2.msra.mxu0 0.0
      %6978 = vmatprep.subr.mxu0 0.0
      %6979 = vmatpush2.msra.mxu0 0.0
      %6980 = vmatprep.subr.mxu0 0.0
      %6981 = vmatpush2.msra.mxu0 0.0
      %6982 = vmatprep.subr.mxu0 0.0
      %6983 = vmatpush2.msra.mxu0 0.0
      %6984 = vmatprep.subr.mxu0 0.0
      %6985 = vmatpush2.msra.mxu0 0.0
      %6986 = vmatprep.subr.mxu0 0.0
      %6987 = vmatpush2.msra.mxu0 0.0
      %6988 = vmatprep.subr.mxu0 0.0
      %6989 = vmatpush2.msra.mxu0 0.0
      %6990 = vmatprep.subr.mxu0 0.0
      %6991 = vmatpush2.msra.mxu0 0.0
      %6992 = vmatprep.mubr.f32.mxu0 0.0
      %6993 = vmatmul.mubr.f32.gmra.mxu0 %v6905
      %v6994 = vpop.f32.mrf.mxu0
      %v6995 = vadd.f32 0.0, %v6994
      %v6996 = vpop.f32.mrf.mxu0
      %6997 = vmatprep.mubr.f32.mxu0 0.0
      %6998 = vmatmul.mubr.f32.gmra.mxu0 %v6908
      %v6999 = vpop.f32.mrf.mxu0
      %v7000 = vadd.f32 0.0, %v6999
      %v7001 = vpop.f32.mrf.mxu0
      %7002 = vmatprep.mubr.f32.mxu0 0.0
      %7003 = vmatmul.mubr.f32.gmra.mxu0 %v6911
      %v7004 = vpop.f32.mrf.mxu0
      %v7005 = vadd.f32 0.0, %v7004
      %v7006 = vpop.f32.mrf.mxu0
      %7007 = vmatprep.mubr.f32.mxu0 0.0
      %7008 = vmatmul.mubr.f32.gmra.mxu0 %v6914
      %v7009 = vpop.f32.mrf.mxu0
      %v7010 = vadd.f32 0.0, %v7009
      %v7011 = vpop.f32.mrf.mxu0
      %7012 = vmatprep.mubr.f32.mxu0 0.0
      %7013 = vmatmul.mubr.f32.gmra.mxu0 %v6917
      %v7014 = vpop.f32.mrf.mxu0
      %v7015 = vadd.f32 0.0, %v7014
      %v7016 = vpop.f32.mrf.mxu0
      %7017 = vmatprep.mubr.f32.mxu0 0.0
      %7018 = vmatmul.mubr.f32.gmra.mxu0 %v6920
      %v7019 = vpop.f32.mrf.mxu0
      %v7020 = vadd.f32 0.0, %v7019
      %v7021 = vpop.f32.mrf.mxu0
      %7022 = vmatprep.mubr.f32.mxu0 0.0
      %7023 = vmatmul.mubr.f32.gmra.mxu0 %v6923
      %v7024 = vpop.f32.mrf.mxu0
      %v7025 = vadd.f32 0.0, %v7024
      %v7026 = vpop.f32.mrf.mxu0
      %7027 = vmatprep.mubr.f32.mxu0 0.0
      %7028 = vmatmul.mubr.f32.gmra.mxu0 %v6926
      %v7029 = vpop.f32.mrf.mxu0
      %v7030 = vadd.f32 0.0, %v7029
      %v7031 = vpop.f32.mrf.mxu0
      %7032 = vdwg.mxu0
      %v7033 = vsub.f32 %v5986, %v6995
      %v7034 = vsub.f32 %v5987, %v7000
      %v7035 = vsub.f32 %v5988, %v7005
      %v7036 = vsub.f32 %v5989, %v7010
      %v7037 = vsub.f32 %v5990, %v7015
      %v7038 = vsub.f32 %v5991, %v7020
      %v7039 = vsub.f32 %v5992, %v7025
      %v7040 = vsub.f32 %v5993, %v7030
      %7041 = vmatprep.subr.mxu0 0.0
      %7042 = vmatpush1.msra.mxu0 0.0
      %7043 = vmatprep.subr.mxu0 0.0
      %7044 = vmatpush1.msra.mxu0 0.0
      %7045 = vmatprep.subr.mxu0 0.0
      %7046 = vmatpush1.msra.mxu0 0.0
      %7047 = vmatprep.subr.mxu0 0.0
      %7048 = vmatpush1.msra.mxu0 0.0
      %7049 = vmatprep.subr.mxu0 0.0
      %7050 = vmatpush1.msra.mxu0 0.0
      %7051 = vmatprep.subr.mxu0 0.0
      %7052 = vmatpush1.msra.mxu0 0.0
      %7053 = vmatprep.subr.mxu0 0.0
      %7054 = vmatpush1.msra.mxu0 0.0
      %7055 = vmatprep.subr.mxu0 0.0
      %7056 = vmatpush1.msra.mxu0 0.0
      %7057 = vmatprep.subr.mxu0 0.0
      %7058 = vmatpush1.msra.mxu0 0.0
      %7059 = vmatprep.subr.mxu0 0.0
      %7060 = vmatpush1.msra.mxu0 0.0
      %7061 = vmatprep.subr.mxu0 0.0
      %7062 = vmatpush1.msra.mxu0 0.0
      %7063 = vmatprep.subr.mxu0 0.0
      %7064 = vmatpush1.msra.mxu0 0.0
      %7065 = vmatprep.subr.mxu0 0.0
      %7066 = vmatpush1.msra.mxu0 0.0
      %7067 = vmatprep.subr.mxu0 0.0
      %7068 = vmatpush1.msra.mxu0 0.0
      %7069 = vmatprep.subr.mxu0 0.0
      %7070 = vmatpush1.msra.mxu0 0.0
      %7071 = vmatprep.subr.mxu0 0.0
      %7072 = vmatpush1.msra.mxu0 %v6459
      %7073 = vmatprep.subr.mxu0 0.0
      %7074 = vmatpush2.msra.mxu0 0.0
      %7075 = vmatprep.subr.mxu0 0.0
      %7076 = vmatpush2.msra.mxu0 0.0
      %7077 = vmatprep.subr.mxu0 0.0
      %7078 = vmatpush2.msra.mxu0 0.0
      %7079 = vmatprep.subr.mxu0 0.0
      %7080 = vmatpush2.msra.mxu0 0.0
      %7081 = vmatprep.subr.mxu0 0.0
      %7082 = vmatpush2.msra.mxu0 0.0
      %7083 = vmatprep.subr.mxu0 0.0
      %7084 = vmatpush2.msra.mxu0 0.0
      %7085 = vmatprep.subr.mxu0 0.0
      %7086 = vmatpush2.msra.mxu0 0.0
      %7087 = vmatprep.subr.mxu0 0.0
      %7088 = vmatpush2.msra.mxu0 0.0
      %7089 = vmatprep.subr.mxu0 0.0
      %7090 = vmatpush2.msra.mxu0 0.0
      %7091 = vmatprep.subr.mxu0 0.0
      %7092 = vmatpush2.msra.mxu0 0.0
      %7093 = vmatprep.subr.mxu0 0.0
      %7094 = vmatpush2.msra.mxu0 0.0
      %7095 = vmatprep.subr.mxu0 0.0
      %7096 = vmatpush2.msra.mxu0 0.0
      %7097 = vmatprep.subr.mxu0 0.0
      %7098 = vmatpush2.msra.mxu0 0.0
      %7099 = vmatprep.subr.mxu0 0.0
      %7100 = vmatpush2.msra.mxu0 0.0
      %7101 = vmatprep.subr.mxu0 0.0
      %7102 = vmatpush2.msra.mxu0 0.0
      %7103 = vmatprep.subr.mxu0 0.0
      %7104 = vmatpush2.msra.mxu0 0.0
      %7105 = vmatprep.mubr.f32.mxu0 0.0
      %7106 = vmatmul.mubr.f32.gmra.mxu0 %v6905
      %v7107 = vpop.f32.mrf.mxu0
      %v7108 = vadd.f32 0.0, %v7107
      %v7109 = vpop.f32.mrf.mxu0
      %7110 = vmatprep.mubr.f32.mxu0 0.0
      %7111 = vmatmul.mubr.f32.gmra.mxu0 %v6908
      %v7112 = vpop.f32.mrf.mxu0
      %v7113 = vadd.f32 0.0, %v7112
      %v7114 = vpop.f32.mrf.mxu0
      %7115 = vmatprep.mubr.f32.mxu0 0.0
      %7116 = vmatmul.mubr.f32.gmra.mxu0 %v6911
      %v7117 = vpop.f32.mrf.mxu0
      %v7118 = vadd.f32 0.0, %v7117
      %v7119 = vpop.f32.mrf.mxu0
      %7120 = vmatprep.mubr.f32.mxu0 0.0
      %7121 = vmatmul.mubr.f32.gmra.mxu0 %v6914
      %v7122 = vpop.f32.mrf.mxu0
      %v7123 = vadd.f32 0.0, %v7122
      %v7124 = vpop.f32.mrf.mxu0
      %7125 = vmatprep.mubr.f32.mxu0 0.0
      %7126 = vmatmul.mubr.f32.gmra.mxu0 %v6917
      %v7127 = vpop.f32.mrf.mxu0
      %v7128 = vadd.f32 0.0, %v7127
      %v7129 = vpop.f32.mrf.mxu0
      %7130 = vmatprep.mubr.f32.mxu0 0.0
      %7131 = vmatmul.mubr.f32.gmra.mxu0 %v6920
      %v7132 = vpop.f32.mrf.mxu0
      %v7133 = vadd.f32 0.0, %v7132
      %v7134 = vpop.f32.mrf.mxu0
      %7135 = vmatprep.mubr.f32.mxu0 0.0
      %7136 = vmatmul.mubr.f32.gmra.mxu0 %v6923
      %v7137 = vpop.f32.mrf.mxu0
      %v7138 = vadd.f32 0.0, %v7137
      %v7139 = vpop.f32.mrf.mxu0
      %7140 = vmatprep.mubr.f32.mxu0 0.0
      %7141 = vmatmul.mubr.f32.gmra.mxu0 %v6926
      %v7142 = vpop.f32.mrf.mxu0
      %v7143 = vadd.f32 0.0, %v7142
      %v7144 = vpop.f32.mrf.mxu0
      %7145 = vdwg.mxu0
      %v7146 = vmul.f32 %v7033, %v7108
      %v7147 = vmul.f32 %v7034, %v7113
      %v7148 = vmul.f32 %v7035, %v7118
      %v7149 = vmul.f32 %v7036, %v7123
      %v7150 = vmul.f32 %v7037, %v7128
      %v7151 = vmul.f32 %v7038, %v7133
      %v7152 = vmul.f32 %v7039, %v7138
      %v7153 = vmul.f32 %v7040, %v7143
      %vm7154 = vcmp.ge.f32.partialorder %v7146, 0.0
      %vm7155 = vcmp.ge.f32.partialorder %v7147, 0.0
      %vm7156 = vcmp.ge.f32.partialorder %v7148, 0.0
      %vm7157 = vcmp.ge.f32.partialorder %v7149, 0.0
      %vm7158 = vcmp.ge.f32.partialorder %v7150, 0.0
      %vm7159 = vcmp.ge.f32.partialorder %v7151, 0.0
      %vm7160 = vcmp.ge.f32.partialorder %v7152, 0.0
      %vm7161 = vcmp.ge.f32.partialorder %v7153, 0.0
      %v7162 = vmul.f32 %v7146, 0.01
      %v7163 = vmul.f32 %v7147, 0.01
      %v7164 = vmul.f32 %v7148, 0.01
      %v7165 = vmul.f32 %v7149, 0.01
      %v7166 = vmul.f32 %v7150, 0.01
      %v7167 = vmul.f32 %v7151, 0.01
      %v7168 = vmul.f32 %v7152, 0.01
      %v7169 = vmul.f32 %v7153, 0.01
      %v7170 = vsel %vm7154, %v7146, %v7162
      %v7171 = vsel %vm7155, %v7147, %v7163
      %v7172 = vsel %vm7156, %v7148, %v7164
      %v7173 = vsel %vm7157, %v7149, %v7165
      %v7174 = vsel %vm7158, %v7150, %v7166
      %v7175 = vsel %vm7159, %v7151, %v7167
      %v7176 = vsel %vm7160, %v7152, %v7168
      %v7177 = vsel %vm7161, %v7153, %v7169
      %7178 = vst [vmem:[%s548 + $0x80] sm:$0xff] %v7170
      %7179 = vst [vmem:[%s548 + $0x88] sm:$0xff] %v7171
      %7180 = vst [vmem:[%s548 + $0x90] sm:$0xff] %v7172
      %7181 = vst [vmem:[%s548 + $0x98] sm:$0xff] %v7173
      %7182 = vst [vmem:[%s548 + $0xa0] sm:$0xff] %v7174
      %7183 = vst [vmem:[%s548 + $0xa8] sm:$0xff] %v7175
      %7184 = vst [vmem:[%s548 + $0xb0] sm:$0xff] %v7176
      %7185 = vst [vmem:[%s548 + $0xb8] sm:$0xff] %v7177
      %p7186 = scmp.lt.s32.totalorder %s28, 1
      %s7187 = scalar_select %p7186, %s28, 1
      %s7188 = smul.addr %s7187, 24
      %s7189 = smul.addr %s7188, 8
      %s7190 = scalar_lea.vmem %s17, %s7189
      // Predicated region
      $region89: #{patch_block_forward.1} parent=87 // pred_check
        %p7191 = pneg %p408
      $region90: #{patch_block_forward.1} parent=87 // pred_check_branch
        %7193 = sbr.rel (%p7191) target = $region92
      $region91: #{patch_block_forward.1} parent=87 // pred_region
        _
      $region92: #{patch_block_forward.1} parent=87 // pred_fallthru
        _
    $region88: #{patch_block_forward.1} parent=5 // pred_fallthru
      _
    %p7194 = scmp.le.s32.totalorder 2, %s23
    // Predicated region
    $region93: #{patch_block_forward.1} parent=5 // pred_check
      %p7195 = pneg %p7194
    $region94: #{patch_block_forward.1} parent=5 // pred_check_branch
      %7197 = sbr.rel (%p7195) target = $region96
    $region95: #{patch_block_forward.1} parent=5 // pred_region
      %s7198 = ssub.s32 %s23, 2
      // Predicated region
      $region97: #{patch_block_forward.1} parent=95 // pred_check
        %p7199 = pneg %p414
      $region98: #{patch_block_forward.1} parent=95 // pred_check_branch
        %7201 = sbr.rel (%p7199) target = $region100
      $region99: #{patch_block_forward.1} parent=95 // pred_region
        %p7202 = scmp.lt.s32.totalorder %s29, 1
        %s7203 = scalar_select %p7202, %s29, 1
        %s7204 = smul.addr %s7203, 24
        %s7205 = smul.addr %s7204, 8
        %s7206 = scalar_lea.vmem %s17, %s7205
      $region100: #{patch_block_forward.1} parent=95 // pred_fallthru
        _
    $region96: #{patch_block_forward.1} parent=5 // pred_fallthru
      _
  $region6: #{patch_block_forward.1} parent=0 // loop_footer
    %s27 = sadd.s32 1, %s23
  $region7: #{patch_block_forward.1} parent=0 // loop_footer_branch
    %22 = sbr.rel target = $region3
  $region8: #{patch_block_forward.1} parent=0 // loop_exit
    _

</llo_original>
